<compile_context>
chip_gen: v7x
topology: tpu7x:2x2x1
jax: 0.10.0
libtpu: 0.0.40
codegen_flags: <defaults>
</compile_context>

<pallas_src>
import math
import functools

import jax
import jax.numpy as jnp
from jax import lax
from jax.experimental import pallas as pl
from jax.experimental.pallas import tpu as pltpu

B = 4                 # batch of independent sequences
SEQ_PER_BLOCK = 2     # sequences per grid step -> M = 256 rows per MXU problem
S = 128               # sequence length
D = 128               # d_model (lane-dense last dim)
HEADS = 4
DK = D // HEADS
FF = 1024             # feed-forward hidden (module default)
EPS = 1e-6
SLAB_W = max(3 * D, FF)   # width of the packed bias / LayerNorm slab

# bf16 operands on the MXU (f32 accumulation); elementwise math stays f32.
MATMUL_DTYPE = jnp.bfloat16


def _mm(a, b):
    """MXU matmul: bf16 operands, f32 accumulation."""
    return jnp.dot(a.astype(MATMUL_DTYPE), b.astype(MATMUL_DTYPE),
                   preferred_element_type=jnp.float32)


def _mm_nt(a, b):
    """a (M,K) x b (N,K) contracting the last dims -> (M,N); no materialized b.T."""
    return lax.dot_general(a.astype(MATMUL_DTYPE), b.astype(MATMUL_DTYPE),
                           (((1,), (1,)), ((), ())),
                           preferred_element_type=jnp.float32)


def _layer_norm(y, gamma, beta, eps=EPS):
    # Matches the PyTorch module: mean / *unbiased* std over last dim,
    # normalize by (std + eps).  Kept in exact f32.
    mean = jnp.mean(y, axis=-1, keepdims=True)
    diff = y - mean
    var = jnp.sum(diff * diff, axis=-1, keepdims=True) * (1.0 / (y.shape[-1] - 1))
    inv = pl.reciprocal(jnp.sqrt(var) + eps, approx=False)
    return gamma * (diff * inv) + beta


def encoder_block_kernel(x_ref, wqkv_ref, wo_ref, w1_ref, w2_ref, pk_ref,
                         o_ref, concat_ref, *, heads):
    nb, s_len, d_model = x_ref.shape            # (SEQ_PER_BLOCK, S, D)
    m = nb * s_len
    ff = w1_ref.shape[-1]
    dk = d_model // heads

    x = x_ref[...].reshape(m, d_model)          # (M, D) f32; layout-preserving merge

    # Packed bias / LayerNorm params: one (8, SLAB_W) slab instead of ten tiny
    # padded inputs.  Each (1, X) row is broadcast exactly once at its use site.
    pk = pk_ref[...]
    bqkv = pk[0:1, :3 * d_model]                # 1/sqrt(dk) already folded into bq part
    b1 = pk[1:2, :ff]
    bo = pk[2:3, :d_model]
    b2 = pk[3:4, :d_model]
    g1 = pk[4:5, :d_model]
    be1 = pk[5:6, :d_model]
    g2 = pk[6:7, :d_model]
    be2 = pk[7:8, :d_model]

    # --- Fused QKV projection: (M, D) @ (D, 3D), M=256 fills the 256-wide MXU.
    qkv = _mm(x, wqkv_ref[...]) + bqkv          # (M, 3D) f32

    # --- Multi-head self-attention (per sequence; attention never crosses
    #     sequences).  Head outputs go straight into the bf16 concat scratch at
    #     their lane offset, so W_o is one full K=128 matmul afterwards.
    for b in range(nb):
        r0, r1 = b * s_len, (b + 1) * s_len
        qb = qkv[r0:r1, :d_model].astype(MATMUL_DTYPE)            # (S, D)
        kb = qkv[r0:r1, d_model:2 * d_model].astype(MATMUL_DTYPE)
        vb = qkv[r0:r1, 2 * d_model:].astype(MATMUL_DTYPE)
        for h in range(heads):                                    # static unroll
            c0, c1 = h * dk, (h + 1) * dk
            qh = qb[:, c0:c1]                                     # (S, dk)
            kh = kb[:, c0:c1]
            vh = vb[:, c0:c1]
            # QK^T without materializing kh.T (scale folded into W_q/b_q).
            s = _mm_nt(qh, kh)                                    # (S, S) f32
            s = s - jnp.max(s, axis=-1, keepdims=True)
            p = jnp.exp(s)
            inv_den = pl.reciprocal(jnp.sum(p, axis=-1, keepdims=True),
                                    approx=True)                  # EUP, off the VALU
            # Normalize AFTER the PV matmul: scale (S, dk) instead of (S, S).
            oh = _mm(p, vh) * inv_den                             # (S, dk) f32
            concat_ref[r0:r1, c0:c1] = oh.astype(concat_ref.dtype)

    # One (M, D) @ (D, D) output projection for all heads / sequences.
    attn = _mm(concat_ref[...], wo_ref[...]) + bo                 # (M, D) f32

    # --- residual + LayerNorm 1 ---
    y = _layer_norm(x + attn, g1, be1)

    # --- Position-wise FFN (dense1 -> relu -> dense2), M=256 tiles ---
    hdn = jnp.maximum(_mm(y, w1_ref[...]) + b1, 0.0)              # (M, FF)
    ffo = _mm(hdn, w2_ref[...]) + b2                              # (M, D)

    # --- residual + LayerNorm 2 ---
    out = _layer_norm(y + ffo, g2, be2)
    o_ref[...] = out.reshape(nb, s_len, d_model).astype(o_ref.dtype)


def _pack_params(p):
    """Fuse QKV weights (1/sqrt(dk) folded into the Q columns), pre-cast all
    weight matrices to bf16, and pack every small bias / LayerNorm vector into
    one (8, SLAB_W) f32 slab."""
    inv = 1.0 / math.sqrt(DK)
    wqkv = jnp.concatenate([p["wq"] * inv, p["wk"], p["wv"]],
                           axis=1).astype(MATMUL_DTYPE)           # (D, 3D) bf16
    slab = jnp.zeros((8, SLAB_W), jnp.float32)
    slab = slab.at[0, :3 * D].set(jnp.concatenate([p["bq"] * inv, p["bk"], p["bv"]]))
    slab = slab.at[1, :FF].set(p["b1"])
    slab = slab.at[2, :D].set(p["bo"])
    slab = slab.at[3, :D].set(p["b2"])
    slab = slab.at[4, :D].set(p["g1"])
    slab = slab.at[5, :D].set(p["be1"])
    slab = slab.at[6, :D].set(p["g2"])
    slab = slab.at[7, :D].set(p["be2"])
    return (wqkv,
            p["wo"].astype(MATMUL_DTYPE),
            p["w1"].astype(MATMUL_DTYPE),
            p["w2"].astype(MATMUL_DTYPE),
            slab)


def encoder_block(x, params):
    """x: (B, S, D) float32 — each batch element is one independent sequence."""
    b, s_len, d_model = x.shape
    assert s_len == S and d_model == D and b % SEQ_PER_BLOCK == 0
    wqkv, wo, w1, w2, slab = _pack_params(params)

    return pl.pallas_call(
        functools.partial(encoder_block_kernel, heads=HEADS),
        out_shape=jax.ShapeDtypeStruct((b, S, D), x.dtype),
        grid=(b // SEQ_PER_BLOCK,),
        in_specs=[
            pl.BlockSpec((SEQ_PER_BLOCK, S, D), lambda i: (i, 0, 0)),  # x block
            pl.BlockSpec((D, 3 * D), lambda i: (0, 0)),                # fused Wqkv (resident)
            pl.BlockSpec((D, D), lambda i: (0, 0)),                    # Wo
            pl.BlockSpec((D, FF), lambda i: (0, 0)),                   # W1
            pl.BlockSpec((FF, D), lambda i: (0, 0)),                   # W2
            pl.BlockSpec((8, SLAB_W), lambda i: (0, 0)),               # bias/LN slab
        ],
        out_specs=pl.BlockSpec((SEQ_PER_BLOCK, S, D), lambda i: (i, 0, 0)),
        scratch_shapes=[pltpu.VMEM((SEQ_PER_BLOCK * S, D), MATMUL_DTYPE)],  # head-concat
        compiler_params=pltpu.CompilerParams(
            dimension_semantics=("parallel",)),        # 2 grid steps -> both v7x TCs
    )(x, wqkv, wo, w1, w2, slab)


def _reference(x, p):
    """Pure-JAX f32 reference of the PyTorch EncoderBlock forward (eval mode),
    applied independently per batch element."""
    def ln(y, g, b):
        mean = jnp.mean(y, axis=-1, keepdims=True)
        var = jnp.sum((y - mean) ** 2, axis=-1, keepdims=True) / (y.shape[-1] - 1)
        return g * ((y - mean) / (jnp.sqrt(var) + EPS)) + b

    def one(xs):
        q = xs @ p["wq"] + p["bq"]
        k = xs @ p["wk"] + p["bk"]
        v = xs @ p["wv"] + p["bv"]
        qh = q.reshape(S, HEADS, DK).transpose(1, 0, 2)
        kh = k.reshape(S, HEADS, DK).transpose(1, 0, 2)
        vh = v.reshape(S, HEADS, DK).transpose(1, 0, 2)
        scores = jnp.einsum("hqd,hkd->hqk", qh, kh) / math.sqrt(DK)
        scores = jax.nn.softmax(scores, axis=-1)
        out = jnp.einsum("hqk,hkd->hqd", scores, vh)
        concat = out.transpose(1, 0, 2).reshape(S, D)
        attn = concat @ p["wo"] + p["bo"]
        y = ln(xs + attn, p["g1"], p["be1"])
        ff = jnp.maximum(y @ p["w1"] + p["b1"], 0.0) @ p["w2"] + p["b2"]
        return ln(y + ff, p["g2"], p["be2"])

    return jax.vmap(one)(x)


def _init_params(key):
    ks = jax.random.split(key, 8)
    scale = 0.1
    return {
        "wq": scale * jax.random.normal(ks[0], (D, D), jnp.float32),
        "wk": scale * jax.random.normal(ks[1], (D, D), jnp.float32),
        "wv": scale * jax.random.normal(ks[2], (D, D), jnp.float32),
        "wo": scale * jax.random.normal(ks[3], (D, D), jnp.float32),
        "w1": scale * jax.random.normal(ks[4], (D, FF), jnp.float32),
        "w2": scale * jax.random.normal(ks[5], (FF, D), jnp.float32),
        "bq": scale * jax.random.normal(ks[6], (D,), jnp.float32),
        "bk": jnp.zeros((D,), jnp.float32),
        "bv": jnp.full((D,), 0.01, jnp.float32),
        "bo": jnp.zeros((D,), jnp.float32),
        "b1": scale * jax.random.normal(ks[7], (FF,), jnp.float32),
        "b2": jnp.zeros((D,), jnp.float32),
        "g1": jnp.ones((D,), jnp.float32),    # LayerNorm a
        "be1": jnp.zeros((D,), jnp.float32),  # LayerNorm b
        "g2": jnp.ones((D,), jnp.float32),
        "be2": jnp.zeros((D,), jnp.float32),
    }


# TODO(synk): nn.Dropout layers are identity in eval mode; training-mode dropout
# (pltpu.prng_*) is intentionally not implemented.

if __name__ == "__main__":
    key = jax.random.PRNGKey(0)
    kx, kp = jax.random.split(key)
    x = jax.random.normal(kx, (B, S, D), jnp.float32)
    params = _init_params(kp)

    out = jax.block_until_ready(encoder_block(x, params))
    ref = _reference(x, params)

    assert out.shape == (B, S, D)
    max_err = jnp.max(jnp.abs(out - ref))
    # Tolerance accommodates bf16 MXU matmul operands (f32 accumulation) and the
    # EUP approximate reciprocal in the softmax denominator, per the perf review
    # ("~1e-2 relative"); all other math is exact f32.
    assert jnp.allclose(out, ref, atol=5e-2, rtol=5e-2), f"max abs err = {max_err}"

    print("KERNEL_OK")
</pallas_src>

<mosaic_0001>
module attributes {stable_mosaic.version = 11 : i64} {
  func.func @encoder_block_kernel(%arg0: i32, %arg1: memref<2x128x128xf32, #tpu.memory_space<vmem>>, %arg2: memref<128x384xbf16, #tpu.memory_space<vmem>>, %arg3: memref<128x128xbf16, #tpu.memory_space<vmem>>, %arg4: memref<128x1024xbf16, #tpu.memory_space<vmem>>, %arg5: memref<1024x128xbf16, #tpu.memory_space<vmem>>, %arg6: memref<8x1024xf32, #tpu.memory_space<vmem>>, %arg7: memref<2x128x128xf32, #tpu.memory_space<vmem>>, %arg8: memref<256x128xbf16, #tpu.memory_space<vmem>>) attributes {dimension_semantics = [#tpu.dimension_semantics<parallel>], iteration_bounds = array<i64: 2>, scalar_prefetch = 0 : i64, scratch_operands = 1 : i64, tpu.core_type = #tpu.core_type<tc>, window_params = [{transform_indices = @transform_0, window_bounds = array<i64: 2, 128, 128>}, {pipeline_mode = #tpu.pipeline_mode<synchronous>, transform_indices = @transform_1, window_bounds = array<i64: 128, 384>}, {pipeline_mode = #tpu.pipeline_mode<synchronous>, transform_indices = @transform_2, window_bounds = array<i64: 128, 128>}, {pipeline_mode = #tpu.pipeline_mode<synchronous>, transform_indices = @transform_3, window_bounds = array<i64: 128, 1024>}, {pipeline_mode = #tpu.pipeline_mode<synchronous>, transform_indices = @transform_4, window_bounds = array<i64: 1024, 128>}, {pipeline_mode = #tpu.pipeline_mode<synchronous>, transform_indices = @transform_5, window_bounds = array<i64: 8, 1024>}, {transform_indices = @transform_6, window_bounds = array<i64: 2, 128, 128>}]} {
    %c0 = arith.constant 0 : index
    %c0_0 = arith.constant 0 : index
    %c0_1 = arith.constant 0 : index
    %0 = vector.load %arg1[%c0, %c0_0, %c0_1] : memref<2x128x128xf32, #tpu.memory_space<vmem>>, vector<2x128x128xf32>
    %1 = vector.shape_cast %0 : vector<2x128x128xf32> to vector<256x128xf32>
    %c0_2 = arith.constant 0 : index
    %c0_3 = arith.constant 0 : index
    %2 = vector.load %arg6[%c0_2, %c0_3] : memref<8x1024xf32, #tpu.memory_space<vmem>>, vector<8x1024xf32>
    %3 = vector.extract_strided_slice %2 {offsets = [0, 0], sizes = [1, 384], strides = [1, 1]} : vector<8x1024xf32> to vector<1x384xf32>
    %4 = vector.extract_strided_slice %2 {offsets = [1, 0], sizes = [1, 1024], strides = [1, 1]} : vector<8x1024xf32> to vector<1x1024xf32>
    %5 = vector.extract_strided_slice %2 {offsets = [2, 0], sizes = [1, 128], strides = [1, 1]} : vector<8x1024xf32> to vector<1x128xf32>
    %6 = vector.extract_strided_slice %2 {offsets = [3, 0], sizes = [1, 128], strides = [1, 1]} : vector<8x1024xf32> to vector<1x128xf32>
    %7 = vector.extract_strided_slice %2 {offsets = [4, 0], sizes = [1, 128], strides = [1, 1]} : vector<8x1024xf32> to vector<1x128xf32>
    %8 = vector.extract_strided_slice %2 {offsets = [5, 0], sizes = [1, 128], strides = [1, 1]} : vector<8x1024xf32> to vector<1x128xf32>
    %9 = vector.extract_strided_slice %2 {offsets = [6, 0], sizes = [1, 128], strides = [1, 1]} : vector<8x1024xf32> to vector<1x128xf32>
    %10 = vector.extract_strided_slice %2 {offsets = [7, 0], sizes = [1, 128], strides = [1, 1]} : vector<8x1024xf32> to vector<1x128xf32>
    %c0_4 = arith.constant 0 : index
    %c0_5 = arith.constant 0 : index
    %11 = vector.load %arg2[%c0_4, %c0_5] : memref<128x384xbf16, #tpu.memory_space<vmem>>, vector<128x384xbf16>
    %12 = arith.truncf %1 : vector<256x128xf32> to vector<256x128xbf16>
    %cst = arith.constant dense<0.000000e+00> : vector<256x384xf32>
    %13 = tpu.matmul %12, %11, %cst {dimension_numbers = #tpu.dot_dimension_numbers<[1], [0], [0], [1], [0, 0, 1, 1], [], []>} : vector<256x128xbf16>, vector<128x384xbf16>, vector<256x384xf32> -> vector<256x384xf32>
    %14 = vector.broadcast %3 : vector<1x384xf32> to vector<256x384xf32>
    %15 = arith.addf %13, %14 : vector<256x384xf32>
    %16 = vector.extract_strided_slice %15 {offsets = [0, 0], sizes = [128, 128], strides = [1, 1]} : vector<256x384xf32> to vector<128x128xf32>
    %17 = arith.truncf %16 : vector<128x128xf32> to vector<128x128xbf16>
    %18 = vector.extract_strided_slice %15 {offsets = [0, 128], sizes = [128, 128], strides = [1, 1]} : vector<256x384xf32> to vector<128x128xf32>
    %19 = arith.truncf %18 : vector<128x128xf32> to vector<128x128xbf16>
    %20 = vector.extract_strided_slice %15 {offsets = [0, 256], sizes = [128, 128], strides = [1, 1]} : vector<256x384xf32> to vector<128x128xf32>
    %21 = arith.truncf %20 : vector<128x128xf32> to vector<128x128xbf16>
    %22 = vector.extract_strided_slice %17 {offsets = [0, 0], sizes = [128, 32], strides = [1, 1]} : vector<128x128xbf16> to vector<128x32xbf16>
    %23 = vector.extract_strided_slice %19 {offsets = [0, 0], sizes = [128, 32], strides = [1, 1]} : vector<128x128xbf16> to vector<128x32xbf16>
    %24 = vector.extract_strided_slice %21 {offsets = [0, 0], sizes = [128, 32], strides = [1, 1]} : vector<128x128xbf16> to vector<128x32xbf16>
    %cst_6 = arith.constant dense<0.000000e+00> : vector<128x128xf32>
    %25 = tpu.matmul %22, %23, %cst_6 {dimension_numbers = #tpu.dot_dimension_numbers<[1], [1], [0], [0], [0, 0, 1, 0], [], []>} : vector<128x32xbf16>, vector<128x32xbf16>, vector<128x128xf32> -> vector<128x128xf32>
    %cst_7 = arith.constant dense<0xFF800000> : vector<128xf32>
    %26 = vector.multi_reduction <maximumf>, %25, %cst_7 [1] : vector<128x128xf32> to vector<128xf32>
    %27 = vector.shape_cast %26 : vector<128xf32> to vector<128x1xf32>
    %28 = vector.broadcast %27 : vector<128x1xf32> to vector<128x128xf32>
    %29 = arith.subf %25, %28 : vector<128x128xf32>
    %30 = math.exp %29 : vector<128x128xf32>
    %cst_8 = arith.constant dense<0.000000e+00> : vector<128xf32>
    %31 = vector.multi_reduction <add>, %30, %cst_8 [1] : vector<128x128xf32> to vector<128xf32>
    %32 = vector.shape_cast %31 : vector<128xf32> to vector<128x1xf32>
    %33 = tpu.reciprocal %32 {approx = true} : vector<128x1xf32> -> vector<128x1xf32>
    %34 = arith.truncf %30 : vector<128x128xf32> to vector<128x128xbf16>
    %cst_9 = arith.constant dense<0.000000e+00> : vector<128x32xf32>
    %35 = tpu.matmul %34, %24, %cst_9 {dimension_numbers = #tpu.dot_dimension_numbers<[1], [0], [0], [1], [0, 0, 1, 1], [], []>} : vector<128x128xbf16>, vector<128x32xbf16>, vector<128x32xf32> -> vector<128x32xf32>
    %36 = vector.broadcast %33 : vector<128x1xf32> to vector<128x32xf32>
    %37 = arith.mulf %35, %36 : vector<128x32xf32>
    %38 = arith.truncf %37 : vector<128x32xf32> to vector<128x32xbf16>
    %c0_10 = arith.constant 0 : index
    %c0_11 = arith.constant 0 : index
    %39 = vector.load %arg8[%c0_10, %c0_11] : memref<256x128xbf16, #tpu.memory_space<vmem>>, vector<128x32xbf16>
    tpu.vector_store %arg8[%c0_10, %c0_11], %38 {strides = array<i32>} : memref<256x128xbf16, #tpu.memory_space<vmem>>, vector<128x32xbf16>,
    %40 = vector.extract_strided_slice %17 {offsets = [0, 32], sizes = [128, 32], strides = [1, 1]} : vector<128x128xbf16> to vector<128x32xbf16>
    %41 = vector.extract_strided_slice %19 {offsets = [0, 32], sizes = [128, 32], strides = [1, 1]} : vector<128x128xbf16> to vector<128x32xbf16>
    %42 = vector.extract_strided_slice %21 {offsets = [0, 32], sizes = [128, 32], strides = [1, 1]} : vector<128x128xbf16> to vector<128x32xbf16>
    %cst_12 = arith.constant dense<0.000000e+00> : vector<128x128xf32>
    %43 = tpu.matmul %40, %41, %cst_12 {dimension_numbers = #tpu.dot_dimension_numbers<[1], [1], [0], [0], [0, 0, 1, 0], [], []>} : vector<128x32xbf16>, vector<128x32xbf16>, vector<128x128xf32> -> vector<128x128xf32>
    %cst_13 = arith.constant dense<0xFF800000> : vector<128xf32>
    %44 = vector.multi_reduction <maximumf>, %43, %cst_13 [1] : vector<128x128xf32> to vector<128xf32>
    %45 = vector.shape_cast %44 : vector<128xf32> to vector<128x1xf32>
    %46 = vector.broadcast %45 : vector<128x1xf32> to vector<128x128xf32>
    %47 = arith.subf %43, %46 : vector<128x128xf32>
    %48 = math.exp %47 : vector<128x128xf32>
    %cst_14 = arith.constant dense<0.000000e+00> : vector<128xf32>
    %49 = vector.multi_reduction <add>, %48, %cst_14 [1] : vector<128x128xf32> to vector<128xf32>
    %50 = vector.shape_cast %49 : vector<128xf32> to vector<128x1xf32>
    %51 = tpu.reciprocal %50 {approx = true} : vector<128x1xf32> -> vector<128x1xf32>
    %52 = arith.truncf %48 : vector<128x128xf32> to vector<128x128xbf16>
    %cst_15 = arith.constant dense<0.000000e+00> : vector<128x32xf32>
    %53 = tpu.matmul %52, %42, %cst_15 {dimension_numbers = #tpu.dot_dimension_numbers<[1], [0], [0], [1], [0, 0, 1, 1], [], []>} : vector<128x128xbf16>, vector<128x32xbf16>, vector<128x32xf32> -> vector<128x32xf32>
    %54 = vector.broadcast %51 : vector<128x1xf32> to vector<128x32xf32>
    %55 = arith.mulf %53, %54 : vector<128x32xf32>
    %56 = arith.truncf %55 : vector<128x32xf32> to vector<128x32xbf16>
    %c0_16 = arith.constant 0 : index
    %c32 = arith.constant 32 : index
    %57 = vector.load %arg8[%c0_16, %c32] : memref<256x128xbf16, #tpu.memory_space<vmem>>, vector<128x32xbf16>
    tpu.vector_store %arg8[%c0_16, %c32], %56 {strides = array<i32>} : memref<256x128xbf16, #tpu.memory_space<vmem>>, vector<128x32xbf16>,
    %58 = vector.extract_strided_slice %17 {offsets = [0, 64], sizes = [128, 32], strides = [1, 1]} : vector<128x128xbf16> to vector<128x32xbf16>
    %59 = vector.extract_strided_slice %19 {offsets = [0, 64], sizes = [128, 32], strides = [1, 1]} : vector<128x128xbf16> to vector<128x32xbf16>
    %60 = vector.extract_strided_slice %21 {offsets = [0, 64], sizes = [128, 32], strides = [1, 1]} : vector<128x128xbf16> to vector<128x32xbf16>
    %cst_17 = arith.constant dense<0.000000e+00> : vector<128x128xf32>
    %61 = tpu.matmul %58, %59, %cst_17 {dimension_numbers = #tpu.dot_dimension_numbers<[1], [1], [0], [0], [0, 0, 1, 0], [], []>} : vector<128x32xbf16>, vector<128x32xbf16>, vector<128x128xf32> -> vector<128x128xf32>
    %cst_18 = arith.constant dense<0xFF800000> : vector<128xf32>
    %62 = vector.multi_reduction <maximumf>, %61, %cst_18 [1] : vector<128x128xf32> to vector<128xf32>
    %63 = vector.shape_cast %62 : vector<128xf32> to vector<128x1xf32>
    %64 = vector.broadcast %63 : vector<128x1xf32> to vector<128x128xf32>
    %65 = arith.subf %61, %64 : vector<128x128xf32>
    %66 = math.exp %65 : vector<128x128xf32>
    %cst_19 = arith.constant dense<0.000000e+00> : vector<128xf32>
    %67 = vector.multi_reduction <add>, %66, %cst_19 [1] : vector<128x128xf32> to vector<128xf32>
    %68 = vector.shape_cast %67 : vector<128xf32> to vector<128x1xf32>
    %69 = tpu.reciprocal %68 {approx = true} : vector<128x1xf32> -> vector<128x1xf32>
    %70 = arith.truncf %66 : vector<128x128xf32> to vector<128x128xbf16>
    %cst_20 = arith.constant dense<0.000000e+00> : vector<128x32xf32>
    %71 = tpu.matmul %70, %60, %cst_20 {dimension_numbers = #tpu.dot_dimension_numbers<[1], [0], [0], [1], [0, 0, 1, 1], [], []>} : vector<128x128xbf16>, vector<128x32xbf16>, vector<128x32xf32> -> vector<128x32xf32>
    %72 = vector.broadcast %69 : vector<128x1xf32> to vector<128x32xf32>
    %73 = arith.mulf %71, %72 : vector<128x32xf32>
    %74 = arith.truncf %73 : vector<128x32xf32> to vector<128x32xbf16>
    %c0_21 = arith.constant 0 : index
    %c64 = arith.constant 64 : index
    %75 = vector.load %arg8[%c0_21, %c64] : memref<256x128xbf16, #tpu.memory_space<vmem>>, vector<128x32xbf16>
    tpu.vector_store %arg8[%c0_21, %c64], %74 {strides = array<i32>} : memref<256x128xbf16, #tpu.memory_space<vmem>>, vector<128x32xbf16>,
    %76 = vector.extract_strided_slice %17 {offsets = [0, 96], sizes = [128, 32], strides = [1, 1]} : vector<128x128xbf16> to vector<128x32xbf16>
    %77 = vector.extract_strided_slice %19 {offsets = [0, 96], sizes = [128, 32], strides = [1, 1]} : vector<128x128xbf16> to vector<128x32xbf16>
    %78 = vector.extract_strided_slice %21 {offsets = [0, 96], sizes = [128, 32], strides = [1, 1]} : vector<128x128xbf16> to vector<128x32xbf16>
    %cst_22 = arith.constant dense<0.000000e+00> : vector<128x128xf32>
    %79 = tpu.matmul %76, %77, %cst_22 {dimension_numbers = #tpu.dot_dimension_numbers<[1], [1], [0], [0], [0, 0, 1, 0], [], []>} : vector<128x32xbf16>, vector<128x32xbf16>, vector<128x128xf32> -> vector<128x128xf32>
    %cst_23 = arith.constant dense<0xFF800000> : vector<128xf32>
    %80 = vector.multi_reduction <maximumf>, %79, %cst_23 [1] : vector<128x128xf32> to vector<128xf32>
    %81 = vector.shape_cast %80 : vector<128xf32> to vector<128x1xf32>
    %82 = vector.broadcast %81 : vector<128x1xf32> to vector<128x128xf32>
    %83 = arith.subf %79, %82 : vector<128x128xf32>
    %84 = math.exp %83 : vector<128x128xf32>
    %cst_24 = arith.constant dense<0.000000e+00> : vector<128xf32>
    %85 = vector.multi_reduction <add>, %84, %cst_24 [1] : vector<128x128xf32> to vector<128xf32>
    %86 = vector.shape_cast %85 : vector<128xf32> to vector<128x1xf32>
    %87 = tpu.reciprocal %86 {approx = true} : vector<128x1xf32> -> vector<128x1xf32>
    %88 = arith.truncf %84 : vector<128x128xf32> to vector<128x128xbf16>
    %cst_25 = arith.constant dense<0.000000e+00> : vector<128x32xf32>
    %89 = tpu.matmul %88, %78, %cst_25 {dimension_numbers = #tpu.dot_dimension_numbers<[1], [0], [0], [1], [0, 0, 1, 1], [], []>} : vector<128x128xbf16>, vector<128x32xbf16>, vector<128x32xf32> -> vector<128x32xf32>
    %90 = vector.broadcast %87 : vector<128x1xf32> to vector<128x32xf32>
    %91 = arith.mulf %89, %90 : vector<128x32xf32>
    %92 = arith.truncf %91 : vector<128x32xf32> to vector<128x32xbf16>
    %c0_26 = arith.constant 0 : index
    %c96 = arith.constant 96 : index
    %93 = vector.load %arg8[%c0_26, %c96] : memref<256x128xbf16, #tpu.memory_space<vmem>>, vector<128x32xbf16>
    tpu.vector_store %arg8[%c0_26, %c96], %92 {strides = array<i32>} : memref<256x128xbf16, #tpu.memory_space<vmem>>, vector<128x32xbf16>,
    %94 = vector.extract_strided_slice %15 {offsets = [128, 0], sizes = [128, 128], strides = [1, 1]} : vector<256x384xf32> to vector<128x128xf32>
    %95 = arith.truncf %94 : vector<128x128xf32> to vector<128x128xbf16>
    %96 = vector.extract_strided_slice %15 {offsets = [128, 128], sizes = [128, 128], strides = [1, 1]} : vector<256x384xf32> to vector<128x128xf32>
    %97 = arith.truncf %96 : vector<128x128xf32> to vector<128x128xbf16>
    %98 = vector.extract_strided_slice %15 {offsets = [128, 256], sizes = [128, 128], strides = [1, 1]} : vector<256x384xf32> to vector<128x128xf32>
    %99 = arith.truncf %98 : vector<128x128xf32> to vector<128x128xbf16>
    %100 = vector.extract_strided_slice %95 {offsets = [0, 0], sizes = [128, 32], strides = [1, 1]} : vector<128x128xbf16> to vector<128x32xbf16>
    %101 = vector.extract_strided_slice %97 {offsets = [0, 0], sizes = [128, 32], strides = [1, 1]} : vector<128x128xbf16> to vector<128x32xbf16>
    %102 = vector.extract_strided_slice %99 {offsets = [0, 0], sizes = [128, 32], strides = [1, 1]} : vector<128x128xbf16> to vector<128x32xbf16>
    %cst_27 = arith.constant dense<0.000000e+00> : vector<128x128xf32>
    %103 = tpu.matmul %100, %101, %cst_27 {dimension_numbers = #tpu.dot_dimension_numbers<[1], [1], [0], [0], [0, 0, 1, 0], [], []>} : vector<128x32xbf16>, vector<128x32xbf16>, vector<128x128xf32> -> vector<128x128xf32>
    %cst_28 = arith.constant dense<0xFF800000> : vector<128xf32>
    %104 = vector.multi_reduction <maximumf>, %103, %cst_28 [1] : vector<128x128xf32> to vector<128xf32>
    %105 = vector.shape_cast %104 : vector<128xf32> to vector<128x1xf32>
    %106 = vector.broadcast %105 : vector<128x1xf32> to vector<128x128xf32>
    %107 = arith.subf %103, %106 : vector<128x128xf32>
    %108 = math.exp %107 : vector<128x128xf32>
    %cst_29 = arith.constant dense<0.000000e+00> : vector<128xf32>
    %109 = vector.multi_reduction <add>, %108, %cst_29 [1] : vector<128x128xf32> to vector<128xf32>
    %110 = vector.shape_cast %109 : vector<128xf32> to vector<128x1xf32>
    %111 = tpu.reciprocal %110 {approx = true} : vector<128x1xf32> -> vector<128x1xf32>
    %112 = arith.truncf %108 : vector<128x128xf32> to vector<128x128xbf16>
    %cst_30 = arith.constant dense<0.000000e+00> : vector<128x32xf32>
    %113 = tpu.matmul %112, %102, %cst_30 {dimension_numbers = #tpu.dot_dimension_numbers<[1], [0], [0], [1], [0, 0, 1, 1], [], []>} : vector<128x128xbf16>, vector<128x32xbf16>, vector<128x32xf32> -> vector<128x32xf32>
    %114 = vector.broadcast %111 : vector<128x1xf32> to vector<128x32xf32>
    %115 = arith.mulf %113, %114 : vector<128x32xf32>
    %116 = arith.truncf %115 : vector<128x32xf32> to vector<128x32xbf16>
    %c128 = arith.constant 128 : index
    %c0_31 = arith.constant 0 : index
    %117 = vector.load %arg8[%c128, %c0_31] : memref<256x128xbf16, #tpu.memory_space<vmem>>, vector<128x32xbf16>
    tpu.vector_store %arg8[%c128, %c0_31], %116 {strides = array<i32>} : memref<256x128xbf16, #tpu.memory_space<vmem>>, vector<128x32xbf16>,
    %118 = vector.extract_strided_slice %95 {offsets = [0, 32], sizes = [128, 32], strides = [1, 1]} : vector<128x128xbf16> to vector<128x32xbf16>
    %119 = vector.extract_strided_slice %97 {offsets = [0, 32], sizes = [128, 32], strides = [1, 1]} : vector<128x128xbf16> to vector<128x32xbf16>
    %120 = vector.extract_strided_slice %99 {offsets = [0, 32], sizes = [128, 32], strides = [1, 1]} : vector<128x128xbf16> to vector<128x32xbf16>
    %cst_32 = arith.constant dense<0.000000e+00> : vector<128x128xf32>
    %121 = tpu.matmul %118, %119, %cst_32 {dimension_numbers = #tpu.dot_dimension_numbers<[1], [1], [0], [0], [0, 0, 1, 0], [], []>} : vector<128x32xbf16>, vector<128x32xbf16>, vector<128x128xf32> -> vector<128x128xf32>
    %cst_33 = arith.constant dense<0xFF800000> : vector<128xf32>
    %122 = vector.multi_reduction <maximumf>, %121, %cst_33 [1] : vector<128x128xf32> to vector<128xf32>
    %123 = vector.shape_cast %122 : vector<128xf32> to vector<128x1xf32>
    %124 = vector.broadcast %123 : vector<128x1xf32> to vector<128x128xf32>
    %125 = arith.subf %121, %124 : vector<128x128xf32>
    %126 = math.exp %125 : vector<128x128xf32>
    %cst_34 = arith.constant dense<0.000000e+00> : vector<128xf32>
    %127 = vector.multi_reduction <add>, %126, %cst_34 [1] : vector<128x128xf32> to vector<128xf32>
    %128 = vector.shape_cast %127 : vector<128xf32> to vector<128x1xf32>
    %129 = tpu.reciprocal %128 {approx = true} : vector<128x1xf32> -> vector<128x1xf32>
    %130 = arith.truncf %126 : vector<128x128xf32> to vector<128x128xbf16>
    %cst_35 = arith.constant dense<0.000000e+00> : vector<128x32xf32>
    %131 = tpu.matmul %130, %120, %cst_35 {dimension_numbers = #tpu.dot_dimension_numbers<[1], [0], [0], [1], [0, 0, 1, 1], [], []>} : vector<128x128xbf16>, vector<128x32xbf16>, vector<128x32xf32> -> vector<128x32xf32>
    %132 = vector.broadcast %129 : vector<128x1xf32> to vector<128x32xf32>
    %133 = arith.mulf %131, %132 : vector<128x32xf32>
    %134 = arith.truncf %133 : vector<128x32xf32> to vector<128x32xbf16>
    %c128_36 = arith.constant 128 : index
    %c32_37 = arith.constant 32 : index
    %135 = vector.load %arg8[%c128_36, %c32_37] : memref<256x128xbf16, #tpu.memory_space<vmem>>, vector<128x32xbf16>
    tpu.vector_store %arg8[%c128_36, %c32_37], %134 {strides = array<i32>} : memref<256x128xbf16, #tpu.memory_space<vmem>>, vector<128x32xbf16>,
    %136 = vector.extract_strided_slice %95 {offsets = [0, 64], sizes = [128, 32], strides = [1, 1]} : vector<128x128xbf16> to vector<128x32xbf16>
    %137 = vector.extract_strided_slice %97 {offsets = [0, 64], sizes = [128, 32], strides = [1, 1]} : vector<128x128xbf16> to vector<128x32xbf16>
    %138 = vector.extract_strided_slice %99 {offsets = [0, 64], sizes = [128, 32], strides = [1, 1]} : vector<128x128xbf16> to vector<128x32xbf16>
    %cst_38 = arith.constant dense<0.000000e+00> : vector<128x128xf32>
    %139 = tpu.matmul %136, %137, %cst_38 {dimension_numbers = #tpu.dot_dimension_numbers<[1], [1], [0], [0], [0, 0, 1, 0], [], []>} : vector<128x32xbf16>, vector<128x32xbf16>, vector<128x128xf32> -> vector<128x128xf32>
    %cst_39 = arith.constant dense<0xFF800000> : vector<128xf32>
    %140 = vector.multi_reduction <maximumf>, %139, %cst_39 [1] : vector<128x128xf32> to vector<128xf32>
    %141 = vector.shape_cast %140 : vector<128xf32> to vector<128x1xf32>
    %142 = vector.broadcast %141 : vector<128x1xf32> to vector<128x128xf32>
    %143 = arith.subf %139, %142 : vector<128x128xf32>
    %144 = math.exp %143 : vector<128x128xf32>
    %cst_40 = arith.constant dense<0.000000e+00> : vector<128xf32>
    %145 = vector.multi_reduction <add>, %144, %cst_40 [1] : vector<128x128xf32> to vector<128xf32>
    %146 = vector.shape_cast %145 : vector<128xf32> to vector<128x1xf32>
    %147 = tpu.reciprocal %146 {approx = true} : vector<128x1xf32> -> vector<128x1xf32>
    %148 = arith.truncf %144 : vector<128x128xf32> to vector<128x128xbf16>
    %cst_41 = arith.constant dense<0.000000e+00> : vector<128x32xf32>
    %149 = tpu.matmul %148, %138, %cst_41 {dimension_numbers = #tpu.dot_dimension_numbers<[1], [0], [0], [1], [0, 0, 1, 1], [], []>} : vector<128x128xbf16>, vector<128x32xbf16>, vector<128x32xf32> -> vector<128x32xf32>
    %150 = vector.broadcast %147 : vector<128x1xf32> to vector<128x32xf32>
    %151 = arith.mulf %149, %150 : vector<128x32xf32>
    %152 = arith.truncf %151 : vector<128x32xf32> to vector<128x32xbf16>
    %c128_42 = arith.constant 128 : index
    %c64_43 = arith.constant 64 : index
    %153 = vector.load %arg8[%c128_42, %c64_43] : memref<256x128xbf16, #tpu.memory_space<vmem>>, vector<128x32xbf16>
    tpu.vector_store %arg8[%c128_42, %c64_43], %152 {strides = array<i32>} : memref<256x128xbf16, #tpu.memory_space<vmem>>, vector<128x32xbf16>,
    %154 = vector.extract_strided_slice %95 {offsets = [0, 96], sizes = [128, 32], strides = [1, 1]} : vector<128x128xbf16> to vector<128x32xbf16>
    %155 = vector.extract_strided_slice %97 {offsets = [0, 96], sizes = [128, 32], strides = [1, 1]} : vector<128x128xbf16> to vector<128x32xbf16>
    %156 = vector.extract_strided_slice %99 {offsets = [0, 96], sizes = [128, 32], strides = [1, 1]} : vector<128x128xbf16> to vector<128x32xbf16>
    %cst_44 = arith.constant dense<0.000000e+00> : vector<128x128xf32>
    %157 = tpu.matmul %154, %155, %cst_44 {dimension_numbers = #tpu.dot_dimension_numbers<[1], [1], [0], [0], [0, 0, 1, 0], [], []>} : vector<128x32xbf16>, vector<128x32xbf16>, vector<128x128xf32> -> vector<128x128xf32>
    %cst_45 = arith.constant dense<0xFF800000> : vector<128xf32>
    %158 = vector.multi_reduction <maximumf>, %157, %cst_45 [1] : vector<128x128xf32> to vector<128xf32>
    %159 = vector.shape_cast %158 : vector<128xf32> to vector<128x1xf32>
    %160 = vector.broadcast %159 : vector<128x1xf32> to vector<128x128xf32>
    %161 = arith.subf %157, %160 : vector<128x128xf32>
    %162 = math.exp %161 : vector<128x128xf32>
    %cst_46 = arith.constant dense<0.000000e+00> : vector<128xf32>
    %163 = vector.multi_reduction <add>, %162, %cst_46 [1] : vector<128x128xf32> to vector<128xf32>
    %164 = vector.shape_cast %163 : vector<128xf32> to vector<128x1xf32>
    %165 = tpu.reciprocal %164 {approx = true} : vector<128x1xf32> -> vector<128x1xf32>
    %166 = arith.truncf %162 : vector<128x128xf32> to vector<128x128xbf16>
    %cst_47 = arith.constant dense<0.000000e+00> : vector<128x32xf32>
    %167 = tpu.matmul %166, %156, %cst_47 {dimension_numbers = #tpu.dot_dimension_numbers<[1], [0], [0], [1], [0, 0, 1, 1], [], []>} : vector<128x128xbf16>, vector<128x32xbf16>, vector<128x32xf32> -> vector<128x32xf32>
    %168 = vector.broadcast %165 : vector<128x1xf32> to vector<128x32xf32>
    %169 = arith.mulf %167, %168 : vector<128x32xf32>
    %170 = arith.truncf %169 : vector<128x32xf32> to vector<128x32xbf16>
    %c128_48 = arith.constant 128 : index
    %c96_49 = arith.constant 96 : index
    %171 = vector.load %arg8[%c128_48, %c96_49] : memref<256x128xbf16, #tpu.memory_space<vmem>>, vector<128x32xbf16>
    tpu.vector_store %arg8[%c128_48, %c96_49], %170 {strides = array<i32>} : memref<256x128xbf16, #tpu.memory_space<vmem>>, vector<128x32xbf16>,
    %c0_50 = arith.constant 0 : index
    %c0_51 = arith.constant 0 : index
    %172 = vector.load %arg8[%c0_50, %c0_51] : memref<256x128xbf16, #tpu.memory_space<vmem>>, vector<256x128xbf16>
    %c0_52 = arith.constant 0 : index
    %c0_53 = arith.constant 0 : index
    %173 = vector.load %arg3[%c0_52, %c0_53] : memref<128x128xbf16, #tpu.memory_space<vmem>>, vector<128x128xbf16>
    %cst_54 = arith.constant dense<0.000000e+00> : vector<256x128xf32>
    %174 = tpu.matmul %172, %173, %cst_54 {dimension_numbers = #tpu.dot_dimension_numbers<[1], [0], [0], [1], [0, 0, 1, 1], [], []>} : vector<256x128xbf16>, vector<128x128xbf16>, vector<256x128xf32> -> vector<256x128xf32>
    %175 = vector.broadcast %5 : vector<1x128xf32> to vector<256x128xf32>
    %176 = arith.addf %174, %175 : vector<256x128xf32>
    %177 = arith.addf %1, %176 : vector<256x128xf32>
    %cst_55 = arith.constant dense<0.000000e+00> : vector<256xf32>
    %178 = vector.multi_reduction <add>, %177, %cst_55 [1] : vector<256x128xf32> to vector<256xf32>
    %179 = vector.shape_cast %178 : vector<256xf32> to vector<256x1xf32>
    %cst_56 = arith.constant 1.280000e+02 : f32
    %180 = vector.broadcast %cst_56 : f32 to vector<256x1xf32>
    %181 = arith.divf %179, %180 : vector<256x1xf32>
    %182 = vector.broadcast %181 : vector<256x1xf32> to vector<256x128xf32>
    %183 = arith.subf %177, %182 : vector<256x128xf32>
    %184 = arith.mulf %183, %183 : vector<256x128xf32>
    %cst_57 = arith.constant dense<0.000000e+00> : vector<256xf32>
    %185 = vector.multi_reduction <add>, %184, %cst_57 [1] : vector<256x128xf32> to vector<256xf32>
    %186 = vector.shape_cast %185 : vector<256xf32> to vector<256x1xf32>
    %cst_58 = arith.constant 0.00787401571 : f32
    %187 = vector.broadcast %cst_58 : f32 to vector<256x1xf32>
    %188 = arith.mulf %186, %187 : vector<256x1xf32>
    %189 = math.sqrt %188 : vector<256x1xf32>
    %cst_59 = arith.constant 9.99999997E-7 : f32
    %190 = vector.broadcast %cst_59 : f32 to vector<256x1xf32>
    %191 = arith.addf %189, %190 : vector<256x1xf32>
    %192 = tpu.reciprocal %191 : vector<256x1xf32> -> vector<256x1xf32>
    %193 = vector.broadcast %192 : vector<256x1xf32> to vector<256x128xf32>
    %194 = arith.mulf %183, %193 : vector<256x128xf32>
    %195 = vector.broadcast %7 : vector<1x128xf32> to vector<256x128xf32>
    %196 = arith.mulf %195, %194 : vector<256x128xf32>
    %197 = vector.broadcast %8 : vector<1x128xf32> to vector<256x128xf32>
    %198 = arith.addf %196, %197 : vector<256x128xf32>
    %c0_60 = arith.constant 0 : index
    %c0_61 = arith.constant 0 : index
    %199 = vector.load %arg4[%c0_60, %c0_61] : memref<128x1024xbf16, #tpu.memory_space<vmem>>, vector<128x1024xbf16>
    %200 = arith.truncf %198 : vector<256x128xf32> to vector<256x128xbf16>
    %cst_62 = arith.constant dense<0.000000e+00> : vector<256x1024xf32>
    %201 = tpu.matmul %200, %199, %cst_62 {dimension_numbers = #tpu.dot_dimension_numbers<[1], [0], [0], [1], [0, 0, 1, 1], [], []>} : vector<256x128xbf16>, vector<128x1024xbf16>, vector<256x1024xf32> -> vector<256x1024xf32>
    %202 = vector.broadcast %4 : vector<1x1024xf32> to vector<256x1024xf32>
    %203 = arith.addf %201, %202 : vector<256x1024xf32>
    %cst_63 = arith.constant 0.000000e+00 : f32
    %204 = vector.broadcast %cst_63 : f32 to vector<256x1024xf32>
    %205 = arith.maximumf %203, %204 : vector<256x1024xf32>
    %c0_64 = arith.constant 0 : index
    %c0_65 = arith.constant 0 : index
    %206 = vector.load %arg5[%c0_64, %c0_65] : memref<1024x128xbf16, #tpu.memory_space<vmem>>, vector<1024x128xbf16>
    %207 = arith.truncf %205 : vector<256x1024xf32> to vector<256x1024xbf16>
    %cst_66 = arith.constant dense<0.000000e+00> : vector<256x128xf32>
    %208 = tpu.matmul %207, %206, %cst_66 {dimension_numbers = #tpu.dot_dimension_numbers<[1], [0], [0], [1], [0, 0, 1, 1], [], []>} : vector<256x1024xbf16>, vector<1024x128xbf16>, vector<256x128xf32> -> vector<256x128xf32>
    %209 = vector.broadcast %6 : vector<1x128xf32> to vector<256x128xf32>
    %210 = arith.addf %208, %209 : vector<256x128xf32>
    %211 = arith.addf %198, %210 : vector<256x128xf32>
    %cst_67 = arith.constant dense<0.000000e+00> : vector<256xf32>
    %212 = vector.multi_reduction <add>, %211, %cst_67 [1] : vector<256x128xf32> to vector<256xf32>
    %213 = vector.shape_cast %212 : vector<256xf32> to vector<256x1xf32>
    %cst_68 = arith.constant 1.280000e+02 : f32
    %214 = vector.broadcast %cst_68 : f32 to vector<256x1xf32>
    %215 = arith.divf %213, %214 : vector<256x1xf32>
    %216 = vector.broadcast %215 : vector<256x1xf32> to vector<256x128xf32>
    %217 = arith.subf %211, %216 : vector<256x128xf32>
    %218 = arith.mulf %217, %217 : vector<256x128xf32>
    %cst_69 = arith.constant dense<0.000000e+00> : vector<256xf32>
    %219 = vector.multi_reduction <add>, %218, %cst_69 [1] : vector<256x128xf32> to vector<256xf32>
    %220 = vector.shape_cast %219 : vector<256xf32> to vector<256x1xf32>
    %cst_70 = arith.constant 0.00787401571 : f32
    %221 = vector.broadcast %cst_70 : f32 to vector<256x1xf32>
    %222 = arith.mulf %220, %221 : vector<256x1xf32>
    %223 = math.sqrt %222 : vector<256x1xf32>
    %cst_71 = arith.constant 9.99999997E-7 : f32
    %224 = vector.broadcast %cst_71 : f32 to vector<256x1xf32>
    %225 = arith.addf %223, %224 : vector<256x1xf32>
    %226 = tpu.reciprocal %225 : vector<256x1xf32> -> vector<256x1xf32>
    %227 = vector.broadcast %226 : vector<256x1xf32> to vector<256x128xf32>
    %228 = arith.mulf %217, %227 : vector<256x128xf32>
    %229 = vector.broadcast %9 : vector<1x128xf32> to vector<256x128xf32>
    %230 = arith.mulf %229, %228 : vector<256x128xf32>
    %231 = vector.broadcast %10 : vector<1x128xf32> to vector<256x128xf32>
    %232 = arith.addf %230, %231 : vector<256x128xf32>
    %233 = vector.shape_cast %232 : vector<256x128xf32> to vector<2x128x128xf32>
    %c0_72 = arith.constant 0 : index
    %c0_73 = arith.constant 0 : index
    %c0_74 = arith.constant 0 : index
    %234 = vector.load %arg7[%c0_72, %c0_73, %c0_74] : memref<2x128x128xf32, #tpu.memory_space<vmem>>, vector<2x128x128xf32>
    tpu.vector_store %arg7[%c0_72, %c0_73, %c0_74], %233 {strides = array<i32>} : memref<2x128x128xf32, #tpu.memory_space<vmem>>, vector<2x128x128xf32>,
    return
  }
  func.func @transform_0(%arg0: i32) -> (i32, i32, i32) {
    %c0_i32 = arith.constant 0 : i32
    %c0_i32_0 = arith.constant 0 : i32
    %c0_i32_1 = arith.constant 0 : i32
    return %arg0, %c0_i32, %c0_i32_0 : i32, i32, i32
  }
  func.func @transform_1(%arg0: i32) -> (i32, i32) {
    %c0_i32 = arith.constant 0 : i32
    %c0_i32_0 = arith.constant 0 : i32
    %c0_i32_1 = arith.constant 0 : i32
    return %c0_i32, %c0_i32_0 : i32, i32
  }
  func.func @transform_2(%arg0: i32) -> (i32, i32) {
    %c0_i32 = arith.constant 0 : i32
    %c0_i32_0 = arith.constant 0 : i32
    %c0_i32_1 = arith.constant 0 : i32
    return %c0_i32, %c0_i32_0 : i32, i32
  }
  func.func @transform_3(%arg0: i32) -> (i32, i32) {
    %c0_i32 = arith.constant 0 : i32
    %c0_i32_0 = arith.constant 0 : i32
    %c0_i32_1 = arith.constant 0 : i32
    return %c0_i32, %c0_i32_0 : i32, i32
  }
  func.func @transform_4(%arg0: i32) -> (i32, i32) {
    %c0_i32 = arith.constant 0 : i32
    %c0_i32_0 = arith.constant 0 : i32
    %c0_i32_1 = arith.constant 0 : i32
    return %c0_i32, %c0_i32_0 : i32, i32
  }
  func.func @transform_5(%arg0: i32) -> (i32, i32) {
    %c0_i32 = arith.constant 0 : i32
    %c0_i32_0 = arith.constant 0 : i32
    %c0_i32_1 = arith.constant 0 : i32
    return %c0_i32, %c0_i32_0 : i32, i32
  }
  func.func @transform_6(%arg0: i32) -> (i32, i32, i32) {
    %c0_i32 = arith.constant 0 : i32
    %c0_i32_0 = arith.constant 0 : i32
    %c0_i32_1 = arith.constant 0 : i32
    return %arg0, %c0_i32, %c0_i32_0 : i32, i32, i32
  }
}

</mosaic_0001>

<llo_original>
// kernel: tpu_custom_call.1
$region0: #{tpu_custom_call.1}
  #allocation0 [shape = 'u32[]', space=smem, size = 0x4, offset = 0x4, fixed_abs, tag = 'smem constant byte address 0x4 - core index']
  #allocation1 [shape = 'u32[144,128]{1,0:T(1,128)}', space=vmem, size = 0x12000, scoped, tag = 'internal scratch']
  #allocation2 [shape = 'bf16[256,128]{1,0:T(16,128)(2,1)}', space=vmem, size = 0x10000, scoped, tag = 'scratch operand']
  %s0 = inlined_call_operand.hbm [shape: f32[4,128,128], index: 0, kind: input, shape index: {}]
  %s1 = inlined_call_operand.hbm [shape: bf16[128,384], index: 1, kind: input, shape index: {}]
  %s2 = inlined_call_operand.hbm [shape: bf16[128,128], index: 2, kind: input, shape index: {}]
  %s3 = inlined_call_operand.hbm [shape: bf16[128,1024], index: 3, kind: input, shape index: {}]
  %s4 = inlined_call_operand.hbm [shape: bf16[1024,128], index: 4, kind: input, shape index: {}]
  %s5 = inlined_call_operand.hbm [shape: f32[8,1024], index: 5, kind: input, shape index: {}]
  %s6 = inlined_call_operand.hbm [shape: f32[4,128,128], index: 6, kind: output, shape index: {}]
  %s7 = sld [smem:[#allocation0]]
  $region81: #{tpu_custom_call.1} parent=0
    _
  %s9 = ssub.s32 1, %s7
  %s10 = scalar_select 0, %s9, %s7
  $region1: #{tpu_custom_call.1} parent=0
    #allocation3 [shape = 'u8[262144]{0}', space=vmem, size = 0x40000, scoped, tag = 'input window, operand 0']
    #allocation4 [shape = 's32[2]{0}', space=sflag, size = 0x8, scoped, tag = 'scoped memory for tpu_custom_call.1']
    #allocation5 [shape = 's32[2]{0}', space=sflag, size = 0x8, scoped, tag = 'scoped memory for tpu_custom_call.1']
    #allocation6 [shape = 'u8[98304]{0}', space=vmem, size = 0x18000, scoped, tag = 'input window, operand 1, single buffered']
    #allocation7 [shape = 's32[1]{0}', space=sflag, size = 0x4, scoped, tag = 'scoped memory for tpu_custom_call.1']
    #allocation8 [shape = 'u8[32768]{0}', space=vmem, size = 0x8000, scoped, tag = 'input window, operand 2, single buffered']
    #allocation9 [shape = 'u8[262144]{0}', space=vmem, size = 0x40000, scoped, tag = 'input window, operand 3, single buffered']
    #allocation10 [shape = 's32[1]{0}', space=sflag, size = 0x4, scoped, tag = 'scoped memory for tpu_custom_call.1']
    #allocation11 [shape = 'u8[262144]{0}', space=vmem, size = 0x40000, scoped, tag = 'input window, operand 4, single buffered']
    #allocation12 [shape = 'u8[32768]{0}', space=vmem, size = 0x8000, scoped, tag = 'input window, operand 5, single buffered']
    #allocation13 [shape = 's32[1]{0}', space=sflag, size = 0x4, scoped, tag = 'scoped memory for tpu_custom_call.1']
    #allocation14 [shape = 'u8[262144]{0}', space=vmem, size = 0x40000, scoped, tag = 'output window, operand 0']
    %11 = vsyncpa [#allocation4], 0
    %s12 = scalar_lea.sflag [#allocation4], 1
    %13 = vsyncpa %s12, 0
    %14 = vsyncpa [#allocation7], 0
    %15 = vsyncpa [#allocation10], 0
    %16 = vsyncpa [#allocation13], 0
    %17 = vsyncpa [#allocation5], 0
    %s18 = scalar_lea.sflag [#allocation5], 1
    %19 = vsyncpa %s18, 0
    loop: start=0, step=1, limit=4
    $region2: #{tpu_custom_call.1} parent=1 // loop_pre_header
      _
    $region3: #{tpu_custom_call.1} parent=1 // loop_header
      %s21 = sphi 0, %s25
      %p22 = scmp.ge.s32.totalorder %s21, 4
      %s31 = sphi 0, %s33
      %s34 = sphi 0, %s31
      %s35 = sphi 0, %s34
      %s51 = sphi 0, %s35
      %s55 = sphi 0, %s55
      %s57 = sphi 0, %s55
      %s58 = sphi 0, %s57
      %s72 = sphi 0, %s58
      %s76 = sphi 0, %s76
      %s78 = sphi 0, %s76
      %s79 = sphi 0, %s78
      %s93 = sphi 0, %s79
      %s97 = sphi 0, %s97
      %s99 = sphi 0, %s97
      %s100 = sphi 0, %s99
      %s114 = sphi 0, %s100
      %s118 = sphi 0, %s118
      %s120 = sphi 0, %s118
      %s121 = sphi 0, %s120
      %s135 = sphi 0, %s121
      %s139 = sphi 0, %s139
      %s141 = sphi 0, %s139
      %s142 = sphi 0, %s141
      %s156 = sphi 0, %s142
      %s162 = sphi 0, %s164
      %s165 = sphi 0, %s162
      %s166 = sphi 0, %s165
      %s182 = sphi 0, %s166
    $region4: #{tpu_custom_call.1} parent=1 // loop_header_branch
      %24 = sbr.rel (%p22) target = $region8
    $region5: #{tpu_custom_call.1} parent=1 // loop_body
      %s26 = ssub.s32 %s21, 1
      %s27 = ssub.s32 %s21, 2
      %s28 = sadd.s32 %s21, 1
      %s29 = ssub.s32 %s21, %s28
      %p30 = scmp.eq.s32.totalorder %s29, 0
      %s32 = sadd.s32 %s31, 1
      %s33 = scalar_select %p30, %s31, %s32
      %p36 = pneg %p30
      %p37 = scmp.eq.s32.totalorder %s21, 1
      %p38 = por %p36, %p37
      %p39 = scmp.ne.s32.totalorder %s31, %s34
      %p40 = scmp.eq.s32.totalorder %s21, 0
      %p41 = por %p39, %p40
      %p42 = scmp.ne.s32.totalorder %s31, %s34
      %p43 = scmp.eq.s32.totalorder %s26, 1
      %p44 = por %p42, %p43
      %p45 = scmp.ne.s32.totalorder %s34, %s35
      %p46 = scmp.eq.s32.totalorder %s26, 0
      %p47 = por %p45, %p46
      %p48 = scmp.ne.s32.totalorder %s34, %s35
      %p49 = scmp.eq.s32.totalorder %s27, 1
      %p50 = por %p48, %p49
      %p52 = scmp.ne.s32.totalorder %s35, %s51
      %p53 = scmp.eq.s32.totalorder %s27, 0
      %p54 = por %p52, %p53
      %s56 = sadd.s32 %s55, 1
      %p59 = scmp.eq.s32.totalorder %s21, 1
      %p60 = scmp.ne.s32.totalorder %s55, %s57
      %p61 = scmp.eq.s32.totalorder %s21, 0
      %p62 = por %p60, %p61
      %p63 = scmp.ne.s32.totalorder %s55, %s57
      %p64 = scmp.eq.s32.totalorder %s26, 1
      %p65 = por %p63, %p64
      %p66 = scmp.ne.s32.totalorder %s57, %s58
      %p67 = scmp.eq.s32.totalorder %s26, 0
      %p68 = por %p66, %p67
      %p69 = scmp.ne.s32.totalorder %s57, %s58
      %p70 = scmp.eq.s32.totalorder %s27, 1
      %p71 = por %p69, %p70
      %p73 = scmp.ne.s32.totalorder %s58, %s72
      %p74 = scmp.eq.s32.totalorder %s27, 0
      %p75 = por %p73, %p74
      %s77 = sadd.s32 %s76, 1
      %p80 = scmp.eq.s32.totalorder %s21, 1
      %p81 = scmp.ne.s32.totalorder %s76, %s78
      %p82 = scmp.eq.s32.totalorder %s21, 0
      %p83 = por %p81, %p82
      %p84 = scmp.ne.s32.totalorder %s76, %s78
      %p85 = scmp.eq.s32.totalorder %s26, 1
      %p86 = por %p84, %p85
      %p87 = scmp.ne.s32.totalorder %s78, %s79
      %p88 = scmp.eq.s32.totalorder %s26, 0
      %p89 = por %p87, %p88
      %p90 = scmp.ne.s32.totalorder %s78, %s79
      %p91 = scmp.eq.s32.totalorder %s27, 1
      %p92 = por %p90, %p91
      %p94 = scmp.ne.s32.totalorder %s79, %s93
      %p95 = scmp.eq.s32.totalorder %s27, 0
      %p96 = por %p94, %p95
      %s98 = sadd.s32 %s97, 1
      %p101 = scmp.eq.s32.totalorder %s21, 1
      %p102 = scmp.ne.s32.totalorder %s97, %s99
      %p103 = scmp.eq.s32.totalorder %s21, 0
      %p104 = por %p102, %p103
      %p105 = scmp.ne.s32.totalorder %s97, %s99
      %p106 = scmp.eq.s32.totalorder %s26, 1
      %p107 = por %p105, %p106
      %p108 = scmp.ne.s32.totalorder %s99, %s100
      %p109 = scmp.eq.s32.totalorder %s26, 0
      %p110 = por %p108, %p109
      %p111 = scmp.ne.s32.totalorder %s99, %s100
      %p112 = scmp.eq.s32.totalorder %s27, 1
      %p113 = por %p111, %p112
      %p115 = scmp.ne.s32.totalorder %s100, %s114
      %p116 = scmp.eq.s32.totalorder %s27, 0
      %p117 = por %p115, %p116
      %s119 = sadd.s32 %s118, 1
      %p122 = scmp.eq.s32.totalorder %s21, 1
      %p123 = scmp.ne.s32.totalorder %s118, %s120
      %p124 = scmp.eq.s32.totalorder %s21, 0
      %p125 = por %p123, %p124
      %p126 = scmp.ne.s32.totalorder %s118, %s120
      %p127 = scmp.eq.s32.totalorder %s26, 1
      %p128 = por %p126, %p127
      %p129 = scmp.ne.s32.totalorder %s120, %s121
      %p130 = scmp.eq.s32.totalorder %s26, 0
      %p131 = por %p129, %p130
      %p132 = scmp.ne.s32.totalorder %s120, %s121
      %p133 = scmp.eq.s32.totalorder %s27, 1
      %p134 = por %p132, %p133
      %p136 = scmp.ne.s32.totalorder %s121, %s135
      %p137 = scmp.eq.s32.totalorder %s27, 0
      %p138 = por %p136, %p137
      %s140 = sadd.s32 %s139, 1
      %p143 = scmp.eq.s32.totalorder %s21, 1
      %p144 = scmp.ne.s32.totalorder %s139, %s141
      %p145 = scmp.eq.s32.totalorder %s21, 0
      %p146 = por %p144, %p145
      %p147 = scmp.ne.s32.totalorder %s139, %s141
      %p148 = scmp.eq.s32.totalorder %s26, 1
      %p149 = por %p147, %p148
      %p150 = scmp.ne.s32.totalorder %s141, %s142
      %p151 = scmp.eq.s32.totalorder %s26, 0
      %p152 = por %p150, %p151
      %p153 = scmp.ne.s32.totalorder %s141, %s142
      %p154 = scmp.eq.s32.totalorder %s27, 1
      %p155 = por %p153, %p154
      %p157 = scmp.ne.s32.totalorder %s142, %s156
      %p158 = scmp.eq.s32.totalorder %s27, 0
      %p159 = por %p157, %p158
      %s160 = ssub.s32 %s21, %s28
      %p161 = scmp.eq.s32.totalorder %s160, 0
      %s163 = sadd.s32 %s162, 1
      %s164 = scalar_select %p161, %s162, %s163
      %p167 = pneg %p161
      %p168 = scmp.eq.s32.totalorder %s21, 1
      %p169 = por %p167, %p168
      %p170 = scmp.ne.s32.totalorder %s162, %s165
      %p171 = scmp.eq.s32.totalorder %s21, 0
      %p172 = por %p170, %p171
      %p173 = scmp.ne.s32.totalorder %s162, %s165
      %p174 = scmp.eq.s32.totalorder %s26, 1
      %p175 = por %p173, %p174
      %p176 = scmp.ne.s32.totalorder %s165, %s166
      %p177 = scmp.eq.s32.totalorder %s26, 0
      %p178 = por %p176, %p177
      %p179 = scmp.ne.s32.totalorder %s165, %s166
      %p180 = scmp.eq.s32.totalorder %s27, 1
      %p181 = por %p179, %p180
      %p183 = scmp.ne.s32.totalorder %s166, %s182
      %p184 = scmp.eq.s32.totalorder %s27, 0
      %p185 = por %p183, %p184
      %p186 = scmp.le.s32.totalorder 1, %s21
      %p187 = scmp.lt.s32.totalorder %s21, 3
      %p188 = pnand %p186, %p187
      %p189 = pneg %p188
      // Predicated region
      $region9: #{tpu_custom_call.1} parent=5 // pred_check
        _
      $region10: #{tpu_custom_call.1} parent=5 // pred_check_branch
        %191 = sbr.rel (%p188) target = $region12
      $region11: #{tpu_custom_call.1} parent=5 // pred_region
        %s192 = ssub.s32 %s21, 1
        // Predicated region
        $region13: #{tpu_custom_call.1} parent=11 // pred_check
          %p193 = pneg %p68
        $region14: #{tpu_custom_call.1} parent=11 // pred_check_branch
          %195 = sbr.rel (%p193) target = $region16
        $region15: #{tpu_custom_call.1} parent=11 // pred_region
          %s197 = ssub.s32 3072, 3072
          %198 = vsyncadd [#allocation7], %s197
          %s199 = sshll.u32 [#allocation6], 4
          %s200 = int_to_ptr.vmem [resolvable:$true] %s199
          %205 = dma.hbm_to_vmem [thread:$0]  %s1, 3072, %s200, [#allocation7], 192, 192, 12
        $region16: #{tpu_custom_call.1} parent=11 // pred_fallthru
          _
        // Predicated region
        $region17: #{tpu_custom_call.1} parent=11 // pred_check
          %p206 = pneg %p89
        $region18: #{tpu_custom_call.1} parent=11 // pred_check_branch
          %208 = sbr.rel (%p206) target = $region20
        $region19: #{tpu_custom_call.1} parent=11 // pred_region
          %s210 = ssub.s32 1024, 1024
          %211 = vsyncadd [#allocation7], %s210
          %s212 = sshll.u32 [#allocation8], 4
          %s213 = int_to_ptr.vmem [resolvable:$true] %s212
          %218 = dma.hbm_to_vmem [thread:$0]  %s2, 1024, %s213, [#allocation7], 64, 64, 4
        $region20: #{tpu_custom_call.1} parent=11 // pred_fallthru
          _
        // Predicated region
        $region21: #{tpu_custom_call.1} parent=11 // pred_check
          %p219 = pneg %p110
        $region22: #{tpu_custom_call.1} parent=11 // pred_check_branch
          %221 = sbr.rel (%p219) target = $region24
        $region23: #{tpu_custom_call.1} parent=11 // pred_region
          %s223 = ssub.s32 8192, 8192
          %224 = vsyncadd [#allocation10], %s223
          %s225 = sshll.u32 [#allocation9], 4
          %s226 = int_to_ptr.vmem [resolvable:$true] %s225
          %231 = dma.hbm_to_vmem [thread:$0]  %s3, 8192, %s226, [#allocation10], 512, 512, 32
        $region24: #{tpu_custom_call.1} parent=11 // pred_fallthru
          _
        // Predicated region
        $region25: #{tpu_custom_call.1} parent=11 // pred_check
          %p232 = pneg %p131
        $region26: #{tpu_custom_call.1} parent=11 // pred_check_branch
          %234 = sbr.rel (%p232) target = $region28
        $region27: #{tpu_custom_call.1} parent=11 // pred_region
          %s236 = ssub.s32 8192, 8192
          %237 = vsyncadd [#allocation10], %s236
          %s238 = sshll.u32 [#allocation11], 4
          %s239 = int_to_ptr.vmem [resolvable:$true] %s238
          %244 = dma.hbm_to_vmem [thread:$0]  %s4, 8192, %s239, [#allocation10], 64, 64, 4
        $region28: #{tpu_custom_call.1} parent=11 // pred_fallthru
          _
        // Predicated region
        $region29: #{tpu_custom_call.1} parent=11 // pred_check
          %p245 = pneg %p152
        $region30: #{tpu_custom_call.1} parent=11 // pred_check_branch
          %247 = sbr.rel (%p245) target = $region32
        $region31: #{tpu_custom_call.1} parent=11 // pred_region
          %s249 = ssub.s32 1024, 1024
          %250 = vsyncadd [#allocation13], %s249
          %s252 = sshll.u32 [#allocation12], 4
          %s253 = int_to_ptr.vmem [resolvable:$true] %s252
          %255 = dma.hbm_to_vmem [thread:$0]  %s5, 1024, %s253, [#allocation13]
        $region32: #{tpu_custom_call.1} parent=11 // pred_fallthru
          _
      $region12: #{tpu_custom_call.1} parent=5 // pred_fallthru
        _
      %p256 = scmp.lt.s32.totalorder %s21, 2
      // Predicated region
      $region33: #{tpu_custom_call.1} parent=5 // pred_check
        %p257 = pneg %p256
      $region34: #{tpu_custom_call.1} parent=5 // pred_check_branch
        %259 = sbr.rel (%p257) target = $region36
      $region35: #{tpu_custom_call.1} parent=5 // pred_region
        // Predicated region
        $region37: #{tpu_custom_call.1} parent=35 // pred_check
          %p260 = pneg %p41
        $region38: #{tpu_custom_call.1} parent=35 // pred_check_branch
          %262 = sbr.rel (%p260) target = $region40
        $region39: #{tpu_custom_call.1} parent=35 // pred_region
          %s263 = sand.u32 %s31, 1
          %s264 = scalar_lea.sflag [#allocation4], %s263
          %s265 = sand.u32 %s31, 1
          %s266 = smul.addr %s265, 256
          %s267 = scalar_lea.vmem [#allocation3], %s266
          %s268 = smul.u32 2, %s21
          %s270 = ssub.s32 4096, 4096
          %271 = vsyncadd %s264, %s270
          %s272 = smul.addr %s268, 16
          %s273 = smul.addr %s272, 128
          %s274 = scalar_lea.hbm %s0, %s273
          %s275 = sshll.u32 %s267, 4
          %s276 = int_to_ptr.vmem [resolvable:$true] %s275
          %281 = dma.hbm_to_vmem [thread:$0]  %s274, 4096, %s276, %s264, 128, 128, 8
        $region40: #{tpu_custom_call.1} parent=35 // pred_fallthru
          _
      $region36: #{tpu_custom_call.1} parent=5 // pred_fallthru
        _
      %p282 = scmp.le.s32.totalorder 1, %s21
      %p283 = scmp.lt.s32.totalorder %s21, 3
      %p284 = pnand %p282, %p283
      %p285 = pneg %p284
      // Predicated region
      $region41: #{tpu_custom_call.1} parent=5 // pred_check
        _
      $region42: #{tpu_custom_call.1} parent=5 // pred_check_branch
        %287 = sbr.rel (%p284) target = $region44
      $region43: #{tpu_custom_call.1} parent=5 // pred_region
        %s288 = ssub.s32 %s21, 1
        %s289 = sand.u32 %s34, 1
        %s290 = scalar_lea.sflag [#allocation4], %s289
        %s291 = sand.u32 %s34, 1
        %s292 = smul.addr %s291, 256
        %s293 = scalar_lea.vmem [#allocation3], %s292
        // Predicated region
        $region45: #{tpu_custom_call.1} parent=43 // pred_check
          %p294 = pneg %p47
        $region46: #{tpu_custom_call.1} parent=43 // pred_check_branch
          %296 = sbr.rel (%p294) target = $region48
        $region47: #{tpu_custom_call.1} parent=43 // pred_region
          %297 = dma.done %s290, 4096
        $region48: #{tpu_custom_call.1} parent=43 // pred_fallthru
          _
        // Predicated region
        $region49: #{tpu_custom_call.1} parent=43 // pred_check
          %p298 = pneg %p68
        $region50: #{tpu_custom_call.1} parent=43 // pred_check_branch
          %300 = sbr.rel (%p298) target = $region52
        $region51: #{tpu_custom_call.1} parent=43 // pred_region
          %301 = dma.done [#allocation7], 3072
        $region52: #{tpu_custom_call.1} parent=43 // pred_fallthru
          _
        // Predicated region
        $region53: #{tpu_custom_call.1} parent=43 // pred_check
          %p302 = pneg %p89
        $region54: #{tpu_custom_call.1} parent=43 // pred_check_branch
          %304 = sbr.rel (%p302) target = $region56
        $region55: #{tpu_custom_call.1} parent=43 // pred_region
          %305 = dma.done [#allocation7], 1024
        $region56: #{tpu_custom_call.1} parent=43 // pred_fallthru
          _
        // Predicated region
        $region57: #{tpu_custom_call.1} parent=43 // pred_check
          %p306 = pneg %p110
        $region58: #{tpu_custom_call.1} parent=43 // pred_check_branch
          %308 = sbr.rel (%p306) target = $region60
        $region59: #{tpu_custom_call.1} parent=43 // pred_region
          %309 = dma.done [#allocation10], 8192
        $region60: #{tpu_custom_call.1} parent=43 // pred_fallthru
          _
        // Predicated region
        $region61: #{tpu_custom_call.1} parent=43 // pred_check
          %p310 = pneg %p131
        $region62: #{tpu_custom_call.1} parent=43 // pred_check_branch
          %312 = sbr.rel (%p310) target = $region64
        $region63: #{tpu_custom_call.1} parent=43 // pred_region
          %313 = dma.done [#allocation10], 8192
        $region64: #{tpu_custom_call.1} parent=43 // pred_fallthru
          _
        // Predicated region
        $region65: #{tpu_custom_call.1} parent=43 // pred_check
          %p314 = pneg %p152
        $region66: #{tpu_custom_call.1} parent=43 // pred_check_branch
          %316 = sbr.rel (%p314) target = $region68
        $region67: #{tpu_custom_call.1} parent=43 // pred_region
          %317 = dma.done [#allocation13], 1024
        $region68: #{tpu_custom_call.1} parent=43 // pred_fallthru
          _
        %s318 = sand.u32 %s34, 1
        %s319 = scalar_lea.sflag [#allocation4], %s318
        %s320 = sand.u32 %s34, 1
        %s321 = smul.addr %s320, 256
        %s322 = scalar_lea.vmem [#allocation3], %s321
        %p323 = pneg %p47
        %p324 = pneg %p44
        %p325 = pneg %p68
        %p326 = pneg %p65
        %p327 = pneg %p89
        %p328 = pneg %p86
        %p329 = pneg %p110
        %p330 = pneg %p107
        %p331 = pneg %p131
        %p332 = pneg %p128
        %p333 = pneg %p152
        %p334 = pneg %p149
        %p335 = pneg %p178
        %p336 = pneg %p175
        %s337 = sand.u32 %s165, 1
        %s338 = scalar_lea.sflag [#allocation5], %s337
        %s339 = sand.u32 %s165, 1
        %s340 = smul.addr %s339, 256
        %s341 = scalar_lea.vmem [#allocation14], %s340
        %s342 = smul.u32 2, %s26
        %s343 = smul.u32 2, %s26
        %v345 = vld [vmem:[%s293] sm:$0xff]
        %v346 = vld [vmem:[%s293 + $0x8] sm:$0xff]
        %v347 = vld [vmem:[%s293 + $0x10] sm:$0xff]
        %v348 = vld [vmem:[%s293 + $0x18] sm:$0xff]
        %v349 = vld [vmem:[%s293 + $0x20] sm:$0xff]
        %v350 = vld [vmem:[%s293 + $0x28] sm:$0xff]
        %v351 = vld [vmem:[%s293 + $0x30] sm:$0xff]
        %v352 = vld [vmem:[%s293 + $0x38] sm:$0xff]
        %v353 = vld [vmem:[%s293 + $0x40] sm:$0xff]
        %v354 = vld [vmem:[%s293 + $0x48] sm:$0xff]
        %v355 = vld [vmem:[%s293 + $0x50] sm:$0xff]
        %v356 = vld [vmem:[%s293 + $0x58] sm:$0xff]
        %v357 = vld [vmem:[%s293 + $0x60] sm:$0xff]
        %v358 = vld [vmem:[%s293 + $0x68] sm:$0xff]
        %v359 = vld [vmem:[%s293 + $0x70] sm:$0xff]
        %v360 = vld [vmem:[%s293 + $0x78] sm:$0xff]
        %v361 = vld [vmem:[%s293 + $0x80] sm:$0xff]
        %v362 = vld [vmem:[%s293 + $0x88] sm:$0xff]
        %v363 = vld [vmem:[%s293 + $0x90] sm:$0xff]
        %v364 = vld [vmem:[%s293 + $0x98] sm:$0xff]
        %v365 = vld [vmem:[%s293 + $0xa0] sm:$0xff]
        %v366 = vld [vmem:[%s293 + $0xa8] sm:$0xff]
        %v367 = vld [vmem:[%s293 + $0xb0] sm:$0xff]
        %v368 = vld [vmem:[%s293 + $0xb8] sm:$0xff]
        %v369 = vld [vmem:[%s293 + $0xc0] sm:$0xff]
        %v370 = vld [vmem:[%s293 + $0xc8] sm:$0xff]
        %v371 = vld [vmem:[%s293 + $0xd0] sm:$0xff]
        %v372 = vld [vmem:[%s293 + $0xd8] sm:$0xff]
        %v373 = vld [vmem:[%s293 + $0xe0] sm:$0xff]
        %v374 = vld [vmem:[%s293 + $0xe8] sm:$0xff]
        %v375 = vld [vmem:[%s293 + $0xf0] sm:$0xff]
        %v376 = vld [vmem:[%s293 + $0xf8] sm:$0xff]
        %v377 = vld [vmem:[#allocation12] sm:$0xff]
        %v378 = vld [vmem:[#allocation12 + $0x8] sm:$0xff]
        %v379 = vld [vmem:[#allocation12 + $0x10] sm:$0xff]
        %v380 = vld [vmem:[#allocation12 + $0x18] sm:$0xff]
        %v381 = vld [vmem:[#allocation12 + $0x20] sm:$0xff]
        %v382 = vld [vmem:[#allocation12 + $0x28] sm:$0xff]
        %v383 = vld [vmem:[#allocation12 + $0x30] sm:$0xff]
        %v384 = vld [vmem:[#allocation12 + $0x38] sm:$0xff]
        %v385 = vld [vmem:[#allocation6] sm:$0xff]
        %v386 = vld [vmem:[#allocation6 + $0x8] sm:$0xf]
        %v387 = vld [vmem:[#allocation6 + $0xc] sm:$0xff]
        %v388 = vld [vmem:[#allocation6 + $0x14] sm:$0xf]
        %v389 = vld [vmem:[#allocation6 + $0x18] sm:$0xff]
        %v390 = vld [vmem:[#allocation6 + $0x20] sm:$0xf]
        %v391 = vld [vmem:[#allocation6 + $0x24] sm:$0xff]
        %v392 = vld [vmem:[#allocation6 + $0x2c] sm:$0xf]
        %v393 = vld [vmem:[#allocation6 + $0x30] sm:$0xff]
        %v394 = vld [vmem:[#allocation6 + $0x38] sm:$0xf]
        %v395 = vld [vmem:[#allocation6 + $0x3c] sm:$0xff]
        %v396 = vld [vmem:[#allocation6 + $0x44] sm:$0xf]
        %v397 = vld [vmem:[#allocation6 + $0x48] sm:$0xff]
        %v398 = vld [vmem:[#allocation6 + $0x50] sm:$0xf]
        %v399 = vld [vmem:[#allocation6 + $0x54] sm:$0xff]
        %v400 = vld [vmem:[#allocation6 + $0x5c] sm:$0xf]
        %v401 = vld [vmem:[#allocation6 + $0x60] sm:$0xff]
        %v402 = vld [vmem:[#allocation6 + $0x68] sm:$0xf]
        %v403 = vld [vmem:[#allocation6 + $0x6c] sm:$0xff]
        %v404 = vld [vmem:[#allocation6 + $0x74] sm:$0xf]
        %v405 = vld [vmem:[#allocation6 + $0x78] sm:$0xff]
        %v406 = vld [vmem:[#allocation6 + $0x80] sm:$0xf]
        %v407 = vld [vmem:[#allocation6 + $0x84] sm:$0xff]
        %v408 = vld [vmem:[#allocation6 + $0x8c] sm:$0xf]
        %v409 = vld [vmem:[#allocation6 + $0x90] sm:$0xff]
        %v410 = vld [vmem:[#allocation6 + $0x98] sm:$0xf]
        %v411 = vld [vmem:[#allocation6 + $0x9c] sm:$0xff]
        %v412 = vld [vmem:[#allocation6 + $0xa4] sm:$0xf]
        %v413 = vld [vmem:[#allocation6 + $0xa8] sm:$0xff]
        %v414 = vld [vmem:[#allocation6 + $0xb0] sm:$0xf]
        %v415 = vld [vmem:[#allocation6 + $0xb4] sm:$0xff]
        %v416 = vld [vmem:[#allocation6 + $0xbc] sm:$0xf]
        %v417 = vpack.c.bf16 %v346, %v345
        %v418 = vpack.c.bf16 %v348, %v347
        %v419 = vpack.c.bf16 %v350, %v349
        %v420 = vpack.c.bf16 %v352, %v351
        %v421 = vpack.c.bf16 %v354, %v353
        %v422 = vpack.c.bf16 %v356, %v355
        %v423 = vpack.c.bf16 %v358, %v357
        %v424 = vpack.c.bf16 %v360, %v359
        %v425 = vpack.c.bf16 %v362, %v361
        %v426 = vpack.c.bf16 %v364, %v363
        %v427 = vpack.c.bf16 %v366, %v365
        %v428 = vpack.c.bf16 %v368, %v367
        %v429 = vpack.c.bf16 %v370, %v369
        %v430 = vpack.c.bf16 %v372, %v371
        %v431 = vpack.c.bf16 %v374, %v373
        %v432 = vpack.c.bf16 %v376, %v375
        %v433 = vlaneseq
        %v434 = vshrl.u32 %v433, 7
        %v435 = vsub.s32 0, %v434
        %v436 = vrot.slane %v377, %v435
        %v437 = vlaneseq
        %v438 = vshrl.u32 %v437, 7
        %v439 = vsub.s32 0, %v438
        %v440 = vrot.slane %v378, %v439
        %v441 = vlaneseq
        %v442 = vshrl.u32 %v441, 7
        %v443 = vsub.s32 0, %v442
        %v444 = vrot.slane %v379, %v443
        %v477 = vunpack.c.l.b16 %v385
        %v478 = vunpack.c.h.b16 %v385
        %v479 = vunpack.c.l.b16 %v386
        %v480 = vunpack.c.l.b16 %v387
        %v481 = vunpack.c.h.b16 %v387
        %v482 = vunpack.c.l.b16 %v388
        %v483 = vunpack.c.l.b16 %v389
        %v484 = vunpack.c.h.b16 %v389
        %v485 = vunpack.c.l.b16 %v390
        %v486 = vunpack.c.l.b16 %v391
        %v487 = vunpack.c.h.b16 %v391
        %v488 = vunpack.c.l.b16 %v392
        %v489 = vunpack.c.l.b16 %v393
        %v490 = vunpack.c.h.b16 %v393
        %v491 = vunpack.c.l.b16 %v394
        %v492 = vunpack.c.l.b16 %v395
        %v493 = vunpack.c.h.b16 %v395
        %v494 = vunpack.c.l.b16 %v396
        %v495 = vunpack.c.l.b16 %v397
        %v496 = vunpack.c.h.b16 %v397
        %v497 = vunpack.c.l.b16 %v398
        %v498 = vunpack.c.l.b16 %v399
        %v499 = vunpack.c.h.b16 %v399
        %v500 = vunpack.c.l.b16 %v400
        %v501 = vunpack.c.l.b16 %v401
        %v502 = vunpack.c.h.b16 %v401
        %v503 = vunpack.c.l.b16 %v402
        %v504 = vunpack.c.l.b16 %v403
        %v505 = vunpack.c.h.b16 %v403
        %v506 = vunpack.c.l.b16 %v404
        %v507 = vunpack.c.l.b16 %v405
        %v508 = vunpack.c.h.b16 %v405
        %v509 = vunpack.c.l.b16 %v406
        %v510 = vunpack.c.l.b16 %v407
        %v511 = vunpack.c.h.b16 %v407
        %v512 = vunpack.c.l.b16 %v408
        %v513 = vunpack.c.l.b16 %v409
        %v514 = vunpack.c.h.b16 %v409
        %v515 = vunpack.c.l.b16 %v410
        %v516 = vunpack.c.l.b16 %v411
        %v517 = vunpack.c.h.b16 %v411
        %v518 = vunpack.c.l.b16 %v412
        %v519 = vunpack.c.l.b16 %v413
        %v520 = vunpack.c.h.b16 %v413
        %v521 = vunpack.c.l.b16 %v414
        %v522 = vunpack.c.l.b16 %v415
        %v523 = vunpack.c.h.b16 %v415
        %v524 = vunpack.c.l.b16 %v416
        %v525 = vpack.c.b16 %v480, %v477
        %v526 = vpack.c.b16 %v481, %v478
        %v527 = vpack.c.b16 %v482, %v479
        %v528 = vpack.c.b16 %v486, %v483
        %v529 = vpack.c.b16 %v487, %v484
        %v530 = vpack.c.b16 %v488, %v485
        %v531 = vpack.c.b16 %v492, %v489
        %v532 = vpack.c.b16 %v493, %v490
        %v533 = vpack.c.b16 %v494, %v491
        %v534 = vpack.c.b16 %v498, %v495
        %v535 = vpack.c.b16 %v499, %v496
        %v536 = vpack.c.b16 %v500, %v497
        %v537 = vpack.c.b16 %v504, %v501
        %v538 = vpack.c.b16 %v505, %v502
        %v539 = vpack.c.b16 %v506, %v503
        %v540 = vpack.c.b16 %v510, %v507
        %v541 = vpack.c.b16 %v511, %v508
        %v542 = vpack.c.b16 %v512, %v509
        %v543 = vpack.c.b16 %v516, %v513
        %v544 = vpack.c.b16 %v517, %v514
        %v545 = vpack.c.b16 %v518, %v515
        %v546 = vpack.c.b16 %v522, %v519
        %v547 = vpack.c.b16 %v523, %v520
        %v548 = vpack.c.b16 %v524, %v521
        %573 = vmatprep.subr.bf16.mxu0 %v526
        %574 = vmatpush1.bf16.msra.mxu0 %v525
        %575 = vmatprep.subr.bf16.mxu0 %v529
        %576 = vmatpush1.bf16.msra.mxu0 %v528
        %577 = vmatprep.subr.bf16.mxu0 %v532
        %578 = vmatpush1.bf16.msra.mxu0 %v531
        %579 = vmatprep.subr.bf16.mxu0 %v535
        %580 = vmatpush1.bf16.msra.mxu0 %v534
        %581 = vmatprep.subr.bf16.mxu0 %v538
        %582 = vmatpush1.bf16.msra.mxu0 %v537
        %583 = vmatprep.subr.bf16.mxu0 %v541
        %584 = vmatpush1.bf16.msra.mxu0 %v540
        %585 = vmatprep.subr.bf16.mxu0 %v544
        %586 = vmatpush1.bf16.msra.mxu0 %v543
        %587 = vmatprep.subr.bf16.mxu0 %v547
        %588 = vmatpush1.bf16.msra.mxu0 %v546
        %589 = vmatprep.subr.bf16.mxu0 0
        %590 = vmatpush1.bf16.msra.mxu0 0
        %591 = vmatprep.subr.bf16.mxu0 0
        %592 = vmatpush1.bf16.msra.mxu0 0
        %593 = vmatprep.subr.bf16.mxu0 0
        %594 = vmatpush1.bf16.msra.mxu0 0
        %595 = vmatprep.subr.bf16.mxu0 0
        %596 = vmatpush1.bf16.msra.mxu0 0
        %597 = vmatprep.subr.bf16.mxu0 0
        %598 = vmatpush1.bf16.msra.mxu0 0
        %599 = vmatprep.subr.bf16.mxu0 0
        %600 = vmatpush1.bf16.msra.mxu0 0
        %601 = vmatprep.subr.bf16.mxu0 0
        %602 = vmatpush1.bf16.msra.mxu0 0
        %603 = vmatprep.subr.bf16.mxu0 0
        %604 = vmatpush1.bf16.msra.mxu0 0
        %605 = vmatprep.mubr.bf16.mxu0 0
        %606 = vmatmul.mubr.bf16.gmra.mrb[0].mxu0 %v417
        %v607 = vpop.f32.mrb[0].mxu0
        %v608 = vadd.f32 %v436, %v607
        %v609 = vpop.f32.mrb[0].mxu0
        %v610 = vadd.f32 %v440, %v609
        %v611 = vpop.f32.mrb[0].mxu0
        %v612 = vadd.f32 %v436, %v611
        %v613 = vpop.f32.mrb[0].mxu0
        %v614 = vadd.f32 %v440, %v613
        %615 = vmatprep.mubr.bf16.mxu0 0
        %616 = vmatmul.mubr.bf16.gmra.mrb[0].mxu0 %v418
        %v617 = vpop.f32.mrb[0].mxu0
        %v618 = vadd.f32 %v436, %v617
        %v619 = vpop.f32.mrb[0].mxu0
        %v620 = vadd.f32 %v440, %v619
        %v621 = vpop.f32.mrb[0].mxu0
        %v622 = vadd.f32 %v436, %v621
        %v623 = vpop.f32.mrb[0].mxu0
        %v624 = vadd.f32 %v440, %v623
        %625 = vmatprep.mubr.bf16.mxu0 0
        %626 = vmatmul.mubr.bf16.gmra.mrb[0].mxu0 %v419
        %v627 = vpop.f32.mrb[0].mxu0
        %v628 = vadd.f32 %v436, %v627
        %v629 = vpop.f32.mrb[0].mxu0
        %v630 = vadd.f32 %v440, %v629
        %v631 = vpop.f32.mrb[0].mxu0
        %v632 = vadd.f32 %v436, %v631
        %v633 = vpop.f32.mrb[0].mxu0
        %v634 = vadd.f32 %v440, %v633
        %635 = vmatprep.mubr.bf16.mxu0 0
        %636 = vmatmul.mubr.bf16.gmra.mrb[0].mxu0 %v420
        %v637 = vpop.f32.mrb[0].mxu0
        %v638 = vadd.f32 %v436, %v637
        %v639 = vpop.f32.mrb[0].mxu0
        %v640 = vadd.f32 %v440, %v639
        %v641 = vpop.f32.mrb[0].mxu0
        %v642 = vadd.f32 %v436, %v641
        %v643 = vpop.f32.mrb[0].mxu0
        %v644 = vadd.f32 %v440, %v643
        %645 = vmatprep.mubr.bf16.mxu0 0
        %646 = vmatmul.mubr.bf16.gmra.mrb[0].mxu0 %v421
        %v647 = vpop.f32.mrb[0].mxu0
        %v648 = vadd.f32 %v436, %v647
        %v649 = vpop.f32.mrb[0].mxu0
        %v650 = vadd.f32 %v440, %v649
        %v651 = vpop.f32.mrb[0].mxu0
        %v652 = vadd.f32 %v436, %v651
        %v653 = vpop.f32.mrb[0].mxu0
        %v654 = vadd.f32 %v440, %v653
        %655 = vmatprep.mubr.bf16.mxu0 0
        %656 = vmatmul.mubr.bf16.gmra.mrb[0].mxu0 %v422
        %v657 = vpop.f32.mrb[0].mxu0
        %v658 = vadd.f32 %v436, %v657
        %v659 = vpop.f32.mrb[0].mxu0
        %v660 = vadd.f32 %v440, %v659
        %v661 = vpop.f32.mrb[0].mxu0
        %v662 = vadd.f32 %v436, %v661
        %v663 = vpop.f32.mrb[0].mxu0
        %v664 = vadd.f32 %v440, %v663
        %665 = vmatprep.mubr.bf16.mxu0 0
        %666 = vmatmul.mubr.bf16.gmra.mrb[0].mxu0 %v423
        %v667 = vpop.f32.mrb[0].mxu0
        %v668 = vadd.f32 %v436, %v667
        %v669 = vpop.f32.mrb[0].mxu0
        %v670 = vadd.f32 %v440, %v669
        %v671 = vpop.f32.mrb[0].mxu0
        %v672 = vadd.f32 %v436, %v671
        %v673 = vpop.f32.mrb[0].mxu0
        %v674 = vadd.f32 %v440, %v673
        %675 = vmatprep.mubr.bf16.mxu0 0
        %676 = vmatmul.mubr.bf16.gmra.mrb[0].mxu0 %v424
        %v677 = vpop.f32.mrb[0].mxu0
        %v678 = vadd.f32 %v436, %v677
        %v679 = vpop.f32.mrb[0].mxu0
        %v680 = vadd.f32 %v440, %v679
        %v681 = vpop.f32.mrb[0].mxu0
        %v682 = vadd.f32 %v436, %v681
        %v683 = vpop.f32.mrb[0].mxu0
        %v684 = vadd.f32 %v440, %v683
        %685 = vmatprep.mubr.bf16.mxu0 0
        %686 = vmatmul.mubr.bf16.gmra.mrb[0].mxu0 %v425
        %v687 = vpop.f32.mrb[0].mxu0
        %v688 = vadd.f32 %v436, %v687
        %v689 = vpop.f32.mrb[0].mxu0
        %v690 = vadd.f32 %v440, %v689
        %v691 = vpop.f32.mrb[0].mxu0
        %v692 = vadd.f32 %v436, %v691
        %v693 = vpop.f32.mrb[0].mxu0
        %v694 = vadd.f32 %v440, %v693
        %695 = vmatprep.mubr.bf16.mxu0 0
        %696 = vmatmul.mubr.bf16.gmra.mrb[0].mxu0 %v426
        %v697 = vpop.f32.mrb[0].mxu0
        %v698 = vadd.f32 %v436, %v697
        %v699 = vpop.f32.mrb[0].mxu0
        %v700 = vadd.f32 %v440, %v699
        %v701 = vpop.f32.mrb[0].mxu0
        %v702 = vadd.f32 %v436, %v701
        %v703 = vpop.f32.mrb[0].mxu0
        %v704 = vadd.f32 %v440, %v703
        %705 = vmatprep.mubr.bf16.mxu0 0
        %706 = vmatmul.mubr.bf16.gmra.mrb[0].mxu0 %v427
        %v707 = vpop.f32.mrb[0].mxu0
        %v708 = vadd.f32 %v436, %v707
        %v709 = vpop.f32.mrb[0].mxu0
        %v710 = vadd.f32 %v440, %v709
        %v711 = vpop.f32.mrb[0].mxu0
        %v712 = vadd.f32 %v436, %v711
        %v713 = vpop.f32.mrb[0].mxu0
        %v714 = vadd.f32 %v440, %v713
        %715 = vmatprep.mubr.bf16.mxu0 0
        %716 = vmatmul.mubr.bf16.gmra.mrb[0].mxu0 %v428
        %v717 = vpop.f32.mrb[0].mxu0
        %v718 = vadd.f32 %v436, %v717
        %v719 = vpop.f32.mrb[0].mxu0
        %v720 = vadd.f32 %v440, %v719
        %v721 = vpop.f32.mrb[0].mxu0
        %v722 = vadd.f32 %v436, %v721
        %v723 = vpop.f32.mrb[0].mxu0
        %v724 = vadd.f32 %v440, %v723
        %725 = vmatprep.mubr.bf16.mxu0 0
        %726 = vmatmul.mubr.bf16.gmra.mrb[0].mxu0 %v429
        %v727 = vpop.f32.mrb[0].mxu0
        %v728 = vadd.f32 %v436, %v727
        %v729 = vpop.f32.mrb[0].mxu0
        %v730 = vadd.f32 %v440, %v729
        %v731 = vpop.f32.mrb[0].mxu0
        %v732 = vadd.f32 %v436, %v731
        %v733 = vpop.f32.mrb[0].mxu0
        %v734 = vadd.f32 %v440, %v733
        %735 = vmatprep.mubr.bf16.mxu0 0
        %736 = vmatmul.mubr.bf16.gmra.mrb[0].mxu0 %v430
        %v737 = vpop.f32.mrb[0].mxu0
        %v738 = vadd.f32 %v436, %v737
        %v739 = vpop.f32.mrb[0].mxu0
        %v740 = vadd.f32 %v440, %v739
        %v741 = vpop.f32.mrb[0].mxu0
        %v742 = vadd.f32 %v436, %v741
        %v743 = vpop.f32.mrb[0].mxu0
        %v744 = vadd.f32 %v440, %v743
        %745 = vmatprep.mubr.bf16.mxu0 0
        %746 = vmatmul.mubr.bf16.gmra.mrb[0].mxu0 %v431
        %v747 = vpop.f32.mrb[0].mxu0
        %v748 = vadd.f32 %v436, %v747
        %v749 = vpop.f32.mrb[0].mxu0
        %v750 = vadd.f32 %v440, %v749
        %v751 = vpop.f32.mrb[0].mxu0
        %v752 = vadd.f32 %v436, %v751
        %v753 = vpop.f32.mrb[0].mxu0
        %v754 = vadd.f32 %v440, %v753
        %755 = vmatprep.mubr.bf16.mxu0 0
        %756 = vmatmul.mubr.bf16.gmra.mrb[0].mxu0 %v432
        %v757 = vpop.f32.mrb[0].mxu0
        %v758 = vadd.f32 %v436, %v757
        %v759 = vpop.f32.mrb[0].mxu0
        %v760 = vadd.f32 %v440, %v759
        %v761 = vpop.f32.mrb[0].mxu0
        %v762 = vadd.f32 %v436, %v761
        %v763 = vpop.f32.mrb[0].mxu0
        %v764 = vadd.f32 %v440, %v763
        %765 = vdwg.mxu0
        %766 = vmatprep.subr.bf16.mxu0 0
        %767 = vmatpush1.bf16.msra.mxu0 %v527
        %768 = vmatprep.subr.bf16.mxu0 0
        %769 = vmatpush1.bf16.msra.mxu0 %v530
        %770 = vmatprep.subr.bf16.mxu0 0
        %771 = vmatpush1.bf16.msra.mxu0 %v533
        %772 = vmatprep.subr.bf16.mxu0 0
        %773 = vmatpush1.bf16.msra.mxu0 %v536
        %774 = vmatprep.subr.bf16.mxu0 0
        %775 = vmatpush1.bf16.msra.mxu0 %v539
        %776 = vmatprep.subr.bf16.mxu0 0
        %777 = vmatpush1.bf16.msra.mxu0 %v542
        %778 = vmatprep.subr.bf16.mxu0 0
        %779 = vmatpush1.bf16.msra.mxu0 %v545
        %780 = vmatprep.subr.bf16.mxu0 0
        %781 = vmatpush1.bf16.msra.mxu0 %v548
        %782 = vmatprep.subr.bf16.mxu0 0
        %783 = vmatpush1.bf16.msra.mxu0 0
        %784 = vmatprep.subr.bf16.mxu0 0
        %785 = vmatpush1.bf16.msra.mxu0 0
        %786 = vmatprep.subr.bf16.mxu0 0
        %787 = vmatpush1.bf16.msra.mxu0 0
        %788 = vmatprep.subr.bf16.mxu0 0
        %789 = vmatpush1.bf16.msra.mxu0 0
        %790 = vmatprep.subr.bf16.mxu0 0
        %791 = vmatpush1.bf16.msra.mxu0 0
        %792 = vmatprep.subr.bf16.mxu0 0
        %793 = vmatpush1.bf16.msra.mxu0 0
        %794 = vmatprep.subr.bf16.mxu0 0
        %795 = vmatpush1.bf16.msra.mxu0 0
        %796 = vmatprep.subr.bf16.mxu0 0
        %797 = vmatpush1.bf16.msra.mxu0 0
        %798 = vmatprep.mubr.bf16.mxu0 0
        %799 = vmatmul.mubr.bf16.gmra.mrb[0].mxu0 %v417
        %v800 = vpop.f32.mrb[0].mxu0
        %v801 = vadd.f32 %v444, %v800
        %v802 = vpop.f32.mrb[0].mxu0
        %v803 = vpop.f32.mrb[0].mxu0
        %v804 = vadd.f32 %v444, %v803
        %v805 = vpop.f32.mrb[0].mxu0
        %806 = vmatprep.mubr.bf16.mxu0 0
        %807 = vmatmul.mubr.bf16.gmra.mrb[0].mxu0 %v418
        %v808 = vpop.f32.mrb[0].mxu0
        %v809 = vadd.f32 %v444, %v808
        %v810 = vpop.f32.mrb[0].mxu0
        %v811 = vpop.f32.mrb[0].mxu0
        %v812 = vadd.f32 %v444, %v811
        %v813 = vpop.f32.mrb[0].mxu0
        %814 = vmatprep.mubr.bf16.mxu0 0
        %815 = vmatmul.mubr.bf16.gmra.mrb[0].mxu0 %v419
        %v816 = vpop.f32.mrb[0].mxu0
        %v817 = vadd.f32 %v444, %v816
        %v818 = vpop.f32.mrb[0].mxu0
        %v819 = vpop.f32.mrb[0].mxu0
        %v820 = vadd.f32 %v444, %v819
        %v821 = vpop.f32.mrb[0].mxu0
        %822 = vmatprep.mubr.bf16.mxu0 0
        %823 = vmatmul.mubr.bf16.gmra.mrb[0].mxu0 %v420
        %v824 = vpop.f32.mrb[0].mxu0
        %v825 = vadd.f32 %v444, %v824
        %v826 = vpop.f32.mrb[0].mxu0
        %v827 = vpop.f32.mrb[0].mxu0
        %v828 = vadd.f32 %v444, %v827
        %v829 = vpop.f32.mrb[0].mxu0
        %830 = vmatprep.mubr.bf16.mxu0 0
        %831 = vmatmul.mubr.bf16.gmra.mrb[0].mxu0 %v421
        %v832 = vpop.f32.mrb[0].mxu0
        %v833 = vadd.f32 %v444, %v832
        %v834 = vpop.f32.mrb[0].mxu0
        %v835 = vpop.f32.mrb[0].mxu0
        %v836 = vadd.f32 %v444, %v835
        %v837 = vpop.f32.mrb[0].mxu0
        %838 = vmatprep.mubr.bf16.mxu0 0
        %839 = vmatmul.mubr.bf16.gmra.mrb[0].mxu0 %v422
        %v840 = vpop.f32.mrb[0].mxu0
        %v841 = vadd.f32 %v444, %v840
        %v842 = vpop.f32.mrb[0].mxu0
        %v843 = vpop.f32.mrb[0].mxu0
        %v844 = vadd.f32 %v444, %v843
        %v845 = vpop.f32.mrb[0].mxu0
        %846 = vmatprep.mubr.bf16.mxu0 0
        %847 = vmatmul.mubr.bf16.gmra.mrb[0].mxu0 %v423
        %v848 = vpop.f32.mrb[0].mxu0
        %v849 = vadd.f32 %v444, %v848
        %v850 = vpop.f32.mrb[0].mxu0
        %v851 = vpop.f32.mrb[0].mxu0
        %v852 = vadd.f32 %v444, %v851
        %v853 = vpop.f32.mrb[0].mxu0
        %854 = vmatprep.mubr.bf16.mxu0 0
        %855 = vmatmul.mubr.bf16.gmra.mrb[0].mxu0 %v424
        %v856 = vpop.f32.mrb[0].mxu0
        %v857 = vadd.f32 %v444, %v856
        %v858 = vpop.f32.mrb[0].mxu0
        %v859 = vpop.f32.mrb[0].mxu0
        %v860 = vadd.f32 %v444, %v859
        %v861 = vpop.f32.mrb[0].mxu0
        %862 = vmatprep.mubr.bf16.mxu0 0
        %863 = vmatmul.mubr.bf16.gmra.mrb[0].mxu0 %v425
        %v864 = vpop.f32.mrb[0].mxu0
        %v865 = vadd.f32 %v444, %v864
        %v866 = vpop.f32.mrb[0].mxu0
        %v867 = vpop.f32.mrb[0].mxu0
        %v868 = vadd.f32 %v444, %v867
        %v869 = vpop.f32.mrb[0].mxu0
        %870 = vmatprep.mubr.bf16.mxu0 0
        %871 = vmatmul.mubr.bf16.gmra.mrb[0].mxu0 %v426
        %v872 = vpop.f32.mrb[0].mxu0
        %v873 = vadd.f32 %v444, %v872
        %v874 = vpop.f32.mrb[0].mxu0
        %v875 = vpop.f32.mrb[0].mxu0
        %v876 = vadd.f32 %v444, %v875
        %v877 = vpop.f32.mrb[0].mxu0
        %878 = vmatprep.mubr.bf16.mxu0 0
        %879 = vmatmul.mubr.bf16.gmra.mrb[0].mxu0 %v427
        %v880 = vpop.f32.mrb[0].mxu0
        %v881 = vadd.f32 %v444, %v880
        %v882 = vpop.f32.mrb[0].mxu0
        %v883 = vpop.f32.mrb[0].mxu0
        %v884 = vadd.f32 %v444, %v883
        %v885 = vpop.f32.mrb[0].mxu0
        %886 = vmatprep.mubr.bf16.mxu0 0
        %887 = vmatmul.mubr.bf16.gmra.mrb[0].mxu0 %v428
        %v888 = vpop.f32.mrb[0].mxu0
        %v889 = vadd.f32 %v444, %v888
        %v890 = vpop.f32.mrb[0].mxu0
        %v891 = vpop.f32.mrb[0].mxu0
        %v892 = vadd.f32 %v444, %v891
        %v893 = vpop.f32.mrb[0].mxu0
        %894 = vmatprep.mubr.bf16.mxu0 0
        %895 = vmatmul.mubr.bf16.gmra.mrb[0].mxu0 %v429
        %v896 = vpop.f32.mrb[0].mxu0
        %v897 = vadd.f32 %v444, %v896
        %v898 = vpop.f32.mrb[0].mxu0
        %v899 = vpop.f32.mrb[0].mxu0
        %v900 = vadd.f32 %v444, %v899
        %v901 = vpop.f32.mrb[0].mxu0
        %902 = vmatprep.mubr.bf16.mxu0 0
        %903 = vmatmul.mubr.bf16.gmra.mrb[0].mxu0 %v430
        %v904 = vpop.f32.mrb[0].mxu0
        %v905 = vadd.f32 %v444, %v904
        %v906 = vpop.f32.mrb[0].mxu0
        %v907 = vpop.f32.mrb[0].mxu0
        %v908 = vadd.f32 %v444, %v907
        %v909 = vpop.f32.mrb[0].mxu0
        %910 = vmatprep.mubr.bf16.mxu0 0
        %911 = vmatmul.mubr.bf16.gmra.mrb[0].mxu0 %v431
        %v912 = vpop.f32.mrb[0].mxu0
        %v913 = vadd.f32 %v444, %v912
        %v914 = vpop.f32.mrb[0].mxu0
        %v915 = vpop.f32.mrb[0].mxu0
        %v916 = vadd.f32 %v444, %v915
        %v917 = vpop.f32.mrb[0].mxu0
        %918 = vmatprep.mubr.bf16.mxu0 0
        %919 = vmatmul.mubr.bf16.gmra.mrb[0].mxu0 %v432
        %v920 = vpop.f32.mrb[0].mxu0
        %v921 = vadd.f32 %v444, %v920
        %v922 = vpop.f32.mrb[0].mxu0
        %v923 = vpop.f32.mrb[0].mxu0
        %v924 = vadd.f32 %v444, %v923
        %v925 = vpop.f32.mrb[0].mxu0
        %926 = vdwg.mxu0
        %v927 = vpack.c.bf16 %v612, %v608
        %v928 = vpack.c.bf16 %v622, %v618
        %v929 = vpack.c.bf16 %v632, %v628
        %v930 = vpack.c.bf16 %v642, %v638
        %v931 = vpack.c.bf16 %v652, %v648
        %v932 = vpack.c.bf16 %v662, %v658
        %v933 = vpack.c.bf16 %v672, %v668
        %v934 = vpack.c.bf16 %v682, %v678
        %v935 = vpack.c.bf16 %v614, %v610
        %v936 = vpack.c.bf16 %v624, %v620
        %v937 = vpack.c.bf16 %v634, %v630
        %v938 = vpack.c.bf16 %v644, %v640
        %v939 = vpack.c.bf16 %v654, %v650
        %v940 = vpack.c.bf16 %v664, %v660
        %v941 = vpack.c.bf16 %v674, %v670
        %v942 = vpack.c.bf16 %v684, %v680
        %v943 = vpack.c.bf16 %v804, %v801
        %v944 = vpack.c.bf16 %v812, %v809
        %v945 = vpack.c.bf16 %v820, %v817
        %v946 = vpack.c.bf16 %v828, %v825
        %v947 = vpack.c.bf16 %v836, %v833
        %v948 = vpack.c.bf16 %v844, %v841
        %v949 = vpack.c.bf16 %v852, %v849
        %v950 = vpack.c.bf16 %v860, %v857
        %vm951 = vcmask 261120
        %v953 = vsel %vm951, %v927, 0
        %v956 = vsel %vm951, %v928, 0
        %v959 = vsel %vm951, %v929, 0
        %v962 = vsel %vm951, %v930, 0
        %v965 = vsel %vm951, %v931, 0
        %v968 = vsel %vm951, %v932, 0
        %v971 = vsel %vm951, %v933, 0
        %v974 = vsel %vm951, %v934, 0
        %v977 = vsel %vm951, %v935, 0
        %v980 = vsel %vm951, %v936, 0
        %v983 = vsel %vm951, %v937, 0
        %v986 = vsel %vm951, %v938, 0
        %v989 = vsel %vm951, %v939, 0
        %v992 = vsel %vm951, %v940, 0
        %v995 = vsel %vm951, %v941, 0
        %v998 = vsel %vm951, %v942, 0
        %1000 = vmatprep.subr.bf16.mxu0 0
        %1001 = vmatpush1.bf16.xpose.msra.mxu0 %v977
        %1002 = vmatprep.subr.bf16.mxu0 0
        %1003 = vmatpush1.bf16.xpose.msra.mxu0 %v980
        %1004 = vmatprep.subr.bf16.mxu0 0
        %1005 = vmatpush1.bf16.xpose.msra.mxu0 %v983
        %1006 = vmatprep.subr.bf16.mxu0 0
        %1007 = vmatpush1.bf16.xpose.msra.mxu0 %v986
        %1008 = vmatprep.subr.bf16.mxu0 0
        %1009 = vmatpush1.bf16.xpose.msra.mxu0 %v989
        %1010 = vmatprep.subr.bf16.mxu0 0
        %1011 = vmatpush1.bf16.xpose.msra.mxu0 %v992
        %1012 = vmatprep.subr.bf16.mxu0 0
        %1013 = vmatpush1.bf16.xpose.msra.mxu0 %v995
        %1014 = vmatprep.subr.bf16.mxu0 0
        %1015 = vmatpush1.bf16.xpose.msra.mxu0 %v998
        %1016 = vmatprep.subr.bf16.mxu0 0
        %1017 = vmatpush1.bf16.xpose.msra.mxu0 0
        %1018 = vmatprep.subr.bf16.mxu0 0
        %1019 = vmatpush1.bf16.xpose.msra.mxu0 0
        %1020 = vmatprep.subr.bf16.mxu0 0
        %1021 = vmatpush1.bf16.xpose.msra.mxu0 0
        %1022 = vmatprep.subr.bf16.mxu0 0
        %1023 = vmatpush1.bf16.xpose.msra.mxu0 0
        %1024 = vmatprep.subr.bf16.mxu0 0
        %1025 = vmatpush1.bf16.xpose.msra.mxu0 0
        %1026 = vmatprep.subr.bf16.mxu0 0
        %1027 = vmatpush1.bf16.xpose.msra.mxu0 0
        %1028 = vmatprep.subr.bf16.mxu0 0
        %1029 = vmatpush1.bf16.xpose.msra.mxu0 0
        %1030 = vmatprep.subr.bf16.mxu0 0
        %1031 = vmatpush1.bf16.xpose.msra.mxu0 0
        %1032 = vmatprep.mubr.bf16.mxu0 0
        %1033 = vmatmul.mubr.bf16.gmra.mrb[0].mxu0 %v953
        %v1034 = vpop.f32.mrb[0].mxu0
        %v1035 = vadd.f32 0.0, %v1034
        %v1036 = vpop.f32.mrb[0].mxu0
        %v1037 = vpop.f32.mrb[0].mxu0
        %v1038 = vadd.f32 0.0, %v1037
        %v1039 = vpop.f32.mrb[0].mxu0
        %1040 = vmatprep.mubr.bf16.mxu0 0
        %1041 = vmatmul.mubr.bf16.gmra.mrb[0].mxu0 %v956
        %v1042 = vpop.f32.mrb[0].mxu0
        %v1043 = vadd.f32 0.0, %v1042
        %v1044 = vpop.f32.mrb[0].mxu0
        %v1045 = vpop.f32.mrb[0].mxu0
        %v1046 = vadd.f32 0.0, %v1045
        %v1047 = vpop.f32.mrb[0].mxu0
        %1048 = vmatprep.mubr.bf16.mxu0 0
        %1049 = vmatmul.mubr.bf16.gmra.mrb[0].mxu0 %v959
        %v1050 = vpop.f32.mrb[0].mxu0
        %v1051 = vadd.f32 0.0, %v1050
        %v1052 = vpop.f32.mrb[0].mxu0
        %v1053 = vpop.f32.mrb[0].mxu0
        %v1054 = vadd.f32 0.0, %v1053
        %v1055 = vpop.f32.mrb[0].mxu0
        %1056 = vmatprep.mubr.bf16.mxu0 0
        %1057 = vmatmul.mubr.bf16.gmra.mrb[0].mxu0 %v962
        %v1058 = vpop.f32.mrb[0].mxu0
        %v1059 = vadd.f32 0.0, %v1058
        %v1060 = vpop.f32.mrb[0].mxu0
        %v1061 = vpop.f32.mrb[0].mxu0
        %v1062 = vadd.f32 0.0, %v1061
        %v1063 = vpop.f32.mrb[0].mxu0
        %1064 = vmatprep.mubr.bf16.mxu0 0
        %1065 = vmatmul.mubr.bf16.gmra.mrb[0].mxu0 %v965
        %v1066 = vpop.f32.mrb[0].mxu0
        %v1067 = vadd.f32 0.0, %v1066
        %v1068 = vpop.f32.mrb[0].mxu0
        %v1069 = vpop.f32.mrb[0].mxu0
        %v1070 = vadd.f32 0.0, %v1069
        %v1071 = vpop.f32.mrb[0].mxu0
        %1072 = vmatprep.mubr.bf16.mxu0 0
        %1073 = vmatmul.mubr.bf16.gmra.mrb[0].mxu0 %v968
        %v1074 = vpop.f32.mrb[0].mxu0
        %v1075 = vadd.f32 0.0, %v1074
        %v1076 = vpop.f32.mrb[0].mxu0
        %v1077 = vpop.f32.mrb[0].mxu0
        %v1078 = vadd.f32 0.0, %v1077
        %v1079 = vpop.f32.mrb[0].mxu0
        %1080 = vmatprep.mubr.bf16.mxu0 0
        %1081 = vmatmul.mubr.bf16.gmra.mrb[0].mxu0 %v971
        %v1082 = vpop.f32.mrb[0].mxu0
        %v1083 = vadd.f32 0.0, %v1082
        %v1084 = vpop.f32.mrb[0].mxu0
        %v1085 = vpop.f32.mrb[0].mxu0
        %v1086 = vadd.f32 0.0, %v1085
        %v1087 = vpop.f32.mrb[0].mxu0
        %1088 = vmatprep.mubr.bf16.mxu0 0
        %1089 = vmatmul.mubr.bf16.gmra.mrb[0].mxu0 %v974
        %v1090 = vpop.f32.mrb[0].mxu0
        %v1091 = vadd.f32 0.0, %v1090
        %v1092 = vpop.f32.mrb[0].mxu0
        %v1093 = vpop.f32.mrb[0].mxu0
        %v1094 = vadd.f32 0.0, %v1093
        %v1095 = vpop.f32.mrb[0].mxu0
        %1096 = vdwg.mxu0
        %1097 = vmax.xlane.f32.xlu0 %v1035
        %v1098 = vpop.xlane.xlu0 %1097
        %1099 = vmax.xlane.f32.xlu0 %v1038
        %v1100 = vpop.xlane.xlu0 %1099
        %1101 = vmax.xlane.f32.xlu0 %v1043
        %v1102 = vpop.xlane.xlu0 %1101
        %1103 = vmax.xlane.f32.xlu0 %v1046
        %v1104 = vpop.xlane.xlu0 %1103
        %1105 = vmax.xlane.f32.xlu0 %v1051
        %v1106 = vpop.xlane.xlu0 %1105
        %1107 = vmax.xlane.f32.xlu0 %v1054
        %v1108 = vpop.xlane.xlu0 %1107
        %1109 = vmax.xlane.f32.xlu0 %v1059
        %v1110 = vpop.xlane.xlu0 %1109
        %1111 = vmax.xlane.f32.xlu0 %v1062
        %v1112 = vpop.xlane.xlu0 %1111
        %1113 = vmax.xlane.f32.xlu0 %v1067
        %v1114 = vpop.xlane.xlu0 %1113
        %1115 = vmax.xlane.f32.xlu0 %v1070
        %v1116 = vpop.xlane.xlu0 %1115
        %1117 = vmax.xlane.f32.xlu0 %v1075
        %v1118 = vpop.xlane.xlu0 %1117
        %1119 = vmax.xlane.f32.xlu0 %v1078
        %v1120 = vpop.xlane.xlu0 %1119
        %1121 = vmax.xlane.f32.xlu0 %v1083
        %v1122 = vpop.xlane.xlu0 %1121
        %1123 = vmax.xlane.f32.xlu0 %v1086
        %v1124 = vpop.xlane.xlu0 %1123
        %1125 = vmax.xlane.f32.xlu0 %v1091
        %v1126 = vpop.xlane.xlu0 %1125
        %1127 = vmax.xlane.f32.xlu0 %v1094
        %v1128 = vpop.xlane.xlu0 %1127
        %v1129 = vsub.f32 %v1035, %v1098
        %v1130 = vsub.f32 %v1038, %v1100
        %v1131 = vsub.f32 %v1043, %v1102
        %v1132 = vsub.f32 %v1046, %v1104
        %v1133 = vsub.f32 %v1051, %v1106
        %v1134 = vsub.f32 %v1054, %v1108
        %v1135 = vsub.f32 %v1059, %v1110
        %v1136 = vsub.f32 %v1062, %v1112
        %v1137 = vsub.f32 %v1067, %v1114
        %v1138 = vsub.f32 %v1070, %v1116
        %v1139 = vsub.f32 %v1075, %v1118
        %v1140 = vsub.f32 %v1078, %v1120
        %v1141 = vsub.f32 %v1083, %v1122
        %v1142 = vsub.f32 %v1086, %v1124
        %v1143 = vsub.f32 %v1091, %v1126
        %v1144 = vsub.f32 %v1094, %v1128
        %v1145 = vmul.f32 %v1129, 1.442695
        %v1146 = vpow.pop %v1145
        %v1147 = vmul.f32 %v1130, 1.442695
        %v1148 = vpow.pop %v1147
        %v1149 = vmul.f32 %v1131, 1.442695
        %v1150 = vpow.pop %v1149
        %v1151 = vmul.f32 %v1132, 1.442695
        %v1152 = vpow.pop %v1151
        %v1153 = vmul.f32 %v1133, 1.442695
        %v1154 = vpow.pop %v1153
        %v1155 = vmul.f32 %v1134, 1.442695
        %v1156 = vpow.pop %v1155
        %v1157 = vmul.f32 %v1135, 1.442695
        %v1158 = vpow.pop %v1157
        %v1159 = vmul.f32 %v1136, 1.442695
        %v1160 = vpow.pop %v1159
        %v1161 = vmul.f32 %v1137, 1.442695
        %v1162 = vpow.pop %v1161
        %v1163 = vmul.f32 %v1138, 1.442695
        %v1164 = vpow.pop %v1163
        %v1165 = vmul.f32 %v1139, 1.442695
        %v1166 = vpow.pop %v1165
        %v1167 = vmul.f32 %v1140, 1.442695
        %v1168 = vpow.pop %v1167
        %v1169 = vmul.f32 %v1141, 1.442695
        %v1170 = vpow.pop %v1169
        %v1171 = vmul.f32 %v1142, 1.442695
        %v1172 = vpow.pop %v1171
        %v1173 = vmul.f32 %v1143, 1.442695
        %v1174 = vpow.pop %v1173
        %v1175 = vmul.f32 %v1144, 1.442695
        %v1176 = vpow.pop %v1175
        %1177 = vadd.xlane.f32.xlu0 %v1146
        %v1178 = vpop.xlane.xlu0 %1177
        %1179 = vadd.xlane.f32.xlu0 %v1148
        %v1180 = vpop.xlane.xlu0 %1179
        %1181 = vadd.xlane.f32.xlu0 %v1150
        %v1182 = vpop.xlane.xlu0 %1181
        %1183 = vadd.xlane.f32.xlu0 %v1152
        %v1184 = vpop.xlane.xlu0 %1183
        %1185 = vadd.xlane.f32.xlu0 %v1154
        %v1186 = vpop.xlane.xlu0 %1185
        %1187 = vadd.xlane.f32.xlu0 %v1156
        %v1188 = vpop.xlane.xlu0 %1187
        %1189 = vadd.xlane.f32.xlu0 %v1158
        %v1190 = vpop.xlane.xlu0 %1189
        %1191 = vadd.xlane.f32.xlu0 %v1160
        %v1192 = vpop.xlane.xlu0 %1191
        %1193 = vadd.xlane.f32.xlu0 %v1162
        %v1194 = vpop.xlane.xlu0 %1193
        %1195 = vadd.xlane.f32.xlu0 %v1164
        %v1196 = vpop.xlane.xlu0 %1195
        %1197 = vadd.xlane.f32.xlu0 %v1166
        %v1198 = vpop.xlane.xlu0 %1197
        %1199 = vadd.xlane.f32.xlu0 %v1168
        %v1200 = vpop.xlane.xlu0 %1199
        %1201 = vadd.xlane.f32.xlu0 %v1170
        %v1202 = vpop.xlane.xlu0 %1201
        %1203 = vadd.xlane.f32.xlu0 %v1172
        %v1204 = vpop.xlane.xlu0 %1203
        %1205 = vadd.xlane.f32.xlu0 %v1174
        %v1206 = vpop.xlane.xlu0 %1205
        %1207 = vadd.xlane.f32.xlu0 %v1176
        %v1208 = vpop.xlane.xlu0 %1207
        %v1209 = vrcp.pop %v1178
        %v1210 = vrcp.pop %v1180
        %v1211 = vrcp.pop %v1182
        %v1212 = vrcp.pop %v1184
        %v1213 = vrcp.pop %v1186
        %v1214 = vrcp.pop %v1188
        %v1215 = vrcp.pop %v1190
        %v1216 = vrcp.pop %v1192
        %v1217 = vrcp.pop %v1194
        %v1218 = vrcp.pop %v1196
        %v1219 = vrcp.pop %v1198
        %v1220 = vrcp.pop %v1200
        %v1221 = vrcp.pop %v1202
        %v1222 = vrcp.pop %v1204
        %v1223 = vrcp.pop %v1206
        %v1224 = vrcp.pop %v1208
        %v1225 = vpack.c.bf16 %v1148, %v1146
        %v1226 = vpack.c.bf16 %v1152, %v1150
        %v1227 = vpack.c.bf16 %v1156, %v1154
        %v1228 = vpack.c.bf16 %v1160, %v1158
        %v1229 = vpack.c.bf16 %v1164, %v1162
        %v1230 = vpack.c.bf16 %v1168, %v1166
        %v1231 = vpack.c.bf16 %v1172, %v1170
        %v1232 = vpack.c.bf16 %v1176, %v1174
        %1233 = vmatprep.subr.bf16.mxu0 0
        %1234 = vmatpush1.bf16.msra.mxu0 %v943
        %1235 = vmatprep.subr.bf16.mxu0 0
        %1236 = vmatpush1.bf16.msra.mxu0 %v944
        %1237 = vmatprep.subr.bf16.mxu0 0
        %1238 = vmatpush1.bf16.msra.mxu0 %v945
        %1239 = vmatprep.subr.bf16.mxu0 0
        %1240 = vmatpush1.bf16.msra.mxu0 %v946
        %1241 = vmatprep.subr.bf16.mxu0 0
        %1242 = vmatpush1.bf16.msra.mxu0 %v947
        %1243 = vmatprep.subr.bf16.mxu0 0
        %1244 = vmatpush1.bf16.msra.mxu0 %v948
        %1245 = vmatprep.subr.bf16.mxu0 0
        %1246 = vmatpush1.bf16.msra.mxu0 %v949
        %1247 = vmatprep.subr.bf16.mxu0 0
        %1248 = vmatpush1.bf16.msra.mxu0 %v950
        %1249 = vmatprep.subr.bf16.mxu0 0
        %1250 = vmatpush1.bf16.msra.mxu0 0
        %1251 = vmatprep.subr.bf16.mxu0 0
        %1252 = vmatpush1.bf16.msra.mxu0 0
        %1253 = vmatprep.subr.bf16.mxu0 0
        %1254 = vmatpush1.bf16.msra.mxu0 0
        %1255 = vmatprep.subr.bf16.mxu0 0
        %1256 = vmatpush1.bf16.msra.mxu0 0
        %1257 = vmatprep.subr.bf16.mxu0 0
        %1258 = vmatpush1.bf16.msra.mxu0 0
        %1259 = vmatprep.subr.bf16.mxu0 0
        %1260 = vmatpush1.bf16.msra.mxu0 0
        %1261 = vmatprep.subr.bf16.mxu0 0
        %1262 = vmatpush1.bf16.msra.mxu0 0
        %1263 = vmatprep.subr.bf16.mxu0 0
        %1264 = vmatpush1.bf16.msra.mxu0 0
        %1265 = vmatprep.mubr.bf16.mxu0 0
        %1266 = vmatmul.mubr.bf16.gmra.mrb[0].mxu0 %v1225
        %v1267 = vpop.f32.mrb[0].mxu0
        %v1268 = vadd.f32 0.0, %v1267
        %v1269 = vpop.f32.mrb[0].mxu0
        %v1270 = vpop.f32.mrb[0].mxu0
        %v1271 = vadd.f32 0.0, %v1270
        %v1272 = vpop.f32.mrb[0].mxu0
        %1273 = vmatprep.mubr.bf16.mxu0 0
        %1274 = vmatmul.mubr.bf16.gmra.mrb[0].mxu0 %v1226
        %v1275 = vpop.f32.mrb[0].mxu0
        %v1276 = vadd.f32 0.0, %v1275
        %v1277 = vpop.f32.mrb[0].mxu0
        %v1278 = vpop.f32.mrb[0].mxu0
        %v1279 = vadd.f32 0.0, %v1278
        %v1280 = vpop.f32.mrb[0].mxu0
        %1281 = vmatprep.mubr.bf16.mxu0 0
        %1282 = vmatmul.mubr.bf16.gmra.mrb[0].mxu0 %v1227
        %v1283 = vpop.f32.mrb[0].mxu0
        %v1284 = vadd.f32 0.0, %v1283
        %v1285 = vpop.f32.mrb[0].mxu0
        %v1286 = vpop.f32.mrb[0].mxu0
        %v1287 = vadd.f32 0.0, %v1286
        %v1288 = vpop.f32.mrb[0].mxu0
        %1289 = vmatprep.mubr.bf16.mxu0 0
        %1290 = vmatmul.mubr.bf16.gmra.mrb[0].mxu0 %v1228
        %v1291 = vpop.f32.mrb[0].mxu0
        %v1292 = vadd.f32 0.0, %v1291
        %v1293 = vpop.f32.mrb[0].mxu0
        %v1294 = vpop.f32.mrb[0].mxu0
        %v1295 = vadd.f32 0.0, %v1294
        %v1296 = vpop.f32.mrb[0].mxu0
        %1297 = vmatprep.mubr.bf16.mxu0 0
        %1298 = vmatmul.mubr.bf16.gmra.mrb[0].mxu0 %v1229
        %v1299 = vpop.f32.mrb[0].mxu0
        %v1300 = vadd.f32 0.0, %v1299
        %v1301 = vpop.f32.mrb[0].mxu0
        %v1302 = vpop.f32.mrb[0].mxu0
        %v1303 = vadd.f32 0.0, %v1302
        %v1304 = vpop.f32.mrb[0].mxu0
        %1305 = vmatprep.mubr.bf16.mxu0 0
        %1306 = vmatmul.mubr.bf16.gmra.mrb[0].mxu0 %v1230
        %v1307 = vpop.f32.mrb[0].mxu0
        %v1308 = vadd.f32 0.0, %v1307
        %v1309 = vpop.f32.mrb[0].mxu0
        %v1310 = vpop.f32.mrb[0].mxu0
        %v1311 = vadd.f32 0.0, %v1310
        %v1312 = vpop.f32.mrb[0].mxu0
        %1313 = vmatprep.mubr.bf16.mxu0 0
        %1314 = vmatmul.mubr.bf16.gmra.mrb[0].mxu0 %v1231
        %v1315 = vpop.f32.mrb[0].mxu0
        %v1316 = vadd.f32 0.0, %v1315
        %v1317 = vpop.f32.mrb[0].mxu0
        %v1318 = vpop.f32.mrb[0].mxu0
        %v1319 = vadd.f32 0.0, %v1318
        %v1320 = vpop.f32.mrb[0].mxu0
        %1321 = vmatprep.mubr.bf16.mxu0 0
        %1322 = vmatmul.mubr.bf16.gmra.mrb[0].mxu0 %v1232
        %v1323 = vpop.f32.mrb[0].mxu0
        %v1324 = vadd.f32 0.0, %v1323
        %v1325 = vpop.f32.mrb[0].mxu0
        %v1326 = vpop.f32.mrb[0].mxu0
        %v1327 = vadd.f32 0.0, %v1326
        %v1328 = vpop.f32.mrb[0].mxu0
        %1329 = vdwg.mxu0
        %v1330 = vmul.f32 %v1268, %v1209
        %v1331 = vmul.f32 %v1271, %v1210
        %v1332 = vmul.f32 %v1276, %v1211
        %v1333 = vmul.f32 %v1279, %v1212
        %v1334 = vmul.f32 %v1284, %v1213
        %v1335 = vmul.f32 %v1287, %v1214
        %v1336 = vmul.f32 %v1292, %v1215
        %v1337 = vmul.f32 %v1295, %v1216
        %v1338 = vmul.f32 %v1300, %v1217
        %v1339 = vmul.f32 %v1303, %v1218
        %v1340 = vmul.f32 %v1308, %v1219
        %v1341 = vmul.f32 %v1311, %v1220
        %v1342 = vmul.f32 %v1316, %v1221
        %v1343 = vmul.f32 %v1319, %v1222
        %v1344 = vmul.f32 %v1324, %v1223
        %v1345 = vmul.f32 %v1327, %v1224
        %v1346 = vpack.c.bf16 %v1331, %v1330
        %v1347 = vpack.c.bf16 %v1333, %v1332
        %v1348 = vpack.c.bf16 %v1335, %v1334
        %v1349 = vpack.c.bf16 %v1337, %v1336
        %v1350 = vpack.c.bf16 %v1339, %v1338
        %v1351 = vpack.c.bf16 %v1341, %v1340
        %v1352 = vpack.c.bf16 %v1343, %v1342
        %v1353 = vpack.c.bf16 %v1345, %v1344
        %1354 = vst.msk [vmem:[#allocation2] sm:$0xff] %vm951, %v1346
        %1355 = vst.msk [vmem:[#allocation2 + $0x8] sm:$0xff] %vm951, %v1347
        %1356 = vst.msk [vmem:[#allocation2 + $0x10] sm:$0xff] %vm951, %v1348
        %1357 = vst.msk [vmem:[#allocation2 + $0x18] sm:$0xff] %vm951, %v1349
        %1358 = vst.msk [vmem:[#allocation2 + $0x20] sm:$0xff] %vm951, %v1350
        %1359 = vst.msk [vmem:[#allocation2 + $0x28] sm:$0xff] %vm951, %v1351
        %1360 = vst.msk [vmem:[#allocation2 + $0x30] sm:$0xff] %vm951, %v1352
        %1361 = vst.msk [vmem:[#allocation2 + $0x38] sm:$0xff] %vm951, %v1353
        %1370 = vrot.lane.b32.xlu0 %v927, 96
        %v1371 = vpop.permute.xlu0 %1370
        %1372 = vrot.lane.b32.xlu0 %v928, 96
        %v1373 = vpop.permute.xlu0 %1372
        %1374 = vrot.lane.b32.xlu0 %v929, 96
        %v1375 = vpop.permute.xlu0 %1374
        %1376 = vrot.lane.b32.xlu0 %v930, 96
        %v1377 = vpop.permute.xlu0 %1376
        %1378 = vrot.lane.b32.xlu0 %v931, 96
        %v1379 = vpop.permute.xlu0 %1378
        %1380 = vrot.lane.b32.xlu0 %v932, 96
        %v1381 = vpop.permute.xlu0 %1380
        %1382 = vrot.lane.b32.xlu0 %v933, 96
        %v1383 = vpop.permute.xlu0 %1382
        %1384 = vrot.lane.b32.xlu0 %v934, 96
        %v1385 = vpop.permute.xlu0 %1384
        %1394 = vrot.lane.b32.xlu0 %v935, 96
        %v1395 = vpop.permute.xlu0 %1394
        %1396 = vrot.lane.b32.xlu0 %v936, 96
        %v1397 = vpop.permute.xlu0 %1396
        %1398 = vrot.lane.b32.xlu0 %v937, 96
        %v1399 = vpop.permute.xlu0 %1398
        %1400 = vrot.lane.b32.xlu0 %v938, 96
        %v1401 = vpop.permute.xlu0 %1400
        %1402 = vrot.lane.b32.xlu0 %v939, 96
        %v1403 = vpop.permute.xlu0 %1402
        %1404 = vrot.lane.b32.xlu0 %v940, 96
        %v1405 = vpop.permute.xlu0 %1404
        %1406 = vrot.lane.b32.xlu0 %v941, 96
        %v1407 = vpop.permute.xlu0 %1406
        %1408 = vrot.lane.b32.xlu0 %v942, 96
        %v1409 = vpop.permute.xlu0 %1408
        %v1411 = vsel %vm951, %v1371, 0
        %v1414 = vsel %vm951, %v1373, 0
        %v1417 = vsel %vm951, %v1375, 0
        %v1420 = vsel %vm951, %v1377, 0
        %v1423 = vsel %vm951, %v1379, 0
        %v1426 = vsel %vm951, %v1381, 0
        %v1429 = vsel %vm951, %v1383, 0
        %v1432 = vsel %vm951, %v1385, 0
        %v1435 = vsel %vm951, %v1395, 0
        %v1438 = vsel %vm951, %v1397, 0
        %v1441 = vsel %vm951, %v1399, 0
        %v1444 = vsel %vm951, %v1401, 0
        %v1447 = vsel %vm951, %v1403, 0
        %v1450 = vsel %vm951, %v1405, 0
        %v1453 = vsel %vm951, %v1407, 0
        %v1456 = vsel %vm951, %v1409, 0
        %1458 = vmatprep.subr.bf16.mxu0 0
        %1459 = vmatpush1.bf16.xpose.msra.mxu0 %v1435
        %1460 = vmatprep.subr.bf16.mxu0 0
        %1461 = vmatpush1.bf16.xpose.msra.mxu0 %v1438
        %1462 = vmatprep.subr.bf16.mxu0 0
        %1463 = vmatpush1.bf16.xpose.msra.mxu0 %v1441
        %1464 = vmatprep.subr.bf16.mxu0 0
        %1465 = vmatpush1.bf16.xpose.msra.mxu0 %v1444
        %1466 = vmatprep.subr.bf16.mxu0 0
        %1467 = vmatpush1.bf16.xpose.msra.mxu0 %v1447
        %1468 = vmatprep.subr.bf16.mxu0 0
        %1469 = vmatpush1.bf16.xpose.msra.mxu0 %v1450
        %1470 = vmatprep.subr.bf16.mxu0 0
        %1471 = vmatpush1.bf16.xpose.msra.mxu0 %v1453
        %1472 = vmatprep.subr.bf16.mxu0 0
        %1473 = vmatpush1.bf16.xpose.msra.mxu0 %v1456
        %1474 = vmatprep.subr.bf16.mxu0 0
        %1475 = vmatpush1.bf16.xpose.msra.mxu0 0
        %1476 = vmatprep.subr.bf16.mxu0 0
        %1477 = vmatpush1.bf16.xpose.msra.mxu0 0
        %1478 = vmatprep.subr.bf16.mxu0 0
        %1479 = vmatpush1.bf16.xpose.msra.mxu0 0
        %1480 = vmatprep.subr.bf16.mxu0 0
        %1481 = vmatpush1.bf16.xpose.msra.mxu0 0
        %1482 = vmatprep.subr.bf16.mxu0 0
        %1483 = vmatpush1.bf16.xpose.msra.mxu0 0
        %1484 = vmatprep.subr.bf16.mxu0 0
        %1485 = vmatpush1.bf16.xpose.msra.mxu0 0
        %1486 = vmatprep.subr.bf16.mxu0 0
        %1487 = vmatpush1.bf16.xpose.msra.mxu0 0
        %1488 = vmatprep.subr.bf16.mxu0 0
        %1489 = vmatpush1.bf16.xpose.msra.mxu0 0
        %1490 = vmatprep.mubr.bf16.mxu0 0
        %1491 = vmatmul.mubr.bf16.gmra.mrb[0].mxu0 %v1411
        %v1492 = vpop.f32.mrb[0].mxu0
        %v1493 = vadd.f32 0.0, %v1492
        %v1494 = vpop.f32.mrb[0].mxu0
        %v1495 = vpop.f32.mrb[0].mxu0
        %v1496 = vadd.f32 0.0, %v1495
        %v1497 = vpop.f32.mrb[0].mxu0
        %1498 = vmatprep.mubr.bf16.mxu0 0
        %1499 = vmatmul.mubr.bf16.gmra.mrb[0].mxu0 %v1414
        %v1500 = vpop.f32.mrb[0].mxu0
        %v1501 = vadd.f32 0.0, %v1500
        %v1502 = vpop.f32.mrb[0].mxu0
        %v1503 = vpop.f32.mrb[0].mxu0
        %v1504 = vadd.f32 0.0, %v1503
        %v1505 = vpop.f32.mrb[0].mxu0
        %1506 = vmatprep.mubr.bf16.mxu0 0
        %1507 = vmatmul.mubr.bf16.gmra.mrb[0].mxu0 %v1417
        %v1508 = vpop.f32.mrb[0].mxu0
        %v1509 = vadd.f32 0.0, %v1508
        %v1510 = vpop.f32.mrb[0].mxu0
        %v1511 = vpop.f32.mrb[0].mxu0
        %v1512 = vadd.f32 0.0, %v1511
        %v1513 = vpop.f32.mrb[0].mxu0
        %1514 = vmatprep.mubr.bf16.mxu0 0
        %1515 = vmatmul.mubr.bf16.gmra.mrb[0].mxu0 %v1420
        %v1516 = vpop.f32.mrb[0].mxu0
        %v1517 = vadd.f32 0.0, %v1516
        %v1518 = vpop.f32.mrb[0].mxu0
        %v1519 = vpop.f32.mrb[0].mxu0
        %v1520 = vadd.f32 0.0, %v1519
        %v1521 = vpop.f32.mrb[0].mxu0
        %1522 = vmatprep.mubr.bf16.mxu0 0
        %1523 = vmatmul.mubr.bf16.gmra.mrb[0].mxu0 %v1423
        %v1524 = vpop.f32.mrb[0].mxu0
        %v1525 = vadd.f32 0.0, %v1524
        %v1526 = vpop.f32.mrb[0].mxu0
        %v1527 = vpop.f32.mrb[0].mxu0
        %v1528 = vadd.f32 0.0, %v1527
        %v1529 = vpop.f32.mrb[0].mxu0
        %1530 = vmatprep.mubr.bf16.mxu0 0
        %1531 = vmatmul.mubr.bf16.gmra.mrb[0].mxu0 %v1426
        %v1532 = vpop.f32.mrb[0].mxu0
        %v1533 = vadd.f32 0.0, %v1532
        %v1534 = vpop.f32.mrb[0].mxu0
        %v1535 = vpop.f32.mrb[0].mxu0
        %v1536 = vadd.f32 0.0, %v1535
        %v1537 = vpop.f32.mrb[0].mxu0
        %1538 = vmatprep.mubr.bf16.mxu0 0
        %1539 = vmatmul.mubr.bf16.gmra.mrb[0].mxu0 %v1429
        %v1540 = vpop.f32.mrb[0].mxu0
        %v1541 = vadd.f32 0.0, %v1540
        %v1542 = vpop.f32.mrb[0].mxu0
        %v1543 = vpop.f32.mrb[0].mxu0
        %v1544 = vadd.f32 0.0, %v1543
        %v1545 = vpop.f32.mrb[0].mxu0
        %1546 = vmatprep.mubr.bf16.mxu0 0
        %1547 = vmatmul.mubr.bf16.gmra.mrb[0].mxu0 %v1432
        %v1548 = vpop.f32.mrb[0].mxu0
        %v1549 = vadd.f32 0.0, %v1548
        %v1550 = vpop.f32.mrb[0].mxu0
        %v1551 = vpop.f32.mrb[0].mxu0
        %v1552 = vadd.f32 0.0, %v1551
        %v1553 = vpop.f32.mrb[0].mxu0
        %1554 = vdwg.mxu0
        %1555 = vmax.xlane.f32.xlu0 %v1493
        %v1556 = vpop.xlane.xlu0 %1555
        %1557 = vmax.xlane.f32.xlu0 %v1496
        %v1558 = vpop.xlane.xlu0 %1557
        %1559 = vmax.xlane.f32.xlu0 %v1501
        %v1560 = vpop.xlane.xlu0 %1559
        %1561 = vmax.xlane.f32.xlu0 %v1504
        %v1562 = vpop.xlane.xlu0 %1561
        %1563 = vmax.xlane.f32.xlu0 %v1509
        %v1564 = vpop.xlane.xlu0 %1563
        %1565 = vmax.xlane.f32.xlu0 %v1512
        %v1566 = vpop.xlane.xlu0 %1565
        %1567 = vmax.xlane.f32.xlu0 %v1517
        %v1568 = vpop.xlane.xlu0 %1567
        %1569 = vmax.xlane.f32.xlu0 %v1520
        %v1570 = vpop.xlane.xlu0 %1569
        %1571 = vmax.xlane.f32.xlu0 %v1525
        %v1572 = vpop.xlane.xlu0 %1571
        %1573 = vmax.xlane.f32.xlu0 %v1528
        %v1574 = vpop.xlane.xlu0 %1573
        %1575 = vmax.xlane.f32.xlu0 %v1533
        %v1576 = vpop.xlane.xlu0 %1575
        %1577 = vmax.xlane.f32.xlu0 %v1536
        %v1578 = vpop.xlane.xlu0 %1577
        %1579 = vmax.xlane.f32.xlu0 %v1541
        %v1580 = vpop.xlane.xlu0 %1579
        %1581 = vmax.xlane.f32.xlu0 %v1544
        %v1582 = vpop.xlane.xlu0 %1581
        %1583 = vmax.xlane.f32.xlu0 %v1549
        %v1584 = vpop.xlane.xlu0 %1583
        %1585 = vmax.xlane.f32.xlu0 %v1552
        %v1586 = vpop.xlane.xlu0 %1585
        %v1587 = vsub.f32 %v1493, %v1556
        %v1588 = vsub.f32 %v1496, %v1558
        %v1589 = vsub.f32 %v1501, %v1560
        %v1590 = vsub.f32 %v1504, %v1562
        %v1591 = vsub.f32 %v1509, %v1564
        %v1592 = vsub.f32 %v1512, %v1566
        %v1593 = vsub.f32 %v1517, %v1568
        %v1594 = vsub.f32 %v1520, %v1570
        %v1595 = vsub.f32 %v1525, %v1572
        %v1596 = vsub.f32 %v1528, %v1574
        %v1597 = vsub.f32 %v1533, %v1576
        %v1598 = vsub.f32 %v1536, %v1578
        %v1599 = vsub.f32 %v1541, %v1580
        %v1600 = vsub.f32 %v1544, %v1582
        %v1601 = vsub.f32 %v1549, %v1584
        %v1602 = vsub.f32 %v1552, %v1586
        %v1603 = vmul.f32 %v1587, 1.442695
        %v1604 = vpow.pop %v1603
        %v1605 = vmul.f32 %v1588, 1.442695
        %v1606 = vpow.pop %v1605
        %v1607 = vmul.f32 %v1589, 1.442695
        %v1608 = vpow.pop %v1607
        %v1609 = vmul.f32 %v1590, 1.442695
        %v1610 = vpow.pop %v1609
        %v1611 = vmul.f32 %v1591, 1.442695
        %v1612 = vpow.pop %v1611
        %v1613 = vmul.f32 %v1592, 1.442695
        %v1614 = vpow.pop %v1613
        %v1615 = vmul.f32 %v1593, 1.442695
        %v1616 = vpow.pop %v1615
        %v1617 = vmul.f32 %v1594, 1.442695
        %v1618 = vpow.pop %v1617
        %v1619 = vmul.f32 %v1595, 1.442695
        %v1620 = vpow.pop %v1619
        %v1621 = vmul.f32 %v1596, 1.442695
        %v1622 = vpow.pop %v1621
        %v1623 = vmul.f32 %v1597, 1.442695
        %v1624 = vpow.pop %v1623
        %v1625 = vmul.f32 %v1598, 1.442695
        %v1626 = vpow.pop %v1625
        %v1627 = vmul.f32 %v1599, 1.442695
        %v1628 = vpow.pop %v1627
        %v1629 = vmul.f32 %v1600, 1.442695
        %v1630 = vpow.pop %v1629
        %v1631 = vmul.f32 %v1601, 1.442695
        %v1632 = vpow.pop %v1631
        %v1633 = vmul.f32 %v1602, 1.442695
        %v1634 = vpow.pop %v1633
        %1635 = vadd.xlane.f32.xlu0 %v1604
        %v1636 = vpop.xlane.xlu0 %1635
        %1637 = vadd.xlane.f32.xlu0 %v1606
        %v1638 = vpop.xlane.xlu0 %1637
        %1639 = vadd.xlane.f32.xlu0 %v1608
        %v1640 = vpop.xlane.xlu0 %1639
        %1641 = vadd.xlane.f32.xlu0 %v1610
        %v1642 = vpop.xlane.xlu0 %1641
        %1643 = vadd.xlane.f32.xlu0 %v1612
        %v1644 = vpop.xlane.xlu0 %1643
        %1645 = vadd.xlane.f32.xlu0 %v1614
        %v1646 = vpop.xlane.xlu0 %1645
        %1647 = vadd.xlane.f32.xlu0 %v1616
        %v1648 = vpop.xlane.xlu0 %1647
        %1649 = vadd.xlane.f32.xlu0 %v1618
        %v1650 = vpop.xlane.xlu0 %1649
        %1651 = vadd.xlane.f32.xlu0 %v1620
        %v1652 = vpop.xlane.xlu0 %1651
        %1653 = vadd.xlane.f32.xlu0 %v1622
        %v1654 = vpop.xlane.xlu0 %1653
        %1655 = vadd.xlane.f32.xlu0 %v1624
        %v1656 = vpop.xlane.xlu0 %1655
        %1657 = vadd.xlane.f32.xlu0 %v1626
        %v1658 = vpop.xlane.xlu0 %1657
        %1659 = vadd.xlane.f32.xlu0 %v1628
        %v1660 = vpop.xlane.xlu0 %1659
        %1661 = vadd.xlane.f32.xlu0 %v1630
        %v1662 = vpop.xlane.xlu0 %1661
        %1663 = vadd.xlane.f32.xlu0 %v1632
        %v1664 = vpop.xlane.xlu0 %1663
        %1665 = vadd.xlane.f32.xlu0 %v1634
        %v1666 = vpop.xlane.xlu0 %1665
        %v1667 = vrcp.pop %v1636
        %v1668 = vrcp.pop %v1638
        %v1669 = vrcp.pop %v1640
        %v1670 = vrcp.pop %v1642
        %v1671 = vrcp.pop %v1644
        %v1672 = vrcp.pop %v1646
        %v1673 = vrcp.pop %v1648
        %v1674 = vrcp.pop %v1650
        %v1675 = vrcp.pop %v1652
        %v1676 = vrcp.pop %v1654
        %v1677 = vrcp.pop %v1656
        %v1678 = vrcp.pop %v1658
        %v1679 = vrcp.pop %v1660
        %v1680 = vrcp.pop %v1662
        %v1681 = vrcp.pop %v1664
        %v1682 = vrcp.pop %v1666
        %v1683 = vpack.c.bf16 %v1606, %v1604
        %v1684 = vpack.c.bf16 %v1610, %v1608
        %v1685 = vpack.c.bf16 %v1614, %v1612
        %v1686 = vpack.c.bf16 %v1618, %v1616
        %v1687 = vpack.c.bf16 %v1622, %v1620
        %v1688 = vpack.c.bf16 %v1626, %v1624
        %v1689 = vpack.c.bf16 %v1630, %v1628
        %v1690 = vpack.c.bf16 %v1634, %v1632
        %1699 = vrot.lane.b32.xlu0 %v943, 96
        %v1700 = vpop.permute.xlu0 %1699
        %1701 = vrot.lane.b32.xlu0 %v944, 96
        %v1702 = vpop.permute.xlu0 %1701
        %1703 = vrot.lane.b32.xlu0 %v945, 96
        %v1704 = vpop.permute.xlu0 %1703
        %1705 = vrot.lane.b32.xlu0 %v946, 96
        %v1706 = vpop.permute.xlu0 %1705
        %1707 = vrot.lane.b32.xlu0 %v947, 96
        %v1708 = vpop.permute.xlu0 %1707
        %1709 = vrot.lane.b32.xlu0 %v948, 96
        %v1710 = vpop.permute.xlu0 %1709
        %1711 = vrot.lane.b32.xlu0 %v949, 96
        %v1712 = vpop.permute.xlu0 %1711
        %1713 = vrot.lane.b32.xlu0 %v950, 96
        %v1714 = vpop.permute.xlu0 %1713
        %1723 = vmatprep.subr.bf16.mxu0 0
        %1724 = vmatpush1.bf16.msra.mxu0 %v1700
        %1725 = vmatprep.subr.bf16.mxu0 0
        %1726 = vmatpush1.bf16.msra.mxu0 %v1702
        %1727 = vmatprep.subr.bf16.mxu0 0
        %1728 = vmatpush1.bf16.msra.mxu0 %v1704
        %1729 = vmatprep.subr.bf16.mxu0 0
        %1730 = vmatpush1.bf16.msra.mxu0 %v1706
        %1731 = vmatprep.subr.bf16.mxu0 0
        %1732 = vmatpush1.bf16.msra.mxu0 %v1708
        %1733 = vmatprep.subr.bf16.mxu0 0
        %1734 = vmatpush1.bf16.msra.mxu0 %v1710
        %1735 = vmatprep.subr.bf16.mxu0 0
        %1736 = vmatpush1.bf16.msra.mxu0 %v1712
        %1737 = vmatprep.subr.bf16.mxu0 0
        %1738 = vmatpush1.bf16.msra.mxu0 %v1714
        %1739 = vmatprep.subr.bf16.mxu0 0
        %1740 = vmatpush1.bf16.msra.mxu0 0
        %1741 = vmatprep.subr.bf16.mxu0 0
        %1742 = vmatpush1.bf16.msra.mxu0 0
        %1743 = vmatprep.subr.bf16.mxu0 0
        %1744 = vmatpush1.bf16.msra.mxu0 0
        %1745 = vmatprep.subr.bf16.mxu0 0
        %1746 = vmatpush1.bf16.msra.mxu0 0
        %1747 = vmatprep.subr.bf16.mxu0 0
        %1748 = vmatpush1.bf16.msra.mxu0 0
        %1749 = vmatprep.subr.bf16.mxu0 0
        %1750 = vmatpush1.bf16.msra.mxu0 0
        %1751 = vmatprep.subr.bf16.mxu0 0
        %1752 = vmatpush1.bf16.msra.mxu0 0
        %1753 = vmatprep.subr.bf16.mxu0 0
        %1754 = vmatpush1.bf16.msra.mxu0 0
        %1755 = vmatprep.mubr.bf16.mxu0 0
        %1756 = vmatmul.mubr.bf16.gmra.mrb[0].mxu0 %v1683
        %v1757 = vpop.f32.mrb[0].mxu0
        %v1758 = vadd.f32 0.0, %v1757
        %v1759 = vpop.f32.mrb[0].mxu0
        %v1760 = vpop.f32.mrb[0].mxu0
        %v1761 = vadd.f32 0.0, %v1760
        %v1762 = vpop.f32.mrb[0].mxu0
        %1763 = vmatprep.mubr.bf16.mxu0 0
        %1764 = vmatmul.mubr.bf16.gmra.mrb[0].mxu0 %v1684
        %v1765 = vpop.f32.mrb[0].mxu0
        %v1766 = vadd.f32 0.0, %v1765
        %v1767 = vpop.f32.mrb[0].mxu0
        %v1768 = vpop.f32.mrb[0].mxu0
        %v1769 = vadd.f32 0.0, %v1768
        %v1770 = vpop.f32.mrb[0].mxu0
        %1771 = vmatprep.mubr.bf16.mxu0 0
        %1772 = vmatmul.mubr.bf16.gmra.mrb[0].mxu0 %v1685
        %v1773 = vpop.f32.mrb[0].mxu0
        %v1774 = vadd.f32 0.0, %v1773
        %v1775 = vpop.f32.mrb[0].mxu0
        %v1776 = vpop.f32.mrb[0].mxu0
        %v1777 = vadd.f32 0.0, %v1776
        %v1778 = vpop.f32.mrb[0].mxu0
        %1779 = vmatprep.mubr.bf16.mxu0 0
        %1780 = vmatmul.mubr.bf16.gmra.mrb[0].mxu0 %v1686
        %v1781 = vpop.f32.mrb[0].mxu0
        %v1782 = vadd.f32 0.0, %v1781
        %v1783 = vpop.f32.mrb[0].mxu0
        %v1784 = vpop.f32.mrb[0].mxu0
        %v1785 = vadd.f32 0.0, %v1784
        %v1786 = vpop.f32.mrb[0].mxu0
        %1787 = vmatprep.mubr.bf16.mxu0 0
        %1788 = vmatmul.mubr.bf16.gmra.mrb[0].mxu0 %v1687
        %v1789 = vpop.f32.mrb[0].mxu0
        %v1790 = vadd.f32 0.0, %v1789
        %v1791 = vpop.f32.mrb[0].mxu0
        %v1792 = vpop.f32.mrb[0].mxu0
        %v1793 = vadd.f32 0.0, %v1792
        %v1794 = vpop.f32.mrb[0].mxu0
        %1795 = vmatprep.mubr.bf16.mxu0 0
        %1796 = vmatmul.mubr.bf16.gmra.mrb[0].mxu0 %v1688
        %v1797 = vpop.f32.mrb[0].mxu0
        %v1798 = vadd.f32 0.0, %v1797
        %v1799 = vpop.f32.mrb[0].mxu0
        %v1800 = vpop.f32.mrb[0].mxu0
        %v1801 = vadd.f32 0.0, %v1800
        %v1802 = vpop.f32.mrb[0].mxu0
        %1803 = vmatprep.mubr.bf16.mxu0 0
        %1804 = vmatmul.mubr.bf16.gmra.mrb[0].mxu0 %v1689
        %v1805 = vpop.f32.mrb[0].mxu0
        %v1806 = vadd.f32 0.0, %v1805
        %v1807 = vpop.f32.mrb[0].mxu0
        %v1808 = vpop.f32.mrb[0].mxu0
        %v1809 = vadd.f32 0.0, %v1808
        %v1810 = vpop.f32.mrb[0].mxu0
        %1811 = vmatprep.mubr.bf16.mxu0 0
        %1812 = vmatmul.mubr.bf16.gmra.mrb[0].mxu0 %v1690
        %v1813 = vpop.f32.mrb[0].mxu0
        %v1814 = vadd.f32 0.0, %v1813
        %v1815 = vpop.f32.mrb[0].mxu0
        %v1816 = vpop.f32.mrb[0].mxu0
        %v1817 = vadd.f32 0.0, %v1816
        %v1818 = vpop.f32.mrb[0].mxu0
        %1819 = vdwg.mxu0
        %v1820 = vmul.f32 %v1758, %v1667
        %v1821 = vmul.f32 %v1761, %v1668
        %v1822 = vmul.f32 %v1766, %v1669
        %v1823 = vmul.f32 %v1769, %v1670
        %v1824 = vmul.f32 %v1774, %v1671
        %v1825 = vmul.f32 %v1777, %v1672
        %v1826 = vmul.f32 %v1782, %v1673
        %v1827 = vmul.f32 %v1785, %v1674
        %v1828 = vmul.f32 %v1790, %v1675
        %v1829 = vmul.f32 %v1793, %v1676
        %v1830 = vmul.f32 %v1798, %v1677
        %v1831 = vmul.f32 %v1801, %v1678
        %v1832 = vmul.f32 %v1806, %v1679
        %v1833 = vmul.f32 %v1809, %v1680
        %v1834 = vmul.f32 %v1814, %v1681
        %v1835 = vmul.f32 %v1817, %v1682
        %v1836 = vpack.c.bf16 %v1821, %v1820
        %v1837 = vpack.c.bf16 %v1823, %v1822
        %v1838 = vpack.c.bf16 %v1825, %v1824
        %v1839 = vpack.c.bf16 %v1827, %v1826
        %v1840 = vpack.c.bf16 %v1829, %v1828
        %v1841 = vpack.c.bf16 %v1831, %v1830
        %v1842 = vpack.c.bf16 %v1833, %v1832
        %v1843 = vpack.c.bf16 %v1835, %v1834
        %1852 = vrot.lane.b32.xlu0 %v1836, 32
        %v1853 = vpop.permute.xlu0 %1852
        %1854 = vrot.lane.b32.xlu0 %v1837, 32
        %v1855 = vpop.permute.xlu0 %1854
        %1856 = vrot.lane.b32.xlu0 %v1838, 32
        %v1857 = vpop.permute.xlu0 %1856
        %1858 = vrot.lane.b32.xlu0 %v1839, 32
        %v1859 = vpop.permute.xlu0 %1858
        %1860 = vrot.lane.b32.xlu0 %v1840, 32
        %v1861 = vpop.permute.xlu0 %1860
        %1862 = vrot.lane.b32.xlu0 %v1841, 32
        %v1863 = vpop.permute.xlu0 %1862
        %1864 = vrot.lane.b32.xlu0 %v1842, 32
        %v1865 = vpop.permute.xlu0 %1864
        %1866 = vrot.lane.b32.xlu0 %v1843, 32
        %v1867 = vpop.permute.xlu0 %1866
        %vm1876 = vcmask 523520
        %1877 = vst.msk [vmem:[#allocation2] sm:$0xff] %vm1876, %v1853
        %1878 = vst.msk [vmem:[#allocation2 + $0x8] sm:$0xff] %vm1876, %v1855
        %1879 = vst.msk [vmem:[#allocation2 + $0x10] sm:$0xff] %vm1876, %v1857
        %1880 = vst.msk [vmem:[#allocation2 + $0x18] sm:$0xff] %vm1876, %v1859
        %1881 = vst.msk [vmem:[#allocation2 + $0x20] sm:$0xff] %vm1876, %v1861
        %1882 = vst.msk [vmem:[#allocation2 + $0x28] sm:$0xff] %vm1876, %v1863
        %1883 = vst.msk [vmem:[#allocation2 + $0x30] sm:$0xff] %vm1876, %v1865
        %1884 = vst.msk [vmem:[#allocation2 + $0x38] sm:$0xff] %vm1876, %v1867
        %1885 = vrot.lane.b32.xlu0 %v927, 64
        %v1886 = vpop.permute.xlu0 %1885
        %1887 = vrot.lane.b32.xlu0 %v928, 64
        %v1888 = vpop.permute.xlu0 %1887
        %1889 = vrot.lane.b32.xlu0 %v929, 64
        %v1890 = vpop.permute.xlu0 %1889
        %1891 = vrot.lane.b32.xlu0 %v930, 64
        %v1892 = vpop.permute.xlu0 %1891
        %1893 = vrot.lane.b32.xlu0 %v931, 64
        %v1894 = vpop.permute.xlu0 %1893
        %1895 = vrot.lane.b32.xlu0 %v932, 64
        %v1896 = vpop.permute.xlu0 %1895
        %1897 = vrot.lane.b32.xlu0 %v933, 64
        %v1898 = vpop.permute.xlu0 %1897
        %1899 = vrot.lane.b32.xlu0 %v934, 64
        %v1900 = vpop.permute.xlu0 %1899
        %1901 = vrot.lane.b32.xlu0 %v935, 64
        %v1902 = vpop.permute.xlu0 %1901
        %1903 = vrot.lane.b32.xlu0 %v936, 64
        %v1904 = vpop.permute.xlu0 %1903
        %1905 = vrot.lane.b32.xlu0 %v937, 64
        %v1906 = vpop.permute.xlu0 %1905
        %1907 = vrot.lane.b32.xlu0 %v938, 64
        %v1908 = vpop.permute.xlu0 %1907
        %1909 = vrot.lane.b32.xlu0 %v939, 64
        %v1910 = vpop.permute.xlu0 %1909
        %1911 = vrot.lane.b32.xlu0 %v940, 64
        %v1912 = vpop.permute.xlu0 %1911
        %1913 = vrot.lane.b32.xlu0 %v941, 64
        %v1914 = vpop.permute.xlu0 %1913
        %1915 = vrot.lane.b32.xlu0 %v942, 64
        %v1916 = vpop.permute.xlu0 %1915
        %v1918 = vsel %vm951, %v1886, 0
        %v1921 = vsel %vm951, %v1888, 0
        %v1924 = vsel %vm951, %v1890, 0
        %v1927 = vsel %vm951, %v1892, 0
        %v1930 = vsel %vm951, %v1894, 0
        %v1933 = vsel %vm951, %v1896, 0
        %v1936 = vsel %vm951, %v1898, 0
        %v1939 = vsel %vm951, %v1900, 0
        %v1942 = vsel %vm951, %v1902, 0
        %v1945 = vsel %vm951, %v1904, 0
        %v1948 = vsel %vm951, %v1906, 0
        %v1951 = vsel %vm951, %v1908, 0
        %v1954 = vsel %vm951, %v1910, 0
        %v1957 = vsel %vm951, %v1912, 0
        %v1960 = vsel %vm951, %v1914, 0
        %v1963 = vsel %vm951, %v1916, 0
        %1965 = vmatprep.subr.bf16.mxu0 0
        %1966 = vmatpush1.bf16.xpose.msra.mxu0 %v1942
        %1967 = vmatprep.subr.bf16.mxu0 0
        %1968 = vmatpush1.bf16.xpose.msra.mxu0 %v1945
        %1969 = vmatprep.subr.bf16.mxu0 0
        %1970 = vmatpush1.bf16.xpose.msra.mxu0 %v1948
        %1971 = vmatprep.subr.bf16.mxu0 0
        %1972 = vmatpush1.bf16.xpose.msra.mxu0 %v1951
        %1973 = vmatprep.subr.bf16.mxu0 0
        %1974 = vmatpush1.bf16.xpose.msra.mxu0 %v1954
        %1975 = vmatprep.subr.bf16.mxu0 0
        %1976 = vmatpush1.bf16.xpose.msra.mxu0 %v1957
        %1977 = vmatprep.subr.bf16.mxu0 0
        %1978 = vmatpush1.bf16.xpose.msra.mxu0 %v1960
        %1979 = vmatprep.subr.bf16.mxu0 0
        %1980 = vmatpush1.bf16.xpose.msra.mxu0 %v1963
        %1981 = vmatprep.subr.bf16.mxu0 0
        %1982 = vmatpush1.bf16.xpose.msra.mxu0 0
        %1983 = vmatprep.subr.bf16.mxu0 0
        %1984 = vmatpush1.bf16.xpose.msra.mxu0 0
        %1985 = vmatprep.subr.bf16.mxu0 0
        %1986 = vmatpush1.bf16.xpose.msra.mxu0 0
        %1987 = vmatprep.subr.bf16.mxu0 0
        %1988 = vmatpush1.bf16.xpose.msra.mxu0 0
        %1989 = vmatprep.subr.bf16.mxu0 0
        %1990 = vmatpush1.bf16.xpose.msra.mxu0 0
        %1991 = vmatprep.subr.bf16.mxu0 0
        %1992 = vmatpush1.bf16.xpose.msra.mxu0 0
        %1993 = vmatprep.subr.bf16.mxu0 0
        %1994 = vmatpush1.bf16.xpose.msra.mxu0 0
        %1995 = vmatprep.subr.bf16.mxu0 0
        %1996 = vmatpush1.bf16.xpose.msra.mxu0 0
        %1997 = vmatprep.mubr.bf16.mxu0 0
        %1998 = vmatmul.mubr.bf16.gmra.mrb[0].mxu0 %v1918
        %v1999 = vpop.f32.mrb[0].mxu0
        %v2000 = vadd.f32 0.0, %v1999
        %v2001 = vpop.f32.mrb[0].mxu0
        %v2002 = vpop.f32.mrb[0].mxu0
        %v2003 = vadd.f32 0.0, %v2002
        %v2004 = vpop.f32.mrb[0].mxu0
        %2005 = vmatprep.mubr.bf16.mxu0 0
        %2006 = vmatmul.mubr.bf16.gmra.mrb[0].mxu0 %v1921
        %v2007 = vpop.f32.mrb[0].mxu0
        %v2008 = vadd.f32 0.0, %v2007
        %v2009 = vpop.f32.mrb[0].mxu0
        %v2010 = vpop.f32.mrb[0].mxu0
        %v2011 = vadd.f32 0.0, %v2010
        %v2012 = vpop.f32.mrb[0].mxu0
        %2013 = vmatprep.mubr.bf16.mxu0 0
        %2014 = vmatmul.mubr.bf16.gmra.mrb[0].mxu0 %v1924
        %v2015 = vpop.f32.mrb[0].mxu0
        %v2016 = vadd.f32 0.0, %v2015
        %v2017 = vpop.f32.mrb[0].mxu0
        %v2018 = vpop.f32.mrb[0].mxu0
        %v2019 = vadd.f32 0.0, %v2018
        %v2020 = vpop.f32.mrb[0].mxu0
        %2021 = vmatprep.mubr.bf16.mxu0 0
        %2022 = vmatmul.mubr.bf16.gmra.mrb[0].mxu0 %v1927
        %v2023 = vpop.f32.mrb[0].mxu0
        %v2024 = vadd.f32 0.0, %v2023
        %v2025 = vpop.f32.mrb[0].mxu0
        %v2026 = vpop.f32.mrb[0].mxu0
        %v2027 = vadd.f32 0.0, %v2026
        %v2028 = vpop.f32.mrb[0].mxu0
        %2029 = vmatprep.mubr.bf16.mxu0 0
        %2030 = vmatmul.mubr.bf16.gmra.mrb[0].mxu0 %v1930
        %v2031 = vpop.f32.mrb[0].mxu0
        %v2032 = vadd.f32 0.0, %v2031
        %v2033 = vpop.f32.mrb[0].mxu0
        %v2034 = vpop.f32.mrb[0].mxu0
        %v2035 = vadd.f32 0.0, %v2034
        %v2036 = vpop.f32.mrb[0].mxu0
        %2037 = vmatprep.mubr.bf16.mxu0 0
        %2038 = vmatmul.mubr.bf16.gmra.mrb[0].mxu0 %v1933
        %v2039 = vpop.f32.mrb[0].mxu0
        %v2040 = vadd.f32 0.0, %v2039
        %v2041 = vpop.f32.mrb[0].mxu0
        %v2042 = vpop.f32.mrb[0].mxu0
        %v2043 = vadd.f32 0.0, %v2042
        %v2044 = vpop.f32.mrb[0].mxu0
        %2045 = vmatprep.mubr.bf16.mxu0 0
        %2046 = vmatmul.mubr.bf16.gmra.mrb[0].mxu0 %v1936
        %v2047 = vpop.f32.mrb[0].mxu0
        %v2048 = vadd.f32 0.0, %v2047
        %v2049 = vpop.f32.mrb[0].mxu0
        %v2050 = vpop.f32.mrb[0].mxu0
        %v2051 = vadd.f32 0.0, %v2050
        %v2052 = vpop.f32.mrb[0].mxu0
        %2053 = vmatprep.mubr.bf16.mxu0 0
        %2054 = vmatmul.mubr.bf16.gmra.mrb[0].mxu0 %v1939
        %v2055 = vpop.f32.mrb[0].mxu0
        %v2056 = vadd.f32 0.0, %v2055
        %v2057 = vpop.f32.mrb[0].mxu0
        %v2058 = vpop.f32.mrb[0].mxu0
        %v2059 = vadd.f32 0.0, %v2058
        %v2060 = vpop.f32.mrb[0].mxu0
        %2061 = vdwg.mxu0
        %2062 = vmax.xlane.f32.xlu0 %v2000
        %v2063 = vpop.xlane.xlu0 %2062
        %2064 = vmax.xlane.f32.xlu0 %v2003
        %v2065 = vpop.xlane.xlu0 %2064
        %2066 = vmax.xlane.f32.xlu0 %v2008
        %v2067 = vpop.xlane.xlu0 %2066
        %2068 = vmax.xlane.f32.xlu0 %v2011
        %v2069 = vpop.xlane.xlu0 %2068
        %2070 = vmax.xlane.f32.xlu0 %v2016
        %v2071 = vpop.xlane.xlu0 %2070
        %2072 = vmax.xlane.f32.xlu0 %v2019
        %v2073 = vpop.xlane.xlu0 %2072
        %2074 = vmax.xlane.f32.xlu0 %v2024
        %v2075 = vpop.xlane.xlu0 %2074
        %2076 = vmax.xlane.f32.xlu0 %v2027
        %v2077 = vpop.xlane.xlu0 %2076
        %2078 = vmax.xlane.f32.xlu0 %v2032
        %v2079 = vpop.xlane.xlu0 %2078
        %2080 = vmax.xlane.f32.xlu0 %v2035
        %v2081 = vpop.xlane.xlu0 %2080
        %2082 = vmax.xlane.f32.xlu0 %v2040
        %v2083 = vpop.xlane.xlu0 %2082
        %2084 = vmax.xlane.f32.xlu0 %v2043
        %v2085 = vpop.xlane.xlu0 %2084
        %2086 = vmax.xlane.f32.xlu0 %v2048
        %v2087 = vpop.xlane.xlu0 %2086
        %2088 = vmax.xlane.f32.xlu0 %v2051
        %v2089 = vpop.xlane.xlu0 %2088
        %2090 = vmax.xlane.f32.xlu0 %v2056
        %v2091 = vpop.xlane.xlu0 %2090
        %2092 = vmax.xlane.f32.xlu0 %v2059
        %v2093 = vpop.xlane.xlu0 %2092
        %v2094 = vsub.f32 %v2000, %v2063
        %v2095 = vsub.f32 %v2003, %v2065
        %v2096 = vsub.f32 %v2008, %v2067
        %v2097 = vsub.f32 %v2011, %v2069
        %v2098 = vsub.f32 %v2016, %v2071
        %v2099 = vsub.f32 %v2019, %v2073
        %v2100 = vsub.f32 %v2024, %v2075
        %v2101 = vsub.f32 %v2027, %v2077
        %v2102 = vsub.f32 %v2032, %v2079
        %v2103 = vsub.f32 %v2035, %v2081
        %v2104 = vsub.f32 %v2040, %v2083
        %v2105 = vsub.f32 %v2043, %v2085
        %v2106 = vsub.f32 %v2048, %v2087
        %v2107 = vsub.f32 %v2051, %v2089
        %v2108 = vsub.f32 %v2056, %v2091
        %v2109 = vsub.f32 %v2059, %v2093
        %v2110 = vmul.f32 %v2094, 1.442695
        %v2111 = vpow.pop %v2110
        %v2112 = vmul.f32 %v2095, 1.442695
        %v2113 = vpow.pop %v2112
        %v2114 = vmul.f32 %v2096, 1.442695
        %v2115 = vpow.pop %v2114
        %v2116 = vmul.f32 %v2097, 1.442695
        %v2117 = vpow.pop %v2116
        %v2118 = vmul.f32 %v2098, 1.442695
        %v2119 = vpow.pop %v2118
        %v2120 = vmul.f32 %v2099, 1.442695
        %v2121 = vpow.pop %v2120
        %v2122 = vmul.f32 %v2100, 1.442695
        %v2123 = vpow.pop %v2122
        %v2124 = vmul.f32 %v2101, 1.442695
        %v2125 = vpow.pop %v2124
        %v2126 = vmul.f32 %v2102, 1.442695
        %v2127 = vpow.pop %v2126
        %v2128 = vmul.f32 %v2103, 1.442695
        %v2129 = vpow.pop %v2128
        %v2130 = vmul.f32 %v2104, 1.442695
        %v2131 = vpow.pop %v2130
        %v2132 = vmul.f32 %v2105, 1.442695
        %v2133 = vpow.pop %v2132
        %v2134 = vmul.f32 %v2106, 1.442695
        %v2135 = vpow.pop %v2134
        %v2136 = vmul.f32 %v2107, 1.442695
        %v2137 = vpow.pop %v2136
        %v2138 = vmul.f32 %v2108, 1.442695
        %v2139 = vpow.pop %v2138
        %v2140 = vmul.f32 %v2109, 1.442695
        %v2141 = vpow.pop %v2140
        %2142 = vadd.xlane.f32.xlu0 %v2111
        %v2143 = vpop.xlane.xlu0 %2142
        %2144 = vadd.xlane.f32.xlu0 %v2113
        %v2145 = vpop.xlane.xlu0 %2144
        %2146 = vadd.xlane.f32.xlu0 %v2115
        %v2147 = vpop.xlane.xlu0 %2146
        %2148 = vadd.xlane.f32.xlu0 %v2117
        %v2149 = vpop.xlane.xlu0 %2148
        %2150 = vadd.xlane.f32.xlu0 %v2119
        %v2151 = vpop.xlane.xlu0 %2150
        %2152 = vadd.xlane.f32.xlu0 %v2121
        %v2153 = vpop.xlane.xlu0 %2152
        %2154 = vadd.xlane.f32.xlu0 %v2123
        %v2155 = vpop.xlane.xlu0 %2154
        %2156 = vadd.xlane.f32.xlu0 %v2125
        %v2157 = vpop.xlane.xlu0 %2156
        %2158 = vadd.xlane.f32.xlu0 %v2127
        %v2159 = vpop.xlane.xlu0 %2158
        %2160 = vadd.xlane.f32.xlu0 %v2129
        %v2161 = vpop.xlane.xlu0 %2160
        %2162 = vadd.xlane.f32.xlu0 %v2131
        %v2163 = vpop.xlane.xlu0 %2162
        %2164 = vadd.xlane.f32.xlu0 %v2133
        %v2165 = vpop.xlane.xlu0 %2164
        %2166 = vadd.xlane.f32.xlu0 %v2135
        %v2167 = vpop.xlane.xlu0 %2166
        %2168 = vadd.xlane.f32.xlu0 %v2137
        %v2169 = vpop.xlane.xlu0 %2168
        %2170 = vadd.xlane.f32.xlu0 %v2139
        %v2171 = vpop.xlane.xlu0 %2170
        %2172 = vadd.xlane.f32.xlu0 %v2141
        %v2173 = vpop.xlane.xlu0 %2172
        %v2174 = vrcp.pop %v2143
        %v2175 = vrcp.pop %v2145
        %v2176 = vrcp.pop %v2147
        %v2177 = vrcp.pop %v2149
        %v2178 = vrcp.pop %v2151
        %v2179 = vrcp.pop %v2153
        %v2180 = vrcp.pop %v2155
        %v2181 = vrcp.pop %v2157
        %v2182 = vrcp.pop %v2159
        %v2183 = vrcp.pop %v2161
        %v2184 = vrcp.pop %v2163
        %v2185 = vrcp.pop %v2165
        %v2186 = vrcp.pop %v2167
        %v2187 = vrcp.pop %v2169
        %v2188 = vrcp.pop %v2171
        %v2189 = vrcp.pop %v2173
        %v2190 = vpack.c.bf16 %v2113, %v2111
        %v2191 = vpack.c.bf16 %v2117, %v2115
        %v2192 = vpack.c.bf16 %v2121, %v2119
        %v2193 = vpack.c.bf16 %v2125, %v2123
        %v2194 = vpack.c.bf16 %v2129, %v2127
        %v2195 = vpack.c.bf16 %v2133, %v2131
        %v2196 = vpack.c.bf16 %v2137, %v2135
        %v2197 = vpack.c.bf16 %v2141, %v2139
        %2198 = vrot.lane.b32.xlu0 %v943, 64
        %v2199 = vpop.permute.xlu0 %2198
        %2200 = vrot.lane.b32.xlu0 %v944, 64
        %v2201 = vpop.permute.xlu0 %2200
        %2202 = vrot.lane.b32.xlu0 %v945, 64
        %v2203 = vpop.permute.xlu0 %2202
        %2204 = vrot.lane.b32.xlu0 %v946, 64
        %v2205 = vpop.permute.xlu0 %2204
        %2206 = vrot.lane.b32.xlu0 %v947, 64
        %v2207 = vpop.permute.xlu0 %2206
        %2208 = vrot.lane.b32.xlu0 %v948, 64
        %v2209 = vpop.permute.xlu0 %2208
        %2210 = vrot.lane.b32.xlu0 %v949, 64
        %v2211 = vpop.permute.xlu0 %2210
        %2212 = vrot.lane.b32.xlu0 %v950, 64
        %v2213 = vpop.permute.xlu0 %2212
        %2222 = vmatprep.subr.bf16.mxu0 0
        %2223 = vmatpush1.bf16.msra.mxu0 %v2199
        %2224 = vmatprep.subr.bf16.mxu0 0
        %2225 = vmatpush1.bf16.msra.mxu0 %v2201
        %2226 = vmatprep.subr.bf16.mxu0 0
        %2227 = vmatpush1.bf16.msra.mxu0 %v2203
        %2228 = vmatprep.subr.bf16.mxu0 0
        %2229 = vmatpush1.bf16.msra.mxu0 %v2205
        %2230 = vmatprep.subr.bf16.mxu0 0
        %2231 = vmatpush1.bf16.msra.mxu0 %v2207
        %2232 = vmatprep.subr.bf16.mxu0 0
        %2233 = vmatpush1.bf16.msra.mxu0 %v2209
        %2234 = vmatprep.subr.bf16.mxu0 0
        %2235 = vmatpush1.bf16.msra.mxu0 %v2211
        %2236 = vmatprep.subr.bf16.mxu0 0
        %2237 = vmatpush1.bf16.msra.mxu0 %v2213
        %2238 = vmatprep.subr.bf16.mxu0 0
        %2239 = vmatpush1.bf16.msra.mxu0 0
        %2240 = vmatprep.subr.bf16.mxu0 0
        %2241 = vmatpush1.bf16.msra.mxu0 0
        %2242 = vmatprep.subr.bf16.mxu0 0
        %2243 = vmatpush1.bf16.msra.mxu0 0
        %2244 = vmatprep.subr.bf16.mxu0 0
        %2245 = vmatpush1.bf16.msra.mxu0 0
        %2246 = vmatprep.subr.bf16.mxu0 0
        %2247 = vmatpush1.bf16.msra.mxu0 0
        %2248 = vmatprep.subr.bf16.mxu0 0
        %2249 = vmatpush1.bf16.msra.mxu0 0
        %2250 = vmatprep.subr.bf16.mxu0 0
        %2251 = vmatpush1.bf16.msra.mxu0 0
        %2252 = vmatprep.subr.bf16.mxu0 0
        %2253 = vmatpush1.bf16.msra.mxu0 0
        %2254 = vmatprep.mubr.bf16.mxu0 0
        %2255 = vmatmul.mubr.bf16.gmra.mrb[0].mxu0 %v2190
        %v2256 = vpop.f32.mrb[0].mxu0
        %v2257 = vadd.f32 0.0, %v2256
        %v2258 = vpop.f32.mrb[0].mxu0
        %v2259 = vpop.f32.mrb[0].mxu0
        %v2260 = vadd.f32 0.0, %v2259
        %v2261 = vpop.f32.mrb[0].mxu0
        %2262 = vmatprep.mubr.bf16.mxu0 0
        %2263 = vmatmul.mubr.bf16.gmra.mrb[0].mxu0 %v2191
        %v2264 = vpop.f32.mrb[0].mxu0
        %v2265 = vadd.f32 0.0, %v2264
        %v2266 = vpop.f32.mrb[0].mxu0
        %v2267 = vpop.f32.mrb[0].mxu0
        %v2268 = vadd.f32 0.0, %v2267
        %v2269 = vpop.f32.mrb[0].mxu0
        %2270 = vmatprep.mubr.bf16.mxu0 0
        %2271 = vmatmul.mubr.bf16.gmra.mrb[0].mxu0 %v2192
        %v2272 = vpop.f32.mrb[0].mxu0
        %v2273 = vadd.f32 0.0, %v2272
        %v2274 = vpop.f32.mrb[0].mxu0
        %v2275 = vpop.f32.mrb[0].mxu0
        %v2276 = vadd.f32 0.0, %v2275
        %v2277 = vpop.f32.mrb[0].mxu0
        %2278 = vmatprep.mubr.bf16.mxu0 0
        %2279 = vmatmul.mubr.bf16.gmra.mrb[0].mxu0 %v2193
        %v2280 = vpop.f32.mrb[0].mxu0
        %v2281 = vadd.f32 0.0, %v2280
        %v2282 = vpop.f32.mrb[0].mxu0
        %v2283 = vpop.f32.mrb[0].mxu0
        %v2284 = vadd.f32 0.0, %v2283
        %v2285 = vpop.f32.mrb[0].mxu0
        %2286 = vmatprep.mubr.bf16.mxu0 0
        %2287 = vmatmul.mubr.bf16.gmra.mrb[0].mxu0 %v2194
        %v2288 = vpop.f32.mrb[0].mxu0
        %v2289 = vadd.f32 0.0, %v2288
        %v2290 = vpop.f32.mrb[0].mxu0
        %v2291 = vpop.f32.mrb[0].mxu0
        %v2292 = vadd.f32 0.0, %v2291
        %v2293 = vpop.f32.mrb[0].mxu0
        %2294 = vmatprep.mubr.bf16.mxu0 0
        %2295 = vmatmul.mubr.bf16.gmra.mrb[0].mxu0 %v2195
        %v2296 = vpop.f32.mrb[0].mxu0
        %v2297 = vadd.f32 0.0, %v2296
        %v2298 = vpop.f32.mrb[0].mxu0
        %v2299 = vpop.f32.mrb[0].mxu0
        %v2300 = vadd.f32 0.0, %v2299
        %v2301 = vpop.f32.mrb[0].mxu0
        %2302 = vmatprep.mubr.bf16.mxu0 0
        %2303 = vmatmul.mubr.bf16.gmra.mrb[0].mxu0 %v2196
        %v2304 = vpop.f32.mrb[0].mxu0
        %v2305 = vadd.f32 0.0, %v2304
        %v2306 = vpop.f32.mrb[0].mxu0
        %v2307 = vpop.f32.mrb[0].mxu0
        %v2308 = vadd.f32 0.0, %v2307
        %v2309 = vpop.f32.mrb[0].mxu0
        %2310 = vmatprep.mubr.bf16.mxu0 0
        %2311 = vmatmul.mubr.bf16.gmra.mrb[0].mxu0 %v2197
        %v2312 = vpop.f32.mrb[0].mxu0
        %v2313 = vadd.f32 0.0, %v2312
        %v2314 = vpop.f32.mrb[0].mxu0
        %v2315 = vpop.f32.mrb[0].mxu0
        %v2316 = vadd.f32 0.0, %v2315
        %v2317 = vpop.f32.mrb[0].mxu0
        %2318 = vdwg.mxu0
        %v2319 = vmul.f32 %v2257, %v2174
        %v2320 = vmul.f32 %v2260, %v2175
        %v2321 = vmul.f32 %v2265, %v2176
        %v2322 = vmul.f32 %v2268, %v2177
        %v2323 = vmul.f32 %v2273, %v2178
        %v2324 = vmul.f32 %v2276, %v2179
        %v2325 = vmul.f32 %v2281, %v2180
        %v2326 = vmul.f32 %v2284, %v2181
        %v2327 = vmul.f32 %v2289, %v2182
        %v2328 = vmul.f32 %v2292, %v2183
        %v2329 = vmul.f32 %v2297, %v2184
        %v2330 = vmul.f32 %v2300, %v2185
        %v2331 = vmul.f32 %v2305, %v2186
        %v2332 = vmul.f32 %v2308, %v2187
        %v2333 = vmul.f32 %v2313, %v2188
        %v2334 = vmul.f32 %v2316, %v2189
        %v2335 = vpack.c.bf16 %v2320, %v2319
        %v2336 = vpack.c.bf16 %v2322, %v2321
        %v2337 = vpack.c.bf16 %v2324, %v2323
        %v2338 = vpack.c.bf16 %v2326, %v2325
        %v2339 = vpack.c.bf16 %v2328, %v2327
        %v2340 = vpack.c.bf16 %v2330, %v2329
        %v2341 = vpack.c.bf16 %v2332, %v2331
        %v2342 = vpack.c.bf16 %v2334, %v2333
        %2351 = vrot.lane.b32.xlu0 %v2335, 64
        %v2352 = vpop.permute.xlu0 %2351
        %2353 = vrot.lane.b32.xlu0 %v2336, 64
        %v2354 = vpop.permute.xlu0 %2353
        %2355 = vrot.lane.b32.xlu0 %v2337, 64
        %v2356 = vpop.permute.xlu0 %2355
        %2357 = vrot.lane.b32.xlu0 %v2338, 64
        %v2358 = vpop.permute.xlu0 %2357
        %2359 = vrot.lane.b32.xlu0 %v2339, 64
        %v2360 = vpop.permute.xlu0 %2359
        %2361 = vrot.lane.b32.xlu0 %v2340, 64
        %v2362 = vpop.permute.xlu0 %2361
        %2363 = vrot.lane.b32.xlu0 %v2341, 64
        %v2364 = vpop.permute.xlu0 %2363
        %2365 = vrot.lane.b32.xlu0 %v2342, 64
        %v2366 = vpop.permute.xlu0 %2365
        %vm2375 = vcmask 785920
        %2376 = vst.msk [vmem:[#allocation2] sm:$0xff] %vm2375, %v2352
        %2377 = vst.msk [vmem:[#allocation2 + $0x8] sm:$0xff] %vm2375, %v2354
        %2378 = vst.msk [vmem:[#allocation2 + $0x10] sm:$0xff] %vm2375, %v2356
        %2379 = vst.msk [vmem:[#allocation2 + $0x18] sm:$0xff] %vm2375, %v2358
        %2380 = vst.msk [vmem:[#allocation2 + $0x20] sm:$0xff] %vm2375, %v2360
        %2381 = vst.msk [vmem:[#allocation2 + $0x28] sm:$0xff] %vm2375, %v2362
        %2382 = vst.msk [vmem:[#allocation2 + $0x30] sm:$0xff] %vm2375, %v2364
        %2383 = vst.msk [vmem:[#allocation2 + $0x38] sm:$0xff] %vm2375, %v2366
        %2384 = vrot.lane.b32.xlu0 %v927, 32
        %v2385 = vpop.permute.xlu0 %2384
        %2386 = vrot.lane.b32.xlu0 %v928, 32
        %v2387 = vpop.permute.xlu0 %2386
        %2388 = vrot.lane.b32.xlu0 %v929, 32
        %v2389 = vpop.permute.xlu0 %2388
        %2390 = vrot.lane.b32.xlu0 %v930, 32
        %v2391 = vpop.permute.xlu0 %2390
        %2392 = vrot.lane.b32.xlu0 %v931, 32
        %v2393 = vpop.permute.xlu0 %2392
        %2394 = vrot.lane.b32.xlu0 %v932, 32
        %v2395 = vpop.permute.xlu0 %2394
        %2396 = vrot.lane.b32.xlu0 %v933, 32
        %v2397 = vpop.permute.xlu0 %2396
        %2398 = vrot.lane.b32.xlu0 %v934, 32
        %v2399 = vpop.permute.xlu0 %2398
        %2400 = vrot.lane.b32.xlu0 %v935, 32
        %v2401 = vpop.permute.xlu0 %2400
        %2402 = vrot.lane.b32.xlu0 %v936, 32
        %v2403 = vpop.permute.xlu0 %2402
        %2404 = vrot.lane.b32.xlu0 %v937, 32
        %v2405 = vpop.permute.xlu0 %2404
        %2406 = vrot.lane.b32.xlu0 %v938, 32
        %v2407 = vpop.permute.xlu0 %2406
        %2408 = vrot.lane.b32.xlu0 %v939, 32
        %v2409 = vpop.permute.xlu0 %2408
        %2410 = vrot.lane.b32.xlu0 %v940, 32
        %v2411 = vpop.permute.xlu0 %2410
        %2412 = vrot.lane.b32.xlu0 %v941, 32
        %v2413 = vpop.permute.xlu0 %2412
        %2414 = vrot.lane.b32.xlu0 %v942, 32
        %v2415 = vpop.permute.xlu0 %2414
        %v2417 = vsel %vm951, %v2385, 0
        %v2420 = vsel %vm951, %v2387, 0
        %v2423 = vsel %vm951, %v2389, 0
        %v2426 = vsel %vm951, %v2391, 0
        %v2429 = vsel %vm951, %v2393, 0
        %v2432 = vsel %vm951, %v2395, 0
        %v2435 = vsel %vm951, %v2397, 0
        %v2438 = vsel %vm951, %v2399, 0
        %v2441 = vsel %vm951, %v2401, 0
        %v2444 = vsel %vm951, %v2403, 0
        %v2447 = vsel %vm951, %v2405, 0
        %v2450 = vsel %vm951, %v2407, 0
        %v2453 = vsel %vm951, %v2409, 0
        %v2456 = vsel %vm951, %v2411, 0
        %v2459 = vsel %vm951, %v2413, 0
        %v2462 = vsel %vm951, %v2415, 0
        %2464 = vmatprep.subr.bf16.mxu0 0
        %2465 = vmatpush1.bf16.xpose.msra.mxu0 %v2441
        %2466 = vmatprep.subr.bf16.mxu0 0
        %2467 = vmatpush1.bf16.xpose.msra.mxu0 %v2444
        %2468 = vmatprep.subr.bf16.mxu0 0
        %2469 = vmatpush1.bf16.xpose.msra.mxu0 %v2447
        %2470 = vmatprep.subr.bf16.mxu0 0
        %2471 = vmatpush1.bf16.xpose.msra.mxu0 %v2450
        %2472 = vmatprep.subr.bf16.mxu0 0
        %2473 = vmatpush1.bf16.xpose.msra.mxu0 %v2453
        %2474 = vmatprep.subr.bf16.mxu0 0
        %2475 = vmatpush1.bf16.xpose.msra.mxu0 %v2456
        %2476 = vmatprep.subr.bf16.mxu0 0
        %2477 = vmatpush1.bf16.xpose.msra.mxu0 %v2459
        %2478 = vmatprep.subr.bf16.mxu0 0
        %2479 = vmatpush1.bf16.xpose.msra.mxu0 %v2462
        %2480 = vmatprep.subr.bf16.mxu0 0
        %2481 = vmatpush1.bf16.xpose.msra.mxu0 0
        %2482 = vmatprep.subr.bf16.mxu0 0
        %2483 = vmatpush1.bf16.xpose.msra.mxu0 0
        %2484 = vmatprep.subr.bf16.mxu0 0
        %2485 = vmatpush1.bf16.xpose.msra.mxu0 0
        %2486 = vmatprep.subr.bf16.mxu0 0
        %2487 = vmatpush1.bf16.xpose.msra.mxu0 0
        %2488 = vmatprep.subr.bf16.mxu0 0
        %2489 = vmatpush1.bf16.xpose.msra.mxu0 0
        %2490 = vmatprep.subr.bf16.mxu0 0
        %2491 = vmatpush1.bf16.xpose.msra.mxu0 0
        %2492 = vmatprep.subr.bf16.mxu0 0
        %2493 = vmatpush1.bf16.xpose.msra.mxu0 0
        %2494 = vmatprep.subr.bf16.mxu0 0
        %2495 = vmatpush1.bf16.xpose.msra.mxu0 0
        %2496 = vmatprep.mubr.bf16.mxu0 0
        %2497 = vmatmul.mubr.bf16.gmra.mrb[0].mxu0 %v2417
        %v2498 = vpop.f32.mrb[0].mxu0
        %v2499 = vadd.f32 0.0, %v2498
        %v2500 = vpop.f32.mrb[0].mxu0
        %v2501 = vpop.f32.mrb[0].mxu0
        %v2502 = vadd.f32 0.0, %v2501
        %v2503 = vpop.f32.mrb[0].mxu0
        %2504 = vmatprep.mubr.bf16.mxu0 0
        %2505 = vmatmul.mubr.bf16.gmra.mrb[0].mxu0 %v2420
        %v2506 = vpop.f32.mrb[0].mxu0
        %v2507 = vadd.f32 0.0, %v2506
        %v2508 = vpop.f32.mrb[0].mxu0
        %v2509 = vpop.f32.mrb[0].mxu0
        %v2510 = vadd.f32 0.0, %v2509
        %v2511 = vpop.f32.mrb[0].mxu0
        %2512 = vmatprep.mubr.bf16.mxu0 0
        %2513 = vmatmul.mubr.bf16.gmra.mrb[0].mxu0 %v2423
        %v2514 = vpop.f32.mrb[0].mxu0
        %v2515 = vadd.f32 0.0, %v2514
        %v2516 = vpop.f32.mrb[0].mxu0
        %v2517 = vpop.f32.mrb[0].mxu0
        %v2518 = vadd.f32 0.0, %v2517
        %v2519 = vpop.f32.mrb[0].mxu0
        %2520 = vmatprep.mubr.bf16.mxu0 0
        %2521 = vmatmul.mubr.bf16.gmra.mrb[0].mxu0 %v2426
        %v2522 = vpop.f32.mrb[0].mxu0
        %v2523 = vadd.f32 0.0, %v2522
        %v2524 = vpop.f32.mrb[0].mxu0
        %v2525 = vpop.f32.mrb[0].mxu0
        %v2526 = vadd.f32 0.0, %v2525
        %v2527 = vpop.f32.mrb[0].mxu0
        %2528 = vmatprep.mubr.bf16.mxu0 0
        %2529 = vmatmul.mubr.bf16.gmra.mrb[0].mxu0 %v2429
        %v2530 = vpop.f32.mrb[0].mxu0
        %v2531 = vadd.f32 0.0, %v2530
        %v2532 = vpop.f32.mrb[0].mxu0
        %v2533 = vpop.f32.mrb[0].mxu0
        %v2534 = vadd.f32 0.0, %v2533
        %v2535 = vpop.f32.mrb[0].mxu0
        %2536 = vmatprep.mubr.bf16.mxu0 0
        %2537 = vmatmul.mubr.bf16.gmra.mrb[0].mxu0 %v2432
        %v2538 = vpop.f32.mrb[0].mxu0
        %v2539 = vadd.f32 0.0, %v2538
        %v2540 = vpop.f32.mrb[0].mxu0
        %v2541 = vpop.f32.mrb[0].mxu0
        %v2542 = vadd.f32 0.0, %v2541
        %v2543 = vpop.f32.mrb[0].mxu0
        %2544 = vmatprep.mubr.bf16.mxu0 0
        %2545 = vmatmul.mubr.bf16.gmra.mrb[0].mxu0 %v2435
        %v2546 = vpop.f32.mrb[0].mxu0
        %v2547 = vadd.f32 0.0, %v2546
        %v2548 = vpop.f32.mrb[0].mxu0
        %v2549 = vpop.f32.mrb[0].mxu0
        %v2550 = vadd.f32 0.0, %v2549
        %v2551 = vpop.f32.mrb[0].mxu0
        %2552 = vmatprep.mubr.bf16.mxu0 0
        %2553 = vmatmul.mubr.bf16.gmra.mrb[0].mxu0 %v2438
        %v2554 = vpop.f32.mrb[0].mxu0
        %v2555 = vadd.f32 0.0, %v2554
        %v2556 = vpop.f32.mrb[0].mxu0
        %v2557 = vpop.f32.mrb[0].mxu0
        %v2558 = vadd.f32 0.0, %v2557
        %v2559 = vpop.f32.mrb[0].mxu0
        %2560 = vdwg.mxu0
        %2561 = vmax.xlane.f32.xlu0 %v2499
        %v2562 = vpop.xlane.xlu0 %2561
        %2563 = vmax.xlane.f32.xlu0 %v2502
        %v2564 = vpop.xlane.xlu0 %2563
        %2565 = vmax.xlane.f32.xlu0 %v2507
        %v2566 = vpop.xlane.xlu0 %2565
        %2567 = vmax.xlane.f32.xlu0 %v2510
        %v2568 = vpop.xlane.xlu0 %2567
        %2569 = vmax.xlane.f32.xlu0 %v2515
        %v2570 = vpop.xlane.xlu0 %2569
        %2571 = vmax.xlane.f32.xlu0 %v2518
        %v2572 = vpop.xlane.xlu0 %2571
        %2573 = vmax.xlane.f32.xlu0 %v2523
        %v2574 = vpop.xlane.xlu0 %2573
        %2575 = vmax.xlane.f32.xlu0 %v2526
        %v2576 = vpop.xlane.xlu0 %2575
        %2577 = vmax.xlane.f32.xlu0 %v2531
        %v2578 = vpop.xlane.xlu0 %2577
        %2579 = vmax.xlane.f32.xlu0 %v2534
        %v2580 = vpop.xlane.xlu0 %2579
        %2581 = vmax.xlane.f32.xlu0 %v2539
        %v2582 = vpop.xlane.xlu0 %2581
        %2583 = vmax.xlane.f32.xlu0 %v2542
        %v2584 = vpop.xlane.xlu0 %2583
        %2585 = vmax.xlane.f32.xlu0 %v2547
        %v2586 = vpop.xlane.xlu0 %2585
        %2587 = vmax.xlane.f32.xlu0 %v2550
        %v2588 = vpop.xlane.xlu0 %2587
        %2589 = vmax.xlane.f32.xlu0 %v2555
        %v2590 = vpop.xlane.xlu0 %2589
        %2591 = vmax.xlane.f32.xlu0 %v2558
        %v2592 = vpop.xlane.xlu0 %2591
        %v2593 = vsub.f32 %v2499, %v2562
        %v2594 = vsub.f32 %v2502, %v2564
        %v2595 = vsub.f32 %v2507, %v2566
        %v2596 = vsub.f32 %v2510, %v2568
        %v2597 = vsub.f32 %v2515, %v2570
        %v2598 = vsub.f32 %v2518, %v2572
        %v2599 = vsub.f32 %v2523, %v2574
        %v2600 = vsub.f32 %v2526, %v2576
        %v2601 = vsub.f32 %v2531, %v2578
        %v2602 = vsub.f32 %v2534, %v2580
        %v2603 = vsub.f32 %v2539, %v2582
        %v2604 = vsub.f32 %v2542, %v2584
        %v2605 = vsub.f32 %v2547, %v2586
        %v2606 = vsub.f32 %v2550, %v2588
        %v2607 = vsub.f32 %v2555, %v2590
        %v2608 = vsub.f32 %v2558, %v2592
        %v2609 = vmul.f32 %v2593, 1.442695
        %v2610 = vpow.pop %v2609
        %v2611 = vmul.f32 %v2594, 1.442695
        %v2612 = vpow.pop %v2611
        %v2613 = vmul.f32 %v2595, 1.442695
        %v2614 = vpow.pop %v2613
        %v2615 = vmul.f32 %v2596, 1.442695
        %v2616 = vpow.pop %v2615
        %v2617 = vmul.f32 %v2597, 1.442695
        %v2618 = vpow.pop %v2617
        %v2619 = vmul.f32 %v2598, 1.442695
        %v2620 = vpow.pop %v2619
        %v2621 = vmul.f32 %v2599, 1.442695
        %v2622 = vpow.pop %v2621
        %v2623 = vmul.f32 %v2600, 1.442695
        %v2624 = vpow.pop %v2623
        %v2625 = vmul.f32 %v2601, 1.442695
        %v2626 = vpow.pop %v2625
        %v2627 = vmul.f32 %v2602, 1.442695
        %v2628 = vpow.pop %v2627
        %v2629 = vmul.f32 %v2603, 1.442695
        %v2630 = vpow.pop %v2629
        %v2631 = vmul.f32 %v2604, 1.442695
        %v2632 = vpow.pop %v2631
        %v2633 = vmul.f32 %v2605, 1.442695
        %v2634 = vpow.pop %v2633
        %v2635 = vmul.f32 %v2606, 1.442695
        %v2636 = vpow.pop %v2635
        %v2637 = vmul.f32 %v2607, 1.442695
        %v2638 = vpow.pop %v2637
        %v2639 = vmul.f32 %v2608, 1.442695
        %v2640 = vpow.pop %v2639
        %2641 = vadd.xlane.f32.xlu0 %v2610
        %v2642 = vpop.xlane.xlu0 %2641
        %2643 = vadd.xlane.f32.xlu0 %v2612
        %v2644 = vpop.xlane.xlu0 %2643
        %2645 = vadd.xlane.f32.xlu0 %v2614
        %v2646 = vpop.xlane.xlu0 %2645
        %2647 = vadd.xlane.f32.xlu0 %v2616
        %v2648 = vpop.xlane.xlu0 %2647
        %2649 = vadd.xlane.f32.xlu0 %v2618
        %v2650 = vpop.xlane.xlu0 %2649
        %2651 = vadd.xlane.f32.xlu0 %v2620
        %v2652 = vpop.xlane.xlu0 %2651
        %2653 = vadd.xlane.f32.xlu0 %v2622
        %v2654 = vpop.xlane.xlu0 %2653
        %2655 = vadd.xlane.f32.xlu0 %v2624
        %v2656 = vpop.xlane.xlu0 %2655
        %2657 = vadd.xlane.f32.xlu0 %v2626
        %v2658 = vpop.xlane.xlu0 %2657
        %2659 = vadd.xlane.f32.xlu0 %v2628
        %v2660 = vpop.xlane.xlu0 %2659
        %2661 = vadd.xlane.f32.xlu0 %v2630
        %v2662 = vpop.xlane.xlu0 %2661
        %2663 = vadd.xlane.f32.xlu0 %v2632
        %v2664 = vpop.xlane.xlu0 %2663
        %2665 = vadd.xlane.f32.xlu0 %v2634
        %v2666 = vpop.xlane.xlu0 %2665
        %2667 = vadd.xlane.f32.xlu0 %v2636
        %v2668 = vpop.xlane.xlu0 %2667
        %2669 = vadd.xlane.f32.xlu0 %v2638
        %v2670 = vpop.xlane.xlu0 %2669
        %2671 = vadd.xlane.f32.xlu0 %v2640
        %v2672 = vpop.xlane.xlu0 %2671
        %v2673 = vrcp.pop %v2642
        %v2674 = vrcp.pop %v2644
        %v2675 = vrcp.pop %v2646
        %v2676 = vrcp.pop %v2648
        %v2677 = vrcp.pop %v2650
        %v2678 = vrcp.pop %v2652
        %v2679 = vrcp.pop %v2654
        %v2680 = vrcp.pop %v2656
        %v2681 = vrcp.pop %v2658
        %v2682 = vrcp.pop %v2660
        %v2683 = vrcp.pop %v2662
        %v2684 = vrcp.pop %v2664
        %v2685 = vrcp.pop %v2666
        %v2686 = vrcp.pop %v2668
        %v2687 = vrcp.pop %v2670
        %v2688 = vrcp.pop %v2672
        %v2689 = vpack.c.bf16 %v2612, %v2610
        %v2690 = vpack.c.bf16 %v2616, %v2614
        %v2691 = vpack.c.bf16 %v2620, %v2618
        %v2692 = vpack.c.bf16 %v2624, %v2622
        %v2693 = vpack.c.bf16 %v2628, %v2626
        %v2694 = vpack.c.bf16 %v2632, %v2630
        %v2695 = vpack.c.bf16 %v2636, %v2634
        %v2696 = vpack.c.bf16 %v2640, %v2638
        %2697 = vrot.lane.b32.xlu0 %v943, 32
        %v2698 = vpop.permute.xlu0 %2697
        %2699 = vrot.lane.b32.xlu0 %v944, 32
        %v2700 = vpop.permute.xlu0 %2699
        %2701 = vrot.lane.b32.xlu0 %v945, 32
        %v2702 = vpop.permute.xlu0 %2701
        %2703 = vrot.lane.b32.xlu0 %v946, 32
        %v2704 = vpop.permute.xlu0 %2703
        %2705 = vrot.lane.b32.xlu0 %v947, 32
        %v2706 = vpop.permute.xlu0 %2705
        %2707 = vrot.lane.b32.xlu0 %v948, 32
        %v2708 = vpop.permute.xlu0 %2707
        %2709 = vrot.lane.b32.xlu0 %v949, 32
        %v2710 = vpop.permute.xlu0 %2709
        %2711 = vrot.lane.b32.xlu0 %v950, 32
        %v2712 = vpop.permute.xlu0 %2711
        %2721 = vmatprep.subr.bf16.mxu0 0
        %2722 = vmatpush1.bf16.msra.mxu0 %v2698
        %2723 = vmatprep.subr.bf16.mxu0 0
        %2724 = vmatpush1.bf16.msra.mxu0 %v2700
        %2725 = vmatprep.subr.bf16.mxu0 0
        %2726 = vmatpush1.bf16.msra.mxu0 %v2702
        %2727 = vmatprep.subr.bf16.mxu0 0
        %2728 = vmatpush1.bf16.msra.mxu0 %v2704
        %2729 = vmatprep.subr.bf16.mxu0 0
        %2730 = vmatpush1.bf16.msra.mxu0 %v2706
        %2731 = vmatprep.subr.bf16.mxu0 0
        %2732 = vmatpush1.bf16.msra.mxu0 %v2708
        %2733 = vmatprep.subr.bf16.mxu0 0
        %2734 = vmatpush1.bf16.msra.mxu0 %v2710
        %2735 = vmatprep.subr.bf16.mxu0 0
        %2736 = vmatpush1.bf16.msra.mxu0 %v2712
        %2737 = vmatprep.subr.bf16.mxu0 0
        %2738 = vmatpush1.bf16.msra.mxu0 0
        %2739 = vmatprep.subr.bf16.mxu0 0
        %2740 = vmatpush1.bf16.msra.mxu0 0
        %2741 = vmatprep.subr.bf16.mxu0 0
        %2742 = vmatpush1.bf16.msra.mxu0 0
        %2743 = vmatprep.subr.bf16.mxu0 0
        %2744 = vmatpush1.bf16.msra.mxu0 0
        %2745 = vmatprep.subr.bf16.mxu0 0
        %2746 = vmatpush1.bf16.msra.mxu0 0
        %2747 = vmatprep.subr.bf16.mxu0 0
        %2748 = vmatpush1.bf16.msra.mxu0 0
        %2749 = vmatprep.subr.bf16.mxu0 0
        %2750 = vmatpush1.bf16.msra.mxu0 0
        %2751 = vmatprep.subr.bf16.mxu0 0
        %2752 = vmatpush1.bf16.msra.mxu0 0
        %2753 = vmatprep.mubr.bf16.mxu0 0
        %2754 = vmatmul.mubr.bf16.gmra.mrb[0].mxu0 %v2689
        %v2755 = vpop.f32.mrb[0].mxu0
        %v2756 = vadd.f32 0.0, %v2755
        %v2757 = vpop.f32.mrb[0].mxu0
        %v2758 = vpop.f32.mrb[0].mxu0
        %v2759 = vadd.f32 0.0, %v2758
        %v2760 = vpop.f32.mrb[0].mxu0
        %2761 = vmatprep.mubr.bf16.mxu0 0
        %2762 = vmatmul.mubr.bf16.gmra.mrb[0].mxu0 %v2690
        %v2763 = vpop.f32.mrb[0].mxu0
        %v2764 = vadd.f32 0.0, %v2763
        %v2765 = vpop.f32.mrb[0].mxu0
        %v2766 = vpop.f32.mrb[0].mxu0
        %v2767 = vadd.f32 0.0, %v2766
        %v2768 = vpop.f32.mrb[0].mxu0
        %2769 = vmatprep.mubr.bf16.mxu0 0
        %2770 = vmatmul.mubr.bf16.gmra.mrb[0].mxu0 %v2691
        %v2771 = vpop.f32.mrb[0].mxu0
        %v2772 = vadd.f32 0.0, %v2771
        %v2773 = vpop.f32.mrb[0].mxu0
        %v2774 = vpop.f32.mrb[0].mxu0
        %v2775 = vadd.f32 0.0, %v2774
        %v2776 = vpop.f32.mrb[0].mxu0
        %2777 = vmatprep.mubr.bf16.mxu0 0
        %2778 = vmatmul.mubr.bf16.gmra.mrb[0].mxu0 %v2692
        %v2779 = vpop.f32.mrb[0].mxu0
        %v2780 = vadd.f32 0.0, %v2779
        %v2781 = vpop.f32.mrb[0].mxu0
        %v2782 = vpop.f32.mrb[0].mxu0
        %v2783 = vadd.f32 0.0, %v2782
        %v2784 = vpop.f32.mrb[0].mxu0
        %2785 = vmatprep.mubr.bf16.mxu0 0
        %2786 = vmatmul.mubr.bf16.gmra.mrb[0].mxu0 %v2693
        %v2787 = vpop.f32.mrb[0].mxu0
        %v2788 = vadd.f32 0.0, %v2787
        %v2789 = vpop.f32.mrb[0].mxu0
        %v2790 = vpop.f32.mrb[0].mxu0
        %v2791 = vadd.f32 0.0, %v2790
        %v2792 = vpop.f32.mrb[0].mxu0
        %2793 = vmatprep.mubr.bf16.mxu0 0
        %2794 = vmatmul.mubr.bf16.gmra.mrb[0].mxu0 %v2694
        %v2795 = vpop.f32.mrb[0].mxu0
        %v2796 = vadd.f32 0.0, %v2795
        %v2797 = vpop.f32.mrb[0].mxu0
        %v2798 = vpop.f32.mrb[0].mxu0
        %v2799 = vadd.f32 0.0, %v2798
        %v2800 = vpop.f32.mrb[0].mxu0
        %2801 = vmatprep.mubr.bf16.mxu0 0
        %2802 = vmatmul.mubr.bf16.gmra.mrb[0].mxu0 %v2695
        %v2803 = vpop.f32.mrb[0].mxu0
        %v2804 = vadd.f32 0.0, %v2803
        %v2805 = vpop.f32.mrb[0].mxu0
        %v2806 = vpop.f32.mrb[0].mxu0
        %v2807 = vadd.f32 0.0, %v2806
        %v2808 = vpop.f32.mrb[0].mxu0
        %2809 = vmatprep.mubr.bf16.mxu0 0
        %2810 = vmatmul.mubr.bf16.gmra.mrb[0].mxu0 %v2696
        %v2811 = vpop.f32.mrb[0].mxu0
        %v2812 = vadd.f32 0.0, %v2811
        %v2813 = vpop.f32.mrb[0].mxu0
        %v2814 = vpop.f32.mrb[0].mxu0
        %v2815 = vadd.f32 0.0, %v2814
        %v2816 = vpop.f32.mrb[0].mxu0
        %2817 = vdwg.mxu0
        %v2818 = vmul.f32 %v2756, %v2673
        %v2819 = vmul.f32 %v2759, %v2674
        %v2820 = vmul.f32 %v2764, %v2675
        %v2821 = vmul.f32 %v2767, %v2676
        %v2822 = vmul.f32 %v2772, %v2677
        %v2823 = vmul.f32 %v2775, %v2678
        %v2824 = vmul.f32 %v2780, %v2679
        %v2825 = vmul.f32 %v2783, %v2680
        %v2826 = vmul.f32 %v2788, %v2681
        %v2827 = vmul.f32 %v2791, %v2682
        %v2828 = vmul.f32 %v2796, %v2683
        %v2829 = vmul.f32 %v2799, %v2684
        %v2830 = vmul.f32 %v2804, %v2685
        %v2831 = vmul.f32 %v2807, %v2686
        %v2832 = vmul.f32 %v2812, %v2687
        %v2833 = vmul.f32 %v2815, %v2688
        %v2834 = vpack.c.bf16 %v2819, %v2818
        %v2835 = vpack.c.bf16 %v2821, %v2820
        %v2836 = vpack.c.bf16 %v2823, %v2822
        %v2837 = vpack.c.bf16 %v2825, %v2824
        %v2838 = vpack.c.bf16 %v2827, %v2826
        %v2839 = vpack.c.bf16 %v2829, %v2828
        %v2840 = vpack.c.bf16 %v2831, %v2830
        %v2841 = vpack.c.bf16 %v2833, %v2832
        %2850 = vrot.lane.b32.xlu0 %v2834, 96
        %v2851 = vpop.permute.xlu0 %2850
        %2852 = vrot.lane.b32.xlu0 %v2835, 96
        %v2853 = vpop.permute.xlu0 %2852
        %2854 = vrot.lane.b32.xlu0 %v2836, 96
        %v2855 = vpop.permute.xlu0 %2854
        %2856 = vrot.lane.b32.xlu0 %v2837, 96
        %v2857 = vpop.permute.xlu0 %2856
        %2858 = vrot.lane.b32.xlu0 %v2838, 96
        %v2859 = vpop.permute.xlu0 %2858
        %2860 = vrot.lane.b32.xlu0 %v2839, 96
        %v2861 = vpop.permute.xlu0 %2860
        %2862 = vrot.lane.b32.xlu0 %v2840, 96
        %v2863 = vpop.permute.xlu0 %2862
        %2864 = vrot.lane.b32.xlu0 %v2841, 96
        %v2865 = vpop.permute.xlu0 %2864
        %vm2874 = vcmask 1048320
        %2875 = vst.msk [vmem:[#allocation2] sm:$0xff] %vm2874, %v2851
        %2876 = vst.msk [vmem:[#allocation2 + $0x8] sm:$0xff] %vm2874, %v2853
        %2877 = vst.msk [vmem:[#allocation2 + $0x10] sm:$0xff] %vm2874, %v2855
        %2878 = vst.msk [vmem:[#allocation2 + $0x18] sm:$0xff] %vm2874, %v2857
        %2879 = vst.msk [vmem:[#allocation2 + $0x20] sm:$0xff] %vm2874, %v2859
        %2880 = vst.msk [vmem:[#allocation2 + $0x28] sm:$0xff] %vm2874, %v2861
        %2881 = vst.msk [vmem:[#allocation2 + $0x30] sm:$0xff] %vm2874, %v2863
        %2882 = vst.msk [vmem:[#allocation2 + $0x38] sm:$0xff] %vm2874, %v2865
        %v2883 = vpack.c.bf16 %v692, %v688
        %v2884 = vpack.c.bf16 %v702, %v698
        %v2885 = vpack.c.bf16 %v712, %v708
        %v2886 = vpack.c.bf16 %v722, %v718
        %v2887 = vpack.c.bf16 %v732, %v728
        %v2888 = vpack.c.bf16 %v742, %v738
        %v2889 = vpack.c.bf16 %v752, %v748
        %v2890 = vpack.c.bf16 %v762, %v758
        %v2891 = vpack.c.bf16 %v694, %v690
        %v2892 = vpack.c.bf16 %v704, %v700
        %v2893 = vpack.c.bf16 %v714, %v710
        %v2894 = vpack.c.bf16 %v724, %v720
        %v2895 = vpack.c.bf16 %v734, %v730
        %v2896 = vpack.c.bf16 %v744, %v740
        %v2897 = vpack.c.bf16 %v754, %v750
        %v2898 = vpack.c.bf16 %v764, %v760
        %v2899 = vpack.c.bf16 %v868, %v865
        %v2900 = vpack.c.bf16 %v876, %v873
        %v2901 = vpack.c.bf16 %v884, %v881
        %v2902 = vpack.c.bf16 %v892, %v889
        %v2903 = vpack.c.bf16 %v900, %v897
        %v2904 = vpack.c.bf16 %v908, %v905
        %v2905 = vpack.c.bf16 %v916, %v913
        %v2906 = vpack.c.bf16 %v924, %v921
        %v2908 = vsel %vm951, %v2883, 0
        %v2911 = vsel %vm951, %v2884, 0
        %v2914 = vsel %vm951, %v2885, 0
        %v2917 = vsel %vm951, %v2886, 0
        %v2920 = vsel %vm951, %v2887, 0
        %v2923 = vsel %vm951, %v2888, 0
        %v2926 = vsel %vm951, %v2889, 0
        %v2929 = vsel %vm951, %v2890, 0
        %v2932 = vsel %vm951, %v2891, 0
        %v2935 = vsel %vm951, %v2892, 0
        %v2938 = vsel %vm951, %v2893, 0
        %v2941 = vsel %vm951, %v2894, 0
        %v2944 = vsel %vm951, %v2895, 0
        %v2947 = vsel %vm951, %v2896, 0
        %v2950 = vsel %vm951, %v2897, 0
        %v2953 = vsel %vm951, %v2898, 0
        %2955 = vmatprep.subr.bf16.mxu0 0
        %2956 = vmatpush1.bf16.xpose.msra.mxu0 %v2932
        %2957 = vmatprep.subr.bf16.mxu0 0
        %2958 = vmatpush1.bf16.xpose.msra.mxu0 %v2935
        %2959 = vmatprep.subr.bf16.mxu0 0
        %2960 = vmatpush1.bf16.xpose.msra.mxu0 %v2938
        %2961 = vmatprep.subr.bf16.mxu0 0
        %2962 = vmatpush1.bf16.xpose.msra.mxu0 %v2941
        %2963 = vmatprep.subr.bf16.mxu0 0
        %2964 = vmatpush1.bf16.xpose.msra.mxu0 %v2944
        %2965 = vmatprep.subr.bf16.mxu0 0
        %2966 = vmatpush1.bf16.xpose.msra.mxu0 %v2947
        %2967 = vmatprep.subr.bf16.mxu0 0
        %2968 = vmatpush1.bf16.xpose.msra.mxu0 %v2950
        %2969 = vmatprep.subr.bf16.mxu0 0
        %2970 = vmatpush1.bf16.xpose.msra.mxu0 %v2953
        %2971 = vmatprep.subr.bf16.mxu0 0
        %2972 = vmatpush1.bf16.xpose.msra.mxu0 0
        %2973 = vmatprep.subr.bf16.mxu0 0
        %2974 = vmatpush1.bf16.xpose.msra.mxu0 0
        %2975 = vmatprep.subr.bf16.mxu0 0
        %2976 = vmatpush1.bf16.xpose.msra.mxu0 0
        %2977 = vmatprep.subr.bf16.mxu0 0
        %2978 = vmatpush1.bf16.xpose.msra.mxu0 0
        %2979 = vmatprep.subr.bf16.mxu0 0
        %2980 = vmatpush1.bf16.xpose.msra.mxu0 0
        %2981 = vmatprep.subr.bf16.mxu0 0
        %2982 = vmatpush1.bf16.xpose.msra.mxu0 0
        %2983 = vmatprep.subr.bf16.mxu0 0
        %2984 = vmatpush1.bf16.xpose.msra.mxu0 0
        %2985 = vmatprep.subr.bf16.mxu0 0
        %2986 = vmatpush1.bf16.xpose.msra.mxu0 0
        %2987 = vmatprep.mubr.bf16.mxu0 0
        %2988 = vmatmul.mubr.bf16.gmra.mrb[0].mxu0 %v2908
        %v2989 = vpop.f32.mrb[0].mxu0
        %v2990 = vadd.f32 0.0, %v2989
        %v2991 = vpop.f32.mrb[0].mxu0
        %v2992 = vpop.f32.mrb[0].mxu0
        %v2993 = vadd.f32 0.0, %v2992
        %v2994 = vpop.f32.mrb[0].mxu0
        %2995 = vmatprep.mubr.bf16.mxu0 0
        %2996 = vmatmul.mubr.bf16.gmra.mrb[0].mxu0 %v2911
        %v2997 = vpop.f32.mrb[0].mxu0
        %v2998 = vadd.f32 0.0, %v2997
        %v2999 = vpop.f32.mrb[0].mxu0
        %v3000 = vpop.f32.mrb[0].mxu0
        %v3001 = vadd.f32 0.0, %v3000
        %v3002 = vpop.f32.mrb[0].mxu0
        %3003 = vmatprep.mubr.bf16.mxu0 0
        %3004 = vmatmul.mubr.bf16.gmra.mrb[0].mxu0 %v2914
        %v3005 = vpop.f32.mrb[0].mxu0
        %v3006 = vadd.f32 0.0, %v3005
        %v3007 = vpop.f32.mrb[0].mxu0
        %v3008 = vpop.f32.mrb[0].mxu0
        %v3009 = vadd.f32 0.0, %v3008
        %v3010 = vpop.f32.mrb[0].mxu0
        %3011 = vmatprep.mubr.bf16.mxu0 0
        %3012 = vmatmul.mubr.bf16.gmra.mrb[0].mxu0 %v2917
        %v3013 = vpop.f32.mrb[0].mxu0
        %v3014 = vadd.f32 0.0, %v3013
        %v3015 = vpop.f32.mrb[0].mxu0
        %v3016 = vpop.f32.mrb[0].mxu0
        %v3017 = vadd.f32 0.0, %v3016
        %v3018 = vpop.f32.mrb[0].mxu0
        %3019 = vmatprep.mubr.bf16.mxu0 0
        %3020 = vmatmul.mubr.bf16.gmra.mrb[0].mxu0 %v2920
        %v3021 = vpop.f32.mrb[0].mxu0
        %v3022 = vadd.f32 0.0, %v3021
        %v3023 = vpop.f32.mrb[0].mxu0
        %v3024 = vpop.f32.mrb[0].mxu0
        %v3025 = vadd.f32 0.0, %v3024
        %v3026 = vpop.f32.mrb[0].mxu0
        %3027 = vmatprep.mubr.bf16.mxu0 0
        %3028 = vmatmul.mubr.bf16.gmra.mrb[0].mxu0 %v2923
        %v3029 = vpop.f32.mrb[0].mxu0
        %v3030 = vadd.f32 0.0, %v3029
        %v3031 = vpop.f32.mrb[0].mxu0
        %v3032 = vpop.f32.mrb[0].mxu0
        %v3033 = vadd.f32 0.0, %v3032
        %v3034 = vpop.f32.mrb[0].mxu0
        %3035 = vmatprep.mubr.bf16.mxu0 0
        %3036 = vmatmul.mubr.bf16.gmra.mrb[0].mxu0 %v2926
        %v3037 = vpop.f32.mrb[0].mxu0
        %v3038 = vadd.f32 0.0, %v3037
        %v3039 = vpop.f32.mrb[0].mxu0
        %v3040 = vpop.f32.mrb[0].mxu0
        %v3041 = vadd.f32 0.0, %v3040
        %v3042 = vpop.f32.mrb[0].mxu0
        %3043 = vmatprep.mubr.bf16.mxu0 0
        %3044 = vmatmul.mubr.bf16.gmra.mrb[0].mxu0 %v2929
        %v3045 = vpop.f32.mrb[0].mxu0
        %v3046 = vadd.f32 0.0, %v3045
        %v3047 = vpop.f32.mrb[0].mxu0
        %v3048 = vpop.f32.mrb[0].mxu0
        %v3049 = vadd.f32 0.0, %v3048
        %v3050 = vpop.f32.mrb[0].mxu0
        %3051 = vdwg.mxu0
        %3052 = vmax.xlane.f32.xlu0 %v2990
        %v3053 = vpop.xlane.xlu0 %3052
        %3054 = vmax.xlane.f32.xlu0 %v2993
        %v3055 = vpop.xlane.xlu0 %3054
        %3056 = vmax.xlane.f32.xlu0 %v2998
        %v3057 = vpop.xlane.xlu0 %3056
        %3058 = vmax.xlane.f32.xlu0 %v3001
        %v3059 = vpop.xlane.xlu0 %3058
        %3060 = vmax.xlane.f32.xlu0 %v3006
        %v3061 = vpop.xlane.xlu0 %3060
        %3062 = vmax.xlane.f32.xlu0 %v3009
        %v3063 = vpop.xlane.xlu0 %3062
        %3064 = vmax.xlane.f32.xlu0 %v3014
        %v3065 = vpop.xlane.xlu0 %3064
        %3066 = vmax.xlane.f32.xlu0 %v3017
        %v3067 = vpop.xlane.xlu0 %3066
        %3068 = vmax.xlane.f32.xlu0 %v3022
        %v3069 = vpop.xlane.xlu0 %3068
        %3070 = vmax.xlane.f32.xlu0 %v3025
        %v3071 = vpop.xlane.xlu0 %3070
        %3072 = vmax.xlane.f32.xlu0 %v3030
        %v3073 = vpop.xlane.xlu0 %3072
        %3074 = vmax.xlane.f32.xlu0 %v3033
        %v3075 = vpop.xlane.xlu0 %3074
        %3076 = vmax.xlane.f32.xlu0 %v3038
        %v3077 = vpop.xlane.xlu0 %3076
        %3078 = vmax.xlane.f32.xlu0 %v3041
        %v3079 = vpop.xlane.xlu0 %3078
        %3080 = vmax.xlane.f32.xlu0 %v3046
        %v3081 = vpop.xlane.xlu0 %3080
        %3082 = vmax.xlane.f32.xlu0 %v3049
        %v3083 = vpop.xlane.xlu0 %3082
        %v3084 = vsub.f32 %v2990, %v3053
        %v3085 = vsub.f32 %v2993, %v3055
        %v3086 = vsub.f32 %v2998, %v3057
        %v3087 = vsub.f32 %v3001, %v3059
        %v3088 = vsub.f32 %v3006, %v3061
        %v3089 = vsub.f32 %v3009, %v3063
        %v3090 = vsub.f32 %v3014, %v3065
        %v3091 = vsub.f32 %v3017, %v3067
        %v3092 = vsub.f32 %v3022, %v3069
        %v3093 = vsub.f32 %v3025, %v3071
        %v3094 = vsub.f32 %v3030, %v3073
        %v3095 = vsub.f32 %v3033, %v3075
        %v3096 = vsub.f32 %v3038, %v3077
        %v3097 = vsub.f32 %v3041, %v3079
        %v3098 = vsub.f32 %v3046, %v3081
        %v3099 = vsub.f32 %v3049, %v3083
        %v3100 = vmul.f32 %v3084, 1.442695
        %v3101 = vpow.pop %v3100
        %v3102 = vmul.f32 %v3085, 1.442695
        %v3103 = vpow.pop %v3102
        %v3104 = vmul.f32 %v3086, 1.442695
        %v3105 = vpow.pop %v3104
        %v3106 = vmul.f32 %v3087, 1.442695
        %v3107 = vpow.pop %v3106
        %v3108 = vmul.f32 %v3088, 1.442695
        %v3109 = vpow.pop %v3108
        %v3110 = vmul.f32 %v3089, 1.442695
        %v3111 = vpow.pop %v3110
        %v3112 = vmul.f32 %v3090, 1.442695
        %v3113 = vpow.pop %v3112
        %v3114 = vmul.f32 %v3091, 1.442695
        %v3115 = vpow.pop %v3114
        %v3116 = vmul.f32 %v3092, 1.442695
        %v3117 = vpow.pop %v3116
        %v3118 = vmul.f32 %v3093, 1.442695
        %v3119 = vpow.pop %v3118
        %v3120 = vmul.f32 %v3094, 1.442695
        %v3121 = vpow.pop %v3120
        %v3122 = vmul.f32 %v3095, 1.442695
        %v3123 = vpow.pop %v3122
        %v3124 = vmul.f32 %v3096, 1.442695
        %v3125 = vpow.pop %v3124
        %v3126 = vmul.f32 %v3097, 1.442695
        %v3127 = vpow.pop %v3126
        %v3128 = vmul.f32 %v3098, 1.442695
        %v3129 = vpow.pop %v3128
        %v3130 = vmul.f32 %v3099, 1.442695
        %v3131 = vpow.pop %v3130
        %3132 = vadd.xlane.f32.xlu0 %v3101
        %v3133 = vpop.xlane.xlu0 %3132
        %3134 = vadd.xlane.f32.xlu0 %v3103
        %v3135 = vpop.xlane.xlu0 %3134
        %3136 = vadd.xlane.f32.xlu0 %v3105
        %v3137 = vpop.xlane.xlu0 %3136
        %3138 = vadd.xlane.f32.xlu0 %v3107
        %v3139 = vpop.xlane.xlu0 %3138
        %3140 = vadd.xlane.f32.xlu0 %v3109
        %v3141 = vpop.xlane.xlu0 %3140
        %3142 = vadd.xlane.f32.xlu0 %v3111
        %v3143 = vpop.xlane.xlu0 %3142
        %3144 = vadd.xlane.f32.xlu0 %v3113
        %v3145 = vpop.xlane.xlu0 %3144
        %3146 = vadd.xlane.f32.xlu0 %v3115
        %v3147 = vpop.xlane.xlu0 %3146
        %3148 = vadd.xlane.f32.xlu0 %v3117
        %v3149 = vpop.xlane.xlu0 %3148
        %3150 = vadd.xlane.f32.xlu0 %v3119
        %v3151 = vpop.xlane.xlu0 %3150
        %3152 = vadd.xlane.f32.xlu0 %v3121
        %v3153 = vpop.xlane.xlu0 %3152
        %3154 = vadd.xlane.f32.xlu0 %v3123
        %v3155 = vpop.xlane.xlu0 %3154
        %3156 = vadd.xlane.f32.xlu0 %v3125
        %v3157 = vpop.xlane.xlu0 %3156
        %3158 = vadd.xlane.f32.xlu0 %v3127
        %v3159 = vpop.xlane.xlu0 %3158
        %3160 = vadd.xlane.f32.xlu0 %v3129
        %v3161 = vpop.xlane.xlu0 %3160
        %3162 = vadd.xlane.f32.xlu0 %v3131
        %v3163 = vpop.xlane.xlu0 %3162
        %v3164 = vrcp.pop %v3133
        %v3165 = vrcp.pop %v3135
        %v3166 = vrcp.pop %v3137
        %v3167 = vrcp.pop %v3139
        %v3168 = vrcp.pop %v3141
        %v3169 = vrcp.pop %v3143
        %v3170 = vrcp.pop %v3145
        %v3171 = vrcp.pop %v3147
        %v3172 = vrcp.pop %v3149
        %v3173 = vrcp.pop %v3151
        %v3174 = vrcp.pop %v3153
        %v3175 = vrcp.pop %v3155
        %v3176 = vrcp.pop %v3157
        %v3177 = vrcp.pop %v3159
        %v3178 = vrcp.pop %v3161
        %v3179 = vrcp.pop %v3163
        %v3180 = vpack.c.bf16 %v3103, %v3101
        %v3181 = vpack.c.bf16 %v3107, %v3105
        %v3182 = vpack.c.bf16 %v3111, %v3109
        %v3183 = vpack.c.bf16 %v3115, %v3113
        %v3184 = vpack.c.bf16 %v3119, %v3117
        %v3185 = vpack.c.bf16 %v3123, %v3121
        %v3186 = vpack.c.bf16 %v3127, %v3125
        %v3187 = vpack.c.bf16 %v3131, %v3129
        %3188 = vmatprep.subr.bf16.mxu0 0
        %3189 = vmatpush1.bf16.msra.mxu0 %v2899
        %3190 = vmatprep.subr.bf16.mxu0 0
        %3191 = vmatpush1.bf16.msra.mxu0 %v2900
        %3192 = vmatprep.subr.bf16.mxu0 0
        %3193 = vmatpush1.bf16.msra.mxu0 %v2901
        %3194 = vmatprep.subr.bf16.mxu0 0
        %3195 = vmatpush1.bf16.msra.mxu0 %v2902
        %3196 = vmatprep.subr.bf16.mxu0 0
        %3197 = vmatpush1.bf16.msra.mxu0 %v2903
        %3198 = vmatprep.subr.bf16.mxu0 0
        %3199 = vmatpush1.bf16.msra.mxu0 %v2904
        %3200 = vmatprep.subr.bf16.mxu0 0
        %3201 = vmatpush1.bf16.msra.mxu0 %v2905
        %3202 = vmatprep.subr.bf16.mxu0 0
        %3203 = vmatpush1.bf16.msra.mxu0 %v2906
        %3204 = vmatprep.subr.bf16.mxu0 0
        %3205 = vmatpush1.bf16.msra.mxu0 0
        %3206 = vmatprep.subr.bf16.mxu0 0
        %3207 = vmatpush1.bf16.msra.mxu0 0
        %3208 = vmatprep.subr.bf16.mxu0 0
        %3209 = vmatpush1.bf16.msra.mxu0 0
        %3210 = vmatprep.subr.bf16.mxu0 0
        %3211 = vmatpush1.bf16.msra.mxu0 0
        %3212 = vmatprep.subr.bf16.mxu0 0
        %3213 = vmatpush1.bf16.msra.mxu0 0
        %3214 = vmatprep.subr.bf16.mxu0 0
        %3215 = vmatpush1.bf16.msra.mxu0 0
        %3216 = vmatprep.subr.bf16.mxu0 0
        %3217 = vmatpush1.bf16.msra.mxu0 0
        %3218 = vmatprep.subr.bf16.mxu0 0
        %3219 = vmatpush1.bf16.msra.mxu0 0
        %3220 = vmatprep.mubr.bf16.mxu0 0
        %3221 = vmatmul.mubr.bf16.gmra.mrb[0].mxu0 %v3180
        %v3222 = vpop.f32.mrb[0].mxu0
        %v3223 = vadd.f32 0.0, %v3222
        %v3224 = vpop.f32.mrb[0].mxu0
        %v3225 = vpop.f32.mrb[0].mxu0
        %v3226 = vadd.f32 0.0, %v3225
        %v3227 = vpop.f32.mrb[0].mxu0
        %3228 = vmatprep.mubr.bf16.mxu0 0
        %3229 = vmatmul.mubr.bf16.gmra.mrb[0].mxu0 %v3181
        %v3230 = vpop.f32.mrb[0].mxu0
        %v3231 = vadd.f32 0.0, %v3230
        %v3232 = vpop.f32.mrb[0].mxu0
        %v3233 = vpop.f32.mrb[0].mxu0
        %v3234 = vadd.f32 0.0, %v3233
        %v3235 = vpop.f32.mrb[0].mxu0
        %3236 = vmatprep.mubr.bf16.mxu0 0
        %3237 = vmatmul.mubr.bf16.gmra.mrb[0].mxu0 %v3182
        %v3238 = vpop.f32.mrb[0].mxu0
        %v3239 = vadd.f32 0.0, %v3238
        %v3240 = vpop.f32.mrb[0].mxu0
        %v3241 = vpop.f32.mrb[0].mxu0
        %v3242 = vadd.f32 0.0, %v3241
        %v3243 = vpop.f32.mrb[0].mxu0
        %3244 = vmatprep.mubr.bf16.mxu0 0
        %3245 = vmatmul.mubr.bf16.gmra.mrb[0].mxu0 %v3183
        %v3246 = vpop.f32.mrb[0].mxu0
        %v3247 = vadd.f32 0.0, %v3246
        %v3248 = vpop.f32.mrb[0].mxu0
        %v3249 = vpop.f32.mrb[0].mxu0
        %v3250 = vadd.f32 0.0, %v3249
        %v3251 = vpop.f32.mrb[0].mxu0
        %3252 = vmatprep.mubr.bf16.mxu0 0
        %3253 = vmatmul.mubr.bf16.gmra.mrb[0].mxu0 %v3184
        %v3254 = vpop.f32.mrb[0].mxu0
        %v3255 = vadd.f32 0.0, %v3254
        %v3256 = vpop.f32.mrb[0].mxu0
        %v3257 = vpop.f32.mrb[0].mxu0
        %v3258 = vadd.f32 0.0, %v3257
        %v3259 = vpop.f32.mrb[0].mxu0
        %3260 = vmatprep.mubr.bf16.mxu0 0
        %3261 = vmatmul.mubr.bf16.gmra.mrb[0].mxu0 %v3185
        %v3262 = vpop.f32.mrb[0].mxu0
        %v3263 = vadd.f32 0.0, %v3262
        %v3264 = vpop.f32.mrb[0].mxu0
        %v3265 = vpop.f32.mrb[0].mxu0
        %v3266 = vadd.f32 0.0, %v3265
        %v3267 = vpop.f32.mrb[0].mxu0
        %3268 = vmatprep.mubr.bf16.mxu0 0
        %3269 = vmatmul.mubr.bf16.gmra.mrb[0].mxu0 %v3186
        %v3270 = vpop.f32.mrb[0].mxu0
        %v3271 = vadd.f32 0.0, %v3270
        %v3272 = vpop.f32.mrb[0].mxu0
        %v3273 = vpop.f32.mrb[0].mxu0
        %v3274 = vadd.f32 0.0, %v3273
        %v3275 = vpop.f32.mrb[0].mxu0
        %3276 = vmatprep.mubr.bf16.mxu0 0
        %3277 = vmatmul.mubr.bf16.gmra.mrb[0].mxu0 %v3187
        %v3278 = vpop.f32.mrb[0].mxu0
        %v3279 = vadd.f32 0.0, %v3278
        %v3280 = vpop.f32.mrb[0].mxu0
        %v3281 = vpop.f32.mrb[0].mxu0
        %v3282 = vadd.f32 0.0, %v3281
        %v3283 = vpop.f32.mrb[0].mxu0
        %3284 = vdwg.mxu0
        %v3285 = vmul.f32 %v3223, %v3164
        %v3286 = vmul.f32 %v3226, %v3165
        %v3287 = vmul.f32 %v3231, %v3166
        %v3288 = vmul.f32 %v3234, %v3167
        %v3289 = vmul.f32 %v3239, %v3168
        %v3290 = vmul.f32 %v3242, %v3169
        %v3291 = vmul.f32 %v3247, %v3170
        %v3292 = vmul.f32 %v3250, %v3171
        %v3293 = vmul.f32 %v3255, %v3172
        %v3294 = vmul.f32 %v3258, %v3173
        %v3295 = vmul.f32 %v3263, %v3174
        %v3296 = vmul.f32 %v3266, %v3175
        %v3297 = vmul.f32 %v3271, %v3176
        %v3298 = vmul.f32 %v3274, %v3177
        %v3299 = vmul.f32 %v3279, %v3178
        %v3300 = vmul.f32 %v3282, %v3179
        %v3301 = vpack.c.bf16 %v3286, %v3285
        %v3302 = vpack.c.bf16 %v3288, %v3287
        %v3303 = vpack.c.bf16 %v3290, %v3289
        %v3304 = vpack.c.bf16 %v3292, %v3291
        %v3305 = vpack.c.bf16 %v3294, %v3293
        %v3306 = vpack.c.bf16 %v3296, %v3295
        %v3307 = vpack.c.bf16 %v3298, %v3297
        %v3308 = vpack.c.bf16 %v3300, %v3299
        %3309 = vst.msk [vmem:[#allocation2 + $0x40] sm:$0xff] %vm951, %v3301
        %3310 = vst.msk [vmem:[#allocation2 + $0x48] sm:$0xff] %vm951, %v3302
        %3311 = vst.msk [vmem:[#allocation2 + $0x50] sm:$0xff] %vm951, %v3303
        %3312 = vst.msk [vmem:[#allocation2 + $0x58] sm:$0xff] %vm951, %v3304
        %3313 = vst.msk [vmem:[#allocation2 + $0x60] sm:$0xff] %vm951, %v3305
        %3314 = vst.msk [vmem:[#allocation2 + $0x68] sm:$0xff] %vm951, %v3306
        %3315 = vst.msk [vmem:[#allocation2 + $0x70] sm:$0xff] %vm951, %v3307
        %3316 = vst.msk [vmem:[#allocation2 + $0x78] sm:$0xff] %vm951, %v3308
        %3325 = vrot.lane.b32.xlu0 %v2883, 96
        %v3326 = vpop.permute.xlu0 %3325
        %3327 = vrot.lane.b32.xlu0 %v2884, 96
        %v3328 = vpop.permute.xlu0 %3327
        %3329 = vrot.lane.b32.xlu0 %v2885, 96
        %v3330 = vpop.permute.xlu0 %3329
        %3331 = vrot.lane.b32.xlu0 %v2886, 96
        %v3332 = vpop.permute.xlu0 %3331
        %3333 = vrot.lane.b32.xlu0 %v2887, 96
        %v3334 = vpop.permute.xlu0 %3333
        %3335 = vrot.lane.b32.xlu0 %v2888, 96
        %v3336 = vpop.permute.xlu0 %3335
        %3337 = vrot.lane.b32.xlu0 %v2889, 96
        %v3338 = vpop.permute.xlu0 %3337
        %3339 = vrot.lane.b32.xlu0 %v2890, 96
        %v3340 = vpop.permute.xlu0 %3339
        %3349 = vrot.lane.b32.xlu0 %v2891, 96
        %v3350 = vpop.permute.xlu0 %3349
        %3351 = vrot.lane.b32.xlu0 %v2892, 96
        %v3352 = vpop.permute.xlu0 %3351
        %3353 = vrot.lane.b32.xlu0 %v2893, 96
        %v3354 = vpop.permute.xlu0 %3353
        %3355 = vrot.lane.b32.xlu0 %v2894, 96
        %v3356 = vpop.permute.xlu0 %3355
        %3357 = vrot.lane.b32.xlu0 %v2895, 96
        %v3358 = vpop.permute.xlu0 %3357
        %3359 = vrot.lane.b32.xlu0 %v2896, 96
        %v3360 = vpop.permute.xlu0 %3359
        %3361 = vrot.lane.b32.xlu0 %v2897, 96
        %v3362 = vpop.permute.xlu0 %3361
        %3363 = vrot.lane.b32.xlu0 %v2898, 96
        %v3364 = vpop.permute.xlu0 %3363
        %v3366 = vsel %vm951, %v3326, 0
        %v3369 = vsel %vm951, %v3328, 0
        %v3372 = vsel %vm951, %v3330, 0
        %v3375 = vsel %vm951, %v3332, 0
        %v3378 = vsel %vm951, %v3334, 0
        %v3381 = vsel %vm951, %v3336, 0
        %v3384 = vsel %vm951, %v3338, 0
        %v3387 = vsel %vm951, %v3340, 0
        %v3390 = vsel %vm951, %v3350, 0
        %v3393 = vsel %vm951, %v3352, 0
        %v3396 = vsel %vm951, %v3354, 0
        %v3399 = vsel %vm951, %v3356, 0
        %v3402 = vsel %vm951, %v3358, 0
        %v3405 = vsel %vm951, %v3360, 0
        %v3408 = vsel %vm951, %v3362, 0
        %v3411 = vsel %vm951, %v3364, 0
        %3413 = vmatprep.subr.bf16.mxu0 0
        %3414 = vmatpush1.bf16.xpose.msra.mxu0 %v3390
        %3415 = vmatprep.subr.bf16.mxu0 0
        %3416 = vmatpush1.bf16.xpose.msra.mxu0 %v3393
        %3417 = vmatprep.subr.bf16.mxu0 0
        %3418 = vmatpush1.bf16.xpose.msra.mxu0 %v3396
        %3419 = vmatprep.subr.bf16.mxu0 0
        %3420 = vmatpush1.bf16.xpose.msra.mxu0 %v3399
        %3421 = vmatprep.subr.bf16.mxu0 0
        %3422 = vmatpush1.bf16.xpose.msra.mxu0 %v3402
        %3423 = vmatprep.subr.bf16.mxu0 0
        %3424 = vmatpush1.bf16.xpose.msra.mxu0 %v3405
        %3425 = vmatprep.subr.bf16.mxu0 0
        %3426 = vmatpush1.bf16.xpose.msra.mxu0 %v3408
        %3427 = vmatprep.subr.bf16.mxu0 0
        %3428 = vmatpush1.bf16.xpose.msra.mxu0 %v3411
        %3429 = vmatprep.subr.bf16.mxu0 0
        %3430 = vmatpush1.bf16.xpose.msra.mxu0 0
        %3431 = vmatprep.subr.bf16.mxu0 0
        %3432 = vmatpush1.bf16.xpose.msra.mxu0 0
        %3433 = vmatprep.subr.bf16.mxu0 0
        %3434 = vmatpush1.bf16.xpose.msra.mxu0 0
        %3435 = vmatprep.subr.bf16.mxu0 0
        %3436 = vmatpush1.bf16.xpose.msra.mxu0 0
        %3437 = vmatprep.subr.bf16.mxu0 0
        %3438 = vmatpush1.bf16.xpose.msra.mxu0 0
        %3439 = vmatprep.subr.bf16.mxu0 0
        %3440 = vmatpush1.bf16.xpose.msra.mxu0 0
        %3441 = vmatprep.subr.bf16.mxu0 0
        %3442 = vmatpush1.bf16.xpose.msra.mxu0 0
        %3443 = vmatprep.subr.bf16.mxu0 0
        %3444 = vmatpush1.bf16.xpose.msra.mxu0 0
        %3445 = vmatprep.mubr.bf16.mxu0 0
        %3446 = vmatmul.mubr.bf16.gmra.mrb[0].mxu0 %v3366
        %v3447 = vpop.f32.mrb[0].mxu0
        %v3448 = vadd.f32 0.0, %v3447
        %v3449 = vpop.f32.mrb[0].mxu0
        %v3450 = vpop.f32.mrb[0].mxu0
        %v3451 = vadd.f32 0.0, %v3450
        %v3452 = vpop.f32.mrb[0].mxu0
        %3453 = vmatprep.mubr.bf16.mxu0 0
        %3454 = vmatmul.mubr.bf16.gmra.mrb[0].mxu0 %v3369
        %v3455 = vpop.f32.mrb[0].mxu0
        %v3456 = vadd.f32 0.0, %v3455
        %v3457 = vpop.f32.mrb[0].mxu0
        %v3458 = vpop.f32.mrb[0].mxu0
        %v3459 = vadd.f32 0.0, %v3458
        %v3460 = vpop.f32.mrb[0].mxu0
        %3461 = vmatprep.mubr.bf16.mxu0 0
        %3462 = vmatmul.mubr.bf16.gmra.mrb[0].mxu0 %v3372
        %v3463 = vpop.f32.mrb[0].mxu0
        %v3464 = vadd.f32 0.0, %v3463
        %v3465 = vpop.f32.mrb[0].mxu0
        %v3466 = vpop.f32.mrb[0].mxu0
        %v3467 = vadd.f32 0.0, %v3466
        %v3468 = vpop.f32.mrb[0].mxu0
        %3469 = vmatprep.mubr.bf16.mxu0 0
        %3470 = vmatmul.mubr.bf16.gmra.mrb[0].mxu0 %v3375
        %v3471 = vpop.f32.mrb[0].mxu0
        %v3472 = vadd.f32 0.0, %v3471
        %v3473 = vpop.f32.mrb[0].mxu0
        %v3474 = vpop.f32.mrb[0].mxu0
        %v3475 = vadd.f32 0.0, %v3474
        %v3476 = vpop.f32.mrb[0].mxu0
        %3477 = vmatprep.mubr.bf16.mxu0 0
        %3478 = vmatmul.mubr.bf16.gmra.mrb[0].mxu0 %v3378
        %v3479 = vpop.f32.mrb[0].mxu0
        %v3480 = vadd.f32 0.0, %v3479
        %v3481 = vpop.f32.mrb[0].mxu0
        %v3482 = vpop.f32.mrb[0].mxu0
        %v3483 = vadd.f32 0.0, %v3482
        %v3484 = vpop.f32.mrb[0].mxu0
        %3485 = vmatprep.mubr.bf16.mxu0 0
        %3486 = vmatmul.mubr.bf16.gmra.mrb[0].mxu0 %v3381
        %v3487 = vpop.f32.mrb[0].mxu0
        %v3488 = vadd.f32 0.0, %v3487
        %v3489 = vpop.f32.mrb[0].mxu0
        %v3490 = vpop.f32.mrb[0].mxu0
        %v3491 = vadd.f32 0.0, %v3490
        %v3492 = vpop.f32.mrb[0].mxu0
        %3493 = vmatprep.mubr.bf16.mxu0 0
        %3494 = vmatmul.mubr.bf16.gmra.mrb[0].mxu0 %v3384
        %v3495 = vpop.f32.mrb[0].mxu0
        %v3496 = vadd.f32 0.0, %v3495
        %v3497 = vpop.f32.mrb[0].mxu0
        %v3498 = vpop.f32.mrb[0].mxu0
        %v3499 = vadd.f32 0.0, %v3498
        %v3500 = vpop.f32.mrb[0].mxu0
        %3501 = vmatprep.mubr.bf16.mxu0 0
        %3502 = vmatmul.mubr.bf16.gmra.mrb[0].mxu0 %v3387
        %v3503 = vpop.f32.mrb[0].mxu0
        %v3504 = vadd.f32 0.0, %v3503
        %v3505 = vpop.f32.mrb[0].mxu0
        %v3506 = vpop.f32.mrb[0].mxu0
        %v3507 = vadd.f32 0.0, %v3506
        %v3508 = vpop.f32.mrb[0].mxu0
        %3509 = vdwg.mxu0
        %3510 = vmax.xlane.f32.xlu0 %v3448
        %v3511 = vpop.xlane.xlu0 %3510
        %3512 = vmax.xlane.f32.xlu0 %v3451
        %v3513 = vpop.xlane.xlu0 %3512
        %3514 = vmax.xlane.f32.xlu0 %v3456
        %v3515 = vpop.xlane.xlu0 %3514
        %3516 = vmax.xlane.f32.xlu0 %v3459
        %v3517 = vpop.xlane.xlu0 %3516
        %3518 = vmax.xlane.f32.xlu0 %v3464
        %v3519 = vpop.xlane.xlu0 %3518
        %3520 = vmax.xlane.f32.xlu0 %v3467
        %v3521 = vpop.xlane.xlu0 %3520
        %3522 = vmax.xlane.f32.xlu0 %v3472
        %v3523 = vpop.xlane.xlu0 %3522
        %3524 = vmax.xlane.f32.xlu0 %v3475
        %v3525 = vpop.xlane.xlu0 %3524
        %3526 = vmax.xlane.f32.xlu0 %v3480
        %v3527 = vpop.xlane.xlu0 %3526
        %3528 = vmax.xlane.f32.xlu0 %v3483
        %v3529 = vpop.xlane.xlu0 %3528
        %3530 = vmax.xlane.f32.xlu0 %v3488
        %v3531 = vpop.xlane.xlu0 %3530
        %3532 = vmax.xlane.f32.xlu0 %v3491
        %v3533 = vpop.xlane.xlu0 %3532
        %3534 = vmax.xlane.f32.xlu0 %v3496
        %v3535 = vpop.xlane.xlu0 %3534
        %3536 = vmax.xlane.f32.xlu0 %v3499
        %v3537 = vpop.xlane.xlu0 %3536
        %3538 = vmax.xlane.f32.xlu0 %v3504
        %v3539 = vpop.xlane.xlu0 %3538
        %3540 = vmax.xlane.f32.xlu0 %v3507
        %v3541 = vpop.xlane.xlu0 %3540
        %v3542 = vsub.f32 %v3448, %v3511
        %v3543 = vsub.f32 %v3451, %v3513
        %v3544 = vsub.f32 %v3456, %v3515
        %v3545 = vsub.f32 %v3459, %v3517
        %v3546 = vsub.f32 %v3464, %v3519
        %v3547 = vsub.f32 %v3467, %v3521
        %v3548 = vsub.f32 %v3472, %v3523
        %v3549 = vsub.f32 %v3475, %v3525
        %v3550 = vsub.f32 %v3480, %v3527
        %v3551 = vsub.f32 %v3483, %v3529
        %v3552 = vsub.f32 %v3488, %v3531
        %v3553 = vsub.f32 %v3491, %v3533
        %v3554 = vsub.f32 %v3496, %v3535
        %v3555 = vsub.f32 %v3499, %v3537
        %v3556 = vsub.f32 %v3504, %v3539
        %v3557 = vsub.f32 %v3507, %v3541
        %v3558 = vmul.f32 %v3542, 1.442695
        %v3559 = vpow.pop %v3558
        %v3560 = vmul.f32 %v3543, 1.442695
        %v3561 = vpow.pop %v3560
        %v3562 = vmul.f32 %v3544, 1.442695
        %v3563 = vpow.pop %v3562
        %v3564 = vmul.f32 %v3545, 1.442695
        %v3565 = vpow.pop %v3564
        %v3566 = vmul.f32 %v3546, 1.442695
        %v3567 = vpow.pop %v3566
        %v3568 = vmul.f32 %v3547, 1.442695
        %v3569 = vpow.pop %v3568
        %v3570 = vmul.f32 %v3548, 1.442695
        %v3571 = vpow.pop %v3570
        %v3572 = vmul.f32 %v3549, 1.442695
        %v3573 = vpow.pop %v3572
        %v3574 = vmul.f32 %v3550, 1.442695
        %v3575 = vpow.pop %v3574
        %v3576 = vmul.f32 %v3551, 1.442695
        %v3577 = vpow.pop %v3576
        %v3578 = vmul.f32 %v3552, 1.442695
        %v3579 = vpow.pop %v3578
        %v3580 = vmul.f32 %v3553, 1.442695
        %v3581 = vpow.pop %v3580
        %v3582 = vmul.f32 %v3554, 1.442695
        %v3583 = vpow.pop %v3582
        %v3584 = vmul.f32 %v3555, 1.442695
        %v3585 = vpow.pop %v3584
        %v3586 = vmul.f32 %v3556, 1.442695
        %v3587 = vpow.pop %v3586
        %v3588 = vmul.f32 %v3557, 1.442695
        %v3589 = vpow.pop %v3588
        %3590 = vadd.xlane.f32.xlu0 %v3559
        %v3591 = vpop.xlane.xlu0 %3590
        %3592 = vadd.xlane.f32.xlu0 %v3561
        %v3593 = vpop.xlane.xlu0 %3592
        %3594 = vadd.xlane.f32.xlu0 %v3563
        %v3595 = vpop.xlane.xlu0 %3594
        %3596 = vadd.xlane.f32.xlu0 %v3565
        %v3597 = vpop.xlane.xlu0 %3596
        %3598 = vadd.xlane.f32.xlu0 %v3567
        %v3599 = vpop.xlane.xlu0 %3598
        %3600 = vadd.xlane.f32.xlu0 %v3569
        %v3601 = vpop.xlane.xlu0 %3600
        %3602 = vadd.xlane.f32.xlu0 %v3571
        %v3603 = vpop.xlane.xlu0 %3602
        %3604 = vadd.xlane.f32.xlu0 %v3573
        %v3605 = vpop.xlane.xlu0 %3604
        %3606 = vadd.xlane.f32.xlu0 %v3575
        %v3607 = vpop.xlane.xlu0 %3606
        %3608 = vadd.xlane.f32.xlu0 %v3577
        %v3609 = vpop.xlane.xlu0 %3608
        %3610 = vadd.xlane.f32.xlu0 %v3579
        %v3611 = vpop.xlane.xlu0 %3610
        %3612 = vadd.xlane.f32.xlu0 %v3581
        %v3613 = vpop.xlane.xlu0 %3612
        %3614 = vadd.xlane.f32.xlu0 %v3583
        %v3615 = vpop.xlane.xlu0 %3614
        %3616 = vadd.xlane.f32.xlu0 %v3585
        %v3617 = vpop.xlane.xlu0 %3616
        %3618 = vadd.xlane.f32.xlu0 %v3587
        %v3619 = vpop.xlane.xlu0 %3618
        %3620 = vadd.xlane.f32.xlu0 %v3589
        %v3621 = vpop.xlane.xlu0 %3620
        %v3622 = vrcp.pop %v3591
        %v3623 = vrcp.pop %v3593
        %v3624 = vrcp.pop %v3595
        %v3625 = vrcp.pop %v3597
        %v3626 = vrcp.pop %v3599
        %v3627 = vrcp.pop %v3601
        %v3628 = vrcp.pop %v3603
        %v3629 = vrcp.pop %v3605
        %v3630 = vrcp.pop %v3607
        %v3631 = vrcp.pop %v3609
        %v3632 = vrcp.pop %v3611
        %v3633 = vrcp.pop %v3613
        %v3634 = vrcp.pop %v3615
        %v3635 = vrcp.pop %v3617
        %v3636 = vrcp.pop %v3619
        %v3637 = vrcp.pop %v3621
        %v3638 = vpack.c.bf16 %v3561, %v3559
        %v3639 = vpack.c.bf16 %v3565, %v3563
        %v3640 = vpack.c.bf16 %v3569, %v3567
        %v3641 = vpack.c.bf16 %v3573, %v3571
        %v3642 = vpack.c.bf16 %v3577, %v3575
        %v3643 = vpack.c.bf16 %v3581, %v3579
        %v3644 = vpack.c.bf16 %v3585, %v3583
        %v3645 = vpack.c.bf16 %v3589, %v3587
        %3654 = vrot.lane.b32.xlu0 %v2899, 96
        %v3655 = vpop.permute.xlu0 %3654
        %3656 = vrot.lane.b32.xlu0 %v2900, 96
        %v3657 = vpop.permute.xlu0 %3656
        %3658 = vrot.lane.b32.xlu0 %v2901, 96
        %v3659 = vpop.permute.xlu0 %3658
        %3660 = vrot.lane.b32.xlu0 %v2902, 96
        %v3661 = vpop.permute.xlu0 %3660
        %3662 = vrot.lane.b32.xlu0 %v2903, 96
        %v3663 = vpop.permute.xlu0 %3662
        %3664 = vrot.lane.b32.xlu0 %v2904, 96
        %v3665 = vpop.permute.xlu0 %3664
        %3666 = vrot.lane.b32.xlu0 %v2905, 96
        %v3667 = vpop.permute.xlu0 %3666
        %3668 = vrot.lane.b32.xlu0 %v2906, 96
        %v3669 = vpop.permute.xlu0 %3668
        %3678 = vmatprep.subr.bf16.mxu0 0
        %3679 = vmatpush1.bf16.msra.mxu0 %v3655
        %3680 = vmatprep.subr.bf16.mxu0 0
        %3681 = vmatpush1.bf16.msra.mxu0 %v3657
        %3682 = vmatprep.subr.bf16.mxu0 0
        %3683 = vmatpush1.bf16.msra.mxu0 %v3659
        %3684 = vmatprep.subr.bf16.mxu0 0
        %3685 = vmatpush1.bf16.msra.mxu0 %v3661
        %3686 = vmatprep.subr.bf16.mxu0 0
        %3687 = vmatpush1.bf16.msra.mxu0 %v3663
        %3688 = vmatprep.subr.bf16.mxu0 0
        %3689 = vmatpush1.bf16.msra.mxu0 %v3665
        %3690 = vmatprep.subr.bf16.mxu0 0
        %3691 = vmatpush1.bf16.msra.mxu0 %v3667
        %3692 = vmatprep.subr.bf16.mxu0 0
        %3693 = vmatpush1.bf16.msra.mxu0 %v3669
        %3694 = vmatprep.subr.bf16.mxu0 0
        %3695 = vmatpush1.bf16.msra.mxu0 0
        %3696 = vmatprep.subr.bf16.mxu0 0
        %3697 = vmatpush1.bf16.msra.mxu0 0
        %3698 = vmatprep.subr.bf16.mxu0 0
        %3699 = vmatpush1.bf16.msra.mxu0 0
        %3700 = vmatprep.subr.bf16.mxu0 0
        %3701 = vmatpush1.bf16.msra.mxu0 0
        %3702 = vmatprep.subr.bf16.mxu0 0
        %3703 = vmatpush1.bf16.msra.mxu0 0
        %3704 = vmatprep.subr.bf16.mxu0 0
        %3705 = vmatpush1.bf16.msra.mxu0 0
        %3706 = vmatprep.subr.bf16.mxu0 0
        %3707 = vmatpush1.bf16.msra.mxu0 0
        %3708 = vmatprep.subr.bf16.mxu0 0
        %3709 = vmatpush1.bf16.msra.mxu0 0
        %3710 = vmatprep.mubr.bf16.mxu0 0
        %3711 = vmatmul.mubr.bf16.gmra.mrb[0].mxu0 %v3638
        %v3712 = vpop.f32.mrb[0].mxu0
        %v3713 = vadd.f32 0.0, %v3712
        %v3714 = vpop.f32.mrb[0].mxu0
        %v3715 = vpop.f32.mrb[0].mxu0
        %v3716 = vadd.f32 0.0, %v3715
        %v3717 = vpop.f32.mrb[0].mxu0
        %3718 = vmatprep.mubr.bf16.mxu0 0
        %3719 = vmatmul.mubr.bf16.gmra.mrb[0].mxu0 %v3639
        %v3720 = vpop.f32.mrb[0].mxu0
        %v3721 = vadd.f32 0.0, %v3720
        %v3722 = vpop.f32.mrb[0].mxu0
        %v3723 = vpop.f32.mrb[0].mxu0
        %v3724 = vadd.f32 0.0, %v3723
        %v3725 = vpop.f32.mrb[0].mxu0
        %3726 = vmatprep.mubr.bf16.mxu0 0
        %3727 = vmatmul.mubr.bf16.gmra.mrb[0].mxu0 %v3640
        %v3728 = vpop.f32.mrb[0].mxu0
        %v3729 = vadd.f32 0.0, %v3728
        %v3730 = vpop.f32.mrb[0].mxu0
        %v3731 = vpop.f32.mrb[0].mxu0
        %v3732 = vadd.f32 0.0, %v3731
        %v3733 = vpop.f32.mrb[0].mxu0
        %3734 = vmatprep.mubr.bf16.mxu0 0
        %3735 = vmatmul.mubr.bf16.gmra.mrb[0].mxu0 %v3641
        %v3736 = vpop.f32.mrb[0].mxu0
        %v3737 = vadd.f32 0.0, %v3736
        %v3738 = vpop.f32.mrb[0].mxu0
        %v3739 = vpop.f32.mrb[0].mxu0
        %v3740 = vadd.f32 0.0, %v3739
        %v3741 = vpop.f32.mrb[0].mxu0
        %3742 = vmatprep.mubr.bf16.mxu0 0
        %3743 = vmatmul.mubr.bf16.gmra.mrb[0].mxu0 %v3642
        %v3744 = vpop.f32.mrb[0].mxu0
        %v3745 = vadd.f32 0.0, %v3744
        %v3746 = vpop.f32.mrb[0].mxu0
        %v3747 = vpop.f32.mrb[0].mxu0
        %v3748 = vadd.f32 0.0, %v3747
        %v3749 = vpop.f32.mrb[0].mxu0
        %3750 = vmatprep.mubr.bf16.mxu0 0
        %3751 = vmatmul.mubr.bf16.gmra.mrb[0].mxu0 %v3643
        %v3752 = vpop.f32.mrb[0].mxu0
        %v3753 = vadd.f32 0.0, %v3752
        %v3754 = vpop.f32.mrb[0].mxu0
        %v3755 = vpop.f32.mrb[0].mxu0
        %v3756 = vadd.f32 0.0, %v3755
        %v3757 = vpop.f32.mrb[0].mxu0
        %3758 = vmatprep.mubr.bf16.mxu0 0
        %3759 = vmatmul.mubr.bf16.gmra.mrb[0].mxu0 %v3644
        %v3760 = vpop.f32.mrb[0].mxu0
        %v3761 = vadd.f32 0.0, %v3760
        %v3762 = vpop.f32.mrb[0].mxu0
        %v3763 = vpop.f32.mrb[0].mxu0
        %v3764 = vadd.f32 0.0, %v3763
        %v3765 = vpop.f32.mrb[0].mxu0
        %3766 = vmatprep.mubr.bf16.mxu0 0
        %3767 = vmatmul.mubr.bf16.gmra.mrb[0].mxu0 %v3645
        %v3768 = vpop.f32.mrb[0].mxu0
        %v3769 = vadd.f32 0.0, %v3768
        %v3770 = vpop.f32.mrb[0].mxu0
        %v3771 = vpop.f32.mrb[0].mxu0
        %v3772 = vadd.f32 0.0, %v3771
        %v3773 = vpop.f32.mrb[0].mxu0
        %3774 = vdwg.mxu0
        %v3775 = vmul.f32 %v3713, %v3622
        %v3776 = vmul.f32 %v3716, %v3623
        %v3777 = vmul.f32 %v3721, %v3624
        %v3778 = vmul.f32 %v3724, %v3625
        %v3779 = vmul.f32 %v3729, %v3626
        %v3780 = vmul.f32 %v3732, %v3627
        %v3781 = vmul.f32 %v3737, %v3628
        %v3782 = vmul.f32 %v3740, %v3629
        %v3783 = vmul.f32 %v3745, %v3630
        %v3784 = vmul.f32 %v3748, %v3631
        %v3785 = vmul.f32 %v3753, %v3632
        %v3786 = vmul.f32 %v3756, %v3633
        %v3787 = vmul.f32 %v3761, %v3634
        %v3788 = vmul.f32 %v3764, %v3635
        %v3789 = vmul.f32 %v3769, %v3636
        %v3790 = vmul.f32 %v3772, %v3637
        %v3791 = vpack.c.bf16 %v3776, %v3775
        %v3792 = vpack.c.bf16 %v3778, %v3777
        %v3793 = vpack.c.bf16 %v3780, %v3779
        %v3794 = vpack.c.bf16 %v3782, %v3781
        %v3795 = vpack.c.bf16 %v3784, %v3783
        %v3796 = vpack.c.bf16 %v3786, %v3785
        %v3797 = vpack.c.bf16 %v3788, %v3787
        %v3798 = vpack.c.bf16 %v3790, %v3789
        %3807 = vrot.lane.b32.xlu0 %v3791, 32
        %v3808 = vpop.permute.xlu0 %3807
        %3809 = vrot.lane.b32.xlu0 %v3792, 32
        %v3810 = vpop.permute.xlu0 %3809
        %3811 = vrot.lane.b32.xlu0 %v3793, 32
        %v3812 = vpop.permute.xlu0 %3811
        %3813 = vrot.lane.b32.xlu0 %v3794, 32
        %v3814 = vpop.permute.xlu0 %3813
        %3815 = vrot.lane.b32.xlu0 %v3795, 32
        %v3816 = vpop.permute.xlu0 %3815
        %3817 = vrot.lane.b32.xlu0 %v3796, 32
        %v3818 = vpop.permute.xlu0 %3817
        %3819 = vrot.lane.b32.xlu0 %v3797, 32
        %v3820 = vpop.permute.xlu0 %3819
        %3821 = vrot.lane.b32.xlu0 %v3798, 32
        %v3822 = vpop.permute.xlu0 %3821
        %3831 = vst.msk [vmem:[#allocation2 + $0x40] sm:$0xff] %vm1876, %v3808
        %3832 = vst.msk [vmem:[#allocation2 + $0x48] sm:$0xff] %vm1876, %v3810
        %3833 = vst.msk [vmem:[#allocation2 + $0x50] sm:$0xff] %vm1876, %v3812
        %3834 = vst.msk [vmem:[#allocation2 + $0x58] sm:$0xff] %vm1876, %v3814
        %3835 = vst.msk [vmem:[#allocation2 + $0x60] sm:$0xff] %vm1876, %v3816
        %3836 = vst.msk [vmem:[#allocation2 + $0x68] sm:$0xff] %vm1876, %v3818
        %3837 = vst.msk [vmem:[#allocation2 + $0x70] sm:$0xff] %vm1876, %v3820
        %3838 = vst.msk [vmem:[#allocation2 + $0x78] sm:$0xff] %vm1876, %v3822
        %3839 = vrot.lane.b32.xlu0 %v2883, 64
        %v3840 = vpop.permute.xlu0 %3839
        %3841 = vrot.lane.b32.xlu0 %v2884, 64
        %v3842 = vpop.permute.xlu0 %3841
        %3843 = vrot.lane.b32.xlu0 %v2885, 64
        %v3844 = vpop.permute.xlu0 %3843
        %3845 = vrot.lane.b32.xlu0 %v2886, 64
        %v3846 = vpop.permute.xlu0 %3845
        %3847 = vrot.lane.b32.xlu0 %v2887, 64
        %v3848 = vpop.permute.xlu0 %3847
        %3849 = vrot.lane.b32.xlu0 %v2888, 64
        %v3850 = vpop.permute.xlu0 %3849
        %3851 = vrot.lane.b32.xlu0 %v2889, 64
        %v3852 = vpop.permute.xlu0 %3851
        %3853 = vrot.lane.b32.xlu0 %v2890, 64
        %v3854 = vpop.permute.xlu0 %3853
        %3855 = vrot.lane.b32.xlu0 %v2891, 64
        %v3856 = vpop.permute.xlu0 %3855
        %3857 = vrot.lane.b32.xlu0 %v2892, 64
        %v3858 = vpop.permute.xlu0 %3857
        %3859 = vrot.lane.b32.xlu0 %v2893, 64
        %v3860 = vpop.permute.xlu0 %3859
        %3861 = vrot.lane.b32.xlu0 %v2894, 64
        %v3862 = vpop.permute.xlu0 %3861
        %3863 = vrot.lane.b32.xlu0 %v2895, 64
        %v3864 = vpop.permute.xlu0 %3863
        %3865 = vrot.lane.b32.xlu0 %v2896, 64
        %v3866 = vpop.permute.xlu0 %3865
        %3867 = vrot.lane.b32.xlu0 %v2897, 64
        %v3868 = vpop.permute.xlu0 %3867
        %3869 = vrot.lane.b32.xlu0 %v2898, 64
        %v3870 = vpop.permute.xlu0 %3869
        %v3872 = vsel %vm951, %v3840, 0
        %v3875 = vsel %vm951, %v3842, 0
        %v3878 = vsel %vm951, %v3844, 0
        %v3881 = vsel %vm951, %v3846, 0
        %v3884 = vsel %vm951, %v3848, 0
        %v3887 = vsel %vm951, %v3850, 0
        %v3890 = vsel %vm951, %v3852, 0
        %v3893 = vsel %vm951, %v3854, 0
        %v3896 = vsel %vm951, %v3856, 0
        %v3899 = vsel %vm951, %v3858, 0
        %v3902 = vsel %vm951, %v3860, 0
        %v3905 = vsel %vm951, %v3862, 0
        %v3908 = vsel %vm951, %v3864, 0
        %v3911 = vsel %vm951, %v3866, 0
        %v3914 = vsel %vm951, %v3868, 0
        %v3917 = vsel %vm951, %v3870, 0
        %3919 = vmatprep.subr.bf16.mxu0 0
        %3920 = vmatpush1.bf16.xpose.msra.mxu0 %v3896
        %3921 = vmatprep.subr.bf16.mxu0 0
        %3922 = vmatpush1.bf16.xpose.msra.mxu0 %v3899
        %3923 = vmatprep.subr.bf16.mxu0 0
        %3924 = vmatpush1.bf16.xpose.msra.mxu0 %v3902
        %3925 = vmatprep.subr.bf16.mxu0 0
        %3926 = vmatpush1.bf16.xpose.msra.mxu0 %v3905
        %3927 = vmatprep.subr.bf16.mxu0 0
        %3928 = vmatpush1.bf16.xpose.msra.mxu0 %v3908
        %3929 = vmatprep.subr.bf16.mxu0 0
        %3930 = vmatpush1.bf16.xpose.msra.mxu0 %v3911
        %3931 = vmatprep.subr.bf16.mxu0 0
        %3932 = vmatpush1.bf16.xpose.msra.mxu0 %v3914
        %3933 = vmatprep.subr.bf16.mxu0 0
        %3934 = vmatpush1.bf16.xpose.msra.mxu0 %v3917
        %3935 = vmatprep.subr.bf16.mxu0 0
        %3936 = vmatpush1.bf16.xpose.msra.mxu0 0
        %3937 = vmatprep.subr.bf16.mxu0 0
        %3938 = vmatpush1.bf16.xpose.msra.mxu0 0
        %3939 = vmatprep.subr.bf16.mxu0 0
        %3940 = vmatpush1.bf16.xpose.msra.mxu0 0
        %3941 = vmatprep.subr.bf16.mxu0 0
        %3942 = vmatpush1.bf16.xpose.msra.mxu0 0
        %3943 = vmatprep.subr.bf16.mxu0 0
        %3944 = vmatpush1.bf16.xpose.msra.mxu0 0
        %3945 = vmatprep.subr.bf16.mxu0 0
        %3946 = vmatpush1.bf16.xpose.msra.mxu0 0
        %3947 = vmatprep.subr.bf16.mxu0 0
        %3948 = vmatpush1.bf16.xpose.msra.mxu0 0
        %3949 = vmatprep.subr.bf16.mxu0 0
        %3950 = vmatpush1.bf16.xpose.msra.mxu0 0
        %3951 = vmatprep.mubr.bf16.mxu0 0
        %3952 = vmatmul.mubr.bf16.gmra.mrb[0].mxu0 %v3872
        %v3953 = vpop.f32.mrb[0].mxu0
        %v3954 = vadd.f32 0.0, %v3953
        %v3955 = vpop.f32.mrb[0].mxu0
        %v3956 = vpop.f32.mrb[0].mxu0
        %v3957 = vadd.f32 0.0, %v3956
        %v3958 = vpop.f32.mrb[0].mxu0
        %3959 = vmatprep.mubr.bf16.mxu0 0
        %3960 = vmatmul.mubr.bf16.gmra.mrb[0].mxu0 %v3875
        %v3961 = vpop.f32.mrb[0].mxu0
        %v3962 = vadd.f32 0.0, %v3961
        %v3963 = vpop.f32.mrb[0].mxu0
        %v3964 = vpop.f32.mrb[0].mxu0
        %v3965 = vadd.f32 0.0, %v3964
        %v3966 = vpop.f32.mrb[0].mxu0
        %3967 = vmatprep.mubr.bf16.mxu0 0
        %3968 = vmatmul.mubr.bf16.gmra.mrb[0].mxu0 %v3878
        %v3969 = vpop.f32.mrb[0].mxu0
        %v3970 = vadd.f32 0.0, %v3969
        %v3971 = vpop.f32.mrb[0].mxu0
        %v3972 = vpop.f32.mrb[0].mxu0
        %v3973 = vadd.f32 0.0, %v3972
        %v3974 = vpop.f32.mrb[0].mxu0
        %3975 = vmatprep.mubr.bf16.mxu0 0
        %3976 = vmatmul.mubr.bf16.gmra.mrb[0].mxu0 %v3881
        %v3977 = vpop.f32.mrb[0].mxu0
        %v3978 = vadd.f32 0.0, %v3977
        %v3979 = vpop.f32.mrb[0].mxu0
        %v3980 = vpop.f32.mrb[0].mxu0
        %v3981 = vadd.f32 0.0, %v3980
        %v3982 = vpop.f32.mrb[0].mxu0
        %3983 = vmatprep.mubr.bf16.mxu0 0
        %3984 = vmatmul.mubr.bf16.gmra.mrb[0].mxu0 %v3884
        %v3985 = vpop.f32.mrb[0].mxu0
        %v3986 = vadd.f32 0.0, %v3985
        %v3987 = vpop.f32.mrb[0].mxu0
        %v3988 = vpop.f32.mrb[0].mxu0
        %v3989 = vadd.f32 0.0, %v3988
        %v3990 = vpop.f32.mrb[0].mxu0
        %3991 = vmatprep.mubr.bf16.mxu0 0
        %3992 = vmatmul.mubr.bf16.gmra.mrb[0].mxu0 %v3887
        %v3993 = vpop.f32.mrb[0].mxu0
        %v3994 = vadd.f32 0.0, %v3993
        %v3995 = vpop.f32.mrb[0].mxu0
        %v3996 = vpop.f32.mrb[0].mxu0
        %v3997 = vadd.f32 0.0, %v3996
        %v3998 = vpop.f32.mrb[0].mxu0
        %3999 = vmatprep.mubr.bf16.mxu0 0
        %4000 = vmatmul.mubr.bf16.gmra.mrb[0].mxu0 %v3890
        %v4001 = vpop.f32.mrb[0].mxu0
        %v4002 = vadd.f32 0.0, %v4001
        %v4003 = vpop.f32.mrb[0].mxu0
        %v4004 = vpop.f32.mrb[0].mxu0
        %v4005 = vadd.f32 0.0, %v4004
        %v4006 = vpop.f32.mrb[0].mxu0
        %4007 = vmatprep.mubr.bf16.mxu0 0
        %4008 = vmatmul.mubr.bf16.gmra.mrb[0].mxu0 %v3893
        %v4009 = vpop.f32.mrb[0].mxu0
        %v4010 = vadd.f32 0.0, %v4009
        %v4011 = vpop.f32.mrb[0].mxu0
        %v4012 = vpop.f32.mrb[0].mxu0
        %v4013 = vadd.f32 0.0, %v4012
        %v4014 = vpop.f32.mrb[0].mxu0
        %4015 = vdwg.mxu0
        %4016 = vmax.xlane.f32.xlu0 %v3954
        %v4017 = vpop.xlane.xlu0 %4016
        %4018 = vmax.xlane.f32.xlu0 %v3957
        %v4019 = vpop.xlane.xlu0 %4018
        %4020 = vmax.xlane.f32.xlu0 %v3962
        %v4021 = vpop.xlane.xlu0 %4020
        %4022 = vmax.xlane.f32.xlu0 %v3965
        %v4023 = vpop.xlane.xlu0 %4022
        %4024 = vmax.xlane.f32.xlu0 %v3970
        %v4025 = vpop.xlane.xlu0 %4024
        %4026 = vmax.xlane.f32.xlu0 %v3973
        %v4027 = vpop.xlane.xlu0 %4026
        %4028 = vmax.xlane.f32.xlu0 %v3978
        %v4029 = vpop.xlane.xlu0 %4028
        %4030 = vmax.xlane.f32.xlu0 %v3981
        %v4031 = vpop.xlane.xlu0 %4030
        %4032 = vmax.xlane.f32.xlu0 %v3986
        %v4033 = vpop.xlane.xlu0 %4032
        %4034 = vmax.xlane.f32.xlu0 %v3989
        %v4035 = vpop.xlane.xlu0 %4034
        %4036 = vmax.xlane.f32.xlu0 %v3994
        %v4037 = vpop.xlane.xlu0 %4036
        %4038 = vmax.xlane.f32.xlu0 %v3997
        %v4039 = vpop.xlane.xlu0 %4038
        %4040 = vmax.xlane.f32.xlu0 %v4002
        %v4041 = vpop.xlane.xlu0 %4040
        %4042 = vmax.xlane.f32.xlu0 %v4005
        %v4043 = vpop.xlane.xlu0 %4042
        %4044 = vmax.xlane.f32.xlu0 %v4010
        %v4045 = vpop.xlane.xlu0 %4044
        %4046 = vmax.xlane.f32.xlu0 %v4013
        %v4047 = vpop.xlane.xlu0 %4046
        %v4048 = vsub.f32 %v3954, %v4017
        %v4049 = vsub.f32 %v3957, %v4019
        %v4050 = vsub.f32 %v3962, %v4021
        %v4051 = vsub.f32 %v3965, %v4023
        %v4052 = vsub.f32 %v3970, %v4025
        %v4053 = vsub.f32 %v3973, %v4027
        %v4054 = vsub.f32 %v3978, %v4029
        %v4055 = vsub.f32 %v3981, %v4031
        %v4056 = vsub.f32 %v3986, %v4033
        %v4057 = vsub.f32 %v3989, %v4035
        %v4058 = vsub.f32 %v3994, %v4037
        %v4059 = vsub.f32 %v3997, %v4039
        %v4060 = vsub.f32 %v4002, %v4041
        %v4061 = vsub.f32 %v4005, %v4043
        %v4062 = vsub.f32 %v4010, %v4045
        %v4063 = vsub.f32 %v4013, %v4047
        %v4064 = vmul.f32 %v4048, 1.442695
        %v4065 = vpow.pop %v4064
        %v4066 = vmul.f32 %v4049, 1.442695
        %v4067 = vpow.pop %v4066
        %v4068 = vmul.f32 %v4050, 1.442695
        %v4069 = vpow.pop %v4068
        %v4070 = vmul.f32 %v4051, 1.442695
        %v4071 = vpow.pop %v4070
        %v4072 = vmul.f32 %v4052, 1.442695
        %v4073 = vpow.pop %v4072
        %v4074 = vmul.f32 %v4053, 1.442695
        %v4075 = vpow.pop %v4074
        %v4076 = vmul.f32 %v4054, 1.442695
        %v4077 = vpow.pop %v4076
        %v4078 = vmul.f32 %v4055, 1.442695
        %v4079 = vpow.pop %v4078
        %v4080 = vmul.f32 %v4056, 1.442695
        %v4081 = vpow.pop %v4080
        %v4082 = vmul.f32 %v4057, 1.442695
        %v4083 = vpow.pop %v4082
        %v4084 = vmul.f32 %v4058, 1.442695
        %v4085 = vpow.pop %v4084
        %v4086 = vmul.f32 %v4059, 1.442695
        %v4087 = vpow.pop %v4086
        %v4088 = vmul.f32 %v4060, 1.442695
        %v4089 = vpow.pop %v4088
        %v4090 = vmul.f32 %v4061, 1.442695
        %v4091 = vpow.pop %v4090
        %v4092 = vmul.f32 %v4062, 1.442695
        %v4093 = vpow.pop %v4092
        %v4094 = vmul.f32 %v4063, 1.442695
        %v4095 = vpow.pop %v4094
        %4096 = vadd.xlane.f32.xlu0 %v4065
        %v4097 = vpop.xlane.xlu0 %4096
        %4098 = vadd.xlane.f32.xlu0 %v4067
        %v4099 = vpop.xlane.xlu0 %4098
        %4100 = vadd.xlane.f32.xlu0 %v4069
        %v4101 = vpop.xlane.xlu0 %4100
        %4102 = vadd.xlane.f32.xlu0 %v4071
        %v4103 = vpop.xlane.xlu0 %4102
        %4104 = vadd.xlane.f32.xlu0 %v4073
        %v4105 = vpop.xlane.xlu0 %4104
        %4106 = vadd.xlane.f32.xlu0 %v4075
        %v4107 = vpop.xlane.xlu0 %4106
        %4108 = vadd.xlane.f32.xlu0 %v4077
        %v4109 = vpop.xlane.xlu0 %4108
        %4110 = vadd.xlane.f32.xlu0 %v4079
        %v4111 = vpop.xlane.xlu0 %4110
        %4112 = vadd.xlane.f32.xlu0 %v4081
        %v4113 = vpop.xlane.xlu0 %4112
        %4114 = vadd.xlane.f32.xlu0 %v4083
        %v4115 = vpop.xlane.xlu0 %4114
        %4116 = vadd.xlane.f32.xlu0 %v4085
        %v4117 = vpop.xlane.xlu0 %4116
        %4118 = vadd.xlane.f32.xlu0 %v4087
        %v4119 = vpop.xlane.xlu0 %4118
        %4120 = vadd.xlane.f32.xlu0 %v4089
        %v4121 = vpop.xlane.xlu0 %4120
        %4122 = vadd.xlane.f32.xlu0 %v4091
        %v4123 = vpop.xlane.xlu0 %4122
        %4124 = vadd.xlane.f32.xlu0 %v4093
        %v4125 = vpop.xlane.xlu0 %4124
        %4126 = vadd.xlane.f32.xlu0 %v4095
        %v4127 = vpop.xlane.xlu0 %4126
        %v4128 = vrcp.pop %v4097
        %v4129 = vrcp.pop %v4099
        %v4130 = vrcp.pop %v4101
        %v4131 = vrcp.pop %v4103
        %v4132 = vrcp.pop %v4105
        %v4133 = vrcp.pop %v4107
        %v4134 = vrcp.pop %v4109
        %v4135 = vrcp.pop %v4111
        %v4136 = vrcp.pop %v4113
        %v4137 = vrcp.pop %v4115
        %v4138 = vrcp.pop %v4117
        %v4139 = vrcp.pop %v4119
        %v4140 = vrcp.pop %v4121
        %v4141 = vrcp.pop %v4123
        %v4142 = vrcp.pop %v4125
        %v4143 = vrcp.pop %v4127
        %v4144 = vpack.c.bf16 %v4067, %v4065
        %v4145 = vpack.c.bf16 %v4071, %v4069
        %v4146 = vpack.c.bf16 %v4075, %v4073
        %v4147 = vpack.c.bf16 %v4079, %v4077
        %v4148 = vpack.c.bf16 %v4083, %v4081
        %v4149 = vpack.c.bf16 %v4087, %v4085
        %v4150 = vpack.c.bf16 %v4091, %v4089
        %v4151 = vpack.c.bf16 %v4095, %v4093
        %4152 = vrot.lane.b32.xlu0 %v2899, 64
        %v4153 = vpop.permute.xlu0 %4152
        %4154 = vrot.lane.b32.xlu0 %v2900, 64
        %v4155 = vpop.permute.xlu0 %4154
        %4156 = vrot.lane.b32.xlu0 %v2901, 64
        %v4157 = vpop.permute.xlu0 %4156
        %4158 = vrot.lane.b32.xlu0 %v2902, 64
        %v4159 = vpop.permute.xlu0 %4158
        %4160 = vrot.lane.b32.xlu0 %v2903, 64
        %v4161 = vpop.permute.xlu0 %4160
        %4162 = vrot.lane.b32.xlu0 %v2904, 64
        %v4163 = vpop.permute.xlu0 %4162
        %4164 = vrot.lane.b32.xlu0 %v2905, 64
        %v4165 = vpop.permute.xlu0 %4164
        %4166 = vrot.lane.b32.xlu0 %v2906, 64
        %v4167 = vpop.permute.xlu0 %4166
        %4176 = vmatprep.subr.bf16.mxu0 0
        %4177 = vmatpush1.bf16.msra.mxu0 %v4153
        %4178 = vmatprep.subr.bf16.mxu0 0
        %4179 = vmatpush1.bf16.msra.mxu0 %v4155
        %4180 = vmatprep.subr.bf16.mxu0 0
        %4181 = vmatpush1.bf16.msra.mxu0 %v4157
        %4182 = vmatprep.subr.bf16.mxu0 0
        %4183 = vmatpush1.bf16.msra.mxu0 %v4159
        %4184 = vmatprep.subr.bf16.mxu0 0
        %4185 = vmatpush1.bf16.msra.mxu0 %v4161
        %4186 = vmatprep.subr.bf16.mxu0 0
        %4187 = vmatpush1.bf16.msra.mxu0 %v4163
        %4188 = vmatprep.subr.bf16.mxu0 0
        %4189 = vmatpush1.bf16.msra.mxu0 %v4165
        %4190 = vmatprep.subr.bf16.mxu0 0
        %4191 = vmatpush1.bf16.msra.mxu0 %v4167
        %4192 = vmatprep.subr.bf16.mxu0 0
        %4193 = vmatpush1.bf16.msra.mxu0 0
        %4194 = vmatprep.subr.bf16.mxu0 0
        %4195 = vmatpush1.bf16.msra.mxu0 0
        %4196 = vmatprep.subr.bf16.mxu0 0
        %4197 = vmatpush1.bf16.msra.mxu0 0
        %4198 = vmatprep.subr.bf16.mxu0 0
        %4199 = vmatpush1.bf16.msra.mxu0 0
        %4200 = vmatprep.subr.bf16.mxu0 0
        %4201 = vmatpush1.bf16.msra.mxu0 0
        %4202 = vmatprep.subr.bf16.mxu0 0
        %4203 = vmatpush1.bf16.msra.mxu0 0
        %4204 = vmatprep.subr.bf16.mxu0 0
        %4205 = vmatpush1.bf16.msra.mxu0 0
        %4206 = vmatprep.subr.bf16.mxu0 0
        %4207 = vmatpush1.bf16.msra.mxu0 0
        %4208 = vmatprep.mubr.bf16.mxu0 0
        %4209 = vmatmul.mubr.bf16.gmra.mrb[0].mxu0 %v4144
        %v4210 = vpop.f32.mrb[0].mxu0
        %v4211 = vadd.f32 0.0, %v4210
        %v4212 = vpop.f32.mrb[0].mxu0
        %v4213 = vpop.f32.mrb[0].mxu0
        %v4214 = vadd.f32 0.0, %v4213
        %v4215 = vpop.f32.mrb[0].mxu0
        %4216 = vmatprep.mubr.bf16.mxu0 0
        %4217 = vmatmul.mubr.bf16.gmra.mrb[0].mxu0 %v4145
        %v4218 = vpop.f32.mrb[0].mxu0
        %v4219 = vadd.f32 0.0, %v4218
        %v4220 = vpop.f32.mrb[0].mxu0
        %v4221 = vpop.f32.mrb[0].mxu0
        %v4222 = vadd.f32 0.0, %v4221
        %v4223 = vpop.f32.mrb[0].mxu0
        %4224 = vmatprep.mubr.bf16.mxu0 0
        %4225 = vmatmul.mubr.bf16.gmra.mrb[0].mxu0 %v4146
        %v4226 = vpop.f32.mrb[0].mxu0
        %v4227 = vadd.f32 0.0, %v4226
        %v4228 = vpop.f32.mrb[0].mxu0
        %v4229 = vpop.f32.mrb[0].mxu0
        %v4230 = vadd.f32 0.0, %v4229
        %v4231 = vpop.f32.mrb[0].mxu0
        %4232 = vmatprep.mubr.bf16.mxu0 0
        %4233 = vmatmul.mubr.bf16.gmra.mrb[0].mxu0 %v4147
        %v4234 = vpop.f32.mrb[0].mxu0
        %v4235 = vadd.f32 0.0, %v4234
        %v4236 = vpop.f32.mrb[0].mxu0
        %v4237 = vpop.f32.mrb[0].mxu0
        %v4238 = vadd.f32 0.0, %v4237
        %v4239 = vpop.f32.mrb[0].mxu0
        %4240 = vmatprep.mubr.bf16.mxu0 0
        %4241 = vmatmul.mubr.bf16.gmra.mrb[0].mxu0 %v4148
        %v4242 = vpop.f32.mrb[0].mxu0
        %v4243 = vadd.f32 0.0, %v4242
        %v4244 = vpop.f32.mrb[0].mxu0
        %v4245 = vpop.f32.mrb[0].mxu0
        %v4246 = vadd.f32 0.0, %v4245
        %v4247 = vpop.f32.mrb[0].mxu0
        %4248 = vmatprep.mubr.bf16.mxu0 0
        %4249 = vmatmul.mubr.bf16.gmra.mrb[0].mxu0 %v4149
        %v4250 = vpop.f32.mrb[0].mxu0
        %v4251 = vadd.f32 0.0, %v4250
        %v4252 = vpop.f32.mrb[0].mxu0
        %v4253 = vpop.f32.mrb[0].mxu0
        %v4254 = vadd.f32 0.0, %v4253
        %v4255 = vpop.f32.mrb[0].mxu0
        %4256 = vmatprep.mubr.bf16.mxu0 0
        %4257 = vmatmul.mubr.bf16.gmra.mrb[0].mxu0 %v4150
        %v4258 = vpop.f32.mrb[0].mxu0
        %v4259 = vadd.f32 0.0, %v4258
        %v4260 = vpop.f32.mrb[0].mxu0
        %v4261 = vpop.f32.mrb[0].mxu0
        %v4262 = vadd.f32 0.0, %v4261
        %v4263 = vpop.f32.mrb[0].mxu0
        %4264 = vmatprep.mubr.bf16.mxu0 0
        %4265 = vmatmul.mubr.bf16.gmra.mrb[0].mxu0 %v4151
        %v4266 = vpop.f32.mrb[0].mxu0
        %v4267 = vadd.f32 0.0, %v4266
        %v4268 = vpop.f32.mrb[0].mxu0
        %v4269 = vpop.f32.mrb[0].mxu0
        %v4270 = vadd.f32 0.0, %v4269
        %v4271 = vpop.f32.mrb[0].mxu0
        %4272 = vdwg.mxu0
        %v4273 = vmul.f32 %v4211, %v4128
        %v4274 = vmul.f32 %v4214, %v4129
        %v4275 = vmul.f32 %v4219, %v4130
        %v4276 = vmul.f32 %v4222, %v4131
        %v4277 = vmul.f32 %v4227, %v4132
        %v4278 = vmul.f32 %v4230, %v4133
        %v4279 = vmul.f32 %v4235, %v4134
        %v4280 = vmul.f32 %v4238, %v4135
        %v4281 = vmul.f32 %v4243, %v4136
        %v4282 = vmul.f32 %v4246, %v4137
        %v4283 = vmul.f32 %v4251, %v4138
        %v4284 = vmul.f32 %v4254, %v4139
        %v4285 = vmul.f32 %v4259, %v4140
        %v4286 = vmul.f32 %v4262, %v4141
        %v4287 = vmul.f32 %v4267, %v4142
        %v4288 = vmul.f32 %v4270, %v4143
        %v4289 = vpack.c.bf16 %v4274, %v4273
        %v4290 = vpack.c.bf16 %v4276, %v4275
        %v4291 = vpack.c.bf16 %v4278, %v4277
        %v4292 = vpack.c.bf16 %v4280, %v4279
        %v4293 = vpack.c.bf16 %v4282, %v4281
        %v4294 = vpack.c.bf16 %v4284, %v4283
        %v4295 = vpack.c.bf16 %v4286, %v4285
        %v4296 = vpack.c.bf16 %v4288, %v4287
        %4305 = vrot.lane.b32.xlu0 %v4289, 64
        %v4306 = vpop.permute.xlu0 %4305
        %4307 = vrot.lane.b32.xlu0 %v4290, 64
        %v4308 = vpop.permute.xlu0 %4307
        %4309 = vrot.lane.b32.xlu0 %v4291, 64
        %v4310 = vpop.permute.xlu0 %4309
        %4311 = vrot.lane.b32.xlu0 %v4292, 64
        %v4312 = vpop.permute.xlu0 %4311
        %4313 = vrot.lane.b32.xlu0 %v4293, 64
        %v4314 = vpop.permute.xlu0 %4313
        %4315 = vrot.lane.b32.xlu0 %v4294, 64
        %v4316 = vpop.permute.xlu0 %4315
        %4317 = vrot.lane.b32.xlu0 %v4295, 64
        %v4318 = vpop.permute.xlu0 %4317
        %4319 = vrot.lane.b32.xlu0 %v4296, 64
        %v4320 = vpop.permute.xlu0 %4319
        %4329 = vst.msk [vmem:[#allocation2 + $0x40] sm:$0xff] %vm2375, %v4306
        %4330 = vst.msk [vmem:[#allocation2 + $0x48] sm:$0xff] %vm2375, %v4308
        %4331 = vst.msk [vmem:[#allocation2 + $0x50] sm:$0xff] %vm2375, %v4310
        %4332 = vst.msk [vmem:[#allocation2 + $0x58] sm:$0xff] %vm2375, %v4312
        %4333 = vst.msk [vmem:[#allocation2 + $0x60] sm:$0xff] %vm2375, %v4314
        %4334 = vst.msk [vmem:[#allocation2 + $0x68] sm:$0xff] %vm2375, %v4316
        %4335 = vst.msk [vmem:[#allocation2 + $0x70] sm:$0xff] %vm2375, %v4318
        %4336 = vst.msk [vmem:[#allocation2 + $0x78] sm:$0xff] %vm2375, %v4320
        %4337 = vrot.lane.b32.xlu0 %v2883, 32
        %v4338 = vpop.permute.xlu0 %4337
        %4339 = vrot.lane.b32.xlu0 %v2884, 32
        %v4340 = vpop.permute.xlu0 %4339
        %4341 = vrot.lane.b32.xlu0 %v2885, 32
        %v4342 = vpop.permute.xlu0 %4341
        %4343 = vrot.lane.b32.xlu0 %v2886, 32
        %v4344 = vpop.permute.xlu0 %4343
        %4345 = vrot.lane.b32.xlu0 %v2887, 32
        %v4346 = vpop.permute.xlu0 %4345
        %4347 = vrot.lane.b32.xlu0 %v2888, 32
        %v4348 = vpop.permute.xlu0 %4347
        %4349 = vrot.lane.b32.xlu0 %v2889, 32
        %v4350 = vpop.permute.xlu0 %4349
        %4351 = vrot.lane.b32.xlu0 %v2890, 32
        %v4352 = vpop.permute.xlu0 %4351
        %4353 = vrot.lane.b32.xlu0 %v2891, 32
        %v4354 = vpop.permute.xlu0 %4353
        %4355 = vrot.lane.b32.xlu0 %v2892, 32
        %v4356 = vpop.permute.xlu0 %4355
        %4357 = vrot.lane.b32.xlu0 %v2893, 32
        %v4358 = vpop.permute.xlu0 %4357
        %4359 = vrot.lane.b32.xlu0 %v2894, 32
        %v4360 = vpop.permute.xlu0 %4359
        %4361 = vrot.lane.b32.xlu0 %v2895, 32
        %v4362 = vpop.permute.xlu0 %4361
        %4363 = vrot.lane.b32.xlu0 %v2896, 32
        %v4364 = vpop.permute.xlu0 %4363
        %4365 = vrot.lane.b32.xlu0 %v2897, 32
        %v4366 = vpop.permute.xlu0 %4365
        %4367 = vrot.lane.b32.xlu0 %v2898, 32
        %v4368 = vpop.permute.xlu0 %4367
        %v4370 = vsel %vm951, %v4338, 0
        %v4373 = vsel %vm951, %v4340, 0
        %v4376 = vsel %vm951, %v4342, 0
        %v4379 = vsel %vm951, %v4344, 0
        %v4382 = vsel %vm951, %v4346, 0
        %v4385 = vsel %vm951, %v4348, 0
        %v4388 = vsel %vm951, %v4350, 0
        %v4391 = vsel %vm951, %v4352, 0
        %v4394 = vsel %vm951, %v4354, 0
        %v4397 = vsel %vm951, %v4356, 0
        %v4400 = vsel %vm951, %v4358, 0
        %v4403 = vsel %vm951, %v4360, 0
        %v4406 = vsel %vm951, %v4362, 0
        %v4409 = vsel %vm951, %v4364, 0
        %v4412 = vsel %vm951, %v4366, 0
        %v4415 = vsel %vm951, %v4368, 0
        %4417 = vmatprep.subr.bf16.mxu0 0
        %4418 = vmatpush1.bf16.xpose.msra.mxu0 %v4394
        %4419 = vmatprep.subr.bf16.mxu0 0
        %4420 = vmatpush1.bf16.xpose.msra.mxu0 %v4397
        %4421 = vmatprep.subr.bf16.mxu0 0
        %4422 = vmatpush1.bf16.xpose.msra.mxu0 %v4400
        %4423 = vmatprep.subr.bf16.mxu0 0
        %4424 = vmatpush1.bf16.xpose.msra.mxu0 %v4403
        %4425 = vmatprep.subr.bf16.mxu0 0
        %4426 = vmatpush1.bf16.xpose.msra.mxu0 %v4406
        %4427 = vmatprep.subr.bf16.mxu0 0
        %4428 = vmatpush1.bf16.xpose.msra.mxu0 %v4409
        %4429 = vmatprep.subr.bf16.mxu0 0
        %4430 = vmatpush1.bf16.xpose.msra.mxu0 %v4412
        %4431 = vmatprep.subr.bf16.mxu0 0
        %4432 = vmatpush1.bf16.xpose.msra.mxu0 %v4415
        %4433 = vmatprep.subr.bf16.mxu0 0
        %4434 = vmatpush1.bf16.xpose.msra.mxu0 0
        %4435 = vmatprep.subr.bf16.mxu0 0
        %4436 = vmatpush1.bf16.xpose.msra.mxu0 0
        %4437 = vmatprep.subr.bf16.mxu0 0
        %4438 = vmatpush1.bf16.xpose.msra.mxu0 0
        %4439 = vmatprep.subr.bf16.mxu0 0
        %4440 = vmatpush1.bf16.xpose.msra.mxu0 0
        %4441 = vmatprep.subr.bf16.mxu0 0
        %4442 = vmatpush1.bf16.xpose.msra.mxu0 0
        %4443 = vmatprep.subr.bf16.mxu0 0
        %4444 = vmatpush1.bf16.xpose.msra.mxu0 0
        %4445 = vmatprep.subr.bf16.mxu0 0
        %4446 = vmatpush1.bf16.xpose.msra.mxu0 0
        %4447 = vmatprep.subr.bf16.mxu0 0
        %4448 = vmatpush1.bf16.xpose.msra.mxu0 0
        %4449 = vmatprep.mubr.bf16.mxu0 0
        %4450 = vmatmul.mubr.bf16.gmra.mrb[0].mxu0 %v4370
        %v4451 = vpop.f32.mrb[0].mxu0
        %v4452 = vadd.f32 0.0, %v4451
        %v4453 = vpop.f32.mrb[0].mxu0
        %v4454 = vpop.f32.mrb[0].mxu0
        %v4455 = vadd.f32 0.0, %v4454
        %v4456 = vpop.f32.mrb[0].mxu0
        %4457 = vmatprep.mubr.bf16.mxu0 0
        %4458 = vmatmul.mubr.bf16.gmra.mrb[0].mxu0 %v4373
        %v4459 = vpop.f32.mrb[0].mxu0
        %v4460 = vadd.f32 0.0, %v4459
        %v4461 = vpop.f32.mrb[0].mxu0
        %v4462 = vpop.f32.mrb[0].mxu0
        %v4463 = vadd.f32 0.0, %v4462
        %v4464 = vpop.f32.mrb[0].mxu0
        %4465 = vmatprep.mubr.bf16.mxu0 0
        %4466 = vmatmul.mubr.bf16.gmra.mrb[0].mxu0 %v4376
        %v4467 = vpop.f32.mrb[0].mxu0
        %v4468 = vadd.f32 0.0, %v4467
        %v4469 = vpop.f32.mrb[0].mxu0
        %v4470 = vpop.f32.mrb[0].mxu0
        %v4471 = vadd.f32 0.0, %v4470
        %v4472 = vpop.f32.mrb[0].mxu0
        %4473 = vmatprep.mubr.bf16.mxu0 0
        %4474 = vmatmul.mubr.bf16.gmra.mrb[0].mxu0 %v4379
        %v4475 = vpop.f32.mrb[0].mxu0
        %v4476 = vadd.f32 0.0, %v4475
        %v4477 = vpop.f32.mrb[0].mxu0
        %v4478 = vpop.f32.mrb[0].mxu0
        %v4479 = vadd.f32 0.0, %v4478
        %v4480 = vpop.f32.mrb[0].mxu0
        %4481 = vmatprep.mubr.bf16.mxu0 0
        %4482 = vmatmul.mubr.bf16.gmra.mrb[0].mxu0 %v4382
        %v4483 = vpop.f32.mrb[0].mxu0
        %v4484 = vadd.f32 0.0, %v4483
        %v4485 = vpop.f32.mrb[0].mxu0
        %v4486 = vpop.f32.mrb[0].mxu0
        %v4487 = vadd.f32 0.0, %v4486
        %v4488 = vpop.f32.mrb[0].mxu0
        %4489 = vmatprep.mubr.bf16.mxu0 0
        %4490 = vmatmul.mubr.bf16.gmra.mrb[0].mxu0 %v4385
        %v4491 = vpop.f32.mrb[0].mxu0
        %v4492 = vadd.f32 0.0, %v4491
        %v4493 = vpop.f32.mrb[0].mxu0
        %v4494 = vpop.f32.mrb[0].mxu0
        %v4495 = vadd.f32 0.0, %v4494
        %v4496 = vpop.f32.mrb[0].mxu0
        %4497 = vmatprep.mubr.bf16.mxu0 0
        %4498 = vmatmul.mubr.bf16.gmra.mrb[0].mxu0 %v4388
        %v4499 = vpop.f32.mrb[0].mxu0
        %v4500 = vadd.f32 0.0, %v4499
        %v4501 = vpop.f32.mrb[0].mxu0
        %v4502 = vpop.f32.mrb[0].mxu0
        %v4503 = vadd.f32 0.0, %v4502
        %v4504 = vpop.f32.mrb[0].mxu0
        %4505 = vmatprep.mubr.bf16.mxu0 0
        %4506 = vmatmul.mubr.bf16.gmra.mrb[0].mxu0 %v4391
        %v4507 = vpop.f32.mrb[0].mxu0
        %v4508 = vadd.f32 0.0, %v4507
        %v4509 = vpop.f32.mrb[0].mxu0
        %v4510 = vpop.f32.mrb[0].mxu0
        %v4511 = vadd.f32 0.0, %v4510
        %v4512 = vpop.f32.mrb[0].mxu0
        %4513 = vdwg.mxu0
        %4514 = vmax.xlane.f32.xlu0 %v4452
        %v4515 = vpop.xlane.xlu0 %4514
        %4516 = vmax.xlane.f32.xlu0 %v4455
        %v4517 = vpop.xlane.xlu0 %4516
        %4518 = vmax.xlane.f32.xlu0 %v4460
        %v4519 = vpop.xlane.xlu0 %4518
        %4520 = vmax.xlane.f32.xlu0 %v4463
        %v4521 = vpop.xlane.xlu0 %4520
        %4522 = vmax.xlane.f32.xlu0 %v4468
        %v4523 = vpop.xlane.xlu0 %4522
        %4524 = vmax.xlane.f32.xlu0 %v4471
        %v4525 = vpop.xlane.xlu0 %4524
        %4526 = vmax.xlane.f32.xlu0 %v4476
        %v4527 = vpop.xlane.xlu0 %4526
        %4528 = vmax.xlane.f32.xlu0 %v4479
        %v4529 = vpop.xlane.xlu0 %4528
        %4530 = vmax.xlane.f32.xlu0 %v4484
        %v4531 = vpop.xlane.xlu0 %4530
        %4532 = vmax.xlane.f32.xlu0 %v4487
        %v4533 = vpop.xlane.xlu0 %4532
        %4534 = vmax.xlane.f32.xlu0 %v4492
        %v4535 = vpop.xlane.xlu0 %4534
        %4536 = vmax.xlane.f32.xlu0 %v4495
        %v4537 = vpop.xlane.xlu0 %4536
        %4538 = vmax.xlane.f32.xlu0 %v4500
        %v4539 = vpop.xlane.xlu0 %4538
        %4540 = vmax.xlane.f32.xlu0 %v4503
        %v4541 = vpop.xlane.xlu0 %4540
        %4542 = vmax.xlane.f32.xlu0 %v4508
        %v4543 = vpop.xlane.xlu0 %4542
        %4544 = vmax.xlane.f32.xlu0 %v4511
        %v4545 = vpop.xlane.xlu0 %4544
        %v4546 = vsub.f32 %v4452, %v4515
        %v4547 = vsub.f32 %v4455, %v4517
        %v4548 = vsub.f32 %v4460, %v4519
        %v4549 = vsub.f32 %v4463, %v4521
        %v4550 = vsub.f32 %v4468, %v4523
        %v4551 = vsub.f32 %v4471, %v4525
        %v4552 = vsub.f32 %v4476, %v4527
        %v4553 = vsub.f32 %v4479, %v4529
        %v4554 = vsub.f32 %v4484, %v4531
        %v4555 = vsub.f32 %v4487, %v4533
        %v4556 = vsub.f32 %v4492, %v4535
        %v4557 = vsub.f32 %v4495, %v4537
        %v4558 = vsub.f32 %v4500, %v4539
        %v4559 = vsub.f32 %v4503, %v4541
        %v4560 = vsub.f32 %v4508, %v4543
        %v4561 = vsub.f32 %v4511, %v4545
        %v4562 = vmul.f32 %v4546, 1.442695
        %v4563 = vpow.pop %v4562
        %v4564 = vmul.f32 %v4547, 1.442695
        %v4565 = vpow.pop %v4564
        %v4566 = vmul.f32 %v4548, 1.442695
        %v4567 = vpow.pop %v4566
        %v4568 = vmul.f32 %v4549, 1.442695
        %v4569 = vpow.pop %v4568
        %v4570 = vmul.f32 %v4550, 1.442695
        %v4571 = vpow.pop %v4570
        %v4572 = vmul.f32 %v4551, 1.442695
        %v4573 = vpow.pop %v4572
        %v4574 = vmul.f32 %v4552, 1.442695
        %v4575 = vpow.pop %v4574
        %v4576 = vmul.f32 %v4553, 1.442695
        %v4577 = vpow.pop %v4576
        %v4578 = vmul.f32 %v4554, 1.442695
        %v4579 = vpow.pop %v4578
        %v4580 = vmul.f32 %v4555, 1.442695
        %v4581 = vpow.pop %v4580
        %v4582 = vmul.f32 %v4556, 1.442695
        %v4583 = vpow.pop %v4582
        %v4584 = vmul.f32 %v4557, 1.442695
        %v4585 = vpow.pop %v4584
        %v4586 = vmul.f32 %v4558, 1.442695
        %v4587 = vpow.pop %v4586
        %v4588 = vmul.f32 %v4559, 1.442695
        %v4589 = vpow.pop %v4588
        %v4590 = vmul.f32 %v4560, 1.442695
        %v4591 = vpow.pop %v4590
        %v4592 = vmul.f32 %v4561, 1.442695
        %v4593 = vpow.pop %v4592
        %4594 = vadd.xlane.f32.xlu0 %v4563
        %v4595 = vpop.xlane.xlu0 %4594
        %4596 = vadd.xlane.f32.xlu0 %v4565
        %v4597 = vpop.xlane.xlu0 %4596
        %4598 = vadd.xlane.f32.xlu0 %v4567
        %v4599 = vpop.xlane.xlu0 %4598
        %4600 = vadd.xlane.f32.xlu0 %v4569
        %v4601 = vpop.xlane.xlu0 %4600
        %4602 = vadd.xlane.f32.xlu0 %v4571
        %v4603 = vpop.xlane.xlu0 %4602
        %4604 = vadd.xlane.f32.xlu0 %v4573
        %v4605 = vpop.xlane.xlu0 %4604
        %4606 = vadd.xlane.f32.xlu0 %v4575
        %v4607 = vpop.xlane.xlu0 %4606
        %4608 = vadd.xlane.f32.xlu0 %v4577
        %v4609 = vpop.xlane.xlu0 %4608
        %4610 = vadd.xlane.f32.xlu0 %v4579
        %v4611 = vpop.xlane.xlu0 %4610
        %4612 = vadd.xlane.f32.xlu0 %v4581
        %v4613 = vpop.xlane.xlu0 %4612
        %4614 = vadd.xlane.f32.xlu0 %v4583
        %v4615 = vpop.xlane.xlu0 %4614
        %4616 = vadd.xlane.f32.xlu0 %v4585
        %v4617 = vpop.xlane.xlu0 %4616
        %4618 = vadd.xlane.f32.xlu0 %v4587
        %v4619 = vpop.xlane.xlu0 %4618
        %4620 = vadd.xlane.f32.xlu0 %v4589
        %v4621 = vpop.xlane.xlu0 %4620
        %4622 = vadd.xlane.f32.xlu0 %v4591
        %v4623 = vpop.xlane.xlu0 %4622
        %4624 = vadd.xlane.f32.xlu0 %v4593
        %v4625 = vpop.xlane.xlu0 %4624
        %v4626 = vrcp.pop %v4595
        %v4627 = vrcp.pop %v4597
        %v4628 = vrcp.pop %v4599
        %v4629 = vrcp.pop %v4601
        %v4630 = vrcp.pop %v4603
        %v4631 = vrcp.pop %v4605
        %v4632 = vrcp.pop %v4607
        %v4633 = vrcp.pop %v4609
        %v4634 = vrcp.pop %v4611
        %v4635 = vrcp.pop %v4613
        %v4636 = vrcp.pop %v4615
        %v4637 = vrcp.pop %v4617
        %v4638 = vrcp.pop %v4619
        %v4639 = vrcp.pop %v4621
        %v4640 = vrcp.pop %v4623
        %v4641 = vrcp.pop %v4625
        %v4642 = vpack.c.bf16 %v4565, %v4563
        %v4643 = vpack.c.bf16 %v4569, %v4567
        %v4644 = vpack.c.bf16 %v4573, %v4571
        %v4645 = vpack.c.bf16 %v4577, %v4575
        %v4646 = vpack.c.bf16 %v4581, %v4579
        %v4647 = vpack.c.bf16 %v4585, %v4583
        %v4648 = vpack.c.bf16 %v4589, %v4587
        %v4649 = vpack.c.bf16 %v4593, %v4591
        %4650 = vrot.lane.b32.xlu0 %v2899, 32
        %v4651 = vpop.permute.xlu0 %4650
        %4652 = vrot.lane.b32.xlu0 %v2900, 32
        %v4653 = vpop.permute.xlu0 %4652
        %4654 = vrot.lane.b32.xlu0 %v2901, 32
        %v4655 = vpop.permute.xlu0 %4654
        %4656 = vrot.lane.b32.xlu0 %v2902, 32
        %v4657 = vpop.permute.xlu0 %4656
        %4658 = vrot.lane.b32.xlu0 %v2903, 32
        %v4659 = vpop.permute.xlu0 %4658
        %4660 = vrot.lane.b32.xlu0 %v2904, 32
        %v4661 = vpop.permute.xlu0 %4660
        %4662 = vrot.lane.b32.xlu0 %v2905, 32
        %v4663 = vpop.permute.xlu0 %4662
        %4664 = vrot.lane.b32.xlu0 %v2906, 32
        %v4665 = vpop.permute.xlu0 %4664
        %4674 = vmatprep.subr.bf16.mxu0 0
        %4675 = vmatpush1.bf16.msra.mxu0 %v4651
        %4676 = vmatprep.subr.bf16.mxu0 0
        %4677 = vmatpush1.bf16.msra.mxu0 %v4653
        %4678 = vmatprep.subr.bf16.mxu0 0
        %4679 = vmatpush1.bf16.msra.mxu0 %v4655
        %4680 = vmatprep.subr.bf16.mxu0 0
        %4681 = vmatpush1.bf16.msra.mxu0 %v4657
        %4682 = vmatprep.subr.bf16.mxu0 0
        %4683 = vmatpush1.bf16.msra.mxu0 %v4659
        %4684 = vmatprep.subr.bf16.mxu0 0
        %4685 = vmatpush1.bf16.msra.mxu0 %v4661
        %4686 = vmatprep.subr.bf16.mxu0 0
        %4687 = vmatpush1.bf16.msra.mxu0 %v4663
        %4688 = vmatprep.subr.bf16.mxu0 0
        %4689 = vmatpush1.bf16.msra.mxu0 %v4665
        %4690 = vmatprep.subr.bf16.mxu0 0
        %4691 = vmatpush1.bf16.msra.mxu0 0
        %4692 = vmatprep.subr.bf16.mxu0 0
        %4693 = vmatpush1.bf16.msra.mxu0 0
        %4694 = vmatprep.subr.bf16.mxu0 0
        %4695 = vmatpush1.bf16.msra.mxu0 0
        %4696 = vmatprep.subr.bf16.mxu0 0
        %4697 = vmatpush1.bf16.msra.mxu0 0
        %4698 = vmatprep.subr.bf16.mxu0 0
        %4699 = vmatpush1.bf16.msra.mxu0 0
        %4700 = vmatprep.subr.bf16.mxu0 0
        %4701 = vmatpush1.bf16.msra.mxu0 0
        %4702 = vmatprep.subr.bf16.mxu0 0
        %4703 = vmatpush1.bf16.msra.mxu0 0
        %4704 = vmatprep.subr.bf16.mxu0 0
        %4705 = vmatpush1.bf16.msra.mxu0 0
        %4706 = vmatprep.mubr.bf16.mxu0 0
        %4707 = vmatmul.mubr.bf16.gmra.mrb[0].mxu0 %v4642
        %v4708 = vpop.f32.mrb[0].mxu0
        %v4709 = vadd.f32 0.0, %v4708
        %v4710 = vpop.f32.mrb[0].mxu0
        %v4711 = vpop.f32.mrb[0].mxu0
        %v4712 = vadd.f32 0.0, %v4711
        %v4713 = vpop.f32.mrb[0].mxu0
        %4714 = vmatprep.mubr.bf16.mxu0 0
        %4715 = vmatmul.mubr.bf16.gmra.mrb[0].mxu0 %v4643
        %v4716 = vpop.f32.mrb[0].mxu0
        %v4717 = vadd.f32 0.0, %v4716
        %v4718 = vpop.f32.mrb[0].mxu0
        %v4719 = vpop.f32.mrb[0].mxu0
        %v4720 = vadd.f32 0.0, %v4719
        %v4721 = vpop.f32.mrb[0].mxu0
        %4722 = vmatprep.mubr.bf16.mxu0 0
        %4723 = vmatmul.mubr.bf16.gmra.mrb[0].mxu0 %v4644
        %v4724 = vpop.f32.mrb[0].mxu0
        %v4725 = vadd.f32 0.0, %v4724
        %v4726 = vpop.f32.mrb[0].mxu0
        %v4727 = vpop.f32.mrb[0].mxu0
        %v4728 = vadd.f32 0.0, %v4727
        %v4729 = vpop.f32.mrb[0].mxu0
        %4730 = vmatprep.mubr.bf16.mxu0 0
        %4731 = vmatmul.mubr.bf16.gmra.mrb[0].mxu0 %v4645
        %v4732 = vpop.f32.mrb[0].mxu0
        %v4733 = vadd.f32 0.0, %v4732
        %v4734 = vpop.f32.mrb[0].mxu0
        %v4735 = vpop.f32.mrb[0].mxu0
        %v4736 = vadd.f32 0.0, %v4735
        %v4737 = vpop.f32.mrb[0].mxu0
        %4738 = vmatprep.mubr.bf16.mxu0 0
        %4739 = vmatmul.mubr.bf16.gmra.mrb[0].mxu0 %v4646
        %v4740 = vpop.f32.mrb[0].mxu0
        %v4741 = vadd.f32 0.0, %v4740
        %v4742 = vpop.f32.mrb[0].mxu0
        %v4743 = vpop.f32.mrb[0].mxu0
        %v4744 = vadd.f32 0.0, %v4743
        %v4745 = vpop.f32.mrb[0].mxu0
        %4746 = vmatprep.mubr.bf16.mxu0 0
        %4747 = vmatmul.mubr.bf16.gmra.mrb[0].mxu0 %v4647
        %v4748 = vpop.f32.mrb[0].mxu0
        %v4749 = vadd.f32 0.0, %v4748
        %v4750 = vpop.f32.mrb[0].mxu0
        %v4751 = vpop.f32.mrb[0].mxu0
        %v4752 = vadd.f32 0.0, %v4751
        %v4753 = vpop.f32.mrb[0].mxu0
        %4754 = vmatprep.mubr.bf16.mxu0 0
        %4755 = vmatmul.mubr.bf16.gmra.mrb[0].mxu0 %v4648
        %v4756 = vpop.f32.mrb[0].mxu0
        %v4757 = vadd.f32 0.0, %v4756
        %v4758 = vpop.f32.mrb[0].mxu0
        %v4759 = vpop.f32.mrb[0].mxu0
        %v4760 = vadd.f32 0.0, %v4759
        %v4761 = vpop.f32.mrb[0].mxu0
        %4762 = vmatprep.mubr.bf16.mxu0 0
        %4763 = vmatmul.mubr.bf16.gmra.mrb[0].mxu0 %v4649
        %v4764 = vpop.f32.mrb[0].mxu0
        %v4765 = vadd.f32 0.0, %v4764
        %v4766 = vpop.f32.mrb[0].mxu0
        %v4767 = vpop.f32.mrb[0].mxu0
        %v4768 = vadd.f32 0.0, %v4767
        %v4769 = vpop.f32.mrb[0].mxu0
        %4770 = vdwg.mxu0
        %v4771 = vmul.f32 %v4709, %v4626
        %v4772 = vmul.f32 %v4712, %v4627
        %v4773 = vmul.f32 %v4717, %v4628
        %v4774 = vmul.f32 %v4720, %v4629
        %v4775 = vmul.f32 %v4725, %v4630
        %v4776 = vmul.f32 %v4728, %v4631
        %v4777 = vmul.f32 %v4733, %v4632
        %v4778 = vmul.f32 %v4736, %v4633
        %v4779 = vmul.f32 %v4741, %v4634
        %v4780 = vmul.f32 %v4744, %v4635
        %v4781 = vmul.f32 %v4749, %v4636
        %v4782 = vmul.f32 %v4752, %v4637
        %v4783 = vmul.f32 %v4757, %v4638
        %v4784 = vmul.f32 %v4760, %v4639
        %v4785 = vmul.f32 %v4765, %v4640
        %v4786 = vmul.f32 %v4768, %v4641
        %v4787 = vpack.c.bf16 %v4772, %v4771
        %v4788 = vpack.c.bf16 %v4774, %v4773
        %v4789 = vpack.c.bf16 %v4776, %v4775
        %v4790 = vpack.c.bf16 %v4778, %v4777
        %v4791 = vpack.c.bf16 %v4780, %v4779
        %v4792 = vpack.c.bf16 %v4782, %v4781
        %v4793 = vpack.c.bf16 %v4784, %v4783
        %v4794 = vpack.c.bf16 %v4786, %v4785
        %4803 = vrot.lane.b32.xlu0 %v4787, 96
        %v4804 = vpop.permute.xlu0 %4803
        %4805 = vrot.lane.b32.xlu0 %v4788, 96
        %v4806 = vpop.permute.xlu0 %4805
        %4807 = vrot.lane.b32.xlu0 %v4789, 96
        %v4808 = vpop.permute.xlu0 %4807
        %4809 = vrot.lane.b32.xlu0 %v4790, 96
        %v4810 = vpop.permute.xlu0 %4809
        %4811 = vrot.lane.b32.xlu0 %v4791, 96
        %v4812 = vpop.permute.xlu0 %4811
        %4813 = vrot.lane.b32.xlu0 %v4792, 96
        %v4814 = vpop.permute.xlu0 %4813
        %4815 = vrot.lane.b32.xlu0 %v4793, 96
        %v4816 = vpop.permute.xlu0 %4815
        %4817 = vrot.lane.b32.xlu0 %v4794, 96
        %v4818 = vpop.permute.xlu0 %4817
        %4827 = vst.msk [vmem:[#allocation2 + $0x40] sm:$0xff] %vm2874, %v4804
        %4828 = vst.msk [vmem:[#allocation2 + $0x48] sm:$0xff] %vm2874, %v4806
        %4829 = vst.msk [vmem:[#allocation2 + $0x50] sm:$0xff] %vm2874, %v4808
        %4830 = vst.msk [vmem:[#allocation2 + $0x58] sm:$0xff] %vm2874, %v4810
        %4831 = vst.msk [vmem:[#allocation2 + $0x60] sm:$0xff] %vm2874, %v4812
        %4832 = vst.msk [vmem:[#allocation2 + $0x68] sm:$0xff] %vm2874, %v4814
        %4833 = vst.msk [vmem:[#allocation2 + $0x70] sm:$0xff] %vm2874, %v4816
        %4834 = vst.msk [vmem:[#allocation2 + $0x78] sm:$0xff] %vm2874, %v4818
        %v4835 = vld [vmem:[#allocation2] sm:$0xff]
        %v4836 = vld [vmem:[#allocation2 + $0x8] sm:$0xff]
        %v4837 = vld [vmem:[#allocation2 + $0x10] sm:$0xff]
        %v4838 = vld [vmem:[#allocation2 + $0x18] sm:$0xff]
        %v4839 = vld [vmem:[#allocation2 + $0x20] sm:$0xff]
        %v4840 = vld [vmem:[#allocation2 + $0x28] sm:$0xff]
        %v4841 = vld [vmem:[#allocation2 + $0x30] sm:$0xff]
        %v4842 = vld [vmem:[#allocation2 + $0x38] sm:$0xff]
        %v4843 = vld [vmem:[#allocation2 + $0x40] sm:$0xff]
        %v4844 = vld [vmem:[#allocation2 + $0x48] sm:$0xff]
        %v4845 = vld [vmem:[#allocation2 + $0x50] sm:$0xff]
        %v4846 = vld [vmem:[#allocation2 + $0x58] sm:$0xff]
        %v4847 = vld [vmem:[#allocation2 + $0x60] sm:$0xff]
        %v4848 = vld [vmem:[#allocation2 + $0x68] sm:$0xff]
        %v4849 = vld [vmem:[#allocation2 + $0x70] sm:$0xff]
        %v4850 = vld [vmem:[#allocation2 + $0x78] sm:$0xff]
        %v4851 = vld [vmem:[#allocation8] sm:$0xf]
        %v4852 = vld [vmem:[#allocation8 + $0x4] sm:$0xf]
        %v4853 = vld [vmem:[#allocation8 + $0x8] sm:$0xf]
        %v4854 = vld [vmem:[#allocation8 + $0xc] sm:$0xf]
        %v4855 = vld [vmem:[#allocation8 + $0x10] sm:$0xf]
        %v4856 = vld [vmem:[#allocation8 + $0x14] sm:$0xf]
        %v4857 = vld [vmem:[#allocation8 + $0x18] sm:$0xf]
        %v4858 = vld [vmem:[#allocation8 + $0x1c] sm:$0xf]
        %v4859 = vld [vmem:[#allocation8 + $0x20] sm:$0xf]
        %v4860 = vld [vmem:[#allocation8 + $0x24] sm:$0xf]
        %v4861 = vld [vmem:[#allocation8 + $0x28] sm:$0xf]
        %v4862 = vld [vmem:[#allocation8 + $0x2c] sm:$0xf]
        %v4863 = vld [vmem:[#allocation8 + $0x30] sm:$0xf]
        %v4864 = vld [vmem:[#allocation8 + $0x34] sm:$0xf]
        %v4865 = vld [vmem:[#allocation8 + $0x38] sm:$0xf]
        %v4866 = vld [vmem:[#allocation8 + $0x3c] sm:$0xf]
        %v4867 = vlaneseq
        %v4868 = vshrl.u32 %v4867, 7
        %v4869 = vsub.s32 2, %v4868
        %v4870 = vrot.slane %v377, %v4869
        %v4887 = vunpack.c.l.b16 %v4851
        %v4888 = vunpack.c.l.b16 %v4852
        %v4889 = vunpack.c.l.b16 %v4853
        %v4890 = vunpack.c.l.b16 %v4854
        %v4891 = vunpack.c.l.b16 %v4855
        %v4892 = vunpack.c.l.b16 %v4856
        %v4893 = vunpack.c.l.b16 %v4857
        %v4894 = vunpack.c.l.b16 %v4858
        %v4895 = vunpack.c.l.b16 %v4859
        %v4896 = vunpack.c.l.b16 %v4860
        %v4897 = vunpack.c.l.b16 %v4861
        %v4898 = vunpack.c.l.b16 %v4862
        %v4899 = vunpack.c.l.b16 %v4863
        %v4900 = vunpack.c.l.b16 %v4864
        %v4901 = vunpack.c.l.b16 %v4865
        %v4902 = vunpack.c.l.b16 %v4866
        %v4903 = vpack.c.b16 %v4888, %v4887
        %v4904 = vpack.c.b16 %v4890, %v4889
        %v4905 = vpack.c.b16 %v4892, %v4891
        %v4906 = vpack.c.b16 %v4894, %v4893
        %v4907 = vpack.c.b16 %v4896, %v4895
        %v4908 = vpack.c.b16 %v4898, %v4897
        %v4909 = vpack.c.b16 %v4900, %v4899
        %v4910 = vpack.c.b16 %v4902, %v4901
        %4919 = vmatprep.subr.bf16.mxu0 0
        %4920 = vmatpush1.bf16.msra.mxu0 %v4903
        %4921 = vmatprep.subr.bf16.mxu0 0
        %4922 = vmatpush1.bf16.msra.mxu0 %v4904
        %4923 = vmatprep.subr.bf16.mxu0 0
        %4924 = vmatpush1.bf16.msra.mxu0 %v4905
        %4925 = vmatprep.subr.bf16.mxu0 0
        %4926 = vmatpush1.bf16.msra.mxu0 %v4906
        %4927 = vmatprep.subr.bf16.mxu0 0
        %4928 = vmatpush1.bf16.msra.mxu0 %v4907
        %4929 = vmatprep.subr.bf16.mxu0 0
        %4930 = vmatpush1.bf16.msra.mxu0 %v4908
        %4931 = vmatprep.subr.bf16.mxu0 0
        %4932 = vmatpush1.bf16.msra.mxu0 %v4909
        %4933 = vmatprep.subr.bf16.mxu0 0
        %4934 = vmatpush1.bf16.msra.mxu0 %v4910
        %4935 = vmatprep.subr.bf16.mxu0 0
        %4936 = vmatpush1.bf16.msra.mxu0 0
        %4937 = vmatprep.subr.bf16.mxu0 0
        %4938 = vmatpush1.bf16.msra.mxu0 0
        %4939 = vmatprep.subr.bf16.mxu0 0
        %4940 = vmatpush1.bf16.msra.mxu0 0
        %4941 = vmatprep.subr.bf16.mxu0 0
        %4942 = vmatpush1.bf16.msra.mxu0 0
        %4943 = vmatprep.subr.bf16.mxu0 0
        %4944 = vmatpush1.bf16.msra.mxu0 0
        %4945 = vmatprep.subr.bf16.mxu0 0
        %4946 = vmatpush1.bf16.msra.mxu0 0
        %4947 = vmatprep.subr.bf16.mxu0 0
        %4948 = vmatpush1.bf16.msra.mxu0 0
        %4949 = vmatprep.subr.bf16.mxu0 0
        %4950 = vmatpush1.bf16.msra.mxu0 0
        %4951 = vmatprep.mubr.bf16.mxu0 0
        %4952 = vmatmul.mubr.bf16.gmra.mrb[0].mxu0 %v4835
        %v4953 = vpop.f32.mrb[0].mxu0
        %v4954 = vadd.f32 %v4870, %v4953
        %v4955 = vpop.f32.mrb[0].mxu0
        %v4956 = vpop.f32.mrb[0].mxu0
        %v4957 = vadd.f32 %v4870, %v4956
        %v4958 = vpop.f32.mrb[0].mxu0
        %4959 = vmatprep.mubr.bf16.mxu0 0
        %4960 = vmatmul.mubr.bf16.gmra.mrb[0].mxu0 %v4836
        %v4961 = vpop.f32.mrb[0].mxu0
        %v4962 = vadd.f32 %v4870, %v4961
        %v4963 = vpop.f32.mrb[0].mxu0
        %v4964 = vpop.f32.mrb[0].mxu0
        %v4965 = vadd.f32 %v4870, %v4964
        %v4966 = vpop.f32.mrb[0].mxu0
        %4967 = vmatprep.mubr.bf16.mxu0 0
        %4968 = vmatmul.mubr.bf16.gmra.mrb[0].mxu0 %v4837
        %v4969 = vpop.f32.mrb[0].mxu0
        %v4970 = vadd.f32 %v4870, %v4969
        %v4971 = vpop.f32.mrb[0].mxu0
        %v4972 = vpop.f32.mrb[0].mxu0
        %v4973 = vadd.f32 %v4870, %v4972
        %v4974 = vpop.f32.mrb[0].mxu0
        %4975 = vmatprep.mubr.bf16.mxu0 0
        %4976 = vmatmul.mubr.bf16.gmra.mrb[0].mxu0 %v4838
        %v4977 = vpop.f32.mrb[0].mxu0
        %v4978 = vadd.f32 %v4870, %v4977
        %v4979 = vpop.f32.mrb[0].mxu0
        %v4980 = vpop.f32.mrb[0].mxu0
        %v4981 = vadd.f32 %v4870, %v4980
        %v4982 = vpop.f32.mrb[0].mxu0
        %4983 = vmatprep.mubr.bf16.mxu0 0
        %4984 = vmatmul.mubr.bf16.gmra.mrb[0].mxu0 %v4839
        %v4985 = vpop.f32.mrb[0].mxu0
        %v4986 = vadd.f32 %v4870, %v4985
        %v4987 = vpop.f32.mrb[0].mxu0
        %v4988 = vpop.f32.mrb[0].mxu0
        %v4989 = vadd.f32 %v4870, %v4988
        %v4990 = vpop.f32.mrb[0].mxu0
        %4991 = vmatprep.mubr.bf16.mxu0 0
        %4992 = vmatmul.mubr.bf16.gmra.mrb[0].mxu0 %v4840
        %v4993 = vpop.f32.mrb[0].mxu0
        %v4994 = vadd.f32 %v4870, %v4993
        %v4995 = vpop.f32.mrb[0].mxu0
        %v4996 = vpop.f32.mrb[0].mxu0
        %v4997 = vadd.f32 %v4870, %v4996
        %v4998 = vpop.f32.mrb[0].mxu0
        %4999 = vmatprep.mubr.bf16.mxu0 0
        %5000 = vmatmul.mubr.bf16.gmra.mrb[0].mxu0 %v4841
        %v5001 = vpop.f32.mrb[0].mxu0
        %v5002 = vadd.f32 %v4870, %v5001
        %v5003 = vpop.f32.mrb[0].mxu0
        %v5004 = vpop.f32.mrb[0].mxu0
        %v5005 = vadd.f32 %v4870, %v5004
        %v5006 = vpop.f32.mrb[0].mxu0
        %5007 = vmatprep.mubr.bf16.mxu0 0
        %5008 = vmatmul.mubr.bf16.gmra.mrb[0].mxu0 %v4842
        %v5009 = vpop.f32.mrb[0].mxu0
        %v5010 = vadd.f32 %v4870, %v5009
        %v5011 = vpop.f32.mrb[0].mxu0
        %v5012 = vpop.f32.mrb[0].mxu0
        %v5013 = vadd.f32 %v4870, %v5012
        %v5014 = vpop.f32.mrb[0].mxu0
        %5015 = vmatprep.mubr.bf16.mxu0 0
        %5016 = vmatmul.mubr.bf16.gmra.mrb[0].mxu0 %v4843
        %v5017 = vpop.f32.mrb[0].mxu0
        %v5018 = vadd.f32 %v4870, %v5017
        %v5019 = vpop.f32.mrb[0].mxu0
        %v5020 = vpop.f32.mrb[0].mxu0
        %v5021 = vadd.f32 %v4870, %v5020
        %v5022 = vpop.f32.mrb[0].mxu0
        %5023 = vmatprep.mubr.bf16.mxu0 0
        %5024 = vmatmul.mubr.bf16.gmra.mrb[0].mxu0 %v4844
        %v5025 = vpop.f32.mrb[0].mxu0
        %v5026 = vadd.f32 %v4870, %v5025
        %v5027 = vpop.f32.mrb[0].mxu0
        %v5028 = vpop.f32.mrb[0].mxu0
        %v5029 = vadd.f32 %v4870, %v5028
        %v5030 = vpop.f32.mrb[0].mxu0
        %5031 = vmatprep.mubr.bf16.mxu0 0
        %5032 = vmatmul.mubr.bf16.gmra.mrb[0].mxu0 %v4845
        %v5033 = vpop.f32.mrb[0].mxu0
        %v5034 = vadd.f32 %v4870, %v5033
        %v5035 = vpop.f32.mrb[0].mxu0
        %v5036 = vpop.f32.mrb[0].mxu0
        %v5037 = vadd.f32 %v4870, %v5036
        %v5038 = vpop.f32.mrb[0].mxu0
        %5039 = vmatprep.mubr.bf16.mxu0 0
        %5040 = vmatmul.mubr.bf16.gmra.mrb[0].mxu0 %v4846
        %v5041 = vpop.f32.mrb[0].mxu0
        %v5042 = vadd.f32 %v4870, %v5041
        %v5043 = vpop.f32.mrb[0].mxu0
        %v5044 = vpop.f32.mrb[0].mxu0
        %v5045 = vadd.f32 %v4870, %v5044
        %v5046 = vpop.f32.mrb[0].mxu0
        %5047 = vmatprep.mubr.bf16.mxu0 0
        %5048 = vmatmul.mubr.bf16.gmra.mrb[0].mxu0 %v4847
        %v5049 = vpop.f32.mrb[0].mxu0
        %v5050 = vadd.f32 %v4870, %v5049
        %v5051 = vpop.f32.mrb[0].mxu0
        %v5052 = vpop.f32.mrb[0].mxu0
        %v5053 = vadd.f32 %v4870, %v5052
        %v5054 = vpop.f32.mrb[0].mxu0
        %5055 = vmatprep.mubr.bf16.mxu0 0
        %5056 = vmatmul.mubr.bf16.gmra.mrb[0].mxu0 %v4848
        %v5057 = vpop.f32.mrb[0].mxu0
        %v5058 = vadd.f32 %v4870, %v5057
        %v5059 = vpop.f32.mrb[0].mxu0
        %v5060 = vpop.f32.mrb[0].mxu0
        %v5061 = vadd.f32 %v4870, %v5060
        %v5062 = vpop.f32.mrb[0].mxu0
        %5063 = vmatprep.mubr.bf16.mxu0 0
        %5064 = vmatmul.mubr.bf16.gmra.mrb[0].mxu0 %v4849
        %v5065 = vpop.f32.mrb[0].mxu0
        %v5066 = vadd.f32 %v4870, %v5065
        %v5067 = vpop.f32.mrb[0].mxu0
        %v5068 = vpop.f32.mrb[0].mxu0
        %v5069 = vadd.f32 %v4870, %v5068
        %v5070 = vpop.f32.mrb[0].mxu0
        %5071 = vmatprep.mubr.bf16.mxu0 0
        %5072 = vmatmul.mubr.bf16.gmra.mrb[0].mxu0 %v4850
        %v5073 = vpop.f32.mrb[0].mxu0
        %v5074 = vadd.f32 %v4870, %v5073
        %v5075 = vpop.f32.mrb[0].mxu0
        %v5076 = vpop.f32.mrb[0].mxu0
        %v5077 = vadd.f32 %v4870, %v5076
        %v5078 = vpop.f32.mrb[0].mxu0
        %5079 = vdwg.mxu0
        %v5080 = vadd.f32 %v345, %v4954
        %v5081 = vadd.f32 %v346, %v4957
        %v5082 = vadd.f32 %v347, %v4962
        %v5083 = vadd.f32 %v348, %v4965
        %v5084 = vadd.f32 %v349, %v4970
        %v5085 = vadd.f32 %v350, %v4973
        %v5086 = vadd.f32 %v351, %v4978
        %v5087 = vadd.f32 %v352, %v4981
        %v5088 = vadd.f32 %v353, %v4986
        %v5089 = vadd.f32 %v354, %v4989
        %v5090 = vadd.f32 %v355, %v4994
        %v5091 = vadd.f32 %v356, %v4997
        %v5092 = vadd.f32 %v357, %v5002
        %v5093 = vadd.f32 %v358, %v5005
        %v5094 = vadd.f32 %v359, %v5010
        %v5095 = vadd.f32 %v360, %v5013
        %v5096 = vadd.f32 %v361, %v5018
        %v5097 = vadd.f32 %v362, %v5021
        %v5098 = vadd.f32 %v363, %v5026
        %v5099 = vadd.f32 %v364, %v5029
        %v5100 = vadd.f32 %v365, %v5034
        %v5101 = vadd.f32 %v366, %v5037
        %v5102 = vadd.f32 %v367, %v5042
        %v5103 = vadd.f32 %v368, %v5045
        %v5104 = vadd.f32 %v369, %v5050
        %v5105 = vadd.f32 %v370, %v5053
        %v5106 = vadd.f32 %v371, %v5058
        %v5107 = vadd.f32 %v372, %v5061
        %v5108 = vadd.f32 %v373, %v5066
        %v5109 = vadd.f32 %v374, %v5069
        %v5110 = vadd.f32 %v375, %v5074
        %v5111 = vadd.f32 %v376, %v5077
        %5112 = vadd.xlane.f32.xlu0 %v5080
        %v5113 = vpop.xlane.xlu0 %5112
        %5114 = vadd.xlane.f32.xlu0 %v5081
        %v5115 = vpop.xlane.xlu0 %5114
        %5116 = vadd.xlane.f32.xlu0 %v5082
        %v5117 = vpop.xlane.xlu0 %5116
        %5118 = vadd.xlane.f32.xlu0 %v5083
        %v5119 = vpop.xlane.xlu0 %5118
        %5120 = vadd.xlane.f32.xlu0 %v5084
        %v5121 = vpop.xlane.xlu0 %5120
        %5122 = vadd.xlane.f32.xlu0 %v5085
        %v5123 = vpop.xlane.xlu0 %5122
        %5124 = vadd.xlane.f32.xlu0 %v5086
        %v5125 = vpop.xlane.xlu0 %5124
        %5126 = vadd.xlane.f32.xlu0 %v5087
        %v5127 = vpop.xlane.xlu0 %5126
        %5128 = vadd.xlane.f32.xlu0 %v5088
        %v5129 = vpop.xlane.xlu0 %5128
        %5130 = vadd.xlane.f32.xlu0 %v5089
        %v5131 = vpop.xlane.xlu0 %5130
        %5132 = vadd.xlane.f32.xlu0 %v5090
        %v5133 = vpop.xlane.xlu0 %5132
        %5134 = vadd.xlane.f32.xlu0 %v5091
        %v5135 = vpop.xlane.xlu0 %5134
        %5136 = vadd.xlane.f32.xlu0 %v5092
        %v5137 = vpop.xlane.xlu0 %5136
        %5138 = vadd.xlane.f32.xlu0 %v5093
        %v5139 = vpop.xlane.xlu0 %5138
        %5140 = vadd.xlane.f32.xlu0 %v5094
        %v5141 = vpop.xlane.xlu0 %5140
        %5142 = vadd.xlane.f32.xlu0 %v5095
        %v5143 = vpop.xlane.xlu0 %5142
        %5144 = vadd.xlane.f32.xlu0 %v5096
        %v5145 = vpop.xlane.xlu0 %5144
        %5146 = vadd.xlane.f32.xlu0 %v5097
        %v5147 = vpop.xlane.xlu0 %5146
        %5148 = vadd.xlane.f32.xlu0 %v5098
        %v5149 = vpop.xlane.xlu0 %5148
        %5150 = vadd.xlane.f32.xlu0 %v5099
        %v5151 = vpop.xlane.xlu0 %5150
        %5152 = vadd.xlane.f32.xlu0 %v5100
        %v5153 = vpop.xlane.xlu0 %5152
        %5154 = vadd.xlane.f32.xlu0 %v5101
        %v5155 = vpop.xlane.xlu0 %5154
        %5156 = vadd.xlane.f32.xlu0 %v5102
        %v5157 = vpop.xlane.xlu0 %5156
        %5158 = vadd.xlane.f32.xlu0 %v5103
        %v5159 = vpop.xlane.xlu0 %5158
        %5160 = vadd.xlane.f32.xlu0 %v5104
        %v5161 = vpop.xlane.xlu0 %5160
        %5162 = vadd.xlane.f32.xlu0 %v5105
        %v5163 = vpop.xlane.xlu0 %5162
        %5164 = vadd.xlane.f32.xlu0 %v5106
        %v5165 = vpop.xlane.xlu0 %5164
        %5166 = vadd.xlane.f32.xlu0 %v5107
        %v5167 = vpop.xlane.xlu0 %5166
        %5168 = vadd.xlane.f32.xlu0 %v5108
        %v5169 = vpop.xlane.xlu0 %5168
        %5170 = vadd.xlane.f32.xlu0 %v5109
        %v5171 = vpop.xlane.xlu0 %5170
        %5172 = vadd.xlane.f32.xlu0 %v5110
        %v5173 = vpop.xlane.xlu0 %5172
        %5174 = vadd.xlane.f32.xlu0 %v5111
        %v5175 = vpop.xlane.xlu0 %5174
        %v5176 = vrcp.pop 128.0
        %v5177 = vmul.f32 %v5113, %v5176
        %v5178 = vmul.f32 %v5115, %v5176
        %v5179 = vmul.f32 %v5117, %v5176
        %v5180 = vmul.f32 %v5119, %v5176
        %v5181 = vmul.f32 %v5121, %v5176
        %v5182 = vmul.f32 %v5123, %v5176
        %v5183 = vmul.f32 %v5125, %v5176
        %v5184 = vmul.f32 %v5127, %v5176
        %v5185 = vmul.f32 %v5129, %v5176
        %v5186 = vmul.f32 %v5131, %v5176
        %v5187 = vmul.f32 %v5133, %v5176
        %v5188 = vmul.f32 %v5135, %v5176
        %v5189 = vmul.f32 %v5137, %v5176
        %v5190 = vmul.f32 %v5139, %v5176
        %v5191 = vmul.f32 %v5141, %v5176
        %v5192 = vmul.f32 %v5143, %v5176
        %v5193 = vmul.f32 %v5145, %v5176
        %v5194 = vmul.f32 %v5147, %v5176
        %v5195 = vmul.f32 %v5149, %v5176
        %v5196 = vmul.f32 %v5151, %v5176
        %v5197 = vmul.f32 %v5153, %v5176
        %v5198 = vmul.f32 %v5155, %v5176
        %v5199 = vmul.f32 %v5157, %v5176
        %v5200 = vmul.f32 %v5159, %v5176
        %v5201 = vmul.f32 %v5161, %v5176
        %v5202 = vmul.f32 %v5163, %v5176
        %v5203 = vmul.f32 %v5165, %v5176
        %v5204 = vmul.f32 %v5167, %v5176
        %v5205 = vmul.f32 %v5169, %v5176
        %v5206 = vmul.f32 %v5171, %v5176
        %v5207 = vmul.f32 %v5173, %v5176
        %v5208 = vmul.f32 %v5175, %v5176
        %v5209 = vsub.f32 %v5080, %v5177
        %v5210 = vsub.f32 %v5081, %v5178
        %v5211 = vsub.f32 %v5082, %v5179
        %v5212 = vsub.f32 %v5083, %v5180
        %v5213 = vsub.f32 %v5084, %v5181
        %v5214 = vsub.f32 %v5085, %v5182
        %v5215 = vsub.f32 %v5086, %v5183
        %v5216 = vsub.f32 %v5087, %v5184
        %v5217 = vsub.f32 %v5088, %v5185
        %v5218 = vsub.f32 %v5089, %v5186
        %v5219 = vsub.f32 %v5090, %v5187
        %v5220 = vsub.f32 %v5091, %v5188
        %v5221 = vsub.f32 %v5092, %v5189
        %v5222 = vsub.f32 %v5093, %v5190
        %v5223 = vsub.f32 %v5094, %v5191
        %v5224 = vsub.f32 %v5095, %v5192
        %v5225 = vsub.f32 %v5096, %v5193
        %v5226 = vsub.f32 %v5097, %v5194
        %v5227 = vsub.f32 %v5098, %v5195
        %v5228 = vsub.f32 %v5099, %v5196
        %v5229 = vsub.f32 %v5100, %v5197
        %v5230 = vsub.f32 %v5101, %v5198
        %v5231 = vsub.f32 %v5102, %v5199
        %v5232 = vsub.f32 %v5103, %v5200
        %v5233 = vsub.f32 %v5104, %v5201
        %v5234 = vsub.f32 %v5105, %v5202
        %v5235 = vsub.f32 %v5106, %v5203
        %v5236 = vsub.f32 %v5107, %v5204
        %v5237 = vsub.f32 %v5108, %v5205
        %v5238 = vsub.f32 %v5109, %v5206
        %v5239 = vsub.f32 %v5110, %v5207
        %v5240 = vsub.f32 %v5111, %v5208
        %v5241 = vmul.f32 %v5209, %v5209
        %v5242 = vmul.f32 %v5210, %v5210
        %v5243 = vmul.f32 %v5211, %v5211
        %v5244 = vmul.f32 %v5212, %v5212
        %v5245 = vmul.f32 %v5213, %v5213
        %v5246 = vmul.f32 %v5214, %v5214
        %v5247 = vmul.f32 %v5215, %v5215
        %v5248 = vmul.f32 %v5216, %v5216
        %v5249 = vmul.f32 %v5217, %v5217
        %v5250 = vmul.f32 %v5218, %v5218
        %v5251 = vmul.f32 %v5219, %v5219
        %v5252 = vmul.f32 %v5220, %v5220
        %v5253 = vmul.f32 %v5221, %v5221
        %v5254 = vmul.f32 %v5222, %v5222
        %v5255 = vmul.f32 %v5223, %v5223
        %v5256 = vmul.f32 %v5224, %v5224
        %v5257 = vmul.f32 %v5225, %v5225
        %v5258 = vmul.f32 %v5226, %v5226
        %v5259 = vmul.f32 %v5227, %v5227
        %v5260 = vmul.f32 %v5228, %v5228
        %v5261 = vmul.f32 %v5229, %v5229
        %v5262 = vmul.f32 %v5230, %v5230
        %v5263 = vmul.f32 %v5231, %v5231
        %v5264 = vmul.f32 %v5232, %v5232
        %v5265 = vmul.f32 %v5233, %v5233
        %v5266 = vmul.f32 %v5234, %v5234
        %v5267 = vmul.f32 %v5235, %v5235
        %v5268 = vmul.f32 %v5236, %v5236
        %v5269 = vmul.f32 %v5237, %v5237
        %v5270 = vmul.f32 %v5238, %v5238
        %v5271 = vmul.f32 %v5239, %v5239
        %v5272 = vmul.f32 %v5240, %v5240
        %5273 = vadd.xlane.f32.xlu0 %v5241
        %v5274 = vpop.xlane.xlu0 %5273
        %5275 = vadd.xlane.f32.xlu0 %v5242
        %v5276 = vpop.xlane.xlu0 %5275
        %5277 = vadd.xlane.f32.xlu0 %v5243
        %v5278 = vpop.xlane.xlu0 %5277
        %5279 = vadd.xlane.f32.xlu0 %v5244
        %v5280 = vpop.xlane.xlu0 %5279
        %5281 = vadd.xlane.f32.xlu0 %v5245
        %v5282 = vpop.xlane.xlu0 %5281
        %5283 = vadd.xlane.f32.xlu0 %v5246
        %v5284 = vpop.xlane.xlu0 %5283
        %5285 = vadd.xlane.f32.xlu0 %v5247
        %v5286 = vpop.xlane.xlu0 %5285
        %5287 = vadd.xlane.f32.xlu0 %v5248
        %v5288 = vpop.xlane.xlu0 %5287
        %5289 = vadd.xlane.f32.xlu0 %v5249
        %v5290 = vpop.xlane.xlu0 %5289
        %5291 = vadd.xlane.f32.xlu0 %v5250
        %v5292 = vpop.xlane.xlu0 %5291
        %5293 = vadd.xlane.f32.xlu0 %v5251
        %v5294 = vpop.xlane.xlu0 %5293
        %5295 = vadd.xlane.f32.xlu0 %v5252
        %v5296 = vpop.xlane.xlu0 %5295
        %5297 = vadd.xlane.f32.xlu0 %v5253
        %v5298 = vpop.xlane.xlu0 %5297
        %5299 = vadd.xlane.f32.xlu0 %v5254
        %v5300 = vpop.xlane.xlu0 %5299
        %5301 = vadd.xlane.f32.xlu0 %v5255
        %v5302 = vpop.xlane.xlu0 %5301
        %5303 = vadd.xlane.f32.xlu0 %v5256
        %v5304 = vpop.xlane.xlu0 %5303
        %5305 = vadd.xlane.f32.xlu0 %v5257
        %v5306 = vpop.xlane.xlu0 %5305
        %5307 = vadd.xlane.f32.xlu0 %v5258
        %v5308 = vpop.xlane.xlu0 %5307
        %5309 = vadd.xlane.f32.xlu0 %v5259
        %v5310 = vpop.xlane.xlu0 %5309
        %5311 = vadd.xlane.f32.xlu0 %v5260
        %v5312 = vpop.xlane.xlu0 %5311
        %5313 = vadd.xlane.f32.xlu0 %v5261
        %v5314 = vpop.xlane.xlu0 %5313
        %5315 = vadd.xlane.f32.xlu0 %v5262
        %v5316 = vpop.xlane.xlu0 %5315
        %5317 = vadd.xlane.f32.xlu0 %v5263
        %v5318 = vpop.xlane.xlu0 %5317
        %5319 = vadd.xlane.f32.xlu0 %v5264
        %v5320 = vpop.xlane.xlu0 %5319
        %5321 = vadd.xlane.f32.xlu0 %v5265
        %v5322 = vpop.xlane.xlu0 %5321
        %5323 = vadd.xlane.f32.xlu0 %v5266
        %v5324 = vpop.xlane.xlu0 %5323
        %5325 = vadd.xlane.f32.xlu0 %v5267
        %v5326 = vpop.xlane.xlu0 %5325
        %5327 = vadd.xlane.f32.xlu0 %v5268
        %v5328 = vpop.xlane.xlu0 %5327
        %5329 = vadd.xlane.f32.xlu0 %v5269
        %v5330 = vpop.xlane.xlu0 %5329
        %5331 = vadd.xlane.f32.xlu0 %v5270
        %v5332 = vpop.xlane.xlu0 %5331
        %5333 = vadd.xlane.f32.xlu0 %v5271
        %v5334 = vpop.xlane.xlu0 %5333
        %5335 = vadd.xlane.f32.xlu0 %v5272
        %v5336 = vpop.xlane.xlu0 %5335
        %v5337 = vmul.f32 %v5274, 0.007874016
        %v5338 = vmul.f32 %v5276, 0.007874016
        %v5339 = vmul.f32 %v5278, 0.007874016
        %v5340 = vmul.f32 %v5280, 0.007874016
        %v5341 = vmul.f32 %v5282, 0.007874016
        %v5342 = vmul.f32 %v5284, 0.007874016
        %v5343 = vmul.f32 %v5286, 0.007874016
        %v5344 = vmul.f32 %v5288, 0.007874016
        %v5345 = vmul.f32 %v5290, 0.007874016
        %v5346 = vmul.f32 %v5292, 0.007874016
        %v5347 = vmul.f32 %v5294, 0.007874016
        %v5348 = vmul.f32 %v5296, 0.007874016
        %v5349 = vmul.f32 %v5298, 0.007874016
        %v5350 = vmul.f32 %v5300, 0.007874016
        %v5351 = vmul.f32 %v5302, 0.007874016
        %v5352 = vmul.f32 %v5304, 0.007874016
        %v5353 = vmul.f32 %v5306, 0.007874016
        %v5354 = vmul.f32 %v5308, 0.007874016
        %v5355 = vmul.f32 %v5310, 0.007874016
        %v5356 = vmul.f32 %v5312, 0.007874016
        %v5357 = vmul.f32 %v5314, 0.007874016
        %v5358 = vmul.f32 %v5316, 0.007874016
        %v5359 = vmul.f32 %v5318, 0.007874016
        %v5360 = vmul.f32 %v5320, 0.007874016
        %v5361 = vmul.f32 %v5322, 0.007874016
        %v5362 = vmul.f32 %v5324, 0.007874016
        %v5363 = vmul.f32 %v5326, 0.007874016
        %v5364 = vmul.f32 %v5328, 0.007874016
        %v5365 = vmul.f32 %v5330, 0.007874016
        %v5366 = vmul.f32 %v5332, 0.007874016
        %v5367 = vmul.f32 %v5334, 0.007874016
        %v5368 = vmul.f32 %v5336, 0.007874016
        %v5369 = vrsqrt.pop %v5337
        %v5370 = vmul.f32 %v5337, %v5369
        %vm5371 = vcmp.eq.f32.partialorder %v5337, inf
        %v5372 = vsel %vm5371, %v5337, %v5370
        %vm5373 = vcmp.eq.f32.partialorder %v5337, 0.0
        %v5374 = vand.u32 %v5337, 2147483648
        %v5375 = vsel %vm5373, %v5374, %v5372
        %v5376 = vrsqrt.pop %v5338
        %v5377 = vmul.f32 %v5338, %v5376
        %vm5378 = vcmp.eq.f32.partialorder %v5338, inf
        %v5379 = vsel %vm5378, %v5338, %v5377
        %vm5380 = vcmp.eq.f32.partialorder %v5338, 0.0
        %v5381 = vand.u32 %v5338, 2147483648
        %v5382 = vsel %vm5380, %v5381, %v5379
        %v5383 = vrsqrt.pop %v5339
        %v5384 = vmul.f32 %v5339, %v5383
        %vm5385 = vcmp.eq.f32.partialorder %v5339, inf
        %v5386 = vsel %vm5385, %v5339, %v5384
        %vm5387 = vcmp.eq.f32.partialorder %v5339, 0.0
        %v5388 = vand.u32 %v5339, 2147483648
        %v5389 = vsel %vm5387, %v5388, %v5386
        %v5390 = vrsqrt.pop %v5340
        %v5391 = vmul.f32 %v5340, %v5390
        %vm5392 = vcmp.eq.f32.partialorder %v5340, inf
        %v5393 = vsel %vm5392, %v5340, %v5391
        %vm5394 = vcmp.eq.f32.partialorder %v5340, 0.0
        %v5395 = vand.u32 %v5340, 2147483648
        %v5396 = vsel %vm5394, %v5395, %v5393
        %v5397 = vrsqrt.pop %v5341
        %v5398 = vmul.f32 %v5341, %v5397
        %vm5399 = vcmp.eq.f32.partialorder %v5341, inf
        %v5400 = vsel %vm5399, %v5341, %v5398
        %vm5401 = vcmp.eq.f32.partialorder %v5341, 0.0
        %v5402 = vand.u32 %v5341, 2147483648
        %v5403 = vsel %vm5401, %v5402, %v5400
        %v5404 = vrsqrt.pop %v5342
        %v5405 = vmul.f32 %v5342, %v5404
        %vm5406 = vcmp.eq.f32.partialorder %v5342, inf
        %v5407 = vsel %vm5406, %v5342, %v5405
        %vm5408 = vcmp.eq.f32.partialorder %v5342, 0.0
        %v5409 = vand.u32 %v5342, 2147483648
        %v5410 = vsel %vm5408, %v5409, %v5407
        %v5411 = vrsqrt.pop %v5343
        %v5412 = vmul.f32 %v5343, %v5411
        %vm5413 = vcmp.eq.f32.partialorder %v5343, inf
        %v5414 = vsel %vm5413, %v5343, %v5412
        %vm5415 = vcmp.eq.f32.partialorder %v5343, 0.0
        %v5416 = vand.u32 %v5343, 2147483648
        %v5417 = vsel %vm5415, %v5416, %v5414
        %v5418 = vrsqrt.pop %v5344
        %v5419 = vmul.f32 %v5344, %v5418
        %vm5420 = vcmp.eq.f32.partialorder %v5344, inf
        %v5421 = vsel %vm5420, %v5344, %v5419
        %vm5422 = vcmp.eq.f32.partialorder %v5344, 0.0
        %v5423 = vand.u32 %v5344, 2147483648
        %v5424 = vsel %vm5422, %v5423, %v5421
        %v5425 = vrsqrt.pop %v5345
        %v5426 = vmul.f32 %v5345, %v5425
        %vm5427 = vcmp.eq.f32.partialorder %v5345, inf
        %v5428 = vsel %vm5427, %v5345, %v5426
        %vm5429 = vcmp.eq.f32.partialorder %v5345, 0.0
        %v5430 = vand.u32 %v5345, 2147483648
        %v5431 = vsel %vm5429, %v5430, %v5428
        %v5432 = vrsqrt.pop %v5346
        %v5433 = vmul.f32 %v5346, %v5432
        %vm5434 = vcmp.eq.f32.partialorder %v5346, inf
        %v5435 = vsel %vm5434, %v5346, %v5433
        %vm5436 = vcmp.eq.f32.partialorder %v5346, 0.0
        %v5437 = vand.u32 %v5346, 2147483648
        %v5438 = vsel %vm5436, %v5437, %v5435
        %v5439 = vrsqrt.pop %v5347
        %v5440 = vmul.f32 %v5347, %v5439
        %vm5441 = vcmp.eq.f32.partialorder %v5347, inf
        %v5442 = vsel %vm5441, %v5347, %v5440
        %vm5443 = vcmp.eq.f32.partialorder %v5347, 0.0
        %v5444 = vand.u32 %v5347, 2147483648
        %v5445 = vsel %vm5443, %v5444, %v5442
        %v5446 = vrsqrt.pop %v5348
        %v5447 = vmul.f32 %v5348, %v5446
        %vm5448 = vcmp.eq.f32.partialorder %v5348, inf
        %v5449 = vsel %vm5448, %v5348, %v5447
        %vm5450 = vcmp.eq.f32.partialorder %v5348, 0.0
        %v5451 = vand.u32 %v5348, 2147483648
        %v5452 = vsel %vm5450, %v5451, %v5449
        %v5453 = vrsqrt.pop %v5349
        %v5454 = vmul.f32 %v5349, %v5453
        %vm5455 = vcmp.eq.f32.partialorder %v5349, inf
        %v5456 = vsel %vm5455, %v5349, %v5454
        %vm5457 = vcmp.eq.f32.partialorder %v5349, 0.0
        %v5458 = vand.u32 %v5349, 2147483648
        %v5459 = vsel %vm5457, %v5458, %v5456
        %v5460 = vrsqrt.pop %v5350
        %v5461 = vmul.f32 %v5350, %v5460
        %vm5462 = vcmp.eq.f32.partialorder %v5350, inf
        %v5463 = vsel %vm5462, %v5350, %v5461
        %vm5464 = vcmp.eq.f32.partialorder %v5350, 0.0
        %v5465 = vand.u32 %v5350, 2147483648
        %v5466 = vsel %vm5464, %v5465, %v5463
        %v5467 = vrsqrt.pop %v5351
        %v5468 = vmul.f32 %v5351, %v5467
        %vm5469 = vcmp.eq.f32.partialorder %v5351, inf
        %v5470 = vsel %vm5469, %v5351, %v5468
        %vm5471 = vcmp.eq.f32.partialorder %v5351, 0.0
        %v5472 = vand.u32 %v5351, 2147483648
        %v5473 = vsel %vm5471, %v5472, %v5470
        %v5474 = vrsqrt.pop %v5352
        %v5475 = vmul.f32 %v5352, %v5474
        %vm5476 = vcmp.eq.f32.partialorder %v5352, inf
        %v5477 = vsel %vm5476, %v5352, %v5475
        %vm5478 = vcmp.eq.f32.partialorder %v5352, 0.0
        %v5479 = vand.u32 %v5352, 2147483648
        %v5480 = vsel %vm5478, %v5479, %v5477
        %v5481 = vrsqrt.pop %v5353
        %v5482 = vmul.f32 %v5353, %v5481
        %vm5483 = vcmp.eq.f32.partialorder %v5353, inf
        %v5484 = vsel %vm5483, %v5353, %v5482
        %vm5485 = vcmp.eq.f32.partialorder %v5353, 0.0
        %v5486 = vand.u32 %v5353, 2147483648
        %v5487 = vsel %vm5485, %v5486, %v5484
        %v5488 = vrsqrt.pop %v5354
        %v5489 = vmul.f32 %v5354, %v5488
        %vm5490 = vcmp.eq.f32.partialorder %v5354, inf
        %v5491 = vsel %vm5490, %v5354, %v5489
        %vm5492 = vcmp.eq.f32.partialorder %v5354, 0.0
        %v5493 = vand.u32 %v5354, 2147483648
        %v5494 = vsel %vm5492, %v5493, %v5491
        %v5495 = vrsqrt.pop %v5355
        %v5496 = vmul.f32 %v5355, %v5495
        %vm5497 = vcmp.eq.f32.partialorder %v5355, inf
        %v5498 = vsel %vm5497, %v5355, %v5496
        %vm5499 = vcmp.eq.f32.partialorder %v5355, 0.0
        %v5500 = vand.u32 %v5355, 2147483648
        %v5501 = vsel %vm5499, %v5500, %v5498
        %v5502 = vrsqrt.pop %v5356
        %v5503 = vmul.f32 %v5356, %v5502
        %vm5504 = vcmp.eq.f32.partialorder %v5356, inf
        %v5505 = vsel %vm5504, %v5356, %v5503
        %vm5506 = vcmp.eq.f32.partialorder %v5356, 0.0
        %v5507 = vand.u32 %v5356, 2147483648
        %v5508 = vsel %vm5506, %v5507, %v5505
        %v5509 = vrsqrt.pop %v5357
        %v5510 = vmul.f32 %v5357, %v5509
        %vm5511 = vcmp.eq.f32.partialorder %v5357, inf
        %v5512 = vsel %vm5511, %v5357, %v5510
        %vm5513 = vcmp.eq.f32.partialorder %v5357, 0.0
        %v5514 = vand.u32 %v5357, 2147483648
        %v5515 = vsel %vm5513, %v5514, %v5512
        %v5516 = vrsqrt.pop %v5358
        %v5517 = vmul.f32 %v5358, %v5516
        %vm5518 = vcmp.eq.f32.partialorder %v5358, inf
        %v5519 = vsel %vm5518, %v5358, %v5517
        %vm5520 = vcmp.eq.f32.partialorder %v5358, 0.0
        %v5521 = vand.u32 %v5358, 2147483648
        %v5522 = vsel %vm5520, %v5521, %v5519
        %v5523 = vrsqrt.pop %v5359
        %v5524 = vmul.f32 %v5359, %v5523
        %vm5525 = vcmp.eq.f32.partialorder %v5359, inf
        %v5526 = vsel %vm5525, %v5359, %v5524
        %vm5527 = vcmp.eq.f32.partialorder %v5359, 0.0
        %v5528 = vand.u32 %v5359, 2147483648
        %v5529 = vsel %vm5527, %v5528, %v5526
        %v5530 = vrsqrt.pop %v5360
        %v5531 = vmul.f32 %v5360, %v5530
        %vm5532 = vcmp.eq.f32.partialorder %v5360, inf
        %v5533 = vsel %vm5532, %v5360, %v5531
        %vm5534 = vcmp.eq.f32.partialorder %v5360, 0.0
        %v5535 = vand.u32 %v5360, 2147483648
        %v5536 = vsel %vm5534, %v5535, %v5533
        %v5537 = vrsqrt.pop %v5361
        %v5538 = vmul.f32 %v5361, %v5537
        %vm5539 = vcmp.eq.f32.partialorder %v5361, inf
        %v5540 = vsel %vm5539, %v5361, %v5538
        %vm5541 = vcmp.eq.f32.partialorder %v5361, 0.0
        %v5542 = vand.u32 %v5361, 2147483648
        %v5543 = vsel %vm5541, %v5542, %v5540
        %v5544 = vrsqrt.pop %v5362
        %v5545 = vmul.f32 %v5362, %v5544
        %vm5546 = vcmp.eq.f32.partialorder %v5362, inf
        %v5547 = vsel %vm5546, %v5362, %v5545
        %vm5548 = vcmp.eq.f32.partialorder %v5362, 0.0
        %v5549 = vand.u32 %v5362, 2147483648
        %v5550 = vsel %vm5548, %v5549, %v5547
        %v5551 = vrsqrt.pop %v5363
        %v5552 = vmul.f32 %v5363, %v5551
        %vm5553 = vcmp.eq.f32.partialorder %v5363, inf
        %v5554 = vsel %vm5553, %v5363, %v5552
        %vm5555 = vcmp.eq.f32.partialorder %v5363, 0.0
        %v5556 = vand.u32 %v5363, 2147483648
        %v5557 = vsel %vm5555, %v5556, %v5554
        %v5558 = vrsqrt.pop %v5364
        %v5559 = vmul.f32 %v5364, %v5558
        %vm5560 = vcmp.eq.f32.partialorder %v5364, inf
        %v5561 = vsel %vm5560, %v5364, %v5559
        %vm5562 = vcmp.eq.f32.partialorder %v5364, 0.0
        %v5563 = vand.u32 %v5364, 2147483648
        %v5564 = vsel %vm5562, %v5563, %v5561
        %v5565 = vrsqrt.pop %v5365
        %v5566 = vmul.f32 %v5365, %v5565
        %vm5567 = vcmp.eq.f32.partialorder %v5365, inf
        %v5568 = vsel %vm5567, %v5365, %v5566
        %vm5569 = vcmp.eq.f32.partialorder %v5365, 0.0
        %v5570 = vand.u32 %v5365, 2147483648
        %v5571 = vsel %vm5569, %v5570, %v5568
        %v5572 = vrsqrt.pop %v5366
        %v5573 = vmul.f32 %v5366, %v5572
        %vm5574 = vcmp.eq.f32.partialorder %v5366, inf
        %v5575 = vsel %vm5574, %v5366, %v5573
        %vm5576 = vcmp.eq.f32.partialorder %v5366, 0.0
        %v5577 = vand.u32 %v5366, 2147483648
        %v5578 = vsel %vm5576, %v5577, %v5575
        %v5579 = vrsqrt.pop %v5367
        %v5580 = vmul.f32 %v5367, %v5579
        %vm5581 = vcmp.eq.f32.partialorder %v5367, inf
        %v5582 = vsel %vm5581, %v5367, %v5580
        %vm5583 = vcmp.eq.f32.partialorder %v5367, 0.0
        %v5584 = vand.u32 %v5367, 2147483648
        %v5585 = vsel %vm5583, %v5584, %v5582
        %v5586 = vrsqrt.pop %v5368
        %v5587 = vmul.f32 %v5368, %v5586
        %vm5588 = vcmp.eq.f32.partialorder %v5368, inf
        %v5589 = vsel %vm5588, %v5368, %v5587
        %vm5590 = vcmp.eq.f32.partialorder %v5368, 0.0
        %v5591 = vand.u32 %v5368, 2147483648
        %v5592 = vsel %vm5590, %v5591, %v5589
        %v5593 = vadd.f32 %v5375, 1e-06
        %v5594 = vadd.f32 %v5382, 1e-06
        %v5595 = vadd.f32 %v5389, 1e-06
        %v5596 = vadd.f32 %v5396, 1e-06
        %v5597 = vadd.f32 %v5403, 1e-06
        %v5598 = vadd.f32 %v5410, 1e-06
        %v5599 = vadd.f32 %v5417, 1e-06
        %v5600 = vadd.f32 %v5424, 1e-06
        %v5601 = vadd.f32 %v5431, 1e-06
        %v5602 = vadd.f32 %v5438, 1e-06
        %v5603 = vadd.f32 %v5445, 1e-06
        %v5604 = vadd.f32 %v5452, 1e-06
        %v5605 = vadd.f32 %v5459, 1e-06
        %v5606 = vadd.f32 %v5466, 1e-06
        %v5607 = vadd.f32 %v5473, 1e-06
        %v5608 = vadd.f32 %v5480, 1e-06
        %v5609 = vadd.f32 %v5487, 1e-06
        %v5610 = vadd.f32 %v5494, 1e-06
        %v5611 = vadd.f32 %v5501, 1e-06
        %v5612 = vadd.f32 %v5508, 1e-06
        %v5613 = vadd.f32 %v5515, 1e-06
        %v5614 = vadd.f32 %v5522, 1e-06
        %v5615 = vadd.f32 %v5529, 1e-06
        %v5616 = vadd.f32 %v5536, 1e-06
        %v5617 = vadd.f32 %v5543, 1e-06
        %v5618 = vadd.f32 %v5550, 1e-06
        %v5619 = vadd.f32 %v5557, 1e-06
        %v5620 = vadd.f32 %v5564, 1e-06
        %v5621 = vadd.f32 %v5571, 1e-06
        %v5622 = vadd.f32 %v5578, 1e-06
        %v5623 = vadd.f32 %v5585, 1e-06
        %v5624 = vadd.f32 %v5592, 1e-06
        %v5625 = vrcp.pop %v5593
        %v5626 = vrcp.pop %v5594
        %v5627 = vrcp.pop %v5595
        %v5628 = vrcp.pop %v5596
        %v5629 = vrcp.pop %v5597
        %v5630 = vrcp.pop %v5598
        %v5631 = vrcp.pop %v5599
        %v5632 = vrcp.pop %v5600
        %v5633 = vrcp.pop %v5601
        %v5634 = vrcp.pop %v5602
        %v5635 = vrcp.pop %v5603
        %v5636 = vrcp.pop %v5604
        %v5637 = vrcp.pop %v5605
        %v5638 = vrcp.pop %v5606
        %v5639 = vrcp.pop %v5607
        %v5640 = vrcp.pop %v5608
        %v5641 = vrcp.pop %v5609
        %v5642 = vrcp.pop %v5610
        %v5643 = vrcp.pop %v5611
        %v5644 = vrcp.pop %v5612
        %v5645 = vrcp.pop %v5613
        %v5646 = vrcp.pop %v5614
        %v5647 = vrcp.pop %v5615
        %v5648 = vrcp.pop %v5616
        %v5649 = vrcp.pop %v5617
        %v5650 = vrcp.pop %v5618
        %v5651 = vrcp.pop %v5619
        %v5652 = vrcp.pop %v5620
        %v5653 = vrcp.pop %v5621
        %v5654 = vrcp.pop %v5622
        %v5655 = vrcp.pop %v5623
        %v5656 = vrcp.pop %v5624
        %v5657 = vmul.f32 %v5209, %v5625
        %v5658 = vmul.f32 %v5210, %v5626
        %v5659 = vmul.f32 %v5211, %v5627
        %v5660 = vmul.f32 %v5212, %v5628
        %v5661 = vmul.f32 %v5213, %v5629
        %v5662 = vmul.f32 %v5214, %v5630
        %v5663 = vmul.f32 %v5215, %v5631
        %v5664 = vmul.f32 %v5216, %v5632
        %v5665 = vmul.f32 %v5217, %v5633
        %v5666 = vmul.f32 %v5218, %v5634
        %v5667 = vmul.f32 %v5219, %v5635
        %v5668 = vmul.f32 %v5220, %v5636
        %v5669 = vmul.f32 %v5221, %v5637
        %v5670 = vmul.f32 %v5222, %v5638
        %v5671 = vmul.f32 %v5223, %v5639
        %v5672 = vmul.f32 %v5224, %v5640
        %v5673 = vmul.f32 %v5225, %v5641
        %v5674 = vmul.f32 %v5226, %v5642
        %v5675 = vmul.f32 %v5227, %v5643
        %v5676 = vmul.f32 %v5228, %v5644
        %v5677 = vmul.f32 %v5229, %v5645
        %v5678 = vmul.f32 %v5230, %v5646
        %v5679 = vmul.f32 %v5231, %v5647
        %v5680 = vmul.f32 %v5232, %v5648
        %v5681 = vmul.f32 %v5233, %v5649
        %v5682 = vmul.f32 %v5234, %v5650
        %v5683 = vmul.f32 %v5235, %v5651
        %v5684 = vmul.f32 %v5236, %v5652
        %v5685 = vmul.f32 %v5237, %v5653
        %v5686 = vmul.f32 %v5238, %v5654
        %v5687 = vmul.f32 %v5239, %v5655
        %v5688 = vmul.f32 %v5240, %v5656
        %v5689 = vlaneseq
        %v5690 = vshrl.u32 %v5689, 7
        %v5691 = vsub.s32 4, %v5690
        %v5692 = vrot.slane %v377, %v5691
        %v5693 = vmul.f32 %v5692, %v5657
        %v5694 = vmul.f32 %v5692, %v5658
        %v5695 = vmul.f32 %v5692, %v5659
        %v5696 = vmul.f32 %v5692, %v5660
        %v5697 = vmul.f32 %v5692, %v5661
        %v5698 = vmul.f32 %v5692, %v5662
        %v5699 = vmul.f32 %v5692, %v5663
        %v5700 = vmul.f32 %v5692, %v5664
        %v5701 = vmul.f32 %v5692, %v5665
        %v5702 = vmul.f32 %v5692, %v5666
        %v5703 = vmul.f32 %v5692, %v5667
        %v5704 = vmul.f32 %v5692, %v5668
        %v5705 = vmul.f32 %v5692, %v5669
        %v5706 = vmul.f32 %v5692, %v5670
        %v5707 = vmul.f32 %v5692, %v5671
        %v5708 = vmul.f32 %v5692, %v5672
        %v5709 = vmul.f32 %v5692, %v5673
        %v5710 = vmul.f32 %v5692, %v5674
        %v5711 = vmul.f32 %v5692, %v5675
        %v5712 = vmul.f32 %v5692, %v5676
        %v5713 = vmul.f32 %v5692, %v5677
        %v5714 = vmul.f32 %v5692, %v5678
        %v5715 = vmul.f32 %v5692, %v5679
        %v5716 = vmul.f32 %v5692, %v5680
        %v5717 = vmul.f32 %v5692, %v5681
        %v5718 = vmul.f32 %v5692, %v5682
        %v5719 = vmul.f32 %v5692, %v5683
        %v5720 = vmul.f32 %v5692, %v5684
        %v5721 = vmul.f32 %v5692, %v5685
        %v5722 = vmul.f32 %v5692, %v5686
        %v5723 = vmul.f32 %v5692, %v5687
        %v5724 = vmul.f32 %v5692, %v5688
        %v5725 = vlaneseq
        %v5726 = vshrl.u32 %v5725, 7
        %v5727 = vsub.s32 5, %v5726
        %v5728 = vrot.slane %v377, %v5727
        %v5729 = vadd.f32 %v5693, %v5728
        %v5730 = vadd.f32 %v5694, %v5728
        %v5731 = vadd.f32 %v5695, %v5728
        %v5732 = vadd.f32 %v5696, %v5728
        %v5733 = vadd.f32 %v5697, %v5728
        %v5734 = vadd.f32 %v5698, %v5728
        %v5735 = vadd.f32 %v5699, %v5728
        %v5736 = vadd.f32 %v5700, %v5728
        %v5737 = vadd.f32 %v5701, %v5728
        %v5738 = vadd.f32 %v5702, %v5728
        %v5739 = vadd.f32 %v5703, %v5728
        %v5740 = vadd.f32 %v5704, %v5728
        %v5741 = vadd.f32 %v5705, %v5728
        %v5742 = vadd.f32 %v5706, %v5728
        %v5743 = vadd.f32 %v5707, %v5728
        %v5744 = vadd.f32 %v5708, %v5728
        %v5745 = vadd.f32 %v5709, %v5728
        %v5746 = vadd.f32 %v5710, %v5728
        %v5747 = vadd.f32 %v5711, %v5728
        %v5748 = vadd.f32 %v5712, %v5728
        %v5749 = vadd.f32 %v5713, %v5728
        %v5750 = vadd.f32 %v5714, %v5728
        %v5751 = vadd.f32 %v5715, %v5728
        %v5752 = vadd.f32 %v5716, %v5728
        %v5753 = vadd.f32 %v5717, %v5728
        %v5754 = vadd.f32 %v5718, %v5728
        %v5755 = vadd.f32 %v5719, %v5728
        %v5756 = vadd.f32 %v5720, %v5728
        %v5757 = vadd.f32 %v5721, %v5728
        %v5758 = vadd.f32 %v5722, %v5728
        %v5759 = vadd.f32 %v5723, %v5728
        %v5760 = vadd.f32 %v5724, %v5728
        %v5761 = vld [vmem:[#allocation9] sm:$0xff]
        %v5762 = vld [vmem:[#allocation9 + $0x8] sm:$0xff]
        %v5763 = vld [vmem:[#allocation9 + $0x10] sm:$0xff]
        %v5764 = vld [vmem:[#allocation9 + $0x18] sm:$0xff]
        %v5765 = vld [vmem:[#allocation9 + $0x20] sm:$0xff]
        %v5766 = vld [vmem:[#allocation9 + $0x28] sm:$0xff]
        %v5767 = vld [vmem:[#allocation9 + $0x30] sm:$0xff]
        %v5768 = vld [vmem:[#allocation9 + $0x38] sm:$0xff]
        %v5769 = vld [vmem:[#allocation9 + $0x40] sm:$0xff]
        %v5770 = vld [vmem:[#allocation9 + $0x48] sm:$0xff]
        %v5771 = vld [vmem:[#allocation9 + $0x50] sm:$0xff]
        %v5772 = vld [vmem:[#allocation9 + $0x58] sm:$0xff]
        %v5773 = vld [vmem:[#allocation9 + $0x60] sm:$0xff]
        %v5774 = vld [vmem:[#allocation9 + $0x68] sm:$0xff]
        %v5775 = vld [vmem:[#allocation9 + $0x70] sm:$0xff]
        %v5776 = vld [vmem:[#allocation9 + $0x78] sm:$0xff]
        %v5777 = vld [vmem:[#allocation9 + $0x80] sm:$0xff]
        %v5778 = vld [vmem:[#allocation9 + $0x88] sm:$0xff]
        %v5779 = vld [vmem:[#allocation9 + $0x90] sm:$0xff]
        %v5780 = vld [vmem:[#allocation9 + $0x98] sm:$0xff]
        %v5781 = vld [vmem:[#allocation9 + $0xa0] sm:$0xff]
        %v5782 = vld [vmem:[#allocation9 + $0xa8] sm:$0xff]
        %v5783 = vld [vmem:[#allocation9 + $0xb0] sm:$0xff]
        %v5784 = vld [vmem:[#allocation9 + $0xb8] sm:$0xff]
        %v5785 = vld [vmem:[#allocation9 + $0xc0] sm:$0xff]
        %v5786 = vld [vmem:[#allocation9 + $0xc8] sm:$0xff]
        %v5787 = vld [vmem:[#allocation9 + $0xd0] sm:$0xff]
        %v5788 = vld [vmem:[#allocation9 + $0xd8] sm:$0xff]
        %v5789 = vld [vmem:[#allocation9 + $0xe0] sm:$0xff]
        %v5790 = vld [vmem:[#allocation9 + $0xe8] sm:$0xff]
        %v5791 = vld [vmem:[#allocation9 + $0xf0] sm:$0xff]
        %v5792 = vld [vmem:[#allocation9 + $0xf8] sm:$0xff]
        %v5793 = vld [vmem:[#allocation9 + $0x100] sm:$0xff]
        %v5794 = vld [vmem:[#allocation9 + $0x108] sm:$0xff]
        %v5795 = vld [vmem:[#allocation9 + $0x110] sm:$0xff]
        %v5796 = vld [vmem:[#allocation9 + $0x118] sm:$0xff]
        %v5797 = vld [vmem:[#allocation9 + $0x120] sm:$0xff]
        %v5798 = vld [vmem:[#allocation9 + $0x128] sm:$0xff]
        %v5799 = vld [vmem:[#allocation9 + $0x130] sm:$0xff]
        %v5800 = vld [vmem:[#allocation9 + $0x138] sm:$0xff]
        %v5801 = vld [vmem:[#allocation9 + $0x140] sm:$0xff]
        %v5802 = vld [vmem:[#allocation9 + $0x148] sm:$0xff]
        %v5803 = vld [vmem:[#allocation9 + $0x150] sm:$0xff]
        %v5804 = vld [vmem:[#allocation9 + $0x158] sm:$0xff]
        %v5805 = vld [vmem:[#allocation9 + $0x160] sm:$0xff]
        %v5806 = vld [vmem:[#allocation9 + $0x168] sm:$0xff]
        %v5807 = vld [vmem:[#allocation9 + $0x170] sm:$0xff]
        %v5808 = vld [vmem:[#allocation9 + $0x178] sm:$0xff]
        %v5809 = vld [vmem:[#allocation9 + $0x180] sm:$0xff]
        %v5810 = vld [vmem:[#allocation9 + $0x188] sm:$0xff]
        %v5811 = vld [vmem:[#allocation9 + $0x190] sm:$0xff]
        %v5812 = vld [vmem:[#allocation9 + $0x198] sm:$0xff]
        %v5813 = vld [vmem:[#allocation9 + $0x1a0] sm:$0xff]
        %v5814 = vld [vmem:[#allocation9 + $0x1a8] sm:$0xff]
        %v5815 = vld [vmem:[#allocation9 + $0x1b0] sm:$0xff]
        %v5816 = vld [vmem:[#allocation9 + $0x1b8] sm:$0xff]
        %v5817 = vld [vmem:[#allocation9 + $0x1c0] sm:$0xff]
        %v5818 = vld [vmem:[#allocation9 + $0x1c8] sm:$0xff]
        %v5819 = vld [vmem:[#allocation9 + $0x1d0] sm:$0xff]
        %v5820 = vld [vmem:[#allocation9 + $0x1d8] sm:$0xff]
        %v5821 = vld [vmem:[#allocation9 + $0x1e0] sm:$0xff]
        %v5822 = vld [vmem:[#allocation9 + $0x1e8] sm:$0xff]
        %v5823 = vld [vmem:[#allocation9 + $0x1f0] sm:$0xff]
        %v5824 = vld [vmem:[#allocation9 + $0x1f8] sm:$0xff]
        %v5825 = vpack.c.bf16 %v5730, %v5729
        %v5826 = vpack.c.bf16 %v5732, %v5731
        %v5827 = vpack.c.bf16 %v5734, %v5733
        %v5828 = vpack.c.bf16 %v5736, %v5735
        %v5829 = vpack.c.bf16 %v5738, %v5737
        %v5830 = vpack.c.bf16 %v5740, %v5739
        %v5831 = vpack.c.bf16 %v5742, %v5741
        %v5832 = vpack.c.bf16 %v5744, %v5743
        %v5833 = vpack.c.bf16 %v5746, %v5745
        %v5834 = vpack.c.bf16 %v5748, %v5747
        %v5835 = vpack.c.bf16 %v5750, %v5749
        %v5836 = vpack.c.bf16 %v5752, %v5751
        %v5837 = vpack.c.bf16 %v5754, %v5753
        %v5838 = vpack.c.bf16 %v5756, %v5755
        %v5839 = vpack.c.bf16 %v5758, %v5757
        %v5840 = vpack.c.bf16 %v5760, %v5759
        %v5841 = vlaneseq
        %v5842 = vshrl.u32 %v5841, 7
        %v5843 = vsub.s32 1, %v5842
        %v5844 = vrot.slane %v377, %v5843
        %v5845 = vlaneseq
        %v5846 = vshrl.u32 %v5845, 7
        %v5847 = vsub.s32 1, %v5846
        %v5848 = vrot.slane %v378, %v5847
        %v5849 = vlaneseq
        %v5850 = vshrl.u32 %v5849, 7
        %v5851 = vsub.s32 1, %v5850
        %v5852 = vrot.slane %v379, %v5851
        %v5853 = vlaneseq
        %v5854 = vshrl.u32 %v5853, 7
        %v5855 = vsub.s32 1, %v5854
        %v5856 = vrot.slane %v380, %v5855
        %v5857 = vlaneseq
        %v5858 = vshrl.u32 %v5857, 7
        %v5859 = vsub.s32 1, %v5858
        %v5860 = vrot.slane %v381, %v5859
        %v5861 = vlaneseq
        %v5862 = vshrl.u32 %v5861, 7
        %v5863 = vsub.s32 1, %v5862
        %v5864 = vrot.slane %v382, %v5863
        %v5865 = vlaneseq
        %v5866 = vshrl.u32 %v5865, 7
        %v5867 = vsub.s32 1, %v5866
        %v5868 = vrot.slane %v383, %v5867
        %v5869 = vlaneseq
        %v5870 = vshrl.u32 %v5869, 7
        %v5871 = vsub.s32 1, %v5870
        %v5872 = vrot.slane %v384, %v5871
        %v5937 = vunpack.c.l.b16 %v5761
        %v5938 = vunpack.c.h.b16 %v5761
        %v5939 = vunpack.c.l.b16 %v5762
        %v5940 = vunpack.c.h.b16 %v5762
        %v5941 = vunpack.c.l.b16 %v5763
        %v5942 = vunpack.c.h.b16 %v5763
        %v5943 = vunpack.c.l.b16 %v5764
        %v5944 = vunpack.c.h.b16 %v5764
        %v5945 = vunpack.c.l.b16 %v5765
        %v5946 = vunpack.c.h.b16 %v5765
        %v5947 = vunpack.c.l.b16 %v5766
        %v5948 = vunpack.c.h.b16 %v5766
        %v5949 = vunpack.c.l.b16 %v5767
        %v5950 = vunpack.c.h.b16 %v5767
        %v5951 = vunpack.c.l.b16 %v5768
        %v5952 = vunpack.c.h.b16 %v5768
        %v5953 = vunpack.c.l.b16 %v5769
        %v5954 = vunpack.c.h.b16 %v5769
        %v5955 = vunpack.c.l.b16 %v5770
        %v5956 = vunpack.c.h.b16 %v5770
        %v5957 = vunpack.c.l.b16 %v5771
        %v5958 = vunpack.c.h.b16 %v5771
        %v5959 = vunpack.c.l.b16 %v5772
        %v5960 = vunpack.c.h.b16 %v5772
        %v5961 = vunpack.c.l.b16 %v5773
        %v5962 = vunpack.c.h.b16 %v5773
        %v5963 = vunpack.c.l.b16 %v5774
        %v5964 = vunpack.c.h.b16 %v5774
        %v5965 = vunpack.c.l.b16 %v5775
        %v5966 = vunpack.c.h.b16 %v5775
        %v5967 = vunpack.c.l.b16 %v5776
        %v5968 = vunpack.c.h.b16 %v5776
        %v5969 = vunpack.c.l.b16 %v5777
        %v5970 = vunpack.c.h.b16 %v5777
        %v5971 = vunpack.c.l.b16 %v5778
        %v5972 = vunpack.c.h.b16 %v5778
        %v5973 = vunpack.c.l.b16 %v5779
        %v5974 = vunpack.c.h.b16 %v5779
        %v5975 = vunpack.c.l.b16 %v5780
        %v5976 = vunpack.c.h.b16 %v5780
        %v5977 = vunpack.c.l.b16 %v5781
        %v5978 = vunpack.c.h.b16 %v5781
        %v5979 = vunpack.c.l.b16 %v5782
        %v5980 = vunpack.c.h.b16 %v5782
        %v5981 = vunpack.c.l.b16 %v5783
        %v5982 = vunpack.c.h.b16 %v5783
        %v5983 = vunpack.c.l.b16 %v5784
        %v5984 = vunpack.c.h.b16 %v5784
        %v5985 = vunpack.c.l.b16 %v5785
        %v5986 = vunpack.c.h.b16 %v5785
        %v5987 = vunpack.c.l.b16 %v5786
        %v5988 = vunpack.c.h.b16 %v5786
        %v5989 = vunpack.c.l.b16 %v5787
        %v5990 = vunpack.c.h.b16 %v5787
        %v5991 = vunpack.c.l.b16 %v5788
        %v5992 = vunpack.c.h.b16 %v5788
        %v5993 = vunpack.c.l.b16 %v5789
        %v5994 = vunpack.c.h.b16 %v5789
        %v5995 = vunpack.c.l.b16 %v5790
        %v5996 = vunpack.c.h.b16 %v5790
        %v5997 = vunpack.c.l.b16 %v5791
        %v5998 = vunpack.c.h.b16 %v5791
        %v5999 = vunpack.c.l.b16 %v5792
        %v6000 = vunpack.c.h.b16 %v5792
        %v6001 = vunpack.c.l.b16 %v5793
        %v6002 = vunpack.c.h.b16 %v5793
        %v6003 = vunpack.c.l.b16 %v5794
        %v6004 = vunpack.c.h.b16 %v5794
        %v6005 = vunpack.c.l.b16 %v5795
        %v6006 = vunpack.c.h.b16 %v5795
        %v6007 = vunpack.c.l.b16 %v5796
        %v6008 = vunpack.c.h.b16 %v5796
        %v6009 = vunpack.c.l.b16 %v5797
        %v6010 = vunpack.c.h.b16 %v5797
        %v6011 = vunpack.c.l.b16 %v5798
        %v6012 = vunpack.c.h.b16 %v5798
        %v6013 = vunpack.c.l.b16 %v5799
        %v6014 = vunpack.c.h.b16 %v5799
        %v6015 = vunpack.c.l.b16 %v5800
        %v6016 = vunpack.c.h.b16 %v5800
        %v6017 = vunpack.c.l.b16 %v5801
        %v6018 = vunpack.c.h.b16 %v5801
        %v6019 = vunpack.c.l.b16 %v5802
        %v6020 = vunpack.c.h.b16 %v5802
        %v6021 = vunpack.c.l.b16 %v5803
        %v6022 = vunpack.c.h.b16 %v5803
        %v6023 = vunpack.c.l.b16 %v5804
        %v6024 = vunpack.c.h.b16 %v5804
        %v6025 = vunpack.c.l.b16 %v5805
        %v6026 = vunpack.c.h.b16 %v5805
        %v6027 = vunpack.c.l.b16 %v5806
        %v6028 = vunpack.c.h.b16 %v5806
        %v6029 = vunpack.c.l.b16 %v5807
        %v6030 = vunpack.c.h.b16 %v5807
        %v6031 = vunpack.c.l.b16 %v5808
        %v6032 = vunpack.c.h.b16 %v5808
        %v6033 = vunpack.c.l.b16 %v5809
        %v6034 = vunpack.c.h.b16 %v5809
        %v6035 = vunpack.c.l.b16 %v5810
        %v6036 = vunpack.c.h.b16 %v5810
        %v6037 = vunpack.c.l.b16 %v5811
        %v6038 = vunpack.c.h.b16 %v5811
        %v6039 = vunpack.c.l.b16 %v5812
        %v6040 = vunpack.c.h.b16 %v5812
        %v6041 = vunpack.c.l.b16 %v5813
        %v6042 = vunpack.c.h.b16 %v5813
        %v6043 = vunpack.c.l.b16 %v5814
        %v6044 = vunpack.c.h.b16 %v5814
        %v6045 = vunpack.c.l.b16 %v5815
        %v6046 = vunpack.c.h.b16 %v5815
        %v6047 = vunpack.c.l.b16 %v5816
        %v6048 = vunpack.c.h.b16 %v5816
        %v6049 = vunpack.c.l.b16 %v5817
        %v6050 = vunpack.c.h.b16 %v5817
        %v6051 = vunpack.c.l.b16 %v5818
        %v6052 = vunpack.c.h.b16 %v5818
        %v6053 = vunpack.c.l.b16 %v5819
        %v6054 = vunpack.c.h.b16 %v5819
        %v6055 = vunpack.c.l.b16 %v5820
        %v6056 = vunpack.c.h.b16 %v5820
        %v6057 = vunpack.c.l.b16 %v5821
        %v6058 = vunpack.c.h.b16 %v5821
        %v6059 = vunpack.c.l.b16 %v5822
        %v6060 = vunpack.c.h.b16 %v5822
        %v6061 = vunpack.c.l.b16 %v5823
        %v6062 = vunpack.c.h.b16 %v5823
        %v6063 = vunpack.c.l.b16 %v5824
        %v6064 = vunpack.c.h.b16 %v5824
        %v6065 = vpack.c.b16 %v5945, %v5937
        %v6066 = vpack.c.b16 %v5946, %v5938
        %v6067 = vpack.c.b16 %v5947, %v5939
        %v6068 = vpack.c.b16 %v5948, %v5940
        %v6069 = vpack.c.b16 %v5949, %v5941
        %v6070 = vpack.c.b16 %v5950, %v5942
        %v6071 = vpack.c.b16 %v5951, %v5943
        %v6072 = vpack.c.b16 %v5952, %v5944
        %v6073 = vpack.c.b16 %v5961, %v5953
        %v6074 = vpack.c.b16 %v5962, %v5954
        %v6075 = vpack.c.b16 %v5963, %v5955
        %v6076 = vpack.c.b16 %v5964, %v5956
        %v6077 = vpack.c.b16 %v5965, %v5957
        %v6078 = vpack.c.b16 %v5966, %v5958
        %v6079 = vpack.c.b16 %v5967, %v5959
        %v6080 = vpack.c.b16 %v5968, %v5960
        %v6081 = vpack.c.b16 %v5977, %v5969
        %v6082 = vpack.c.b16 %v5978, %v5970
        %v6083 = vpack.c.b16 %v5979, %v5971
        %v6084 = vpack.c.b16 %v5980, %v5972
        %v6085 = vpack.c.b16 %v5981, %v5973
        %v6086 = vpack.c.b16 %v5982, %v5974
        %v6087 = vpack.c.b16 %v5983, %v5975
        %v6088 = vpack.c.b16 %v5984, %v5976
        %v6089 = vpack.c.b16 %v5993, %v5985
        %v6090 = vpack.c.b16 %v5994, %v5986
        %v6091 = vpack.c.b16 %v5995, %v5987
        %v6092 = vpack.c.b16 %v5996, %v5988
        %v6093 = vpack.c.b16 %v5997, %v5989
        %v6094 = vpack.c.b16 %v5998, %v5990
        %v6095 = vpack.c.b16 %v5999, %v5991
        %v6096 = vpack.c.b16 %v6000, %v5992
        %v6097 = vpack.c.b16 %v6009, %v6001
        %v6098 = vpack.c.b16 %v6010, %v6002
        %v6099 = vpack.c.b16 %v6011, %v6003
        %v6100 = vpack.c.b16 %v6012, %v6004
        %v6101 = vpack.c.b16 %v6013, %v6005
        %v6102 = vpack.c.b16 %v6014, %v6006
        %v6103 = vpack.c.b16 %v6015, %v6007
        %v6104 = vpack.c.b16 %v6016, %v6008
        %v6105 = vpack.c.b16 %v6025, %v6017
        %v6106 = vpack.c.b16 %v6026, %v6018
        %v6107 = vpack.c.b16 %v6027, %v6019
        %v6108 = vpack.c.b16 %v6028, %v6020
        %v6109 = vpack.c.b16 %v6029, %v6021
        %v6110 = vpack.c.b16 %v6030, %v6022
        %v6111 = vpack.c.b16 %v6031, %v6023
        %v6112 = vpack.c.b16 %v6032, %v6024
        %v6113 = vpack.c.b16 %v6041, %v6033
        %v6114 = vpack.c.b16 %v6042, %v6034
        %v6115 = vpack.c.b16 %v6043, %v6035
        %v6116 = vpack.c.b16 %v6044, %v6036
        %v6117 = vpack.c.b16 %v6045, %v6037
        %v6118 = vpack.c.b16 %v6046, %v6038
        %v6119 = vpack.c.b16 %v6047, %v6039
        %v6120 = vpack.c.b16 %v6048, %v6040
        %v6121 = vpack.c.b16 %v6057, %v6049
        %v6122 = vpack.c.b16 %v6058, %v6050
        %v6123 = vpack.c.b16 %v6059, %v6051
        %v6124 = vpack.c.b16 %v6060, %v6052
        %v6125 = vpack.c.b16 %v6061, %v6053
        %v6126 = vpack.c.b16 %v6062, %v6054
        %v6127 = vpack.c.b16 %v6063, %v6055
        %v6128 = vpack.c.b16 %v6064, %v6056
        %6193 = vmatprep.subr.bf16.mxu0 %v6066
        %6194 = vmatpush1.bf16.msra.mxu0 %v6065
        %6195 = vmatprep.subr.bf16.mxu0 %v6074
        %6196 = vmatpush1.bf16.msra.mxu0 %v6073
        %6197 = vmatprep.subr.bf16.mxu0 %v6082
        %6198 = vmatpush1.bf16.msra.mxu0 %v6081
        %6199 = vmatprep.subr.bf16.mxu0 %v6090
        %6200 = vmatpush1.bf16.msra.mxu0 %v6089
        %6201 = vmatprep.subr.bf16.mxu0 %v6098
        %6202 = vmatpush1.bf16.msra.mxu0 %v6097
        %6203 = vmatprep.subr.bf16.mxu0 %v6106
        %6204 = vmatpush1.bf16.msra.mxu0 %v6105
        %6205 = vmatprep.subr.bf16.mxu0 %v6114
        %6206 = vmatpush1.bf16.msra.mxu0 %v6113
        %6207 = vmatprep.subr.bf16.mxu0 %v6122
        %6208 = vmatpush1.bf16.msra.mxu0 %v6121
        %6209 = vmatprep.subr.bf16.mxu0 0
        %6210 = vmatpush1.bf16.msra.mxu0 0
        %6211 = vmatprep.subr.bf16.mxu0 0
        %6212 = vmatpush1.bf16.msra.mxu0 0
        %6213 = vmatprep.subr.bf16.mxu0 0
        %6214 = vmatpush1.bf16.msra.mxu0 0
        %6215 = vmatprep.subr.bf16.mxu0 0
        %6216 = vmatpush1.bf16.msra.mxu0 0
        %6217 = vmatprep.subr.bf16.mxu0 0
        %6218 = vmatpush1.bf16.msra.mxu0 0
        %6219 = vmatprep.subr.bf16.mxu0 0
        %6220 = vmatpush1.bf16.msra.mxu0 0
        %6221 = vmatprep.subr.bf16.mxu0 0
        %6222 = vmatpush1.bf16.msra.mxu0 0
        %6223 = vmatprep.subr.bf16.mxu0 0
        %6224 = vmatpush1.bf16.msra.mxu0 0
        %6225 = vmatprep.mubr.bf16.mxu0 0
        %6226 = vmatmul.mubr.bf16.gmra.mrb[0].mxu0 %v5825
        %v6227 = vpop.f32.mrb[0].mxu0
        %v6228 = vadd.f32 %v5844, %v6227
        %v6229 = vpop.f32.mrb[0].mxu0
        %v6230 = vadd.f32 %v5848, %v6229
        %v6231 = vpop.f32.mrb[0].mxu0
        %v6232 = vadd.f32 %v5844, %v6231
        %v6233 = vpop.f32.mrb[0].mxu0
        %v6234 = vadd.f32 %v5848, %v6233
        %6235 = vmatprep.mubr.bf16.mxu0 0
        %6236 = vmatmul.mubr.bf16.gmra.mrb[0].mxu0 %v5826
        %v6237 = vpop.f32.mrb[0].mxu0
        %v6238 = vadd.f32 %v5844, %v6237
        %v6239 = vpop.f32.mrb[0].mxu0
        %v6240 = vadd.f32 %v5848, %v6239
        %v6241 = vpop.f32.mrb[0].mxu0
        %v6242 = vadd.f32 %v5844, %v6241
        %v6243 = vpop.f32.mrb[0].mxu0
        %v6244 = vadd.f32 %v5848, %v6243
        %6245 = vmatprep.mubr.bf16.mxu0 0
        %6246 = vmatmul.mubr.bf16.gmra.mrb[0].mxu0 %v5827
        %v6247 = vpop.f32.mrb[0].mxu0
        %v6248 = vadd.f32 %v5844, %v6247
        %v6249 = vpop.f32.mrb[0].mxu0
        %v6250 = vadd.f32 %v5848, %v6249
        %v6251 = vpop.f32.mrb[0].mxu0
        %v6252 = vadd.f32 %v5844, %v6251
        %v6253 = vpop.f32.mrb[0].mxu0
        %v6254 = vadd.f32 %v5848, %v6253
        %6255 = vmatprep.mubr.bf16.mxu0 0
        %6256 = vmatmul.mubr.bf16.gmra.mrb[0].mxu0 %v5828
        %v6257 = vpop.f32.mrb[0].mxu0
        %v6258 = vadd.f32 %v5844, %v6257
        %v6259 = vpop.f32.mrb[0].mxu0
        %v6260 = vadd.f32 %v5848, %v6259
        %v6261 = vpop.f32.mrb[0].mxu0
        %v6262 = vadd.f32 %v5844, %v6261
        %v6263 = vpop.f32.mrb[0].mxu0
        %v6264 = vadd.f32 %v5848, %v6263
        %6265 = vmatprep.mubr.bf16.mxu0 0
        %6266 = vmatmul.mubr.bf16.gmra.mrb[0].mxu0 %v5829
        %v6267 = vpop.f32.mrb[0].mxu0
        %v6268 = vadd.f32 %v5844, %v6267
        %v6269 = vpop.f32.mrb[0].mxu0
        %v6270 = vadd.f32 %v5848, %v6269
        %v6271 = vpop.f32.mrb[0].mxu0
        %v6272 = vadd.f32 %v5844, %v6271
        %v6273 = vpop.f32.mrb[0].mxu0
        %v6274 = vadd.f32 %v5848, %v6273
        %6275 = vmatprep.mubr.bf16.mxu0 0
        %6276 = vmatmul.mubr.bf16.gmra.mrb[0].mxu0 %v5830
        %v6277 = vpop.f32.mrb[0].mxu0
        %v6278 = vadd.f32 %v5844, %v6277
        %v6279 = vpop.f32.mrb[0].mxu0
        %v6280 = vadd.f32 %v5848, %v6279
        %v6281 = vpop.f32.mrb[0].mxu0
        %v6282 = vadd.f32 %v5844, %v6281
        %v6283 = vpop.f32.mrb[0].mxu0
        %v6284 = vadd.f32 %v5848, %v6283
        %6285 = vmatprep.mubr.bf16.mxu0 0
        %6286 = vmatmul.mubr.bf16.gmra.mrb[0].mxu0 %v5831
        %v6287 = vpop.f32.mrb[0].mxu0
        %v6288 = vadd.f32 %v5844, %v6287
        %v6289 = vpop.f32.mrb[0].mxu0
        %v6290 = vadd.f32 %v5848, %v6289
        %v6291 = vpop.f32.mrb[0].mxu0
        %v6292 = vadd.f32 %v5844, %v6291
        %v6293 = vpop.f32.mrb[0].mxu0
        %v6294 = vadd.f32 %v5848, %v6293
        %6295 = vmatprep.mubr.bf16.mxu0 0
        %6296 = vmatmul.mubr.bf16.gmra.mrb[0].mxu0 %v5832
        %v6297 = vpop.f32.mrb[0].mxu0
        %v6298 = vadd.f32 %v5844, %v6297
        %v6299 = vpop.f32.mrb[0].mxu0
        %v6300 = vadd.f32 %v5848, %v6299
        %v6301 = vpop.f32.mrb[0].mxu0
        %v6302 = vadd.f32 %v5844, %v6301
        %v6303 = vpop.f32.mrb[0].mxu0
        %v6304 = vadd.f32 %v5848, %v6303
        %6305 = vmatprep.mubr.bf16.mxu0 0
        %6306 = vmatmul.mubr.bf16.gmra.mrb[0].mxu0 %v5833
        %v6307 = vpop.f32.mrb[0].mxu0
        %v6308 = vadd.f32 %v5844, %v6307
        %v6309 = vpop.f32.mrb[0].mxu0
        %v6310 = vadd.f32 %v5848, %v6309
        %v6311 = vpop.f32.mrb[0].mxu0
        %v6312 = vadd.f32 %v5844, %v6311
        %v6313 = vpop.f32.mrb[0].mxu0
        %v6314 = vadd.f32 %v5848, %v6313
        %6315 = vmatprep.mubr.bf16.mxu0 0
        %6316 = vmatmul.mubr.bf16.gmra.mrb[0].mxu0 %v5834
        %v6317 = vpop.f32.mrb[0].mxu0
        %v6318 = vadd.f32 %v5844, %v6317
        %v6319 = vpop.f32.mrb[0].mxu0
        %v6320 = vadd.f32 %v5848, %v6319
        %v6321 = vpop.f32.mrb[0].mxu0
        %v6322 = vadd.f32 %v5844, %v6321
        %v6323 = vpop.f32.mrb[0].mxu0
        %v6324 = vadd.f32 %v5848, %v6323
        %6325 = vmatprep.mubr.bf16.mxu0 0
        %6326 = vmatmul.mubr.bf16.gmra.mrb[0].mxu0 %v5835
        %v6327 = vpop.f32.mrb[0].mxu0
        %v6328 = vadd.f32 %v5844, %v6327
        %v6329 = vpop.f32.mrb[0].mxu0
        %v6330 = vadd.f32 %v5848, %v6329
        %v6331 = vpop.f32.mrb[0].mxu0
        %v6332 = vadd.f32 %v5844, %v6331
        %v6333 = vpop.f32.mrb[0].mxu0
        %v6334 = vadd.f32 %v5848, %v6333
        %6335 = vmatprep.mubr.bf16.mxu0 0
        %6336 = vmatmul.mubr.bf16.gmra.mrb[0].mxu0 %v5836
        %v6337 = vpop.f32.mrb[0].mxu0
        %v6338 = vadd.f32 %v5844, %v6337
        %v6339 = vpop.f32.mrb[0].mxu0
        %v6340 = vadd.f32 %v5848, %v6339
        %v6341 = vpop.f32.mrb[0].mxu0
        %v6342 = vadd.f32 %v5844, %v6341
        %v6343 = vpop.f32.mrb[0].mxu0
        %v6344 = vadd.f32 %v5848, %v6343
        %6345 = vmatprep.mubr.bf16.mxu0 0
        %6346 = vmatmul.mubr.bf16.gmra.mrb[0].mxu0 %v5837
        %v6347 = vpop.f32.mrb[0].mxu0
        %v6348 = vadd.f32 %v5844, %v6347
        %v6349 = vpop.f32.mrb[0].mxu0
        %v6350 = vadd.f32 %v5848, %v6349
        %v6351 = vpop.f32.mrb[0].mxu0
        %v6352 = vadd.f32 %v5844, %v6351
        %v6353 = vpop.f32.mrb[0].mxu0
        %v6354 = vadd.f32 %v5848, %v6353
        %6355 = vmatprep.mubr.bf16.mxu0 0
        %6356 = vmatmul.mubr.bf16.gmra.mrb[0].mxu0 %v5838
        %v6357 = vpop.f32.mrb[0].mxu0
        %v6358 = vadd.f32 %v5844, %v6357
        %v6359 = vpop.f32.mrb[0].mxu0
        %v6360 = vadd.f32 %v5848, %v6359
        %v6361 = vpop.f32.mrb[0].mxu0
        %v6362 = vadd.f32 %v5844, %v6361
        %v6363 = vpop.f32.mrb[0].mxu0
        %v6364 = vadd.f32 %v5848, %v6363
        %6365 = vmatprep.mubr.bf16.mxu0 0
        %6366 = vmatmul.mubr.bf16.gmra.mrb[0].mxu0 %v5839
        %v6367 = vpop.f32.mrb[0].mxu0
        %v6368 = vadd.f32 %v5844, %v6367
        %v6369 = vpop.f32.mrb[0].mxu0
        %v6370 = vadd.f32 %v5848, %v6369
        %v6371 = vpop.f32.mrb[0].mxu0
        %v6372 = vadd.f32 %v5844, %v6371
        %v6373 = vpop.f32.mrb[0].mxu0
        %v6374 = vadd.f32 %v5848, %v6373
        %6375 = vmatprep.mubr.bf16.mxu0 0
        %6376 = vmatmul.mubr.bf16.gmra.mrb[0].mxu0 %v5840
        %v6377 = vpop.f32.mrb[0].mxu0
        %v6378 = vadd.f32 %v5844, %v6377
        %v6379 = vpop.f32.mrb[0].mxu0
        %v6380 = vadd.f32 %v5848, %v6379
        %v6381 = vpop.f32.mrb[0].mxu0
        %v6382 = vadd.f32 %v5844, %v6381
        %v6383 = vpop.f32.mrb[0].mxu0
        %v6384 = vadd.f32 %v5848, %v6383
        %6385 = vdwg.mxu0
        %6386 = vmatprep.subr.bf16.mxu0 %v6068
        %6387 = vmatpush1.bf16.msra.mxu0 %v6067
        %6388 = vmatprep.subr.bf16.mxu0 %v6076
        %6389 = vmatpush1.bf16.msra.mxu0 %v6075
        %6390 = vmatprep.subr.bf16.mxu0 %v6084
        %6391 = vmatpush1.bf16.msra.mxu0 %v6083
        %6392 = vmatprep.subr.bf16.mxu0 %v6092
        %6393 = vmatpush1.bf16.msra.mxu0 %v6091
        %6394 = vmatprep.subr.bf16.mxu0 %v6100
        %6395 = vmatpush1.bf16.msra.mxu0 %v6099
        %6396 = vmatprep.subr.bf16.mxu0 %v6108
        %6397 = vmatpush1.bf16.msra.mxu0 %v6107
        %6398 = vmatprep.subr.bf16.mxu0 %v6116
        %6399 = vmatpush1.bf16.msra.mxu0 %v6115
        %6400 = vmatprep.subr.bf16.mxu0 %v6124
        %6401 = vmatpush1.bf16.msra.mxu0 %v6123
        %6402 = vmatprep.subr.bf16.mxu0 0
        %6403 = vmatpush1.bf16.msra.mxu0 0
        %6404 = vmatprep.subr.bf16.mxu0 0
        %6405 = vmatpush1.bf16.msra.mxu0 0
        %6406 = vmatprep.subr.bf16.mxu0 0
        %6407 = vmatpush1.bf16.msra.mxu0 0
        %6408 = vmatprep.subr.bf16.mxu0 0
        %6409 = vmatpush1.bf16.msra.mxu0 0
        %6410 = vmatprep.subr.bf16.mxu0 0
        %6411 = vmatpush1.bf16.msra.mxu0 0
        %6412 = vmatprep.subr.bf16.mxu0 0
        %6413 = vmatpush1.bf16.msra.mxu0 0
        %6414 = vmatprep.subr.bf16.mxu0 0
        %6415 = vmatpush1.bf16.msra.mxu0 0
        %6416 = vmatprep.subr.bf16.mxu0 0
        %6417 = vmatpush1.bf16.msra.mxu0 0
        %6418 = vmatprep.mubr.bf16.mxu0 0
        %6419 = vmatmul.mubr.bf16.gmra.mrb[0].mxu0 %v5825
        %v6420 = vpop.f32.mrb[0].mxu0
        %v6421 = vadd.f32 %v5852, %v6420
        %v6422 = vpop.f32.mrb[0].mxu0
        %v6423 = vadd.f32 %v5856, %v6422
        %v6424 = vpop.f32.mrb[0].mxu0
        %v6425 = vadd.f32 %v5852, %v6424
        %v6426 = vpop.f32.mrb[0].mxu0
        %v6427 = vadd.f32 %v5856, %v6426
        %6428 = vmatprep.mubr.bf16.mxu0 0
        %6429 = vmatmul.mubr.bf16.gmra.mrb[0].mxu0 %v5826
        %v6430 = vpop.f32.mrb[0].mxu0
        %v6431 = vadd.f32 %v5852, %v6430
        %v6432 = vpop.f32.mrb[0].mxu0
        %v6433 = vadd.f32 %v5856, %v6432
        %v6434 = vpop.f32.mrb[0].mxu0
        %v6435 = vadd.f32 %v5852, %v6434
        %v6436 = vpop.f32.mrb[0].mxu0
        %v6437 = vadd.f32 %v5856, %v6436
        %6438 = vmatprep.mubr.bf16.mxu0 0
        %6439 = vmatmul.mubr.bf16.gmra.mrb[0].mxu0 %v5827
        %v6440 = vpop.f32.mrb[0].mxu0
        %v6441 = vadd.f32 %v5852, %v6440
        %v6442 = vpop.f32.mrb[0].mxu0
        %v6443 = vadd.f32 %v5856, %v6442
        %v6444 = vpop.f32.mrb[0].mxu0
        %v6445 = vadd.f32 %v5852, %v6444
        %v6446 = vpop.f32.mrb[0].mxu0
        %v6447 = vadd.f32 %v5856, %v6446
        %6448 = vmatprep.mubr.bf16.mxu0 0
        %6449 = vmatmul.mubr.bf16.gmra.mrb[0].mxu0 %v5828
        %v6450 = vpop.f32.mrb[0].mxu0
        %v6451 = vadd.f32 %v5852, %v6450
        %v6452 = vpop.f32.mrb[0].mxu0
        %v6453 = vadd.f32 %v5856, %v6452
        %v6454 = vpop.f32.mrb[0].mxu0
        %v6455 = vadd.f32 %v5852, %v6454
        %v6456 = vpop.f32.mrb[0].mxu0
        %v6457 = vadd.f32 %v5856, %v6456
        %6458 = vmatprep.mubr.bf16.mxu0 0
        %6459 = vmatmul.mubr.bf16.gmra.mrb[0].mxu0 %v5829
        %v6460 = vpop.f32.mrb[0].mxu0
        %v6461 = vadd.f32 %v5852, %v6460
        %v6462 = vpop.f32.mrb[0].mxu0
        %v6463 = vadd.f32 %v5856, %v6462
        %v6464 = vpop.f32.mrb[0].mxu0
        %v6465 = vadd.f32 %v5852, %v6464
        %v6466 = vpop.f32.mrb[0].mxu0
        %v6467 = vadd.f32 %v5856, %v6466
        %6468 = vmatprep.mubr.bf16.mxu0 0
        %6469 = vmatmul.mubr.bf16.gmra.mrb[0].mxu0 %v5830
        %v6470 = vpop.f32.mrb[0].mxu0
        %v6471 = vadd.f32 %v5852, %v6470
        %v6472 = vpop.f32.mrb[0].mxu0
        %v6473 = vadd.f32 %v5856, %v6472
        %v6474 = vpop.f32.mrb[0].mxu0
        %v6475 = vadd.f32 %v5852, %v6474
        %v6476 = vpop.f32.mrb[0].mxu0
        %v6477 = vadd.f32 %v5856, %v6476
        %6478 = vmatprep.mubr.bf16.mxu0 0
        %6479 = vmatmul.mubr.bf16.gmra.mrb[0].mxu0 %v5831
        %v6480 = vpop.f32.mrb[0].mxu0
        %v6481 = vadd.f32 %v5852, %v6480
        %v6482 = vpop.f32.mrb[0].mxu0
        %v6483 = vadd.f32 %v5856, %v6482
        %v6484 = vpop.f32.mrb[0].mxu0
        %v6485 = vadd.f32 %v5852, %v6484
        %v6486 = vpop.f32.mrb[0].mxu0
        %v6487 = vadd.f32 %v5856, %v6486
        %6488 = vmatprep.mubr.bf16.mxu0 0
        %6489 = vmatmul.mubr.bf16.gmra.mrb[0].mxu0 %v5832
        %v6490 = vpop.f32.mrb[0].mxu0
        %v6491 = vadd.f32 %v5852, %v6490
        %v6492 = vpop.f32.mrb[0].mxu0
        %v6493 = vadd.f32 %v5856, %v6492
        %v6494 = vpop.f32.mrb[0].mxu0
        %v6495 = vadd.f32 %v5852, %v6494
        %v6496 = vpop.f32.mrb[0].mxu0
        %v6497 = vadd.f32 %v5856, %v6496
        %6498 = vmatprep.mubr.bf16.mxu0 0
        %6499 = vmatmul.mubr.bf16.gmra.mrb[0].mxu0 %v5833
        %v6500 = vpop.f32.mrb[0].mxu0
        %v6501 = vadd.f32 %v5852, %v6500
        %v6502 = vpop.f32.mrb[0].mxu0
        %v6503 = vadd.f32 %v5856, %v6502
        %v6504 = vpop.f32.mrb[0].mxu0
        %v6505 = vadd.f32 %v5852, %v6504
        %v6506 = vpop.f32.mrb[0].mxu0
        %v6507 = vadd.f32 %v5856, %v6506
        %6508 = vmatprep.mubr.bf16.mxu0 0
        %6509 = vmatmul.mubr.bf16.gmra.mrb[0].mxu0 %v5834
        %v6510 = vpop.f32.mrb[0].mxu0
        %v6511 = vadd.f32 %v5852, %v6510
        %v6512 = vpop.f32.mrb[0].mxu0
        %v6513 = vadd.f32 %v5856, %v6512
        %v6514 = vpop.f32.mrb[0].mxu0
        %v6515 = vadd.f32 %v5852, %v6514
        %v6516 = vpop.f32.mrb[0].mxu0
        %v6517 = vadd.f32 %v5856, %v6516
        %6518 = vmatprep.mubr.bf16.mxu0 0
        %6519 = vmatmul.mubr.bf16.gmra.mrb[0].mxu0 %v5835
        %v6520 = vpop.f32.mrb[0].mxu0
        %v6521 = vadd.f32 %v5852, %v6520
        %v6522 = vpop.f32.mrb[0].mxu0
        %v6523 = vadd.f32 %v5856, %v6522
        %v6524 = vpop.f32.mrb[0].mxu0
        %v6525 = vadd.f32 %v5852, %v6524
        %v6526 = vpop.f32.mrb[0].mxu0
        %v6527 = vadd.f32 %v5856, %v6526
        %6528 = vmatprep.mubr.bf16.mxu0 0
        %6529 = vmatmul.mubr.bf16.gmra.mrb[0].mxu0 %v5836
        %v6530 = vpop.f32.mrb[0].mxu0
        %v6531 = vadd.f32 %v5852, %v6530
        %v6532 = vpop.f32.mrb[0].mxu0
        %v6533 = vadd.f32 %v5856, %v6532
        %v6534 = vpop.f32.mrb[0].mxu0
        %v6535 = vadd.f32 %v5852, %v6534
        %v6536 = vpop.f32.mrb[0].mxu0
        %v6537 = vadd.f32 %v5856, %v6536
        %6538 = vmatprep.mubr.bf16.mxu0 0
        %6539 = vmatmul.mubr.bf16.gmra.mrb[0].mxu0 %v5837
        %v6540 = vpop.f32.mrb[0].mxu0
        %v6541 = vadd.f32 %v5852, %v6540
        %v6542 = vpop.f32.mrb[0].mxu0
        %v6543 = vadd.f32 %v5856, %v6542
        %v6544 = vpop.f32.mrb[0].mxu0
        %v6545 = vadd.f32 %v5852, %v6544
        %v6546 = vpop.f32.mrb[0].mxu0
        %v6547 = vadd.f32 %v5856, %v6546
        %6548 = vmatprep.mubr.bf16.mxu0 0
        %6549 = vmatmul.mubr.bf16.gmra.mrb[0].mxu0 %v5838
        %v6550 = vpop.f32.mrb[0].mxu0
        %v6551 = vadd.f32 %v5852, %v6550
        %v6552 = vpop.f32.mrb[0].mxu0
        %v6553 = vadd.f32 %v5856, %v6552
        %v6554 = vpop.f32.mrb[0].mxu0
        %v6555 = vadd.f32 %v5852, %v6554
        %v6556 = vpop.f32.mrb[0].mxu0
        %v6557 = vadd.f32 %v5856, %v6556
        %6558 = vmatprep.mubr.bf16.mxu0 0
        %6559 = vmatmul.mubr.bf16.gmra.mrb[0].mxu0 %v5839
        %v6560 = vpop.f32.mrb[0].mxu0
        %v6561 = vadd.f32 %v5852, %v6560
        %v6562 = vpop.f32.mrb[0].mxu0
        %v6563 = vadd.f32 %v5856, %v6562
        %v6564 = vpop.f32.mrb[0].mxu0
        %v6565 = vadd.f32 %v5852, %v6564
        %v6566 = vpop.f32.mrb[0].mxu0
        %v6567 = vadd.f32 %v5856, %v6566
        %6568 = vmatprep.mubr.bf16.mxu0 0
        %6569 = vmatmul.mubr.bf16.gmra.mrb[0].mxu0 %v5840
        %v6570 = vpop.f32.mrb[0].mxu0
        %v6571 = vadd.f32 %v5852, %v6570
        %v6572 = vpop.f32.mrb[0].mxu0
        %v6573 = vadd.f32 %v5856, %v6572
        %v6574 = vpop.f32.mrb[0].mxu0
        %v6575 = vadd.f32 %v5852, %v6574
        %v6576 = vpop.f32.mrb[0].mxu0
        %v6577 = vadd.f32 %v5856, %v6576
        %6578 = vdwg.mxu0
        %6579 = vmatprep.subr.bf16.mxu0 %v6070
        %6580 = vmatpush1.bf16.msra.mxu0 %v6069
        %6581 = vmatprep.subr.bf16.mxu0 %v6078
        %6582 = vmatpush1.bf16.msra.mxu0 %v6077
        %6583 = vmatprep.subr.bf16.mxu0 %v6086
        %6584 = vmatpush1.bf16.msra.mxu0 %v6085
        %6585 = vmatprep.subr.bf16.mxu0 %v6094
        %6586 = vmatpush1.bf16.msra.mxu0 %v6093
        %6587 = vmatprep.subr.bf16.mxu0 %v6102
        %6588 = vmatpush1.bf16.msra.mxu0 %v6101
        %6589 = vmatprep.subr.bf16.mxu0 %v6110
        %6590 = vmatpush1.bf16.msra.mxu0 %v6109
        %6591 = vmatprep.subr.bf16.mxu0 %v6118
        %6592 = vmatpush1.bf16.msra.mxu0 %v6117
        %6593 = vmatprep.subr.bf16.mxu0 %v6126
        %6594 = vmatpush1.bf16.msra.mxu0 %v6125
        %6595 = vmatprep.subr.bf16.mxu0 0
        %6596 = vmatpush1.bf16.msra.mxu0 0
        %6597 = vmatprep.subr.bf16.mxu0 0
        %6598 = vmatpush1.bf16.msra.mxu0 0
        %6599 = vmatprep.subr.bf16.mxu0 0
        %6600 = vmatpush1.bf16.msra.mxu0 0
        %6601 = vmatprep.subr.bf16.mxu0 0
        %6602 = vmatpush1.bf16.msra.mxu0 0
        %6603 = vmatprep.subr.bf16.mxu0 0
        %6604 = vmatpush1.bf16.msra.mxu0 0
        %6605 = vmatprep.subr.bf16.mxu0 0
        %6606 = vmatpush1.bf16.msra.mxu0 0
        %6607 = vmatprep.subr.bf16.mxu0 0
        %6608 = vmatpush1.bf16.msra.mxu0 0
        %6609 = vmatprep.subr.bf16.mxu0 0
        %6610 = vmatpush1.bf16.msra.mxu0 0
        %6611 = vmatprep.mubr.bf16.mxu0 0
        %6612 = vmatmul.mubr.bf16.gmra.mrb[0].mxu0 %v5825
        %v6613 = vpop.f32.mrb[0].mxu0
        %v6614 = vadd.f32 %v5860, %v6613
        %v6615 = vpop.f32.mrb[0].mxu0
        %v6616 = vadd.f32 %v5864, %v6615
        %v6617 = vpop.f32.mrb[0].mxu0
        %v6618 = vadd.f32 %v5860, %v6617
        %v6619 = vpop.f32.mrb[0].mxu0
        %v6620 = vadd.f32 %v5864, %v6619
        %6621 = vmatprep.mubr.bf16.mxu0 0
        %6622 = vmatmul.mubr.bf16.gmra.mrb[0].mxu0 %v5826
        %v6623 = vpop.f32.mrb[0].mxu0
        %v6624 = vadd.f32 %v5860, %v6623
        %v6625 = vpop.f32.mrb[0].mxu0
        %v6626 = vadd.f32 %v5864, %v6625
        %v6627 = vpop.f32.mrb[0].mxu0
        %v6628 = vadd.f32 %v5860, %v6627
        %v6629 = vpop.f32.mrb[0].mxu0
        %v6630 = vadd.f32 %v5864, %v6629
        %6631 = vmatprep.mubr.bf16.mxu0 0
        %6632 = vmatmul.mubr.bf16.gmra.mrb[0].mxu0 %v5827
        %v6633 = vpop.f32.mrb[0].mxu0
        %v6634 = vadd.f32 %v5860, %v6633
        %v6635 = vpop.f32.mrb[0].mxu0
        %v6636 = vadd.f32 %v5864, %v6635
        %v6637 = vpop.f32.mrb[0].mxu0
        %v6638 = vadd.f32 %v5860, %v6637
        %v6639 = vpop.f32.mrb[0].mxu0
        %v6640 = vadd.f32 %v5864, %v6639
        %6641 = vmatprep.mubr.bf16.mxu0 0
        %6642 = vmatmul.mubr.bf16.gmra.mrb[0].mxu0 %v5828
        %v6643 = vpop.f32.mrb[0].mxu0
        %v6644 = vadd.f32 %v5860, %v6643
        %v6645 = vpop.f32.mrb[0].mxu0
        %v6646 = vadd.f32 %v5864, %v6645
        %v6647 = vpop.f32.mrb[0].mxu0
        %v6648 = vadd.f32 %v5860, %v6647
        %v6649 = vpop.f32.mrb[0].mxu0
        %v6650 = vadd.f32 %v5864, %v6649
        %6651 = vmatprep.mubr.bf16.mxu0 0
        %6652 = vmatmul.mubr.bf16.gmra.mrb[0].mxu0 %v5829
        %v6653 = vpop.f32.mrb[0].mxu0
        %v6654 = vadd.f32 %v5860, %v6653
        %v6655 = vpop.f32.mrb[0].mxu0
        %v6656 = vadd.f32 %v5864, %v6655
        %v6657 = vpop.f32.mrb[0].mxu0
        %v6658 = vadd.f32 %v5860, %v6657
        %v6659 = vpop.f32.mrb[0].mxu0
        %v6660 = vadd.f32 %v5864, %v6659
        %6661 = vmatprep.mubr.bf16.mxu0 0
        %6662 = vmatmul.mubr.bf16.gmra.mrb[0].mxu0 %v5830
        %v6663 = vpop.f32.mrb[0].mxu0
        %v6664 = vadd.f32 %v5860, %v6663
        %v6665 = vpop.f32.mrb[0].mxu0
        %v6666 = vadd.f32 %v5864, %v6665
        %v6667 = vpop.f32.mrb[0].mxu0
        %v6668 = vadd.f32 %v5860, %v6667
        %v6669 = vpop.f32.mrb[0].mxu0
        %v6670 = vadd.f32 %v5864, %v6669
        %6671 = vmatprep.mubr.bf16.mxu0 0
        %6672 = vmatmul.mubr.bf16.gmra.mrb[0].mxu0 %v5831
        %v6673 = vpop.f32.mrb[0].mxu0
        %v6674 = vadd.f32 %v5860, %v6673
        %v6675 = vpop.f32.mrb[0].mxu0
        %v6676 = vadd.f32 %v5864, %v6675
        %v6677 = vpop.f32.mrb[0].mxu0
        %v6678 = vadd.f32 %v5860, %v6677
        %v6679 = vpop.f32.mrb[0].mxu0
        %v6680 = vadd.f32 %v5864, %v6679
        %6681 = vmatprep.mubr.bf16.mxu0 0
        %6682 = vmatmul.mubr.bf16.gmra.mrb[0].mxu0 %v5832
        %v6683 = vpop.f32.mrb[0].mxu0
        %v6684 = vadd.f32 %v5860, %v6683
        %v6685 = vpop.f32.mrb[0].mxu0
        %v6686 = vadd.f32 %v5864, %v6685
        %v6687 = vpop.f32.mrb[0].mxu0
        %v6688 = vadd.f32 %v5860, %v6687
        %v6689 = vpop.f32.mrb[0].mxu0
        %v6690 = vadd.f32 %v5864, %v6689
        %6691 = vmatprep.mubr.bf16.mxu0 0
        %6692 = vmatmul.mubr.bf16.gmra.mrb[0].mxu0 %v5833
        %v6693 = vpop.f32.mrb[0].mxu0
        %v6694 = vadd.f32 %v5860, %v6693
        %v6695 = vpop.f32.mrb[0].mxu0
        %v6696 = vadd.f32 %v5864, %v6695
        %v6697 = vpop.f32.mrb[0].mxu0
        %v6698 = vadd.f32 %v5860, %v6697
        %v6699 = vpop.f32.mrb[0].mxu0
        %v6700 = vadd.f32 %v5864, %v6699
        %6701 = vmatprep.mubr.bf16.mxu0 0
        %6702 = vmatmul.mubr.bf16.gmra.mrb[0].mxu0 %v5834
        %v6703 = vpop.f32.mrb[0].mxu0
        %v6704 = vadd.f32 %v5860, %v6703
        %v6705 = vpop.f32.mrb[0].mxu0
        %v6706 = vadd.f32 %v5864, %v6705
        %v6707 = vpop.f32.mrb[0].mxu0
        %v6708 = vadd.f32 %v5860, %v6707
        %v6709 = vpop.f32.mrb[0].mxu0
        %v6710 = vadd.f32 %v5864, %v6709
        %6711 = vmatprep.mubr.bf16.mxu0 0
        %6712 = vmatmul.mubr.bf16.gmra.mrb[0].mxu0 %v5835
        %v6713 = vpop.f32.mrb[0].mxu0
        %v6714 = vadd.f32 %v5860, %v6713
        %v6715 = vpop.f32.mrb[0].mxu0
        %v6716 = vadd.f32 %v5864, %v6715
        %v6717 = vpop.f32.mrb[0].mxu0
        %v6718 = vadd.f32 %v5860, %v6717
        %v6719 = vpop.f32.mrb[0].mxu0
        %v6720 = vadd.f32 %v5864, %v6719
        %6721 = vmatprep.mubr.bf16.mxu0 0
        %6722 = vmatmul.mubr.bf16.gmra.mrb[0].mxu0 %v5836
        %v6723 = vpop.f32.mrb[0].mxu0
        %v6724 = vadd.f32 %v5860, %v6723
        %v6725 = vpop.f32.mrb[0].mxu0
        %v6726 = vadd.f32 %v5864, %v6725
        %v6727 = vpop.f32.mrb[0].mxu0
        %v6728 = vadd.f32 %v5860, %v6727
        %v6729 = vpop.f32.mrb[0].mxu0
        %v6730 = vadd.f32 %v5864, %v6729
        %6731 = vmatprep.mubr.bf16.mxu0 0
        %6732 = vmatmul.mubr.bf16.gmra.mrb[0].mxu0 %v5837
        %v6733 = vpop.f32.mrb[0].mxu0
        %v6734 = vadd.f32 %v5860, %v6733
        %v6735 = vpop.f32.mrb[0].mxu0
        %v6736 = vadd.f32 %v5864, %v6735
        %v6737 = vpop.f32.mrb[0].mxu0
        %v6738 = vadd.f32 %v5860, %v6737
        %v6739 = vpop.f32.mrb[0].mxu0
        %v6740 = vadd.f32 %v5864, %v6739
        %6741 = vmatprep.mubr.bf16.mxu0 0
        %6742 = vmatmul.mubr.bf16.gmra.mrb[0].mxu0 %v5838
        %v6743 = vpop.f32.mrb[0].mxu0
        %v6744 = vadd.f32 %v5860, %v6743
        %v6745 = vpop.f32.mrb[0].mxu0
        %v6746 = vadd.f32 %v5864, %v6745
        %v6747 = vpop.f32.mrb[0].mxu0
        %v6748 = vadd.f32 %v5860, %v6747
        %v6749 = vpop.f32.mrb[0].mxu0
        %v6750 = vadd.f32 %v5864, %v6749
        %6751 = vmatprep.mubr.bf16.mxu0 0
        %6752 = vmatmul.mubr.bf16.gmra.mrb[0].mxu0 %v5839
        %v6753 = vpop.f32.mrb[0].mxu0
        %v6754 = vadd.f32 %v5860, %v6753
        %v6755 = vpop.f32.mrb[0].mxu0
        %v6756 = vadd.f32 %v5864, %v6755
        %v6757 = vpop.f32.mrb[0].mxu0
        %v6758 = vadd.f32 %v5860, %v6757
        %v6759 = vpop.f32.mrb[0].mxu0
        %v6760 = vadd.f32 %v5864, %v6759
        %6761 = vmatprep.mubr.bf16.mxu0 0
        %6762 = vmatmul.mubr.bf16.gmra.mrb[0].mxu0 %v5840
        %v6763 = vpop.f32.mrb[0].mxu0
        %v6764 = vadd.f32 %v5860, %v6763
        %v6765 = vpop.f32.mrb[0].mxu0
        %v6766 = vadd.f32 %v5864, %v6765
        %v6767 = vpop.f32.mrb[0].mxu0
        %v6768 = vadd.f32 %v5860, %v6767
        %v6769 = vpop.f32.mrb[0].mxu0
        %v6770 = vadd.f32 %v5864, %v6769
        %6771 = vdwg.mxu0
        %6772 = vmatprep.subr.bf16.mxu0 %v6072
        %6773 = vmatpush1.bf16.msra.mxu0 %v6071
        %6774 = vmatprep.subr.bf16.mxu0 %v6080
        %6775 = vmatpush1.bf16.msra.mxu0 %v6079
        %6776 = vmatprep.subr.bf16.mxu0 %v6088
        %6777 = vmatpush1.bf16.msra.mxu0 %v6087
        %6778 = vmatprep.subr.bf16.mxu0 %v6096
        %6779 = vmatpush1.bf16.msra.mxu0 %v6095
        %6780 = vmatprep.subr.bf16.mxu0 %v6104
        %6781 = vmatpush1.bf16.msra.mxu0 %v6103
        %6782 = vmatprep.subr.bf16.mxu0 %v6112
        %6783 = vmatpush1.bf16.msra.mxu0 %v6111
        %6784 = vmatprep.subr.bf16.mxu0 %v6120
        %6785 = vmatpush1.bf16.msra.mxu0 %v6119
        %6786 = vmatprep.subr.bf16.mxu0 %v6128
        %6787 = vmatpush1.bf16.msra.mxu0 %v6127
        %6788 = vmatprep.subr.bf16.mxu0 0
        %6789 = vmatpush1.bf16.msra.mxu0 0
        %6790 = vmatprep.subr.bf16.mxu0 0
        %6791 = vmatpush1.bf16.msra.mxu0 0
        %6792 = vmatprep.subr.bf16.mxu0 0
        %6793 = vmatpush1.bf16.msra.mxu0 0
        %6794 = vmatprep.subr.bf16.mxu0 0
        %6795 = vmatpush1.bf16.msra.mxu0 0
        %6796 = vmatprep.subr.bf16.mxu0 0
        %6797 = vmatpush1.bf16.msra.mxu0 0
        %6798 = vmatprep.subr.bf16.mxu0 0
        %6799 = vmatpush1.bf16.msra.mxu0 0
        %6800 = vmatprep.subr.bf16.mxu0 0
        %6801 = vmatpush1.bf16.msra.mxu0 0
        %6802 = vmatprep.subr.bf16.mxu0 0
        %6803 = vmatpush1.bf16.msra.mxu0 0
        %6804 = vmatprep.mubr.bf16.mxu0 0
        %6805 = vmatmul.mubr.bf16.gmra.mrb[0].mxu0 %v5825
        %v6806 = vpop.f32.mrb[0].mxu0
        %v6807 = vadd.f32 %v5868, %v6806
        %v6808 = vpop.f32.mrb[0].mxu0
        %v6809 = vadd.f32 %v5872, %v6808
        %v6810 = vpop.f32.mrb[0].mxu0
        %v6811 = vadd.f32 %v5868, %v6810
        %v6812 = vpop.f32.mrb[0].mxu0
        %v6813 = vadd.f32 %v5872, %v6812
        %6814 = vmatprep.mubr.bf16.mxu0 0
        %6815 = vmatmul.mubr.bf16.gmra.mrb[0].mxu0 %v5826
        %v6816 = vpop.f32.mrb[0].mxu0
        %v6817 = vadd.f32 %v5868, %v6816
        %v6818 = vpop.f32.mrb[0].mxu0
        %v6819 = vadd.f32 %v5872, %v6818
        %v6820 = vpop.f32.mrb[0].mxu0
        %v6821 = vadd.f32 %v5868, %v6820
        %v6822 = vpop.f32.mrb[0].mxu0
        %v6823 = vadd.f32 %v5872, %v6822
        %6824 = vmatprep.mubr.bf16.mxu0 0
        %6825 = vmatmul.mubr.bf16.gmra.mrb[0].mxu0 %v5827
        %v6826 = vpop.f32.mrb[0].mxu0
        %v6827 = vadd.f32 %v5868, %v6826
        %v6828 = vpop.f32.mrb[0].mxu0
        %v6829 = vadd.f32 %v5872, %v6828
        %v6830 = vpop.f32.mrb[0].mxu0
        %v6831 = vadd.f32 %v5868, %v6830
        %v6832 = vpop.f32.mrb[0].mxu0
        %v6833 = vadd.f32 %v5872, %v6832
        %6834 = vmatprep.mubr.bf16.mxu0 0
        %6835 = vmatmul.mubr.bf16.gmra.mrb[0].mxu0 %v5828
        %v6836 = vpop.f32.mrb[0].mxu0
        %v6837 = vadd.f32 %v5868, %v6836
        %v6838 = vpop.f32.mrb[0].mxu0
        %v6839 = vadd.f32 %v5872, %v6838
        %v6840 = vpop.f32.mrb[0].mxu0
        %v6841 = vadd.f32 %v5868, %v6840
        %v6842 = vpop.f32.mrb[0].mxu0
        %v6843 = vadd.f32 %v5872, %v6842
        %6844 = vmatprep.mubr.bf16.mxu0 0
        %6845 = vmatmul.mubr.bf16.gmra.mrb[0].mxu0 %v5829
        %v6846 = vpop.f32.mrb[0].mxu0
        %v6847 = vadd.f32 %v5868, %v6846
        %v6848 = vpop.f32.mrb[0].mxu0
        %v6849 = vadd.f32 %v5872, %v6848
        %v6850 = vpop.f32.mrb[0].mxu0
        %v6851 = vadd.f32 %v5868, %v6850
        %v6852 = vpop.f32.mrb[0].mxu0
        %v6853 = vadd.f32 %v5872, %v6852
        %6854 = vmatprep.mubr.bf16.mxu0 0
        %6855 = vmatmul.mubr.bf16.gmra.mrb[0].mxu0 %v5830
        %v6856 = vpop.f32.mrb[0].mxu0
        %v6857 = vadd.f32 %v5868, %v6856
        %v6858 = vpop.f32.mrb[0].mxu0
        %v6859 = vadd.f32 %v5872, %v6858
        %v6860 = vpop.f32.mrb[0].mxu0
        %v6861 = vadd.f32 %v5868, %v6860
        %v6862 = vpop.f32.mrb[0].mxu0
        %v6863 = vadd.f32 %v5872, %v6862
        %6864 = vmatprep.mubr.bf16.mxu0 0
        %6865 = vmatmul.mubr.bf16.gmra.mrb[0].mxu0 %v5831
        %v6866 = vpop.f32.mrb[0].mxu0
        %v6867 = vadd.f32 %v5868, %v6866
        %v6868 = vpop.f32.mrb[0].mxu0
        %v6869 = vadd.f32 %v5872, %v6868
        %v6870 = vpop.f32.mrb[0].mxu0
        %v6871 = vadd.f32 %v5868, %v6870
        %v6872 = vpop.f32.mrb[0].mxu0
        %v6873 = vadd.f32 %v5872, %v6872
        %6874 = vmatprep.mubr.bf16.mxu0 0
        %6875 = vmatmul.mubr.bf16.gmra.mrb[0].mxu0 %v5832
        %v6876 = vpop.f32.mrb[0].mxu0
        %v6877 = vadd.f32 %v5868, %v6876
        %v6878 = vpop.f32.mrb[0].mxu0
        %v6879 = vadd.f32 %v5872, %v6878
        %v6880 = vpop.f32.mrb[0].mxu0
        %v6881 = vadd.f32 %v5868, %v6880
        %v6882 = vpop.f32.mrb[0].mxu0
        %v6883 = vadd.f32 %v5872, %v6882
        %6884 = vmatprep.mubr.bf16.mxu0 0
        %6885 = vmatmul.mubr.bf16.gmra.mrb[0].mxu0 %v5833
        %v6886 = vpop.f32.mrb[0].mxu0
        %v6887 = vadd.f32 %v5868, %v6886
        %v6888 = vpop.f32.mrb[0].mxu0
        %v6889 = vadd.f32 %v5872, %v6888
        %v6890 = vpop.f32.mrb[0].mxu0
        %v6891 = vadd.f32 %v5868, %v6890
        %v6892 = vpop.f32.mrb[0].mxu0
        %v6893 = vadd.f32 %v5872, %v6892
        %6894 = vmatprep.mubr.bf16.mxu0 0
        %6895 = vmatmul.mubr.bf16.gmra.mrb[0].mxu0 %v5834
        %v6896 = vpop.f32.mrb[0].mxu0
        %v6897 = vadd.f32 %v5868, %v6896
        %v6898 = vpop.f32.mrb[0].mxu0
        %v6899 = vadd.f32 %v5872, %v6898
        %v6900 = vpop.f32.mrb[0].mxu0
        %v6901 = vadd.f32 %v5868, %v6900
        %v6902 = vpop.f32.mrb[0].mxu0
        %v6903 = vadd.f32 %v5872, %v6902
        %6904 = vmatprep.mubr.bf16.mxu0 0
        %6905 = vmatmul.mubr.bf16.gmra.mrb[0].mxu0 %v5835
        %v6906 = vpop.f32.mrb[0].mxu0
        %v6907 = vadd.f32 %v5868, %v6906
        %v6908 = vpop.f32.mrb[0].mxu0
        %v6909 = vadd.f32 %v5872, %v6908
        %v6910 = vpop.f32.mrb[0].mxu0
        %v6911 = vadd.f32 %v5868, %v6910
        %v6912 = vpop.f32.mrb[0].mxu0
        %v6913 = vadd.f32 %v5872, %v6912
        %6914 = vmatprep.mubr.bf16.mxu0 0
        %6915 = vmatmul.mubr.bf16.gmra.mrb[0].mxu0 %v5836
        %v6916 = vpop.f32.mrb[0].mxu0
        %v6917 = vadd.f32 %v5868, %v6916
        %v6918 = vpop.f32.mrb[0].mxu0
        %v6919 = vadd.f32 %v5872, %v6918
        %v6920 = vpop.f32.mrb[0].mxu0
        %v6921 = vadd.f32 %v5868, %v6920
        %v6922 = vpop.f32.mrb[0].mxu0
        %v6923 = vadd.f32 %v5872, %v6922
        %6924 = vmatprep.mubr.bf16.mxu0 0
        %6925 = vmatmul.mubr.bf16.gmra.mrb[0].mxu0 %v5837
        %v6926 = vpop.f32.mrb[0].mxu0
        %v6927 = vadd.f32 %v5868, %v6926
        %v6928 = vpop.f32.mrb[0].mxu0
        %v6929 = vadd.f32 %v5872, %v6928
        %v6930 = vpop.f32.mrb[0].mxu0
        %v6931 = vadd.f32 %v5868, %v6930
        %v6932 = vpop.f32.mrb[0].mxu0
        %v6933 = vadd.f32 %v5872, %v6932
        %6934 = vmatprep.mubr.bf16.mxu0 0
        %6935 = vmatmul.mubr.bf16.gmra.mrb[0].mxu0 %v5838
        %v6936 = vpop.f32.mrb[0].mxu0
        %v6937 = vadd.f32 %v5868, %v6936
        %v6938 = vpop.f32.mrb[0].mxu0
        %v6939 = vadd.f32 %v5872, %v6938
        %v6940 = vpop.f32.mrb[0].mxu0
        %v6941 = vadd.f32 %v5868, %v6940
        %v6942 = vpop.f32.mrb[0].mxu0
        %v6943 = vadd.f32 %v5872, %v6942
        %6944 = vmatprep.mubr.bf16.mxu0 0
        %6945 = vmatmul.mubr.bf16.gmra.mrb[0].mxu0 %v5839
        %v6946 = vpop.f32.mrb[0].mxu0
        %v6947 = vadd.f32 %v5868, %v6946
        %v6948 = vpop.f32.mrb[0].mxu0
        %v6949 = vadd.f32 %v5872, %v6948
        %v6950 = vpop.f32.mrb[0].mxu0
        %v6951 = vadd.f32 %v5868, %v6950
        %v6952 = vpop.f32.mrb[0].mxu0
        %v6953 = vadd.f32 %v5872, %v6952
        %6954 = vmatprep.mubr.bf16.mxu0 0
        %6955 = vmatmul.mubr.bf16.gmra.mrb[0].mxu0 %v5840
        %v6956 = vpop.f32.mrb[0].mxu0
        %v6957 = vadd.f32 %v5868, %v6956
        %v6958 = vpop.f32.mrb[0].mxu0
        %v6959 = vadd.f32 %v5872, %v6958
        %v6960 = vpop.f32.mrb[0].mxu0
        %v6961 = vadd.f32 %v5868, %v6960
        %v6962 = vpop.f32.mrb[0].mxu0
        %v6963 = vadd.f32 %v5872, %v6962
        %6964 = vdwg.mxu0
        %v6965 = vmax.f32 %v6228, 0.0
        %v6966 = vmax.f32 %v6230, 0.0
        %v6967 = vmax.f32 %v6421, 0.0
        %v6968 = vmax.f32 %v6423, 0.0
        %v6969 = vmax.f32 %v6614, 0.0
        %v6970 = vmax.f32 %v6616, 0.0
        %v6971 = vmax.f32 %v6807, 0.0
        %v6972 = vmax.f32 %v6809, 0.0
        %v6973 = vmax.f32 %v6232, 0.0
        %v6974 = vmax.f32 %v6234, 0.0
        %v6975 = vmax.f32 %v6425, 0.0
        %v6976 = vmax.f32 %v6427, 0.0
        %v6977 = vmax.f32 %v6618, 0.0
        %v6978 = vmax.f32 %v6620, 0.0
        %v6979 = vmax.f32 %v6811, 0.0
        %v6980 = vmax.f32 %v6813, 0.0
        %v6981 = vmax.f32 %v6238, 0.0
        %v6982 = vmax.f32 %v6240, 0.0
        %v6983 = vmax.f32 %v6431, 0.0
        %v6984 = vmax.f32 %v6433, 0.0
        %v6985 = vmax.f32 %v6624, 0.0
        %v6986 = vmax.f32 %v6626, 0.0
        %v6987 = vmax.f32 %v6817, 0.0
        %v6988 = vmax.f32 %v6819, 0.0
        %v6989 = vmax.f32 %v6242, 0.0
        %v6990 = vmax.f32 %v6244, 0.0
        %v6991 = vmax.f32 %v6435, 0.0
        %v6992 = vmax.f32 %v6437, 0.0
        %v6993 = vmax.f32 %v6628, 0.0
        %v6994 = vmax.f32 %v6630, 0.0
        %v6995 = vmax.f32 %v6821, 0.0
        %v6996 = vmax.f32 %v6823, 0.0
        %v6997 = vmax.f32 %v6248, 0.0
        %v6998 = vmax.f32 %v6250, 0.0
        %v6999 = vmax.f32 %v6441, 0.0
        %v7000 = vmax.f32 %v6443, 0.0
        %v7001 = vmax.f32 %v6634, 0.0
        %v7002 = vmax.f32 %v6636, 0.0
        %v7003 = vmax.f32 %v6827, 0.0
        %v7004 = vmax.f32 %v6829, 0.0
        %v7005 = vmax.f32 %v6252, 0.0
        %v7006 = vmax.f32 %v6254, 0.0
        %v7007 = vmax.f32 %v6445, 0.0
        %v7008 = vmax.f32 %v6447, 0.0
        %v7009 = vmax.f32 %v6638, 0.0
        %v7010 = vmax.f32 %v6640, 0.0
        %v7011 = vmax.f32 %v6831, 0.0
        %v7012 = vmax.f32 %v6833, 0.0
        %v7013 = vmax.f32 %v6258, 0.0
        %v7014 = vmax.f32 %v6260, 0.0
        %v7015 = vmax.f32 %v6451, 0.0
        %v7016 = vmax.f32 %v6453, 0.0
        %v7017 = vmax.f32 %v6644, 0.0
        %v7018 = vmax.f32 %v6646, 0.0
        %v7019 = vmax.f32 %v6837, 0.0
        %v7020 = vmax.f32 %v6839, 0.0
        %v7021 = vmax.f32 %v6262, 0.0
        %v7022 = vmax.f32 %v6264, 0.0
        %v7023 = vmax.f32 %v6455, 0.0
        %v7024 = vmax.f32 %v6457, 0.0
        %v7025 = vmax.f32 %v6648, 0.0
        %v7026 = vmax.f32 %v6650, 0.0
        %v7027 = vmax.f32 %v6841, 0.0
        %v7028 = vmax.f32 %v6843, 0.0
        %v7029 = vmax.f32 %v6268, 0.0
        %v7030 = vmax.f32 %v6270, 0.0
        %v7031 = vmax.f32 %v6461, 0.0
        %v7032 = vmax.f32 %v6463, 0.0
        %v7033 = vmax.f32 %v6654, 0.0
        %v7034 = vmax.f32 %v6656, 0.0
        %v7035 = vmax.f32 %v6847, 0.0
        %v7036 = vmax.f32 %v6849, 0.0
        %v7037 = vmax.f32 %v6272, 0.0
        %v7038 = vmax.f32 %v6274, 0.0
        %v7039 = vmax.f32 %v6465, 0.0
        %v7040 = vmax.f32 %v6467, 0.0
        %v7041 = vmax.f32 %v6658, 0.0
        %v7042 = vmax.f32 %v6660, 0.0
        %v7043 = vmax.f32 %v6851, 0.0
        %v7044 = vmax.f32 %v6853, 0.0
        %v7045 = vmax.f32 %v6278, 0.0
        %v7046 = vmax.f32 %v6280, 0.0
        %v7047 = vmax.f32 %v6471, 0.0
        %v7048 = vmax.f32 %v6473, 0.0
        %v7049 = vmax.f32 %v6664, 0.0
        %v7050 = vmax.f32 %v6666, 0.0
        %v7051 = vmax.f32 %v6857, 0.0
        %v7052 = vmax.f32 %v6859, 0.0
        %v7053 = vmax.f32 %v6282, 0.0
        %v7054 = vmax.f32 %v6284, 0.0
        %v7055 = vmax.f32 %v6475, 0.0
        %v7056 = vmax.f32 %v6477, 0.0
        %v7057 = vmax.f32 %v6668, 0.0
        %v7058 = vmax.f32 %v6670, 0.0
        %v7059 = vmax.f32 %v6861, 0.0
        %v7060 = vmax.f32 %v6863, 0.0
        %v7061 = vmax.f32 %v6288, 0.0
        %v7062 = vmax.f32 %v6290, 0.0
        %v7063 = vmax.f32 %v6481, 0.0
        %v7064 = vmax.f32 %v6483, 0.0
        %v7065 = vmax.f32 %v6674, 0.0
        %v7066 = vmax.f32 %v6676, 0.0
        %v7067 = vmax.f32 %v6867, 0.0
        %v7068 = vmax.f32 %v6869, 0.0
        %v7069 = vmax.f32 %v6292, 0.0
        %v7070 = vmax.f32 %v6294, 0.0
        %v7071 = vmax.f32 %v6485, 0.0
        %v7072 = vmax.f32 %v6487, 0.0
        %v7073 = vmax.f32 %v6678, 0.0
        %v7074 = vmax.f32 %v6680, 0.0
        %v7075 = vmax.f32 %v6871, 0.0
        %v7076 = vmax.f32 %v6873, 0.0
        %v7077 = vmax.f32 %v6298, 0.0
        %v7078 = vmax.f32 %v6300, 0.0
        %v7079 = vmax.f32 %v6491, 0.0
        %v7080 = vmax.f32 %v6493, 0.0
        %v7081 = vmax.f32 %v6684, 0.0
        %v7082 = vmax.f32 %v6686, 0.0
        %v7083 = vmax.f32 %v6877, 0.0
        %v7084 = vmax.f32 %v6879, 0.0
        %v7085 = vmax.f32 %v6302, 0.0
        %v7086 = vmax.f32 %v6304, 0.0
        %v7087 = vmax.f32 %v6495, 0.0
        %v7088 = vmax.f32 %v6497, 0.0
        %v7089 = vmax.f32 %v6688, 0.0
        %v7090 = vmax.f32 %v6690, 0.0
        %v7091 = vmax.f32 %v6881, 0.0
        %v7092 = vmax.f32 %v6883, 0.0
        %v7093 = vmax.f32 %v6308, 0.0
        %v7094 = vmax.f32 %v6310, 0.0
        %v7095 = vmax.f32 %v6501, 0.0
        %v7096 = vmax.f32 %v6503, 0.0
        %v7097 = vmax.f32 %v6694, 0.0
        %v7098 = vmax.f32 %v6696, 0.0
        %v7099 = vmax.f32 %v6887, 0.0
        %v7100 = vmax.f32 %v6889, 0.0
        %v7101 = vmax.f32 %v6312, 0.0
        %v7102 = vmax.f32 %v6314, 0.0
        %v7103 = vmax.f32 %v6505, 0.0
        %v7104 = vmax.f32 %v6507, 0.0
        %v7105 = vmax.f32 %v6698, 0.0
        %v7106 = vmax.f32 %v6700, 0.0
        %v7107 = vmax.f32 %v6891, 0.0
        %v7108 = vmax.f32 %v6893, 0.0
        %v7109 = vmax.f32 %v6318, 0.0
        %v7110 = vmax.f32 %v6320, 0.0
        %v7111 = vmax.f32 %v6511, 0.0
        %v7112 = vmax.f32 %v6513, 0.0
        %v7113 = vmax.f32 %v6704, 0.0
        %v7114 = vmax.f32 %v6706, 0.0
        %v7115 = vmax.f32 %v6897, 0.0
        %v7116 = vmax.f32 %v6899, 0.0
        %v7117 = vmax.f32 %v6322, 0.0
        %v7118 = vmax.f32 %v6324, 0.0
        %v7119 = vmax.f32 %v6515, 0.0
        %v7120 = vmax.f32 %v6517, 0.0
        %v7121 = vmax.f32 %v6708, 0.0
        %v7122 = vmax.f32 %v6710, 0.0
        %v7123 = vmax.f32 %v6901, 0.0
        %v7124 = vmax.f32 %v6903, 0.0
        %v7125 = vmax.f32 %v6328, 0.0
        %v7126 = vmax.f32 %v6330, 0.0
        %v7127 = vmax.f32 %v6521, 0.0
        %v7128 = vmax.f32 %v6523, 0.0
        %v7129 = vmax.f32 %v6714, 0.0
        %v7130 = vmax.f32 %v6716, 0.0
        %v7131 = vmax.f32 %v6907, 0.0
        %v7132 = vmax.f32 %v6909, 0.0
        %v7133 = vmax.f32 %v6332, 0.0
        %v7134 = vmax.f32 %v6334, 0.0
        %v7135 = vmax.f32 %v6525, 0.0
        %v7136 = vmax.f32 %v6527, 0.0
        %v7137 = vmax.f32 %v6718, 0.0
        %v7138 = vmax.f32 %v6720, 0.0
        %v7139 = vmax.f32 %v6911, 0.0
        %v7140 = vmax.f32 %v6913, 0.0
        %v7141 = vmax.f32 %v6338, 0.0
        %v7142 = vmax.f32 %v6340, 0.0
        %v7143 = vmax.f32 %v6531, 0.0
        %v7144 = vmax.f32 %v6533, 0.0
        %v7145 = vmax.f32 %v6724, 0.0
        %v7146 = vmax.f32 %v6726, 0.0
        %v7147 = vmax.f32 %v6917, 0.0
        %v7148 = vmax.f32 %v6919, 0.0
        %v7149 = vmax.f32 %v6342, 0.0
        %v7150 = vmax.f32 %v6344, 0.0
        %v7151 = vmax.f32 %v6535, 0.0
        %v7152 = vmax.f32 %v6537, 0.0
        %v7153 = vmax.f32 %v6728, 0.0
        %v7154 = vmax.f32 %v6730, 0.0
        %v7155 = vmax.f32 %v6921, 0.0
        %v7156 = vmax.f32 %v6923, 0.0
        %v7157 = vmax.f32 %v6348, 0.0
        %v7158 = vmax.f32 %v6350, 0.0
        %v7159 = vmax.f32 %v6541, 0.0
        %v7160 = vmax.f32 %v6543, 0.0
        %v7161 = vmax.f32 %v6734, 0.0
        %v7162 = vmax.f32 %v6736, 0.0
        %v7163 = vmax.f32 %v6927, 0.0
        %v7164 = vmax.f32 %v6929, 0.0
        %v7165 = vmax.f32 %v6352, 0.0
        %v7166 = vmax.f32 %v6354, 0.0
        %v7167 = vmax.f32 %v6545, 0.0
        %v7168 = vmax.f32 %v6547, 0.0
        %v7169 = vmax.f32 %v6738, 0.0
        %v7170 = vmax.f32 %v6740, 0.0
        %v7171 = vmax.f32 %v6931, 0.0
        %v7172 = vmax.f32 %v6933, 0.0
        %v7173 = vmax.f32 %v6358, 0.0
        %v7174 = vmax.f32 %v6360, 0.0
        %v7175 = vmax.f32 %v6551, 0.0
        %v7176 = vmax.f32 %v6553, 0.0
        %v7177 = vmax.f32 %v6744, 0.0
        %v7178 = vmax.f32 %v6746, 0.0
        %v7179 = vmax.f32 %v6937, 0.0
        %v7180 = vmax.f32 %v6939, 0.0
        %v7181 = vmax.f32 %v6362, 0.0
        %v7182 = vmax.f32 %v6364, 0.0
        %v7183 = vmax.f32 %v6555, 0.0
        %v7184 = vmax.f32 %v6557, 0.0
        %v7185 = vmax.f32 %v6748, 0.0
        %v7186 = vmax.f32 %v6750, 0.0
        %v7187 = vmax.f32 %v6941, 0.0
        %v7188 = vmax.f32 %v6943, 0.0
        %v7189 = vmax.f32 %v6368, 0.0
        %v7190 = vmax.f32 %v6370, 0.0
        %v7191 = vmax.f32 %v6561, 0.0
        %v7192 = vmax.f32 %v6563, 0.0
        %v7193 = vmax.f32 %v6754, 0.0
        %v7194 = vmax.f32 %v6756, 0.0
        %v7195 = vmax.f32 %v6947, 0.0
        %v7196 = vmax.f32 %v6949, 0.0
        %v7197 = vmax.f32 %v6372, 0.0
        %v7198 = vmax.f32 %v6374, 0.0
        %v7199 = vmax.f32 %v6565, 0.0
        %v7200 = vmax.f32 %v6567, 0.0
        %v7201 = vmax.f32 %v6758, 0.0
        %v7202 = vmax.f32 %v6760, 0.0
        %v7203 = vmax.f32 %v6951, 0.0
        %v7204 = vmax.f32 %v6953, 0.0
        %v7205 = vmax.f32 %v6378, 0.0
        %v7206 = vmax.f32 %v6380, 0.0
        %v7207 = vmax.f32 %v6571, 0.0
        %v7208 = vmax.f32 %v6573, 0.0
        %v7209 = vmax.f32 %v6764, 0.0
        %v7210 = vmax.f32 %v6766, 0.0
        %v7211 = vmax.f32 %v6957, 0.0
        %v7212 = vmax.f32 %v6959, 0.0
        %v7213 = vmax.f32 %v6382, 0.0
        %v7214 = vmax.f32 %v6384, 0.0
        %v7215 = vmax.f32 %v6575, 0.0
        %v7216 = vmax.f32 %v6577, 0.0
        %v7217 = vmax.f32 %v6768, 0.0
        %v7218 = vmax.f32 %v6770, 0.0
        %v7219 = vmax.f32 %v6961, 0.0
        %v7220 = vmax.f32 %v6963, 0.0
        %v7221 = vld [vmem:[#allocation11] sm:$0xf]
        %v7222 = vld [vmem:[#allocation11 + $0x4] sm:$0xf]
        %v7223 = vld [vmem:[#allocation11 + $0x8] sm:$0xf]
        %v7224 = vld [vmem:[#allocation11 + $0xc] sm:$0xf]
        %v7225 = vld [vmem:[#allocation11 + $0x10] sm:$0xf]
        %v7226 = vld [vmem:[#allocation11 + $0x14] sm:$0xf]
        %v7227 = vld [vmem:[#allocation11 + $0x18] sm:$0xf]
        %v7228 = vld [vmem:[#allocation11 + $0x1c] sm:$0xf]
        %v7229 = vld [vmem:[#allocation11 + $0x20] sm:$0xf]
        %v7230 = vld [vmem:[#allocation11 + $0x24] sm:$0xf]
        %v7231 = vld [vmem:[#allocation11 + $0x28] sm:$0xf]
        %v7232 = vld [vmem:[#allocation11 + $0x2c] sm:$0xf]
        %v7233 = vld [vmem:[#allocation11 + $0x30] sm:$0xf]
        %v7234 = vld [vmem:[#allocation11 + $0x34] sm:$0xf]
        %v7235 = vld [vmem:[#allocation11 + $0x38] sm:$0xf]
        %v7236 = vld [vmem:[#allocation11 + $0x3c] sm:$0xf]
        %v7237 = vld [vmem:[#allocation11 + $0x40] sm:$0xf]
        %v7238 = vld [vmem:[#allocation11 + $0x44] sm:$0xf]
        %v7239 = vld [vmem:[#allocation11 + $0x48] sm:$0xf]
        %v7240 = vld [vmem:[#allocation11 + $0x4c] sm:$0xf]
        %v7241 = vld [vmem:[#allocation11 + $0x50] sm:$0xf]
        %v7242 = vld [vmem:[#allocation11 + $0x54] sm:$0xf]
        %v7243 = vld [vmem:[#allocation11 + $0x58] sm:$0xf]
        %v7244 = vld [vmem:[#allocation11 + $0x5c] sm:$0xf]
        %v7245 = vld [vmem:[#allocation11 + $0x60] sm:$0xf]
        %v7246 = vld [vmem:[#allocation11 + $0x64] sm:$0xf]
        %v7247 = vld [vmem:[#allocation11 + $0x68] sm:$0xf]
        %v7248 = vld [vmem:[#allocation11 + $0x6c] sm:$0xf]
        %v7249 = vld [vmem:[#allocation11 + $0x70] sm:$0xf]
        %v7250 = vld [vmem:[#allocation11 + $0x74] sm:$0xf]
        %v7251 = vld [vmem:[#allocation11 + $0x78] sm:$0xf]
        %v7252 = vld [vmem:[#allocation11 + $0x7c] sm:$0xf]
        %v7253 = vld [vmem:[#allocation11 + $0x80] sm:$0xf]
        %v7254 = vld [vmem:[#allocation11 + $0x84] sm:$0xf]
        %v7255 = vld [vmem:[#allocation11 + $0x88] sm:$0xf]
        %v7256 = vld [vmem:[#allocation11 + $0x8c] sm:$0xf]
        %v7257 = vld [vmem:[#allocation11 + $0x90] sm:$0xf]
        %v7258 = vld [vmem:[#allocation11 + $0x94] sm:$0xf]
        %v7259 = vld [vmem:[#allocation11 + $0x98] sm:$0xf]
        %v7260 = vld [vmem:[#allocation11 + $0x9c] sm:$0xf]
        %v7261 = vld [vmem:[#allocation11 + $0xa0] sm:$0xf]
        %v7262 = vld [vmem:[#allocation11 + $0xa4] sm:$0xf]
        %v7263 = vld [vmem:[#allocation11 + $0xa8] sm:$0xf]
        %v7264 = vld [vmem:[#allocation11 + $0xac] sm:$0xf]
        %v7265 = vld [vmem:[#allocation11 + $0xb0] sm:$0xf]
        %v7266 = vld [vmem:[#allocation11 + $0xb4] sm:$0xf]
        %v7267 = vld [vmem:[#allocation11 + $0xb8] sm:$0xf]
        %v7268 = vld [vmem:[#allocation11 + $0xbc] sm:$0xf]
        %v7269 = vld [vmem:[#allocation11 + $0xc0] sm:$0xf]
        %v7270 = vld [vmem:[#allocation11 + $0xc4] sm:$0xf]
        %v7271 = vld [vmem:[#allocation11 + $0xc8] sm:$0xf]
        %v7272 = vld [vmem:[#allocation11 + $0xcc] sm:$0xf]
        %v7273 = vld [vmem:[#allocation11 + $0xd0] sm:$0xf]
        %v7274 = vld [vmem:[#allocation11 + $0xd4] sm:$0xf]
        %v7275 = vld [vmem:[#allocation11 + $0xd8] sm:$0xf]
        %v7276 = vld [vmem:[#allocation11 + $0xdc] sm:$0xf]
        %v7277 = vld [vmem:[#allocation11 + $0xe0] sm:$0xf]
        %v7278 = vld [vmem:[#allocation11 + $0xe4] sm:$0xf]
        %v7279 = vld [vmem:[#allocation11 + $0xe8] sm:$0xf]
        %v7280 = vld [vmem:[#allocation11 + $0xec] sm:$0xf]
        %v7281 = vld [vmem:[#allocation11 + $0xf0] sm:$0xf]
        %v7282 = vld [vmem:[#allocation11 + $0xf4] sm:$0xf]
        %v7283 = vld [vmem:[#allocation11 + $0xf8] sm:$0xf]
        %v7284 = vld [vmem:[#allocation11 + $0xfc] sm:$0xf]
        %v7285 = vld [vmem:[#allocation11 + $0x100] sm:$0xf]
        %v7286 = vld [vmem:[#allocation11 + $0x104] sm:$0xf]
        %v7287 = vld [vmem:[#allocation11 + $0x108] sm:$0xf]
        %v7288 = vld [vmem:[#allocation11 + $0x10c] sm:$0xf]
        %v7289 = vld [vmem:[#allocation11 + $0x110] sm:$0xf]
        %v7290 = vld [vmem:[#allocation11 + $0x114] sm:$0xf]
        %v7291 = vld [vmem:[#allocation11 + $0x118] sm:$0xf]
        %v7292 = vld [vmem:[#allocation11 + $0x11c] sm:$0xf]
        %v7293 = vld [vmem:[#allocation11 + $0x120] sm:$0xf]
        %v7294 = vld [vmem:[#allocation11 + $0x124] sm:$0xf]
        %v7295 = vld [vmem:[#allocation11 + $0x128] sm:$0xf]
        %v7296 = vld [vmem:[#allocation11 + $0x12c] sm:$0xf]
        %v7297 = vld [vmem:[#allocation11 + $0x130] sm:$0xf]
        %v7298 = vld [vmem:[#allocation11 + $0x134] sm:$0xf]
        %v7299 = vld [vmem:[#allocation11 + $0x138] sm:$0xf]
        %v7300 = vld [vmem:[#allocation11 + $0x13c] sm:$0xf]
        %v7301 = vld [vmem:[#allocation11 + $0x140] sm:$0xf]
        %v7302 = vld [vmem:[#allocation11 + $0x144] sm:$0xf]
        %v7303 = vld [vmem:[#allocation11 + $0x148] sm:$0xf]
        %v7304 = vld [vmem:[#allocation11 + $0x14c] sm:$0xf]
        %v7305 = vld [vmem:[#allocation11 + $0x150] sm:$0xf]
        %v7306 = vld [vmem:[#allocation11 + $0x154] sm:$0xf]
        %v7307 = vld [vmem:[#allocation11 + $0x158] sm:$0xf]
        %v7308 = vld [vmem:[#allocation11 + $0x15c] sm:$0xf]
        %v7309 = vld [vmem:[#allocation11 + $0x160] sm:$0xf]
        %v7310 = vld [vmem:[#allocation11 + $0x164] sm:$0xf]
        %v7311 = vld [vmem:[#allocation11 + $0x168] sm:$0xf]
        %v7312 = vld [vmem:[#allocation11 + $0x16c] sm:$0xf]
        %v7313 = vld [vmem:[#allocation11 + $0x170] sm:$0xf]
        %v7314 = vld [vmem:[#allocation11 + $0x174] sm:$0xf]
        %v7315 = vld [vmem:[#allocation11 + $0x178] sm:$0xf]
        %v7316 = vld [vmem:[#allocation11 + $0x17c] sm:$0xf]
        %v7317 = vld [vmem:[#allocation11 + $0x180] sm:$0xf]
        %v7318 = vld [vmem:[#allocation11 + $0x184] sm:$0xf]
        %v7319 = vld [vmem:[#allocation11 + $0x188] sm:$0xf]
        %v7320 = vld [vmem:[#allocation11 + $0x18c] sm:$0xf]
        %v7321 = vld [vmem:[#allocation11 + $0x190] sm:$0xf]
        %v7322 = vld [vmem:[#allocation11 + $0x194] sm:$0xf]
        %v7323 = vld [vmem:[#allocation11 + $0x198] sm:$0xf]
        %v7324 = vld [vmem:[#allocation11 + $0x19c] sm:$0xf]
        %v7325 = vld [vmem:[#allocation11 + $0x1a0] sm:$0xf]
        %v7326 = vld [vmem:[#allocation11 + $0x1a4] sm:$0xf]
        %v7327 = vld [vmem:[#allocation11 + $0x1a8] sm:$0xf]
        %v7328 = vld [vmem:[#allocation11 + $0x1ac] sm:$0xf]
        %v7329 = vld [vmem:[#allocation11 + $0x1b0] sm:$0xf]
        %v7330 = vld [vmem:[#allocation11 + $0x1b4] sm:$0xf]
        %v7331 = vld [vmem:[#allocation11 + $0x1b8] sm:$0xf]
        %v7332 = vld [vmem:[#allocation11 + $0x1bc] sm:$0xf]
        %v7333 = vld [vmem:[#allocation11 + $0x1c0] sm:$0xf]
        %v7334 = vld [vmem:[#allocation11 + $0x1c4] sm:$0xf]
        %v7335 = vld [vmem:[#allocation11 + $0x1c8] sm:$0xf]
        %v7336 = vld [vmem:[#allocation11 + $0x1cc] sm:$0xf]
        %v7337 = vld [vmem:[#allocation11 + $0x1d0] sm:$0xf]
        %v7338 = vld [vmem:[#allocation11 + $0x1d4] sm:$0xf]
        %v7339 = vld [vmem:[#allocation11 + $0x1d8] sm:$0xf]
        %v7340 = vld [vmem:[#allocation11 + $0x1dc] sm:$0xf]
        %v7341 = vld [vmem:[#allocation11 + $0x1e0] sm:$0xf]
        %v7342 = vld [vmem:[#allocation11 + $0x1e4] sm:$0xf]
        %v7343 = vld [vmem:[#allocation11 + $0x1e8] sm:$0xf]
        %v7344 = vld [vmem:[#allocation11 + $0x1ec] sm:$0xf]
        %v7345 = vld [vmem:[#allocation11 + $0x1f0] sm:$0xf]
        %v7346 = vld [vmem:[#allocation11 + $0x1f4] sm:$0xf]
        %v7347 = vld [vmem:[#allocation11 + $0x1f8] sm:$0xf]
        %v7348 = vld [vmem:[#allocation11 + $0x1fc] sm:$0xf]
        %v7349 = vpack.c.bf16 %v6973, %v6965
        %v7350 = vpack.c.bf16 %v6974, %v6966
        %v7351 = vpack.c.bf16 %v6975, %v6967
        %v7352 = vpack.c.bf16 %v6976, %v6968
        %v7353 = vpack.c.bf16 %v6977, %v6969
        %v7354 = vpack.c.bf16 %v6978, %v6970
        %v7355 = vpack.c.bf16 %v6979, %v6971
        %v7356 = vpack.c.bf16 %v6980, %v6972
        %v7357 = vpack.c.bf16 %v6989, %v6981
        %v7358 = vpack.c.bf16 %v6990, %v6982
        %v7359 = vpack.c.bf16 %v6991, %v6983
        %v7360 = vpack.c.bf16 %v6992, %v6984
        %v7361 = vpack.c.bf16 %v6993, %v6985
        %v7362 = vpack.c.bf16 %v6994, %v6986
        %v7363 = vpack.c.bf16 %v6995, %v6987
        %v7364 = vpack.c.bf16 %v6996, %v6988
        %v7365 = vpack.c.bf16 %v7005, %v6997
        %v7366 = vpack.c.bf16 %v7006, %v6998
        %v7367 = vpack.c.bf16 %v7007, %v6999
        %v7368 = vpack.c.bf16 %v7008, %v7000
        %v7369 = vpack.c.bf16 %v7009, %v7001
        %v7370 = vpack.c.bf16 %v7010, %v7002
        %v7371 = vpack.c.bf16 %v7011, %v7003
        %v7372 = vpack.c.bf16 %v7012, %v7004
        %v7373 = vpack.c.bf16 %v7021, %v7013
        %v7374 = vpack.c.bf16 %v7022, %v7014
        %v7375 = vpack.c.bf16 %v7023, %v7015
        %v7376 = vpack.c.bf16 %v7024, %v7016
        %v7377 = vpack.c.bf16 %v7025, %v7017
        %v7378 = vpack.c.bf16 %v7026, %v7018
        %v7379 = vpack.c.bf16 %v7027, %v7019
        %v7380 = vpack.c.bf16 %v7028, %v7020
        %v7381 = vpack.c.bf16 %v7037, %v7029
        %v7382 = vpack.c.bf16 %v7038, %v7030
        %v7383 = vpack.c.bf16 %v7039, %v7031
        %v7384 = vpack.c.bf16 %v7040, %v7032
        %v7385 = vpack.c.bf16 %v7041, %v7033
        %v7386 = vpack.c.bf16 %v7042, %v7034
        %v7387 = vpack.c.bf16 %v7043, %v7035
        %v7388 = vpack.c.bf16 %v7044, %v7036
        %v7389 = vpack.c.bf16 %v7053, %v7045
        %v7390 = vpack.c.bf16 %v7054, %v7046
        %v7391 = vpack.c.bf16 %v7055, %v7047
        %v7392 = vpack.c.bf16 %v7056, %v7048
        %v7393 = vpack.c.bf16 %v7057, %v7049
        %v7394 = vpack.c.bf16 %v7058, %v7050
        %v7395 = vpack.c.bf16 %v7059, %v7051
        %v7396 = vpack.c.bf16 %v7060, %v7052
        %v7397 = vpack.c.bf16 %v7069, %v7061
        %v7398 = vpack.c.bf16 %v7070, %v7062
        %v7399 = vpack.c.bf16 %v7071, %v7063
        %v7400 = vpack.c.bf16 %v7072, %v7064
        %v7401 = vpack.c.bf16 %v7073, %v7065
        %v7402 = vpack.c.bf16 %v7074, %v7066
        %v7403 = vpack.c.bf16 %v7075, %v7067
        %v7404 = vpack.c.bf16 %v7076, %v7068
        %v7405 = vpack.c.bf16 %v7085, %v7077
        %v7406 = vpack.c.bf16 %v7086, %v7078
        %v7407 = vpack.c.bf16 %v7087, %v7079
        %v7408 = vpack.c.bf16 %v7088, %v7080
        %v7409 = vpack.c.bf16 %v7089, %v7081
        %v7410 = vpack.c.bf16 %v7090, %v7082
        %v7411 = vpack.c.bf16 %v7091, %v7083
        %v7412 = vpack.c.bf16 %v7092, %v7084
        %v7413 = vpack.c.bf16 %v7101, %v7093
        %v7414 = vpack.c.bf16 %v7102, %v7094
        %v7415 = vpack.c.bf16 %v7103, %v7095
        %v7416 = vpack.c.bf16 %v7104, %v7096
        %v7417 = vpack.c.bf16 %v7105, %v7097
        %v7418 = vpack.c.bf16 %v7106, %v7098
        %v7419 = vpack.c.bf16 %v7107, %v7099
        %v7420 = vpack.c.bf16 %v7108, %v7100
        %v7421 = vpack.c.bf16 %v7117, %v7109
        %v7422 = vpack.c.bf16 %v7118, %v7110
        %v7423 = vpack.c.bf16 %v7119, %v7111
        %v7424 = vpack.c.bf16 %v7120, %v7112
        %v7425 = vpack.c.bf16 %v7121, %v7113
        %v7426 = vpack.c.bf16 %v7122, %v7114
        %v7427 = vpack.c.bf16 %v7123, %v7115
        %v7428 = vpack.c.bf16 %v7124, %v7116
        %v7429 = vpack.c.bf16 %v7133, %v7125
        %v7430 = vpack.c.bf16 %v7134, %v7126
        %v7431 = vpack.c.bf16 %v7135, %v7127
        %v7432 = vpack.c.bf16 %v7136, %v7128
        %v7433 = vpack.c.bf16 %v7137, %v7129
        %v7434 = vpack.c.bf16 %v7138, %v7130
        %v7435 = vpack.c.bf16 %v7139, %v7131
        %v7436 = vpack.c.bf16 %v7140, %v7132
        %v7437 = vpack.c.bf16 %v7149, %v7141
        %v7438 = vpack.c.bf16 %v7150, %v7142
        %v7439 = vpack.c.bf16 %v7151, %v7143
        %v7440 = vpack.c.bf16 %v7152, %v7144
        %v7441 = vpack.c.bf16 %v7153, %v7145
        %v7442 = vpack.c.bf16 %v7154, %v7146
        %v7443 = vpack.c.bf16 %v7155, %v7147
        %v7444 = vpack.c.bf16 %v7156, %v7148
        %v7445 = vpack.c.bf16 %v7165, %v7157
        %v7446 = vpack.c.bf16 %v7166, %v7158
        %v7447 = vpack.c.bf16 %v7167, %v7159
        %v7448 = vpack.c.bf16 %v7168, %v7160
        %v7449 = vpack.c.bf16 %v7169, %v7161
        %v7450 = vpack.c.bf16 %v7170, %v7162
        %v7451 = vpack.c.bf16 %v7171, %v7163
        %v7452 = vpack.c.bf16 %v7172, %v7164
        %v7453 = vpack.c.bf16 %v7181, %v7173
        %v7454 = vpack.c.bf16 %v7182, %v7174
        %v7455 = vpack.c.bf16 %v7183, %v7175
        %v7456 = vpack.c.bf16 %v7184, %v7176
        %v7457 = vpack.c.bf16 %v7185, %v7177
        %v7458 = vpack.c.bf16 %v7186, %v7178
        %v7459 = vpack.c.bf16 %v7187, %v7179
        %v7460 = vpack.c.bf16 %v7188, %v7180
        %v7461 = vpack.c.bf16 %v7197, %v7189
        %v7462 = vpack.c.bf16 %v7198, %v7190
        %v7463 = vpack.c.bf16 %v7199, %v7191
        %v7464 = vpack.c.bf16 %v7200, %v7192
        %v7465 = vpack.c.bf16 %v7201, %v7193
        %v7466 = vpack.c.bf16 %v7202, %v7194
        %v7467 = vpack.c.bf16 %v7203, %v7195
        %v7468 = vpack.c.bf16 %v7204, %v7196
        %v7469 = vpack.c.bf16 %v7213, %v7205
        %v7470 = vpack.c.bf16 %v7214, %v7206
        %v7471 = vpack.c.bf16 %v7215, %v7207
        %v7472 = vpack.c.bf16 %v7216, %v7208
        %v7473 = vpack.c.bf16 %v7217, %v7209
        %v7474 = vpack.c.bf16 %v7218, %v7210
        %v7475 = vpack.c.bf16 %v7219, %v7211
        %v7476 = vpack.c.bf16 %v7220, %v7212
        %v7477 = vlaneseq
        %v7478 = vshrl.u32 %v7477, 7
        %v7479 = vsub.s32 3, %v7478
        %v7480 = vrot.slane %v377, %v7479
        %v7609 = vunpack.c.l.b16 %v7221
        %v7610 = vunpack.c.l.b16 %v7222
        %v7611 = vunpack.c.l.b16 %v7223
        %v7612 = vunpack.c.l.b16 %v7224
        %v7613 = vunpack.c.l.b16 %v7225
        %v7614 = vunpack.c.l.b16 %v7226
        %v7615 = vunpack.c.l.b16 %v7227
        %v7616 = vunpack.c.l.b16 %v7228
        %v7617 = vunpack.c.l.b16 %v7229
        %v7618 = vunpack.c.l.b16 %v7230
        %v7619 = vunpack.c.l.b16 %v7231
        %v7620 = vunpack.c.l.b16 %v7232
        %v7621 = vunpack.c.l.b16 %v7233
        %v7622 = vunpack.c.l.b16 %v7234
        %v7623 = vunpack.c.l.b16 %v7235
        %v7624 = vunpack.c.l.b16 %v7236
        %v7625 = vunpack.c.l.b16 %v7237
        %v7626 = vunpack.c.l.b16 %v7238
        %v7627 = vunpack.c.l.b16 %v7239
        %v7628 = vunpack.c.l.b16 %v7240
        %v7629 = vunpack.c.l.b16 %v7241
        %v7630 = vunpack.c.l.b16 %v7242
        %v7631 = vunpack.c.l.b16 %v7243
        %v7632 = vunpack.c.l.b16 %v7244
        %v7633 = vunpack.c.l.b16 %v7245
        %v7634 = vunpack.c.l.b16 %v7246
        %v7635 = vunpack.c.l.b16 %v7247
        %v7636 = vunpack.c.l.b16 %v7248
        %v7637 = vunpack.c.l.b16 %v7249
        %v7638 = vunpack.c.l.b16 %v7250
        %v7639 = vunpack.c.l.b16 %v7251
        %v7640 = vunpack.c.l.b16 %v7252
        %v7641 = vunpack.c.l.b16 %v7253
        %v7642 = vunpack.c.l.b16 %v7254
        %v7643 = vunpack.c.l.b16 %v7255
        %v7644 = vunpack.c.l.b16 %v7256
        %v7645 = vunpack.c.l.b16 %v7257
        %v7646 = vunpack.c.l.b16 %v7258
        %v7647 = vunpack.c.l.b16 %v7259
        %v7648 = vunpack.c.l.b16 %v7260
        %v7649 = vunpack.c.l.b16 %v7261
        %v7650 = vunpack.c.l.b16 %v7262
        %v7651 = vunpack.c.l.b16 %v7263
        %v7652 = vunpack.c.l.b16 %v7264
        %v7653 = vunpack.c.l.b16 %v7265
        %v7654 = vunpack.c.l.b16 %v7266
        %v7655 = vunpack.c.l.b16 %v7267
        %v7656 = vunpack.c.l.b16 %v7268
        %v7657 = vunpack.c.l.b16 %v7269
        %v7658 = vunpack.c.l.b16 %v7270
        %v7659 = vunpack.c.l.b16 %v7271
        %v7660 = vunpack.c.l.b16 %v7272
        %v7661 = vunpack.c.l.b16 %v7273
        %v7662 = vunpack.c.l.b16 %v7274
        %v7663 = vunpack.c.l.b16 %v7275
        %v7664 = vunpack.c.l.b16 %v7276
        %v7665 = vunpack.c.l.b16 %v7277
        %v7666 = vunpack.c.l.b16 %v7278
        %v7667 = vunpack.c.l.b16 %v7279
        %v7668 = vunpack.c.l.b16 %v7280
        %v7669 = vunpack.c.l.b16 %v7281
        %v7670 = vunpack.c.l.b16 %v7282
        %v7671 = vunpack.c.l.b16 %v7283
        %v7672 = vunpack.c.l.b16 %v7284
        %v7673 = vunpack.c.l.b16 %v7285
        %v7674 = vunpack.c.l.b16 %v7286
        %v7675 = vunpack.c.l.b16 %v7287
        %v7676 = vunpack.c.l.b16 %v7288
        %v7677 = vunpack.c.l.b16 %v7289
        %v7678 = vunpack.c.l.b16 %v7290
        %v7679 = vunpack.c.l.b16 %v7291
        %v7680 = vunpack.c.l.b16 %v7292
        %v7681 = vunpack.c.l.b16 %v7293
        %v7682 = vunpack.c.l.b16 %v7294
        %v7683 = vunpack.c.l.b16 %v7295
        %v7684 = vunpack.c.l.b16 %v7296
        %v7685 = vunpack.c.l.b16 %v7297
        %v7686 = vunpack.c.l.b16 %v7298
        %v7687 = vunpack.c.l.b16 %v7299
        %v7688 = vunpack.c.l.b16 %v7300
        %v7689 = vunpack.c.l.b16 %v7301
        %v7690 = vunpack.c.l.b16 %v7302
        %v7691 = vunpack.c.l.b16 %v7303
        %v7692 = vunpack.c.l.b16 %v7304
        %v7693 = vunpack.c.l.b16 %v7305
        %v7694 = vunpack.c.l.b16 %v7306
        %v7695 = vunpack.c.l.b16 %v7307
        %v7696 = vunpack.c.l.b16 %v7308
        %v7697 = vunpack.c.l.b16 %v7309
        %v7698 = vunpack.c.l.b16 %v7310
        %v7699 = vunpack.c.l.b16 %v7311
        %v7700 = vunpack.c.l.b16 %v7312
        %v7701 = vunpack.c.l.b16 %v7313
        %v7702 = vunpack.c.l.b16 %v7314
        %v7703 = vunpack.c.l.b16 %v7315
        %v7704 = vunpack.c.l.b16 %v7316
        %v7705 = vunpack.c.l.b16 %v7317
        %v7706 = vunpack.c.l.b16 %v7318
        %v7707 = vunpack.c.l.b16 %v7319
        %v7708 = vunpack.c.l.b16 %v7320
        %v7709 = vunpack.c.l.b16 %v7321
        %v7710 = vunpack.c.l.b16 %v7322
        %v7711 = vunpack.c.l.b16 %v7323
        %v7712 = vunpack.c.l.b16 %v7324
        %v7713 = vunpack.c.l.b16 %v7325
        %v7714 = vunpack.c.l.b16 %v7326
        %v7715 = vunpack.c.l.b16 %v7327
        %v7716 = vunpack.c.l.b16 %v7328
        %v7717 = vunpack.c.l.b16 %v7329
        %v7718 = vunpack.c.l.b16 %v7330
        %v7719 = vunpack.c.l.b16 %v7331
        %v7720 = vunpack.c.l.b16 %v7332
        %v7721 = vunpack.c.l.b16 %v7333
        %v7722 = vunpack.c.l.b16 %v7334
        %v7723 = vunpack.c.l.b16 %v7335
        %v7724 = vunpack.c.l.b16 %v7336
        %v7725 = vunpack.c.l.b16 %v7337
        %v7726 = vunpack.c.l.b16 %v7338
        %v7727 = vunpack.c.l.b16 %v7339
        %v7728 = vunpack.c.l.b16 %v7340
        %v7729 = vunpack.c.l.b16 %v7341
        %v7730 = vunpack.c.l.b16 %v7342
        %v7731 = vunpack.c.l.b16 %v7343
        %v7732 = vunpack.c.l.b16 %v7344
        %v7733 = vunpack.c.l.b16 %v7345
        %v7734 = vunpack.c.l.b16 %v7346
        %v7735 = vunpack.c.l.b16 %v7347
        %v7736 = vunpack.c.l.b16 %v7348
        %v7737 = vpack.c.b16 %v7610, %v7609
        %v7738 = vpack.c.b16 %v7612, %v7611
        %v7739 = vpack.c.b16 %v7614, %v7613
        %v7740 = vpack.c.b16 %v7616, %v7615
        %v7741 = vpack.c.b16 %v7618, %v7617
        %v7742 = vpack.c.b16 %v7620, %v7619
        %v7743 = vpack.c.b16 %v7622, %v7621
        %v7744 = vpack.c.b16 %v7624, %v7623
        %v7745 = vpack.c.b16 %v7626, %v7625
        %v7746 = vpack.c.b16 %v7628, %v7627
        %v7747 = vpack.c.b16 %v7630, %v7629
        %v7748 = vpack.c.b16 %v7632, %v7631
        %v7749 = vpack.c.b16 %v7634, %v7633
        %v7750 = vpack.c.b16 %v7636, %v7635
        %v7751 = vpack.c.b16 %v7638, %v7637
        %v7752 = vpack.c.b16 %v7640, %v7639
        %v7753 = vpack.c.b16 %v7642, %v7641
        %v7754 = vpack.c.b16 %v7644, %v7643
        %v7755 = vpack.c.b16 %v7646, %v7645
        %v7756 = vpack.c.b16 %v7648, %v7647
        %v7757 = vpack.c.b16 %v7650, %v7649
        %v7758 = vpack.c.b16 %v7652, %v7651
        %v7759 = vpack.c.b16 %v7654, %v7653
        %v7760 = vpack.c.b16 %v7656, %v7655
        %v7761 = vpack.c.b16 %v7658, %v7657
        %v7762 = vpack.c.b16 %v7660, %v7659
        %v7763 = vpack.c.b16 %v7662, %v7661
        %v7764 = vpack.c.b16 %v7664, %v7663
        %v7765 = vpack.c.b16 %v7666, %v7665
        %v7766 = vpack.c.b16 %v7668, %v7667
        %v7767 = vpack.c.b16 %v7670, %v7669
        %v7768 = vpack.c.b16 %v7672, %v7671
        %v7769 = vpack.c.b16 %v7674, %v7673
        %v7770 = vpack.c.b16 %v7676, %v7675
        %v7771 = vpack.c.b16 %v7678, %v7677
        %v7772 = vpack.c.b16 %v7680, %v7679
        %v7773 = vpack.c.b16 %v7682, %v7681
        %v7774 = vpack.c.b16 %v7684, %v7683
        %v7775 = vpack.c.b16 %v7686, %v7685
        %v7776 = vpack.c.b16 %v7688, %v7687
        %v7777 = vpack.c.b16 %v7690, %v7689
        %v7778 = vpack.c.b16 %v7692, %v7691
        %v7779 = vpack.c.b16 %v7694, %v7693
        %v7780 = vpack.c.b16 %v7696, %v7695
        %v7781 = vpack.c.b16 %v7698, %v7697
        %v7782 = vpack.c.b16 %v7700, %v7699
        %v7783 = vpack.c.b16 %v7702, %v7701
        %v7784 = vpack.c.b16 %v7704, %v7703
        %v7785 = vpack.c.b16 %v7706, %v7705
        %v7786 = vpack.c.b16 %v7708, %v7707
        %v7787 = vpack.c.b16 %v7710, %v7709
        %v7788 = vpack.c.b16 %v7712, %v7711
        %v7789 = vpack.c.b16 %v7714, %v7713
        %v7790 = vpack.c.b16 %v7716, %v7715
        %v7791 = vpack.c.b16 %v7718, %v7717
        %v7792 = vpack.c.b16 %v7720, %v7719
        %v7793 = vpack.c.b16 %v7722, %v7721
        %v7794 = vpack.c.b16 %v7724, %v7723
        %v7795 = vpack.c.b16 %v7726, %v7725
        %v7796 = vpack.c.b16 %v7728, %v7727
        %v7797 = vpack.c.b16 %v7730, %v7729
        %v7798 = vpack.c.b16 %v7732, %v7731
        %v7799 = vpack.c.b16 %v7734, %v7733
        %v7800 = vpack.c.b16 %v7736, %v7735
        %7865 = vmatprep.subr.bf16.mxu0 0
        %7866 = vmatpush1.bf16.msra.mxu0 %v7737
        %7867 = vmatprep.subr.bf16.mxu0 0
        %7868 = vmatpush1.bf16.msra.mxu0 %v7738
        %7869 = vmatprep.subr.bf16.mxu0 0
        %7870 = vmatpush1.bf16.msra.mxu0 %v7739
        %7871 = vmatprep.subr.bf16.mxu0 0
        %7872 = vmatpush1.bf16.msra.mxu0 %v7740
        %7873 = vmatprep.subr.bf16.mxu0 0
        %7874 = vmatpush1.bf16.msra.mxu0 %v7741
        %7875 = vmatprep.subr.bf16.mxu0 0
        %7876 = vmatpush1.bf16.msra.mxu0 %v7742
        %7877 = vmatprep.subr.bf16.mxu0 0
        %7878 = vmatpush1.bf16.msra.mxu0 %v7743
        %7879 = vmatprep.subr.bf16.mxu0 0
        %7880 = vmatpush1.bf16.msra.mxu0 %v7744
        %7881 = vmatprep.subr.bf16.mxu0 0
        %7882 = vmatpush1.bf16.msra.mxu0 %v7745
        %7883 = vmatprep.subr.bf16.mxu0 0
        %7884 = vmatpush1.bf16.msra.mxu0 %v7746
        %7885 = vmatprep.subr.bf16.mxu0 0
        %7886 = vmatpush1.bf16.msra.mxu0 %v7747
        %7887 = vmatprep.subr.bf16.mxu0 0
        %7888 = vmatpush1.bf16.msra.mxu0 %v7748
        %7889 = vmatprep.subr.bf16.mxu0 0
        %7890 = vmatpush1.bf16.msra.mxu0 %v7749
        %7891 = vmatprep.subr.bf16.mxu0 0
        %7892 = vmatpush1.bf16.msra.mxu0 %v7750
        %7893 = vmatprep.subr.bf16.mxu0 0
        %7894 = vmatpush1.bf16.msra.mxu0 %v7751
        %7895 = vmatprep.subr.bf16.mxu0 0
        %7896 = vmatpush1.bf16.msra.mxu0 %v7752
        %7897 = vmatprep.mubr.bf16.mxu0 %v7350
        %7898 = vmatmul.mubr.bf16.gmra.mrb[0].mxu0 %v7349
        %v7899 = vpop.f32.mrb[0].mxu0
        %v7900 = vadd.f32 %v7480, %v7899
        %v7901 = vpop.f32.mrb[0].mxu0
        %v7902 = vpop.f32.mrb[0].mxu0
        %v7903 = vadd.f32 %v7480, %v7902
        %v7904 = vpop.f32.mrb[0].mxu0
        %7905 = vmatprep.mubr.bf16.mxu0 %v7358
        %7906 = vmatmul.mubr.bf16.gmra.mrb[0].mxu0 %v7357
        %v7907 = vpop.f32.mrb[0].mxu0
        %v7908 = vadd.f32 %v7480, %v7907
        %v7909 = vpop.f32.mrb[0].mxu0
        %v7910 = vpop.f32.mrb[0].mxu0
        %v7911 = vadd.f32 %v7480, %v7910
        %v7912 = vpop.f32.mrb[0].mxu0
        %7913 = vmatprep.mubr.bf16.mxu0 %v7366
        %7914 = vmatmul.mubr.bf16.gmra.mrb[0].mxu0 %v7365
        %v7915 = vpop.f32.mrb[0].mxu0
        %v7916 = vadd.f32 %v7480, %v7915
        %v7917 = vpop.f32.mrb[0].mxu0
        %v7918 = vpop.f32.mrb[0].mxu0
        %v7919 = vadd.f32 %v7480, %v7918
        %v7920 = vpop.f32.mrb[0].mxu0
        %7921 = vmatprep.mubr.bf16.mxu0 %v7374
        %7922 = vmatmul.mubr.bf16.gmra.mrb[0].mxu0 %v7373
        %v7923 = vpop.f32.mrb[0].mxu0
        %v7924 = vadd.f32 %v7480, %v7923
        %v7925 = vpop.f32.mrb[0].mxu0
        %v7926 = vpop.f32.mrb[0].mxu0
        %v7927 = vadd.f32 %v7480, %v7926
        %v7928 = vpop.f32.mrb[0].mxu0
        %7929 = vmatprep.mubr.bf16.mxu0 %v7382
        %7930 = vmatmul.mubr.bf16.gmra.mrb[0].mxu0 %v7381
        %v7931 = vpop.f32.mrb[0].mxu0
        %v7932 = vadd.f32 %v7480, %v7931
        %v7933 = vpop.f32.mrb[0].mxu0
        %v7934 = vpop.f32.mrb[0].mxu0
        %v7935 = vadd.f32 %v7480, %v7934
        %v7936 = vpop.f32.mrb[0].mxu0
        %7937 = vmatprep.mubr.bf16.mxu0 %v7390
        %7938 = vmatmul.mubr.bf16.gmra.mrb[0].mxu0 %v7389
        %v7939 = vpop.f32.mrb[0].mxu0
        %v7940 = vadd.f32 %v7480, %v7939
        %v7941 = vpop.f32.mrb[0].mxu0
        %v7942 = vpop.f32.mrb[0].mxu0
        %v7943 = vadd.f32 %v7480, %v7942
        %v7944 = vpop.f32.mrb[0].mxu0
        %7945 = vmatprep.mubr.bf16.mxu0 %v7398
        %7946 = vmatmul.mubr.bf16.gmra.mrb[0].mxu0 %v7397
        %v7947 = vpop.f32.mrb[0].mxu0
        %v7948 = vadd.f32 %v7480, %v7947
        %v7949 = vpop.f32.mrb[0].mxu0
        %v7950 = vpop.f32.mrb[0].mxu0
        %v7951 = vadd.f32 %v7480, %v7950
        %v7952 = vpop.f32.mrb[0].mxu0
        %7953 = vmatprep.mubr.bf16.mxu0 %v7406
        %7954 = vmatmul.mubr.bf16.gmra.mrb[0].mxu0 %v7405
        %v7955 = vpop.f32.mrb[0].mxu0
        %v7956 = vadd.f32 %v7480, %v7955
        %v7957 = vpop.f32.mrb[0].mxu0
        %v7958 = vpop.f32.mrb[0].mxu0
        %v7959 = vadd.f32 %v7480, %v7958
        %v7960 = vpop.f32.mrb[0].mxu0
        %7961 = vmatprep.mubr.bf16.mxu0 %v7414
        %7962 = vmatmul.mubr.bf16.gmra.mrb[0].mxu0 %v7413
        %v7963 = vpop.f32.mrb[0].mxu0
        %v7964 = vadd.f32 %v7480, %v7963
        %v7965 = vpop.f32.mrb[0].mxu0
        %v7966 = vpop.f32.mrb[0].mxu0
        %v7967 = vadd.f32 %v7480, %v7966
        %v7968 = vpop.f32.mrb[0].mxu0
        %7969 = vmatprep.mubr.bf16.mxu0 %v7422
        %7970 = vmatmul.mubr.bf16.gmra.mrb[0].mxu0 %v7421
        %v7971 = vpop.f32.mrb[0].mxu0
        %v7972 = vadd.f32 %v7480, %v7971
        %v7973 = vpop.f32.mrb[0].mxu0
        %v7974 = vpop.f32.mrb[0].mxu0
        %v7975 = vadd.f32 %v7480, %v7974
        %v7976 = vpop.f32.mrb[0].mxu0
        %7977 = vmatprep.mubr.bf16.mxu0 %v7430
        %7978 = vmatmul.mubr.bf16.gmra.mrb[0].mxu0 %v7429
        %v7979 = vpop.f32.mrb[0].mxu0
        %v7980 = vadd.f32 %v7480, %v7979
        %v7981 = vpop.f32.mrb[0].mxu0
        %v7982 = vpop.f32.mrb[0].mxu0
        %v7983 = vadd.f32 %v7480, %v7982
        %v7984 = vpop.f32.mrb[0].mxu0
        %7985 = vmatprep.mubr.bf16.mxu0 %v7438
        %7986 = vmatmul.mubr.bf16.gmra.mrb[0].mxu0 %v7437
        %v7987 = vpop.f32.mrb[0].mxu0
        %v7988 = vadd.f32 %v7480, %v7987
        %v7989 = vpop.f32.mrb[0].mxu0
        %v7990 = vpop.f32.mrb[0].mxu0
        %v7991 = vadd.f32 %v7480, %v7990
        %v7992 = vpop.f32.mrb[0].mxu0
        %7993 = vmatprep.mubr.bf16.mxu0 %v7446
        %7994 = vmatmul.mubr.bf16.gmra.mrb[0].mxu0 %v7445
        %v7995 = vpop.f32.mrb[0].mxu0
        %v7996 = vadd.f32 %v7480, %v7995
        %v7997 = vpop.f32.mrb[0].mxu0
        %v7998 = vpop.f32.mrb[0].mxu0
        %v7999 = vadd.f32 %v7480, %v7998
        %v8000 = vpop.f32.mrb[0].mxu0
        %8001 = vmatprep.mubr.bf16.mxu0 %v7454
        %8002 = vmatmul.mubr.bf16.gmra.mrb[0].mxu0 %v7453
        %v8003 = vpop.f32.mrb[0].mxu0
        %v8004 = vadd.f32 %v7480, %v8003
        %v8005 = vpop.f32.mrb[0].mxu0
        %v8006 = vpop.f32.mrb[0].mxu0
        %v8007 = vadd.f32 %v7480, %v8006
        %v8008 = vpop.f32.mrb[0].mxu0
        %8009 = vmatprep.mubr.bf16.mxu0 %v7462
        %8010 = vmatmul.mubr.bf16.gmra.mrb[0].mxu0 %v7461
        %v8011 = vpop.f32.mrb[0].mxu0
        %v8012 = vadd.f32 %v7480, %v8011
        %v8013 = vpop.f32.mrb[0].mxu0
        %v8014 = vpop.f32.mrb[0].mxu0
        %v8015 = vadd.f32 %v7480, %v8014
        %v8016 = vpop.f32.mrb[0].mxu0
        %8017 = vmatprep.mubr.bf16.mxu0 %v7470
        %8018 = vmatmul.mubr.bf16.gmra.mrb[0].mxu0 %v7469
        %v8019 = vpop.f32.mrb[0].mxu0
        %v8020 = vadd.f32 %v7480, %v8019
        %v8021 = vpop.f32.mrb[0].mxu0
        %v8022 = vpop.f32.mrb[0].mxu0
        %v8023 = vadd.f32 %v7480, %v8022
        %v8024 = vpop.f32.mrb[0].mxu0
        %8025 = vdwg.mxu0
        %8026 = vmatprep.subr.bf16.mxu0 0
        %8027 = vmatpush1.bf16.msra.mxu0 %v7753
        %8028 = vmatprep.subr.bf16.mxu0 0
        %8029 = vmatpush1.bf16.msra.mxu0 %v7754
        %8030 = vmatprep.subr.bf16.mxu0 0
        %8031 = vmatpush1.bf16.msra.mxu0 %v7755
        %8032 = vmatprep.subr.bf16.mxu0 0
        %8033 = vmatpush1.bf16.msra.mxu0 %v7756
        %8034 = vmatprep.subr.bf16.mxu0 0
        %8035 = vmatpush1.bf16.msra.mxu0 %v7757
        %8036 = vmatprep.subr.bf16.mxu0 0
        %8037 = vmatpush1.bf16.msra.mxu0 %v7758
        %8038 = vmatprep.subr.bf16.mxu0 0
        %8039 = vmatpush1.bf16.msra.mxu0 %v7759
        %8040 = vmatprep.subr.bf16.mxu0 0
        %8041 = vmatpush1.bf16.msra.mxu0 %v7760
        %8042 = vmatprep.subr.bf16.mxu0 0
        %8043 = vmatpush1.bf16.msra.mxu0 %v7761
        %8044 = vmatprep.subr.bf16.mxu0 0
        %8045 = vmatpush1.bf16.msra.mxu0 %v7762
        %8046 = vmatprep.subr.bf16.mxu0 0
        %8047 = vmatpush1.bf16.msra.mxu0 %v7763
        %8048 = vmatprep.subr.bf16.mxu0 0
        %8049 = vmatpush1.bf16.msra.mxu0 %v7764
        %8050 = vmatprep.subr.bf16.mxu0 0
        %8051 = vmatpush1.bf16.msra.mxu0 %v7765
        %8052 = vmatprep.subr.bf16.mxu0 0
        %8053 = vmatpush1.bf16.msra.mxu0 %v7766
        %8054 = vmatprep.subr.bf16.mxu0 0
        %8055 = vmatpush1.bf16.msra.mxu0 %v7767
        %8056 = vmatprep.subr.bf16.mxu0 0
        %8057 = vmatpush1.bf16.msra.mxu0 %v7768
        %8058 = vmatprep.mubr.bf16.mxu0 %v7352
        %8059 = vmatmul.mubr.bf16.gmra.mrb[0].mxu0 %v7351
        %v8060 = vpop.f32.mrb[0].mxu0
        %v8061 = vadd.f32 %v7900, %v8060
        %v8062 = vpop.f32.mrb[0].mxu0
        %v8063 = vpop.f32.mrb[0].mxu0
        %v8064 = vadd.f32 %v7903, %v8063
        %v8065 = vpop.f32.mrb[0].mxu0
        %8066 = vmatprep.mubr.bf16.mxu0 %v7360
        %8067 = vmatmul.mubr.bf16.gmra.mrb[0].mxu0 %v7359
        %v8068 = vpop.f32.mrb[0].mxu0
        %v8069 = vadd.f32 %v7908, %v8068
        %v8070 = vpop.f32.mrb[0].mxu0
        %v8071 = vpop.f32.mrb[0].mxu0
        %v8072 = vadd.f32 %v7911, %v8071
        %v8073 = vpop.f32.mrb[0].mxu0
        %8074 = vmatprep.mubr.bf16.mxu0 %v7368
        %8075 = vmatmul.mubr.bf16.gmra.mrb[0].mxu0 %v7367
        %v8076 = vpop.f32.mrb[0].mxu0
        %v8077 = vadd.f32 %v7916, %v8076
        %v8078 = vpop.f32.mrb[0].mxu0
        %v8079 = vpop.f32.mrb[0].mxu0
        %v8080 = vadd.f32 %v7919, %v8079
        %v8081 = vpop.f32.mrb[0].mxu0
        %8082 = vmatprep.mubr.bf16.mxu0 %v7376
        %8083 = vmatmul.mubr.bf16.gmra.mrb[0].mxu0 %v7375
        %v8084 = vpop.f32.mrb[0].mxu0
        %v8085 = vadd.f32 %v7924, %v8084
        %v8086 = vpop.f32.mrb[0].mxu0
        %v8087 = vpop.f32.mrb[0].mxu0
        %v8088 = vadd.f32 %v7927, %v8087
        %v8089 = vpop.f32.mrb[0].mxu0
        %8090 = vmatprep.mubr.bf16.mxu0 %v7384
        %8091 = vmatmul.mubr.bf16.gmra.mrb[0].mxu0 %v7383
        %v8092 = vpop.f32.mrb[0].mxu0
        %v8093 = vadd.f32 %v7932, %v8092
        %v8094 = vpop.f32.mrb[0].mxu0
        %v8095 = vpop.f32.mrb[0].mxu0
        %v8096 = vadd.f32 %v7935, %v8095
        %v8097 = vpop.f32.mrb[0].mxu0
        %8098 = vmatprep.mubr.bf16.mxu0 %v7392
        %8099 = vmatmul.mubr.bf16.gmra.mrb[0].mxu0 %v7391
        %v8100 = vpop.f32.mrb[0].mxu0
        %v8101 = vadd.f32 %v7940, %v8100
        %v8102 = vpop.f32.mrb[0].mxu0
        %v8103 = vpop.f32.mrb[0].mxu0
        %v8104 = vadd.f32 %v7943, %v8103
        %v8105 = vpop.f32.mrb[0].mxu0
        %8106 = vmatprep.mubr.bf16.mxu0 %v7400
        %8107 = vmatmul.mubr.bf16.gmra.mrb[0].mxu0 %v7399
        %v8108 = vpop.f32.mrb[0].mxu0
        %v8109 = vadd.f32 %v7948, %v8108
        %v8110 = vpop.f32.mrb[0].mxu0
        %v8111 = vpop.f32.mrb[0].mxu0
        %v8112 = vadd.f32 %v7951, %v8111
        %v8113 = vpop.f32.mrb[0].mxu0
        %8114 = vmatprep.mubr.bf16.mxu0 %v7408
        %8115 = vmatmul.mubr.bf16.gmra.mrb[0].mxu0 %v7407
        %v8116 = vpop.f32.mrb[0].mxu0
        %v8117 = vadd.f32 %v7956, %v8116
        %v8118 = vpop.f32.mrb[0].mxu0
        %v8119 = vpop.f32.mrb[0].mxu0
        %v8120 = vadd.f32 %v7959, %v8119
        %v8121 = vpop.f32.mrb[0].mxu0
        %8122 = vmatprep.mubr.bf16.mxu0 %v7416
        %8123 = vmatmul.mubr.bf16.gmra.mrb[0].mxu0 %v7415
        %v8124 = vpop.f32.mrb[0].mxu0
        %v8125 = vadd.f32 %v7964, %v8124
        %v8126 = vpop.f32.mrb[0].mxu0
        %v8127 = vpop.f32.mrb[0].mxu0
        %v8128 = vadd.f32 %v7967, %v8127
        %v8129 = vpop.f32.mrb[0].mxu0
        %8130 = vmatprep.mubr.bf16.mxu0 %v7424
        %8131 = vmatmul.mubr.bf16.gmra.mrb[0].mxu0 %v7423
        %v8132 = vpop.f32.mrb[0].mxu0
        %v8133 = vadd.f32 %v7972, %v8132
        %v8134 = vpop.f32.mrb[0].mxu0
        %v8135 = vpop.f32.mrb[0].mxu0
        %v8136 = vadd.f32 %v7975, %v8135
        %v8137 = vpop.f32.mrb[0].mxu0
        %8138 = vmatprep.mubr.bf16.mxu0 %v7432
        %8139 = vmatmul.mubr.bf16.gmra.mrb[0].mxu0 %v7431
        %v8140 = vpop.f32.mrb[0].mxu0
        %v8141 = vadd.f32 %v7980, %v8140
        %v8142 = vpop.f32.mrb[0].mxu0
        %v8143 = vpop.f32.mrb[0].mxu0
        %v8144 = vadd.f32 %v7983, %v8143
        %v8145 = vpop.f32.mrb[0].mxu0
        %8146 = vmatprep.mubr.bf16.mxu0 %v7440
        %8147 = vmatmul.mubr.bf16.gmra.mrb[0].mxu0 %v7439
        %v8148 = vpop.f32.mrb[0].mxu0
        %v8149 = vadd.f32 %v7988, %v8148
        %v8150 = vpop.f32.mrb[0].mxu0
        %v8151 = vpop.f32.mrb[0].mxu0
        %v8152 = vadd.f32 %v7991, %v8151
        %v8153 = vpop.f32.mrb[0].mxu0
        %8154 = vmatprep.mubr.bf16.mxu0 %v7448
        %8155 = vmatmul.mubr.bf16.gmra.mrb[0].mxu0 %v7447
        %v8156 = vpop.f32.mrb[0].mxu0
        %v8157 = vadd.f32 %v7996, %v8156
        %v8158 = vpop.f32.mrb[0].mxu0
        %v8159 = vpop.f32.mrb[0].mxu0
        %v8160 = vadd.f32 %v7999, %v8159
        %v8161 = vpop.f32.mrb[0].mxu0
        %8162 = vmatprep.mubr.bf16.mxu0 %v7456
        %8163 = vmatmul.mubr.bf16.gmra.mrb[0].mxu0 %v7455
        %v8164 = vpop.f32.mrb[0].mxu0
        %v8165 = vadd.f32 %v8004, %v8164
        %v8166 = vpop.f32.mrb[0].mxu0
        %v8167 = vpop.f32.mrb[0].mxu0
        %v8168 = vadd.f32 %v8007, %v8167
        %v8169 = vpop.f32.mrb[0].mxu0
        %8170 = vmatprep.mubr.bf16.mxu0 %v7464
        %8171 = vmatmul.mubr.bf16.gmra.mrb[0].mxu0 %v7463
        %v8172 = vpop.f32.mrb[0].mxu0
        %v8173 = vadd.f32 %v8012, %v8172
        %v8174 = vpop.f32.mrb[0].mxu0
        %v8175 = vpop.f32.mrb[0].mxu0
        %v8176 = vadd.f32 %v8015, %v8175
        %v8177 = vpop.f32.mrb[0].mxu0
        %8178 = vmatprep.mubr.bf16.mxu0 %v7472
        %8179 = vmatmul.mubr.bf16.gmra.mrb[0].mxu0 %v7471
        %v8180 = vpop.f32.mrb[0].mxu0
        %v8181 = vadd.f32 %v8020, %v8180
        %v8182 = vpop.f32.mrb[0].mxu0
        %v8183 = vpop.f32.mrb[0].mxu0
        %v8184 = vadd.f32 %v8023, %v8183
        %v8185 = vpop.f32.mrb[0].mxu0
        %8186 = vdwg.mxu0
        %8187 = vmatprep.subr.bf16.mxu0 0
        %8188 = vmatpush1.bf16.msra.mxu0 %v7769
        %8189 = vmatprep.subr.bf16.mxu0 0
        %8190 = vmatpush1.bf16.msra.mxu0 %v7770
        %8191 = vmatprep.subr.bf16.mxu0 0
        %8192 = vmatpush1.bf16.msra.mxu0 %v7771
        %8193 = vmatprep.subr.bf16.mxu0 0
        %8194 = vmatpush1.bf16.msra.mxu0 %v7772
        %8195 = vmatprep.subr.bf16.mxu0 0
        %8196 = vmatpush1.bf16.msra.mxu0 %v7773
        %8197 = vmatprep.subr.bf16.mxu0 0
        %8198 = vmatpush1.bf16.msra.mxu0 %v7774
        %8199 = vmatprep.subr.bf16.mxu0 0
        %8200 = vmatpush1.bf16.msra.mxu0 %v7775
        %8201 = vmatprep.subr.bf16.mxu0 0
        %8202 = vmatpush1.bf16.msra.mxu0 %v7776
        %8203 = vmatprep.subr.bf16.mxu0 0
        %8204 = vmatpush1.bf16.msra.mxu0 %v7777
        %8205 = vmatprep.subr.bf16.mxu0 0
        %8206 = vmatpush1.bf16.msra.mxu0 %v7778
        %8207 = vmatprep.subr.bf16.mxu0 0
        %8208 = vmatpush1.bf16.msra.mxu0 %v7779
        %8209 = vmatprep.subr.bf16.mxu0 0
        %8210 = vmatpush1.bf16.msra.mxu0 %v7780
        %8211 = vmatprep.subr.bf16.mxu0 0
        %8212 = vmatpush1.bf16.msra.mxu0 %v7781
        %8213 = vmatprep.subr.bf16.mxu0 0
        %8214 = vmatpush1.bf16.msra.mxu0 %v7782
        %8215 = vmatprep.subr.bf16.mxu0 0
        %8216 = vmatpush1.bf16.msra.mxu0 %v7783
        %8217 = vmatprep.subr.bf16.mxu0 0
        %8218 = vmatpush1.bf16.msra.mxu0 %v7784
        %8219 = vmatprep.mubr.bf16.mxu0 %v7354
        %8220 = vmatmul.mubr.bf16.gmra.mrb[0].mxu0 %v7353
        %v8221 = vpop.f32.mrb[0].mxu0
        %v8222 = vadd.f32 %v8061, %v8221
        %v8223 = vpop.f32.mrb[0].mxu0
        %v8224 = vpop.f32.mrb[0].mxu0
        %v8225 = vadd.f32 %v8064, %v8224
        %v8226 = vpop.f32.mrb[0].mxu0
        %8227 = vmatprep.mubr.bf16.mxu0 %v7362
        %8228 = vmatmul.mubr.bf16.gmra.mrb[0].mxu0 %v7361
        %v8229 = vpop.f32.mrb[0].mxu0
        %v8230 = vadd.f32 %v8069, %v8229
        %v8231 = vpop.f32.mrb[0].mxu0
        %v8232 = vpop.f32.mrb[0].mxu0
        %v8233 = vadd.f32 %v8072, %v8232
        %v8234 = vpop.f32.mrb[0].mxu0
        %8235 = vmatprep.mubr.bf16.mxu0 %v7370
        %8236 = vmatmul.mubr.bf16.gmra.mrb[0].mxu0 %v7369
        %v8237 = vpop.f32.mrb[0].mxu0
        %v8238 = vadd.f32 %v8077, %v8237
        %v8239 = vpop.f32.mrb[0].mxu0
        %v8240 = vpop.f32.mrb[0].mxu0
        %v8241 = vadd.f32 %v8080, %v8240
        %v8242 = vpop.f32.mrb[0].mxu0
        %8243 = vmatprep.mubr.bf16.mxu0 %v7378
        %8244 = vmatmul.mubr.bf16.gmra.mrb[0].mxu0 %v7377
        %v8245 = vpop.f32.mrb[0].mxu0
        %v8246 = vadd.f32 %v8085, %v8245
        %v8247 = vpop.f32.mrb[0].mxu0
        %v8248 = vpop.f32.mrb[0].mxu0
        %v8249 = vadd.f32 %v8088, %v8248
        %v8250 = vpop.f32.mrb[0].mxu0
        %8251 = vmatprep.mubr.bf16.mxu0 %v7386
        %8252 = vmatmul.mubr.bf16.gmra.mrb[0].mxu0 %v7385
        %v8253 = vpop.f32.mrb[0].mxu0
        %v8254 = vadd.f32 %v8093, %v8253
        %v8255 = vpop.f32.mrb[0].mxu0
        %v8256 = vpop.f32.mrb[0].mxu0
        %v8257 = vadd.f32 %v8096, %v8256
        %v8258 = vpop.f32.mrb[0].mxu0
        %8259 = vmatprep.mubr.bf16.mxu0 %v7394
        %8260 = vmatmul.mubr.bf16.gmra.mrb[0].mxu0 %v7393
        %v8261 = vpop.f32.mrb[0].mxu0
        %v8262 = vadd.f32 %v8101, %v8261
        %v8263 = vpop.f32.mrb[0].mxu0
        %v8264 = vpop.f32.mrb[0].mxu0
        %v8265 = vadd.f32 %v8104, %v8264
        %v8266 = vpop.f32.mrb[0].mxu0
        %8267 = vmatprep.mubr.bf16.mxu0 %v7402
        %8268 = vmatmul.mubr.bf16.gmra.mrb[0].mxu0 %v7401
        %v8269 = vpop.f32.mrb[0].mxu0
        %v8270 = vadd.f32 %v8109, %v8269
        %v8271 = vpop.f32.mrb[0].mxu0
        %v8272 = vpop.f32.mrb[0].mxu0
        %v8273 = vadd.f32 %v8112, %v8272
        %v8274 = vpop.f32.mrb[0].mxu0
        %8275 = vmatprep.mubr.bf16.mxu0 %v7410
        %8276 = vmatmul.mubr.bf16.gmra.mrb[0].mxu0 %v7409
        %v8277 = vpop.f32.mrb[0].mxu0
        %v8278 = vadd.f32 %v8117, %v8277
        %v8279 = vpop.f32.mrb[0].mxu0
        %v8280 = vpop.f32.mrb[0].mxu0
        %v8281 = vadd.f32 %v8120, %v8280
        %v8282 = vpop.f32.mrb[0].mxu0
        %8283 = vmatprep.mubr.bf16.mxu0 %v7418
        %8284 = vmatmul.mubr.bf16.gmra.mrb[0].mxu0 %v7417
        %v8285 = vpop.f32.mrb[0].mxu0
        %v8286 = vadd.f32 %v8125, %v8285
        %v8287 = vpop.f32.mrb[0].mxu0
        %v8288 = vpop.f32.mrb[0].mxu0
        %v8289 = vadd.f32 %v8128, %v8288
        %v8290 = vpop.f32.mrb[0].mxu0
        %8291 = vmatprep.mubr.bf16.mxu0 %v7426
        %8292 = vmatmul.mubr.bf16.gmra.mrb[0].mxu0 %v7425
        %v8293 = vpop.f32.mrb[0].mxu0
        %v8294 = vadd.f32 %v8133, %v8293
        %v8295 = vpop.f32.mrb[0].mxu0
        %v8296 = vpop.f32.mrb[0].mxu0
        %v8297 = vadd.f32 %v8136, %v8296
        %v8298 = vpop.f32.mrb[0].mxu0
        %8299 = vmatprep.mubr.bf16.mxu0 %v7434
        %8300 = vmatmul.mubr.bf16.gmra.mrb[0].mxu0 %v7433
        %v8301 = vpop.f32.mrb[0].mxu0
        %v8302 = vadd.f32 %v8141, %v8301
        %v8303 = vpop.f32.mrb[0].mxu0
        %v8304 = vpop.f32.mrb[0].mxu0
        %v8305 = vadd.f32 %v8144, %v8304
        %v8306 = vpop.f32.mrb[0].mxu0
        %8307 = vmatprep.mubr.bf16.mxu0 %v7442
        %8308 = vmatmul.mubr.bf16.gmra.mrb[0].mxu0 %v7441
        %v8309 = vpop.f32.mrb[0].mxu0
        %v8310 = vadd.f32 %v8149, %v8309
        %v8311 = vpop.f32.mrb[0].mxu0
        %v8312 = vpop.f32.mrb[0].mxu0
        %v8313 = vadd.f32 %v8152, %v8312
        %v8314 = vpop.f32.mrb[0].mxu0
        %8315 = vmatprep.mubr.bf16.mxu0 %v7450
        %8316 = vmatmul.mubr.bf16.gmra.mrb[0].mxu0 %v7449
        %v8317 = vpop.f32.mrb[0].mxu0
        %v8318 = vadd.f32 %v8157, %v8317
        %v8319 = vpop.f32.mrb[0].mxu0
        %v8320 = vpop.f32.mrb[0].mxu0
        %v8321 = vadd.f32 %v8160, %v8320
        %v8322 = vpop.f32.mrb[0].mxu0
        %8323 = vmatprep.mubr.bf16.mxu0 %v7458
        %8324 = vmatmul.mubr.bf16.gmra.mrb[0].mxu0 %v7457
        %v8325 = vpop.f32.mrb[0].mxu0
        %v8326 = vadd.f32 %v8165, %v8325
        %v8327 = vpop.f32.mrb[0].mxu0
        %v8328 = vpop.f32.mrb[0].mxu0
        %v8329 = vadd.f32 %v8168, %v8328
        %v8330 = vpop.f32.mrb[0].mxu0
        %8331 = vmatprep.mubr.bf16.mxu0 %v7466
        %8332 = vmatmul.mubr.bf16.gmra.mrb[0].mxu0 %v7465
        %v8333 = vpop.f32.mrb[0].mxu0
        %v8334 = vadd.f32 %v8173, %v8333
        %v8335 = vpop.f32.mrb[0].mxu0
        %v8336 = vpop.f32.mrb[0].mxu0
        %v8337 = vadd.f32 %v8176, %v8336
        %v8338 = vpop.f32.mrb[0].mxu0
        %8339 = vmatprep.mubr.bf16.mxu0 %v7474
        %8340 = vmatmul.mubr.bf16.gmra.mrb[0].mxu0 %v7473
        %v8341 = vpop.f32.mrb[0].mxu0
        %v8342 = vadd.f32 %v8181, %v8341
        %v8343 = vpop.f32.mrb[0].mxu0
        %v8344 = vpop.f32.mrb[0].mxu0
        %v8345 = vadd.f32 %v8184, %v8344
        %v8346 = vpop.f32.mrb[0].mxu0
        %8347 = vdwg.mxu0
        %8348 = vmatprep.subr.bf16.mxu0 0
        %8349 = vmatpush1.bf16.msra.mxu0 %v7785
        %8350 = vmatprep.subr.bf16.mxu0 0
        %8351 = vmatpush1.bf16.msra.mxu0 %v7786
        %8352 = vmatprep.subr.bf16.mxu0 0
        %8353 = vmatpush1.bf16.msra.mxu0 %v7787
        %8354 = vmatprep.subr.bf16.mxu0 0
        %8355 = vmatpush1.bf16.msra.mxu0 %v7788
        %8356 = vmatprep.subr.bf16.mxu0 0
        %8357 = vmatpush1.bf16.msra.mxu0 %v7789
        %8358 = vmatprep.subr.bf16.mxu0 0
        %8359 = vmatpush1.bf16.msra.mxu0 %v7790
        %8360 = vmatprep.subr.bf16.mxu0 0
        %8361 = vmatpush1.bf16.msra.mxu0 %v7791
        %8362 = vmatprep.subr.bf16.mxu0 0
        %8363 = vmatpush1.bf16.msra.mxu0 %v7792
        %8364 = vmatprep.subr.bf16.mxu0 0
        %8365 = vmatpush1.bf16.msra.mxu0 %v7793
        %8366 = vmatprep.subr.bf16.mxu0 0
        %8367 = vmatpush1.bf16.msra.mxu0 %v7794
        %8368 = vmatprep.subr.bf16.mxu0 0
        %8369 = vmatpush1.bf16.msra.mxu0 %v7795
        %8370 = vmatprep.subr.bf16.mxu0 0
        %8371 = vmatpush1.bf16.msra.mxu0 %v7796
        %8372 = vmatprep.subr.bf16.mxu0 0
        %8373 = vmatpush1.bf16.msra.mxu0 %v7797
        %8374 = vmatprep.subr.bf16.mxu0 0
        %8375 = vmatpush1.bf16.msra.mxu0 %v7798
        %8376 = vmatprep.subr.bf16.mxu0 0
        %8377 = vmatpush1.bf16.msra.mxu0 %v7799
        %8378 = vmatprep.subr.bf16.mxu0 0
        %8379 = vmatpush1.bf16.msra.mxu0 %v7800
        %8380 = vmatprep.mubr.bf16.mxu0 %v7356
        %8381 = vmatmul.mubr.bf16.gmra.mrb[0].mxu0 %v7355
        %v8382 = vpop.f32.mrb[0].mxu0
        %v8383 = vadd.f32 %v8222, %v8382
        %v8384 = vpop.f32.mrb[0].mxu0
        %v8385 = vpop.f32.mrb[0].mxu0
        %v8386 = vadd.f32 %v8225, %v8385
        %v8387 = vpop.f32.mrb[0].mxu0
        %8388 = vmatprep.mubr.bf16.mxu0 %v7364
        %8389 = vmatmul.mubr.bf16.gmra.mrb[0].mxu0 %v7363
        %v8390 = vpop.f32.mrb[0].mxu0
        %v8391 = vadd.f32 %v8230, %v8390
        %v8392 = vpop.f32.mrb[0].mxu0
        %v8393 = vpop.f32.mrb[0].mxu0
        %v8394 = vadd.f32 %v8233, %v8393
        %v8395 = vpop.f32.mrb[0].mxu0
        %8396 = vmatprep.mubr.bf16.mxu0 %v7372
        %8397 = vmatmul.mubr.bf16.gmra.mrb[0].mxu0 %v7371
        %v8398 = vpop.f32.mrb[0].mxu0
        %v8399 = vadd.f32 %v8238, %v8398
        %v8400 = vpop.f32.mrb[0].mxu0
        %v8401 = vpop.f32.mrb[0].mxu0
        %v8402 = vadd.f32 %v8241, %v8401
        %v8403 = vpop.f32.mrb[0].mxu0
        %8404 = vmatprep.mubr.bf16.mxu0 %v7380
        %8405 = vmatmul.mubr.bf16.gmra.mrb[0].mxu0 %v7379
        %v8406 = vpop.f32.mrb[0].mxu0
        %v8407 = vadd.f32 %v8246, %v8406
        %v8408 = vpop.f32.mrb[0].mxu0
        %v8409 = vpop.f32.mrb[0].mxu0
        %v8410 = vadd.f32 %v8249, %v8409
        %v8411 = vpop.f32.mrb[0].mxu0
        %8412 = vmatprep.mubr.bf16.mxu0 %v7388
        %8413 = vmatmul.mubr.bf16.gmra.mrb[0].mxu0 %v7387
        %v8414 = vpop.f32.mrb[0].mxu0
        %v8415 = vadd.f32 %v8254, %v8414
        %v8416 = vpop.f32.mrb[0].mxu0
        %v8417 = vpop.f32.mrb[0].mxu0
        %v8418 = vadd.f32 %v8257, %v8417
        %v8419 = vpop.f32.mrb[0].mxu0
        %8420 = vmatprep.mubr.bf16.mxu0 %v7396
        %8421 = vmatmul.mubr.bf16.gmra.mrb[0].mxu0 %v7395
        %v8422 = vpop.f32.mrb[0].mxu0
        %v8423 = vadd.f32 %v8262, %v8422
        %v8424 = vpop.f32.mrb[0].mxu0
        %v8425 = vpop.f32.mrb[0].mxu0
        %v8426 = vadd.f32 %v8265, %v8425
        %v8427 = vpop.f32.mrb[0].mxu0
        %8428 = vmatprep.mubr.bf16.mxu0 %v7404
        %8429 = vmatmul.mubr.bf16.gmra.mrb[0].mxu0 %v7403
        %v8430 = vpop.f32.mrb[0].mxu0
        %v8431 = vadd.f32 %v8270, %v8430
        %v8432 = vpop.f32.mrb[0].mxu0
        %v8433 = vpop.f32.mrb[0].mxu0
        %v8434 = vadd.f32 %v8273, %v8433
        %v8435 = vpop.f32.mrb[0].mxu0
        %8436 = vmatprep.mubr.bf16.mxu0 %v7412
        %8437 = vmatmul.mubr.bf16.gmra.mrb[0].mxu0 %v7411
        %v8438 = vpop.f32.mrb[0].mxu0
        %v8439 = vadd.f32 %v8278, %v8438
        %v8440 = vpop.f32.mrb[0].mxu0
        %v8441 = vpop.f32.mrb[0].mxu0
        %v8442 = vadd.f32 %v8281, %v8441
        %v8443 = vpop.f32.mrb[0].mxu0
        %8444 = vmatprep.mubr.bf16.mxu0 %v7420
        %8445 = vmatmul.mubr.bf16.gmra.mrb[0].mxu0 %v7419
        %v8446 = vpop.f32.mrb[0].mxu0
        %v8447 = vadd.f32 %v8286, %v8446
        %v8448 = vpop.f32.mrb[0].mxu0
        %v8449 = vpop.f32.mrb[0].mxu0
        %v8450 = vadd.f32 %v8289, %v8449
        %v8451 = vpop.f32.mrb[0].mxu0
        %8452 = vmatprep.mubr.bf16.mxu0 %v7428
        %8453 = vmatmul.mubr.bf16.gmra.mrb[0].mxu0 %v7427
        %v8454 = vpop.f32.mrb[0].mxu0
        %v8455 = vadd.f32 %v8294, %v8454
        %v8456 = vpop.f32.mrb[0].mxu0
        %v8457 = vpop.f32.mrb[0].mxu0
        %v8458 = vadd.f32 %v8297, %v8457
        %v8459 = vpop.f32.mrb[0].mxu0
        %8460 = vmatprep.mubr.bf16.mxu0 %v7436
        %8461 = vmatmul.mubr.bf16.gmra.mrb[0].mxu0 %v7435
        %v8462 = vpop.f32.mrb[0].mxu0
        %v8463 = vadd.f32 %v8302, %v8462
        %v8464 = vpop.f32.mrb[0].mxu0
        %v8465 = vpop.f32.mrb[0].mxu0
        %v8466 = vadd.f32 %v8305, %v8465
        %v8467 = vpop.f32.mrb[0].mxu0
        %8468 = vmatprep.mubr.bf16.mxu0 %v7444
        %8469 = vmatmul.mubr.bf16.gmra.mrb[0].mxu0 %v7443
        %v8470 = vpop.f32.mrb[0].mxu0
        %v8471 = vadd.f32 %v8310, %v8470
        %v8472 = vpop.f32.mrb[0].mxu0
        %v8473 = vpop.f32.mrb[0].mxu0
        %v8474 = vadd.f32 %v8313, %v8473
        %v8475 = vpop.f32.mrb[0].mxu0
        %8476 = vmatprep.mubr.bf16.mxu0 %v7452
        %8477 = vmatmul.mubr.bf16.gmra.mrb[0].mxu0 %v7451
        %v8478 = vpop.f32.mrb[0].mxu0
        %v8479 = vadd.f32 %v8318, %v8478
        %v8480 = vpop.f32.mrb[0].mxu0
        %v8481 = vpop.f32.mrb[0].mxu0
        %v8482 = vadd.f32 %v8321, %v8481
        %v8483 = vpop.f32.mrb[0].mxu0
        %8484 = vmatprep.mubr.bf16.mxu0 %v7460
        %8485 = vmatmul.mubr.bf16.gmra.mrb[0].mxu0 %v7459
        %v8486 = vpop.f32.mrb[0].mxu0
        %v8487 = vadd.f32 %v8326, %v8486
        %v8488 = vpop.f32.mrb[0].mxu0
        %v8489 = vpop.f32.mrb[0].mxu0
        %v8490 = vadd.f32 %v8329, %v8489
        %v8491 = vpop.f32.mrb[0].mxu0
        %8492 = vmatprep.mubr.bf16.mxu0 %v7468
        %8493 = vmatmul.mubr.bf16.gmra.mrb[0].mxu0 %v7467
        %v8494 = vpop.f32.mrb[0].mxu0
        %v8495 = vadd.f32 %v8334, %v8494
        %v8496 = vpop.f32.mrb[0].mxu0
        %v8497 = vpop.f32.mrb[0].mxu0
        %v8498 = vadd.f32 %v8337, %v8497
        %v8499 = vpop.f32.mrb[0].mxu0
        %8500 = vmatprep.mubr.bf16.mxu0 %v7476
        %8501 = vmatmul.mubr.bf16.gmra.mrb[0].mxu0 %v7475
        %v8502 = vpop.f32.mrb[0].mxu0
        %v8503 = vadd.f32 %v8342, %v8502
        %v8504 = vpop.f32.mrb[0].mxu0
        %v8505 = vpop.f32.mrb[0].mxu0
        %v8506 = vadd.f32 %v8345, %v8505
        %v8507 = vpop.f32.mrb[0].mxu0
        %8508 = vdwg.mxu0
        %v8509 = vadd.f32 %v5729, %v8383
        %v8510 = vadd.f32 %v5730, %v8386
        %v8511 = vadd.f32 %v5731, %v8391
        %v8512 = vadd.f32 %v5732, %v8394
        %v8513 = vadd.f32 %v5733, %v8399
        %v8514 = vadd.f32 %v5734, %v8402
        %v8515 = vadd.f32 %v5735, %v8407
        %v8516 = vadd.f32 %v5736, %v8410
        %v8517 = vadd.f32 %v5737, %v8415
        %v8518 = vadd.f32 %v5738, %v8418
        %v8519 = vadd.f32 %v5739, %v8423
        %v8520 = vadd.f32 %v5740, %v8426
        %v8521 = vadd.f32 %v5741, %v8431
        %v8522 = vadd.f32 %v5742, %v8434
        %v8523 = vadd.f32 %v5743, %v8439
        %v8524 = vadd.f32 %v5744, %v8442
        %v8525 = vadd.f32 %v5745, %v8447
        %v8526 = vadd.f32 %v5746, %v8450
        %v8527 = vadd.f32 %v5747, %v8455
        %v8528 = vadd.f32 %v5748, %v8458
        %v8529 = vadd.f32 %v5749, %v8463
        %v8530 = vadd.f32 %v5750, %v8466
        %v8531 = vadd.f32 %v5751, %v8471
        %v8532 = vadd.f32 %v5752, %v8474
        %v8533 = vadd.f32 %v5753, %v8479
        %v8534 = vadd.f32 %v5754, %v8482
        %v8535 = vadd.f32 %v5755, %v8487
        %v8536 = vadd.f32 %v5756, %v8490
        %v8537 = vadd.f32 %v5757, %v8495
        %v8538 = vadd.f32 %v5758, %v8498
        %v8539 = vadd.f32 %v5759, %v8503
        %v8540 = vadd.f32 %v5760, %v8506
        %8541 = vadd.xlane.f32.xlu0 %v8509
        %v8542 = vpop.xlane.xlu0 %8541
        %8543 = vadd.xlane.f32.xlu0 %v8510
        %v8544 = vpop.xlane.xlu0 %8543
        %8545 = vadd.xlane.f32.xlu0 %v8511
        %v8546 = vpop.xlane.xlu0 %8545
        %8547 = vadd.xlane.f32.xlu0 %v8512
        %v8548 = vpop.xlane.xlu0 %8547
        %8549 = vadd.xlane.f32.xlu0 %v8513
        %v8550 = vpop.xlane.xlu0 %8549
        %8551 = vadd.xlane.f32.xlu0 %v8514
        %v8552 = vpop.xlane.xlu0 %8551
        %8553 = vadd.xlane.f32.xlu0 %v8515
        %v8554 = vpop.xlane.xlu0 %8553
        %8555 = vadd.xlane.f32.xlu0 %v8516
        %v8556 = vpop.xlane.xlu0 %8555
        %8557 = vadd.xlane.f32.xlu0 %v8517
        %v8558 = vpop.xlane.xlu0 %8557
        %8559 = vadd.xlane.f32.xlu0 %v8518
        %v8560 = vpop.xlane.xlu0 %8559
        %8561 = vadd.xlane.f32.xlu0 %v8519
        %v8562 = vpop.xlane.xlu0 %8561
        %8563 = vadd.xlane.f32.xlu0 %v8520
        %v8564 = vpop.xlane.xlu0 %8563
        %8565 = vadd.xlane.f32.xlu0 %v8521
        %v8566 = vpop.xlane.xlu0 %8565
        %8567 = vadd.xlane.f32.xlu0 %v8522
        %v8568 = vpop.xlane.xlu0 %8567
        %8569 = vadd.xlane.f32.xlu0 %v8523
        %v8570 = vpop.xlane.xlu0 %8569
        %8571 = vadd.xlane.f32.xlu0 %v8524
        %v8572 = vpop.xlane.xlu0 %8571
        %8573 = vadd.xlane.f32.xlu0 %v8525
        %v8574 = vpop.xlane.xlu0 %8573
        %8575 = vadd.xlane.f32.xlu0 %v8526
        %v8576 = vpop.xlane.xlu0 %8575
        %8577 = vadd.xlane.f32.xlu0 %v8527
        %v8578 = vpop.xlane.xlu0 %8577
        %8579 = vadd.xlane.f32.xlu0 %v8528
        %v8580 = vpop.xlane.xlu0 %8579
        %8581 = vadd.xlane.f32.xlu0 %v8529
        %v8582 = vpop.xlane.xlu0 %8581
        %8583 = vadd.xlane.f32.xlu0 %v8530
        %v8584 = vpop.xlane.xlu0 %8583
        %8585 = vadd.xlane.f32.xlu0 %v8531
        %v8586 = vpop.xlane.xlu0 %8585
        %8587 = vadd.xlane.f32.xlu0 %v8532
        %v8588 = vpop.xlane.xlu0 %8587
        %8589 = vadd.xlane.f32.xlu0 %v8533
        %v8590 = vpop.xlane.xlu0 %8589
        %8591 = vadd.xlane.f32.xlu0 %v8534
        %v8592 = vpop.xlane.xlu0 %8591
        %8593 = vadd.xlane.f32.xlu0 %v8535
        %v8594 = vpop.xlane.xlu0 %8593
        %8595 = vadd.xlane.f32.xlu0 %v8536
        %v8596 = vpop.xlane.xlu0 %8595
        %8597 = vadd.xlane.f32.xlu0 %v8537
        %v8598 = vpop.xlane.xlu0 %8597
        %8599 = vadd.xlane.f32.xlu0 %v8538
        %v8600 = vpop.xlane.xlu0 %8599
        %8601 = vadd.xlane.f32.xlu0 %v8539
        %v8602 = vpop.xlane.xlu0 %8601
        %8603 = vadd.xlane.f32.xlu0 %v8540
        %v8604 = vpop.xlane.xlu0 %8603
        %v8605 = vmul.f32 %v8542, %v5176
        %v8606 = vmul.f32 %v8544, %v5176
        %v8607 = vmul.f32 %v8546, %v5176
        %v8608 = vmul.f32 %v8548, %v5176
        %v8609 = vmul.f32 %v8550, %v5176
        %v8610 = vmul.f32 %v8552, %v5176
        %v8611 = vmul.f32 %v8554, %v5176
        %v8612 = vmul.f32 %v8556, %v5176
        %v8613 = vmul.f32 %v8558, %v5176
        %v8614 = vmul.f32 %v8560, %v5176
        %v8615 = vmul.f32 %v8562, %v5176
        %v8616 = vmul.f32 %v8564, %v5176
        %v8617 = vmul.f32 %v8566, %v5176
        %v8618 = vmul.f32 %v8568, %v5176
        %v8619 = vmul.f32 %v8570, %v5176
        %v8620 = vmul.f32 %v8572, %v5176
        %v8621 = vmul.f32 %v8574, %v5176
        %v8622 = vmul.f32 %v8576, %v5176
        %v8623 = vmul.f32 %v8578, %v5176
        %v8624 = vmul.f32 %v8580, %v5176
        %v8625 = vmul.f32 %v8582, %v5176
        %v8626 = vmul.f32 %v8584, %v5176
        %v8627 = vmul.f32 %v8586, %v5176
        %v8628 = vmul.f32 %v8588, %v5176
        %v8629 = vmul.f32 %v8590, %v5176
        %v8630 = vmul.f32 %v8592, %v5176
        %v8631 = vmul.f32 %v8594, %v5176
        %v8632 = vmul.f32 %v8596, %v5176
        %v8633 = vmul.f32 %v8598, %v5176
        %v8634 = vmul.f32 %v8600, %v5176
        %v8635 = vmul.f32 %v8602, %v5176
        %v8636 = vmul.f32 %v8604, %v5176
        %v8637 = vsub.f32 %v8509, %v8605
        %v8638 = vsub.f32 %v8510, %v8606
        %v8639 = vsub.f32 %v8511, %v8607
        %v8640 = vsub.f32 %v8512, %v8608
        %v8641 = vsub.f32 %v8513, %v8609
        %v8642 = vsub.f32 %v8514, %v8610
        %v8643 = vsub.f32 %v8515, %v8611
        %v8644 = vsub.f32 %v8516, %v8612
        %v8645 = vsub.f32 %v8517, %v8613
        %v8646 = vsub.f32 %v8518, %v8614
        %v8647 = vsub.f32 %v8519, %v8615
        %v8648 = vsub.f32 %v8520, %v8616
        %v8649 = vsub.f32 %v8521, %v8617
        %v8650 = vsub.f32 %v8522, %v8618
        %v8651 = vsub.f32 %v8523, %v8619
        %v8652 = vsub.f32 %v8524, %v8620
        %v8653 = vsub.f32 %v8525, %v8621
        %v8654 = vsub.f32 %v8526, %v8622
        %v8655 = vsub.f32 %v8527, %v8623
        %v8656 = vsub.f32 %v8528, %v8624
        %v8657 = vsub.f32 %v8529, %v8625
        %v8658 = vsub.f32 %v8530, %v8626
        %v8659 = vsub.f32 %v8531, %v8627
        %v8660 = vsub.f32 %v8532, %v8628
        %v8661 = vsub.f32 %v8533, %v8629
        %v8662 = vsub.f32 %v8534, %v8630
        %v8663 = vsub.f32 %v8535, %v8631
        %v8664 = vsub.f32 %v8536, %v8632
        %v8665 = vsub.f32 %v8537, %v8633
        %v8666 = vsub.f32 %v8538, %v8634
        %v8667 = vsub.f32 %v8539, %v8635
        %v8668 = vsub.f32 %v8540, %v8636
        %v8669 = vmul.f32 %v8637, %v8637
        %v8670 = vmul.f32 %v8638, %v8638
        %v8671 = vmul.f32 %v8639, %v8639
        %v8672 = vmul.f32 %v8640, %v8640
        %v8673 = vmul.f32 %v8641, %v8641
        %v8674 = vmul.f32 %v8642, %v8642
        %v8675 = vmul.f32 %v8643, %v8643
        %v8676 = vmul.f32 %v8644, %v8644
        %v8677 = vmul.f32 %v8645, %v8645
        %v8678 = vmul.f32 %v8646, %v8646
        %v8679 = vmul.f32 %v8647, %v8647
        %v8680 = vmul.f32 %v8648, %v8648
        %v8681 = vmul.f32 %v8649, %v8649
        %v8682 = vmul.f32 %v8650, %v8650
        %v8683 = vmul.f32 %v8651, %v8651
        %v8684 = vmul.f32 %v8652, %v8652
        %v8685 = vmul.f32 %v8653, %v8653
        %v8686 = vmul.f32 %v8654, %v8654
        %v8687 = vmul.f32 %v8655, %v8655
        %v8688 = vmul.f32 %v8656, %v8656
        %v8689 = vmul.f32 %v8657, %v8657
        %v8690 = vmul.f32 %v8658, %v8658
        %v8691 = vmul.f32 %v8659, %v8659
        %v8692 = vmul.f32 %v8660, %v8660
        %v8693 = vmul.f32 %v8661, %v8661
        %v8694 = vmul.f32 %v8662, %v8662
        %v8695 = vmul.f32 %v8663, %v8663
        %v8696 = vmul.f32 %v8664, %v8664
        %v8697 = vmul.f32 %v8665, %v8665
        %v8698 = vmul.f32 %v8666, %v8666
        %v8699 = vmul.f32 %v8667, %v8667
        %v8700 = vmul.f32 %v8668, %v8668
        %8701 = vadd.xlane.f32.xlu0 %v8669
        %v8702 = vpop.xlane.xlu0 %8701
        %8703 = vadd.xlane.f32.xlu0 %v8670
        %v8704 = vpop.xlane.xlu0 %8703
        %8705 = vadd.xlane.f32.xlu0 %v8671
        %v8706 = vpop.xlane.xlu0 %8705
        %8707 = vadd.xlane.f32.xlu0 %v8672
        %v8708 = vpop.xlane.xlu0 %8707
        %8709 = vadd.xlane.f32.xlu0 %v8673
        %v8710 = vpop.xlane.xlu0 %8709
        %8711 = vadd.xlane.f32.xlu0 %v8674
        %v8712 = vpop.xlane.xlu0 %8711
        %8713 = vadd.xlane.f32.xlu0 %v8675
        %v8714 = vpop.xlane.xlu0 %8713
        %8715 = vadd.xlane.f32.xlu0 %v8676
        %v8716 = vpop.xlane.xlu0 %8715
        %8717 = vadd.xlane.f32.xlu0 %v8677
        %v8718 = vpop.xlane.xlu0 %8717
        %8719 = vadd.xlane.f32.xlu0 %v8678
        %v8720 = vpop.xlane.xlu0 %8719
        %8721 = vadd.xlane.f32.xlu0 %v8679
        %v8722 = vpop.xlane.xlu0 %8721
        %8723 = vadd.xlane.f32.xlu0 %v8680
        %v8724 = vpop.xlane.xlu0 %8723
        %8725 = vadd.xlane.f32.xlu0 %v8681
        %v8726 = vpop.xlane.xlu0 %8725
        %8727 = vadd.xlane.f32.xlu0 %v8682
        %v8728 = vpop.xlane.xlu0 %8727
        %8729 = vadd.xlane.f32.xlu0 %v8683
        %v8730 = vpop.xlane.xlu0 %8729
        %8731 = vadd.xlane.f32.xlu0 %v8684
        %v8732 = vpop.xlane.xlu0 %8731
        %8733 = vadd.xlane.f32.xlu0 %v8685
        %v8734 = vpop.xlane.xlu0 %8733
        %8735 = vadd.xlane.f32.xlu0 %v8686
        %v8736 = vpop.xlane.xlu0 %8735
        %8737 = vadd.xlane.f32.xlu0 %v8687
        %v8738 = vpop.xlane.xlu0 %8737
        %8739 = vadd.xlane.f32.xlu0 %v8688
        %v8740 = vpop.xlane.xlu0 %8739
        %8741 = vadd.xlane.f32.xlu0 %v8689
        %v8742 = vpop.xlane.xlu0 %8741
        %8743 = vadd.xlane.f32.xlu0 %v8690
        %v8744 = vpop.xlane.xlu0 %8743
        %8745 = vadd.xlane.f32.xlu0 %v8691
        %v8746 = vpop.xlane.xlu0 %8745
        %8747 = vadd.xlane.f32.xlu0 %v8692
        %v8748 = vpop.xlane.xlu0 %8747
        %8749 = vadd.xlane.f32.xlu0 %v8693
        %v8750 = vpop.xlane.xlu0 %8749
        %8751 = vadd.xlane.f32.xlu0 %v8694
        %v8752 = vpop.xlane.xlu0 %8751
        %8753 = vadd.xlane.f32.xlu0 %v8695
        %v8754 = vpop.xlane.xlu0 %8753
        %8755 = vadd.xlane.f32.xlu0 %v8696
        %v8756 = vpop.xlane.xlu0 %8755
        %8757 = vadd.xlane.f32.xlu0 %v8697
        %v8758 = vpop.xlane.xlu0 %8757
        %8759 = vadd.xlane.f32.xlu0 %v8698
        %v8760 = vpop.xlane.xlu0 %8759
        %8761 = vadd.xlane.f32.xlu0 %v8699
        %v8762 = vpop.xlane.xlu0 %8761
        %8763 = vadd.xlane.f32.xlu0 %v8700
        %v8764 = vpop.xlane.xlu0 %8763
        %v8765 = vmul.f32 %v8702, 0.007874016
        %v8766 = vmul.f32 %v8704, 0.007874016
        %v8767 = vmul.f32 %v8706, 0.007874016
        %v8768 = vmul.f32 %v8708, 0.007874016
        %v8769 = vmul.f32 %v8710, 0.007874016
        %v8770 = vmul.f32 %v8712, 0.007874016
        %v8771 = vmul.f32 %v8714, 0.007874016
        %v8772 = vmul.f32 %v8716, 0.007874016
        %v8773 = vmul.f32 %v8718, 0.007874016
        %v8774 = vmul.f32 %v8720, 0.007874016
        %v8775 = vmul.f32 %v8722, 0.007874016
        %v8776 = vmul.f32 %v8724, 0.007874016
        %v8777 = vmul.f32 %v8726, 0.007874016
        %v8778 = vmul.f32 %v8728, 0.007874016
        %v8779 = vmul.f32 %v8730, 0.007874016
        %v8780 = vmul.f32 %v8732, 0.007874016
        %v8781 = vmul.f32 %v8734, 0.007874016
        %v8782 = vmul.f32 %v8736, 0.007874016
        %v8783 = vmul.f32 %v8738, 0.007874016
        %v8784 = vmul.f32 %v8740, 0.007874016
        %v8785 = vmul.f32 %v8742, 0.007874016
        %v8786 = vmul.f32 %v8744, 0.007874016
        %v8787 = vmul.f32 %v8746, 0.007874016
        %v8788 = vmul.f32 %v8748, 0.007874016
        %v8789 = vmul.f32 %v8750, 0.007874016
        %v8790 = vmul.f32 %v8752, 0.007874016
        %v8791 = vmul.f32 %v8754, 0.007874016
        %v8792 = vmul.f32 %v8756, 0.007874016
        %v8793 = vmul.f32 %v8758, 0.007874016
        %v8794 = vmul.f32 %v8760, 0.007874016
        %v8795 = vmul.f32 %v8762, 0.007874016
        %v8796 = vmul.f32 %v8764, 0.007874016
        %v8797 = vrsqrt.pop %v8765
        %v8798 = vmul.f32 %v8765, %v8797
        %vm8799 = vcmp.eq.f32.partialorder %v8765, inf
        %v8800 = vsel %vm8799, %v8765, %v8798
        %vm8801 = vcmp.eq.f32.partialorder %v8765, 0.0
        %v8802 = vand.u32 %v8765, 2147483648
        %v8803 = vsel %vm8801, %v8802, %v8800
        %v8804 = vrsqrt.pop %v8766
        %v8805 = vmul.f32 %v8766, %v8804
        %vm8806 = vcmp.eq.f32.partialorder %v8766, inf
        %v8807 = vsel %vm8806, %v8766, %v8805
        %vm8808 = vcmp.eq.f32.partialorder %v8766, 0.0
        %v8809 = vand.u32 %v8766, 2147483648
        %v8810 = vsel %vm8808, %v8809, %v8807
        %v8811 = vrsqrt.pop %v8767
        %v8812 = vmul.f32 %v8767, %v8811
        %vm8813 = vcmp.eq.f32.partialorder %v8767, inf
        %v8814 = vsel %vm8813, %v8767, %v8812
        %vm8815 = vcmp.eq.f32.partialorder %v8767, 0.0
        %v8816 = vand.u32 %v8767, 2147483648
        %v8817 = vsel %vm8815, %v8816, %v8814
        %v8818 = vrsqrt.pop %v8768
        %v8819 = vmul.f32 %v8768, %v8818
        %vm8820 = vcmp.eq.f32.partialorder %v8768, inf
        %v8821 = vsel %vm8820, %v8768, %v8819
        %vm8822 = vcmp.eq.f32.partialorder %v8768, 0.0
        %v8823 = vand.u32 %v8768, 2147483648
        %v8824 = vsel %vm8822, %v8823, %v8821
        %v8825 = vrsqrt.pop %v8769
        %v8826 = vmul.f32 %v8769, %v8825
        %vm8827 = vcmp.eq.f32.partialorder %v8769, inf
        %v8828 = vsel %vm8827, %v8769, %v8826
        %vm8829 = vcmp.eq.f32.partialorder %v8769, 0.0
        %v8830 = vand.u32 %v8769, 2147483648
        %v8831 = vsel %vm8829, %v8830, %v8828
        %v8832 = vrsqrt.pop %v8770
        %v8833 = vmul.f32 %v8770, %v8832
        %vm8834 = vcmp.eq.f32.partialorder %v8770, inf
        %v8835 = vsel %vm8834, %v8770, %v8833
        %vm8836 = vcmp.eq.f32.partialorder %v8770, 0.0
        %v8837 = vand.u32 %v8770, 2147483648
        %v8838 = vsel %vm8836, %v8837, %v8835
        %v8839 = vrsqrt.pop %v8771
        %v8840 = vmul.f32 %v8771, %v8839
        %vm8841 = vcmp.eq.f32.partialorder %v8771, inf
        %v8842 = vsel %vm8841, %v8771, %v8840
        %vm8843 = vcmp.eq.f32.partialorder %v8771, 0.0
        %v8844 = vand.u32 %v8771, 2147483648
        %v8845 = vsel %vm8843, %v8844, %v8842
        %v8846 = vrsqrt.pop %v8772
        %v8847 = vmul.f32 %v8772, %v8846
        %vm8848 = vcmp.eq.f32.partialorder %v8772, inf
        %v8849 = vsel %vm8848, %v8772, %v8847
        %vm8850 = vcmp.eq.f32.partialorder %v8772, 0.0
        %v8851 = vand.u32 %v8772, 2147483648
        %v8852 = vsel %vm8850, %v8851, %v8849
        %v8853 = vrsqrt.pop %v8773
        %v8854 = vmul.f32 %v8773, %v8853
        %vm8855 = vcmp.eq.f32.partialorder %v8773, inf
        %v8856 = vsel %vm8855, %v8773, %v8854
        %vm8857 = vcmp.eq.f32.partialorder %v8773, 0.0
        %v8858 = vand.u32 %v8773, 2147483648
        %v8859 = vsel %vm8857, %v8858, %v8856
        %v8860 = vrsqrt.pop %v8774
        %v8861 = vmul.f32 %v8774, %v8860
        %vm8862 = vcmp.eq.f32.partialorder %v8774, inf
        %v8863 = vsel %vm8862, %v8774, %v8861
        %vm8864 = vcmp.eq.f32.partialorder %v8774, 0.0
        %v8865 = vand.u32 %v8774, 2147483648
        %v8866 = vsel %vm8864, %v8865, %v8863
        %v8867 = vrsqrt.pop %v8775
        %v8868 = vmul.f32 %v8775, %v8867
        %vm8869 = vcmp.eq.f32.partialorder %v8775, inf
        %v8870 = vsel %vm8869, %v8775, %v8868
        %vm8871 = vcmp.eq.f32.partialorder %v8775, 0.0
        %v8872 = vand.u32 %v8775, 2147483648
        %v8873 = vsel %vm8871, %v8872, %v8870
        %v8874 = vrsqrt.pop %v8776
        %v8875 = vmul.f32 %v8776, %v8874
        %vm8876 = vcmp.eq.f32.partialorder %v8776, inf
        %v8877 = vsel %vm8876, %v8776, %v8875
        %vm8878 = vcmp.eq.f32.partialorder %v8776, 0.0
        %v8879 = vand.u32 %v8776, 2147483648
        %v8880 = vsel %vm8878, %v8879, %v8877
        %v8881 = vrsqrt.pop %v8777
        %v8882 = vmul.f32 %v8777, %v8881
        %vm8883 = vcmp.eq.f32.partialorder %v8777, inf
        %v8884 = vsel %vm8883, %v8777, %v8882
        %vm8885 = vcmp.eq.f32.partialorder %v8777, 0.0
        %v8886 = vand.u32 %v8777, 2147483648
        %v8887 = vsel %vm8885, %v8886, %v8884
        %v8888 = vrsqrt.pop %v8778
        %v8889 = vmul.f32 %v8778, %v8888
        %vm8890 = vcmp.eq.f32.partialorder %v8778, inf
        %v8891 = vsel %vm8890, %v8778, %v8889
        %vm8892 = vcmp.eq.f32.partialorder %v8778, 0.0
        %v8893 = vand.u32 %v8778, 2147483648
        %v8894 = vsel %vm8892, %v8893, %v8891
        %v8895 = vrsqrt.pop %v8779
        %v8896 = vmul.f32 %v8779, %v8895
        %vm8897 = vcmp.eq.f32.partialorder %v8779, inf
        %v8898 = vsel %vm8897, %v8779, %v8896
        %vm8899 = vcmp.eq.f32.partialorder %v8779, 0.0
        %v8900 = vand.u32 %v8779, 2147483648
        %v8901 = vsel %vm8899, %v8900, %v8898
        %v8902 = vrsqrt.pop %v8780
        %v8903 = vmul.f32 %v8780, %v8902
        %vm8904 = vcmp.eq.f32.partialorder %v8780, inf
        %v8905 = vsel %vm8904, %v8780, %v8903
        %vm8906 = vcmp.eq.f32.partialorder %v8780, 0.0
        %v8907 = vand.u32 %v8780, 2147483648
        %v8908 = vsel %vm8906, %v8907, %v8905
        %v8909 = vrsqrt.pop %v8781
        %v8910 = vmul.f32 %v8781, %v8909
        %vm8911 = vcmp.eq.f32.partialorder %v8781, inf
        %v8912 = vsel %vm8911, %v8781, %v8910
        %vm8913 = vcmp.eq.f32.partialorder %v8781, 0.0
        %v8914 = vand.u32 %v8781, 2147483648
        %v8915 = vsel %vm8913, %v8914, %v8912
        %v8916 = vrsqrt.pop %v8782
        %v8917 = vmul.f32 %v8782, %v8916
        %vm8918 = vcmp.eq.f32.partialorder %v8782, inf
        %v8919 = vsel %vm8918, %v8782, %v8917
        %vm8920 = vcmp.eq.f32.partialorder %v8782, 0.0
        %v8921 = vand.u32 %v8782, 2147483648
        %v8922 = vsel %vm8920, %v8921, %v8919
        %v8923 = vrsqrt.pop %v8783
        %v8924 = vmul.f32 %v8783, %v8923
        %vm8925 = vcmp.eq.f32.partialorder %v8783, inf
        %v8926 = vsel %vm8925, %v8783, %v8924
        %vm8927 = vcmp.eq.f32.partialorder %v8783, 0.0
        %v8928 = vand.u32 %v8783, 2147483648
        %v8929 = vsel %vm8927, %v8928, %v8926
        %v8930 = vrsqrt.pop %v8784
        %v8931 = vmul.f32 %v8784, %v8930
        %vm8932 = vcmp.eq.f32.partialorder %v8784, inf
        %v8933 = vsel %vm8932, %v8784, %v8931
        %vm8934 = vcmp.eq.f32.partialorder %v8784, 0.0
        %v8935 = vand.u32 %v8784, 2147483648
        %v8936 = vsel %vm8934, %v8935, %v8933
        %v8937 = vrsqrt.pop %v8785
        %v8938 = vmul.f32 %v8785, %v8937
        %vm8939 = vcmp.eq.f32.partialorder %v8785, inf
        %v8940 = vsel %vm8939, %v8785, %v8938
        %vm8941 = vcmp.eq.f32.partialorder %v8785, 0.0
        %v8942 = vand.u32 %v8785, 2147483648
        %v8943 = vsel %vm8941, %v8942, %v8940
        %v8944 = vrsqrt.pop %v8786
        %v8945 = vmul.f32 %v8786, %v8944
        %vm8946 = vcmp.eq.f32.partialorder %v8786, inf
        %v8947 = vsel %vm8946, %v8786, %v8945
        %vm8948 = vcmp.eq.f32.partialorder %v8786, 0.0
        %v8949 = vand.u32 %v8786, 2147483648
        %v8950 = vsel %vm8948, %v8949, %v8947
        %v8951 = vrsqrt.pop %v8787
        %v8952 = vmul.f32 %v8787, %v8951
        %vm8953 = vcmp.eq.f32.partialorder %v8787, inf
        %v8954 = vsel %vm8953, %v8787, %v8952
        %vm8955 = vcmp.eq.f32.partialorder %v8787, 0.0
        %v8956 = vand.u32 %v8787, 2147483648
        %v8957 = vsel %vm8955, %v8956, %v8954
        %v8958 = vrsqrt.pop %v8788
        %v8959 = vmul.f32 %v8788, %v8958
        %vm8960 = vcmp.eq.f32.partialorder %v8788, inf
        %v8961 = vsel %vm8960, %v8788, %v8959
        %vm8962 = vcmp.eq.f32.partialorder %v8788, 0.0
        %v8963 = vand.u32 %v8788, 2147483648
        %v8964 = vsel %vm8962, %v8963, %v8961
        %v8965 = vrsqrt.pop %v8789
        %v8966 = vmul.f32 %v8789, %v8965
        %vm8967 = vcmp.eq.f32.partialorder %v8789, inf
        %v8968 = vsel %vm8967, %v8789, %v8966
        %vm8969 = vcmp.eq.f32.partialorder %v8789, 0.0
        %v8970 = vand.u32 %v8789, 2147483648
        %v8971 = vsel %vm8969, %v8970, %v8968
        %v8972 = vrsqrt.pop %v8790
        %v8973 = vmul.f32 %v8790, %v8972
        %vm8974 = vcmp.eq.f32.partialorder %v8790, inf
        %v8975 = vsel %vm8974, %v8790, %v8973
        %vm8976 = vcmp.eq.f32.partialorder %v8790, 0.0
        %v8977 = vand.u32 %v8790, 2147483648
        %v8978 = vsel %vm8976, %v8977, %v8975
        %v8979 = vrsqrt.pop %v8791
        %v8980 = vmul.f32 %v8791, %v8979
        %vm8981 = vcmp.eq.f32.partialorder %v8791, inf
        %v8982 = vsel %vm8981, %v8791, %v8980
        %vm8983 = vcmp.eq.f32.partialorder %v8791, 0.0
        %v8984 = vand.u32 %v8791, 2147483648
        %v8985 = vsel %vm8983, %v8984, %v8982
        %v8986 = vrsqrt.pop %v8792
        %v8987 = vmul.f32 %v8792, %v8986
        %vm8988 = vcmp.eq.f32.partialorder %v8792, inf
        %v8989 = vsel %vm8988, %v8792, %v8987
        %vm8990 = vcmp.eq.f32.partialorder %v8792, 0.0
        %v8991 = vand.u32 %v8792, 2147483648
        %v8992 = vsel %vm8990, %v8991, %v8989
        %v8993 = vrsqrt.pop %v8793
        %v8994 = vmul.f32 %v8793, %v8993
        %vm8995 = vcmp.eq.f32.partialorder %v8793, inf
        %v8996 = vsel %vm8995, %v8793, %v8994
        %vm8997 = vcmp.eq.f32.partialorder %v8793, 0.0
        %v8998 = vand.u32 %v8793, 2147483648
        %v8999 = vsel %vm8997, %v8998, %v8996
        %v9000 = vrsqrt.pop %v8794
        %v9001 = vmul.f32 %v8794, %v9000
        %vm9002 = vcmp.eq.f32.partialorder %v8794, inf
        %v9003 = vsel %vm9002, %v8794, %v9001
        %vm9004 = vcmp.eq.f32.partialorder %v8794, 0.0
        %v9005 = vand.u32 %v8794, 2147483648
        %v9006 = vsel %vm9004, %v9005, %v9003
        %v9007 = vrsqrt.pop %v8795
        %v9008 = vmul.f32 %v8795, %v9007
        %vm9009 = vcmp.eq.f32.partialorder %v8795, inf
        %v9010 = vsel %vm9009, %v8795, %v9008
        %vm9011 = vcmp.eq.f32.partialorder %v8795, 0.0
        %v9012 = vand.u32 %v8795, 2147483648
        %v9013 = vsel %vm9011, %v9012, %v9010
        %v9014 = vrsqrt.pop %v8796
        %v9015 = vmul.f32 %v8796, %v9014
        %vm9016 = vcmp.eq.f32.partialorder %v8796, inf
        %v9017 = vsel %vm9016, %v8796, %v9015
        %vm9018 = vcmp.eq.f32.partialorder %v8796, 0.0
        %v9019 = vand.u32 %v8796, 2147483648
        %v9020 = vsel %vm9018, %v9019, %v9017
        %v9021 = vadd.f32 %v8803, 1e-06
        %v9022 = vadd.f32 %v8810, 1e-06
        %v9023 = vadd.f32 %v8817, 1e-06
        %v9024 = vadd.f32 %v8824, 1e-06
        %v9025 = vadd.f32 %v8831, 1e-06
        %v9026 = vadd.f32 %v8838, 1e-06
        %v9027 = vadd.f32 %v8845, 1e-06
        %v9028 = vadd.f32 %v8852, 1e-06
        %v9029 = vadd.f32 %v8859, 1e-06
        %v9030 = vadd.f32 %v8866, 1e-06
        %v9031 = vadd.f32 %v8873, 1e-06
        %v9032 = vadd.f32 %v8880, 1e-06
        %v9033 = vadd.f32 %v8887, 1e-06
        %v9034 = vadd.f32 %v8894, 1e-06
        %v9035 = vadd.f32 %v8901, 1e-06
        %v9036 = vadd.f32 %v8908, 1e-06
        %v9037 = vadd.f32 %v8915, 1e-06
        %v9038 = vadd.f32 %v8922, 1e-06
        %v9039 = vadd.f32 %v8929, 1e-06
        %v9040 = vadd.f32 %v8936, 1e-06
        %v9041 = vadd.f32 %v8943, 1e-06
        %v9042 = vadd.f32 %v8950, 1e-06
        %v9043 = vadd.f32 %v8957, 1e-06
        %v9044 = vadd.f32 %v8964, 1e-06
        %v9045 = vadd.f32 %v8971, 1e-06
        %v9046 = vadd.f32 %v8978, 1e-06
        %v9047 = vadd.f32 %v8985, 1e-06
        %v9048 = vadd.f32 %v8992, 1e-06
        %v9049 = vadd.f32 %v8999, 1e-06
        %v9050 = vadd.f32 %v9006, 1e-06
        %v9051 = vadd.f32 %v9013, 1e-06
        %v9052 = vadd.f32 %v9020, 1e-06
        %v9053 = vrcp.pop %v9021
        %v9054 = vrcp.pop %v9022
        %v9055 = vrcp.pop %v9023
        %v9056 = vrcp.pop %v9024
        %v9057 = vrcp.pop %v9025
        %v9058 = vrcp.pop %v9026
        %v9059 = vrcp.pop %v9027
        %v9060 = vrcp.pop %v9028
        %v9061 = vrcp.pop %v9029
        %v9062 = vrcp.pop %v9030
        %v9063 = vrcp.pop %v9031
        %v9064 = vrcp.pop %v9032
        %v9065 = vrcp.pop %v9033
        %v9066 = vrcp.pop %v9034
        %v9067 = vrcp.pop %v9035
        %v9068 = vrcp.pop %v9036
        %v9069 = vrcp.pop %v9037
        %v9070 = vrcp.pop %v9038
        %v9071 = vrcp.pop %v9039
        %v9072 = vrcp.pop %v9040
        %v9073 = vrcp.pop %v9041
        %v9074 = vrcp.pop %v9042
        %v9075 = vrcp.pop %v9043
        %v9076 = vrcp.pop %v9044
        %v9077 = vrcp.pop %v9045
        %v9078 = vrcp.pop %v9046
        %v9079 = vrcp.pop %v9047
        %v9080 = vrcp.pop %v9048
        %v9081 = vrcp.pop %v9049
        %v9082 = vrcp.pop %v9050
        %v9083 = vrcp.pop %v9051
        %v9084 = vrcp.pop %v9052
        %v9085 = vmul.f32 %v8637, %v9053
        %v9086 = vmul.f32 %v8638, %v9054
        %v9087 = vmul.f32 %v8639, %v9055
        %v9088 = vmul.f32 %v8640, %v9056
        %v9089 = vmul.f32 %v8641, %v9057
        %v9090 = vmul.f32 %v8642, %v9058
        %v9091 = vmul.f32 %v8643, %v9059
        %v9092 = vmul.f32 %v8644, %v9060
        %v9093 = vmul.f32 %v8645, %v9061
        %v9094 = vmul.f32 %v8646, %v9062
        %v9095 = vmul.f32 %v8647, %v9063
        %v9096 = vmul.f32 %v8648, %v9064
        %v9097 = vmul.f32 %v8649, %v9065
        %v9098 = vmul.f32 %v8650, %v9066
        %v9099 = vmul.f32 %v8651, %v9067
        %v9100 = vmul.f32 %v8652, %v9068
        %v9101 = vmul.f32 %v8653, %v9069
        %v9102 = vmul.f32 %v8654, %v9070
        %v9103 = vmul.f32 %v8655, %v9071
        %v9104 = vmul.f32 %v8656, %v9072
        %v9105 = vmul.f32 %v8657, %v9073
        %v9106 = vmul.f32 %v8658, %v9074
        %v9107 = vmul.f32 %v8659, %v9075
        %v9108 = vmul.f32 %v8660, %v9076
        %v9109 = vmul.f32 %v8661, %v9077
        %v9110 = vmul.f32 %v8662, %v9078
        %v9111 = vmul.f32 %v8663, %v9079
        %v9112 = vmul.f32 %v8664, %v9080
        %v9113 = vmul.f32 %v8665, %v9081
        %v9114 = vmul.f32 %v8666, %v9082
        %v9115 = vmul.f32 %v8667, %v9083
        %v9116 = vmul.f32 %v8668, %v9084
        %v9117 = vlaneseq
        %v9118 = vshrl.u32 %v9117, 7
        %v9119 = vsub.s32 6, %v9118
        %v9120 = vrot.slane %v377, %v9119
        %v9121 = vmul.f32 %v9120, %v9085
        %v9122 = vmul.f32 %v9120, %v9086
        %v9123 = vmul.f32 %v9120, %v9087
        %v9124 = vmul.f32 %v9120, %v9088
        %v9125 = vmul.f32 %v9120, %v9089
        %v9126 = vmul.f32 %v9120, %v9090
        %v9127 = vmul.f32 %v9120, %v9091
        %v9128 = vmul.f32 %v9120, %v9092
        %v9129 = vmul.f32 %v9120, %v9093
        %v9130 = vmul.f32 %v9120, %v9094
        %v9131 = vmul.f32 %v9120, %v9095
        %v9132 = vmul.f32 %v9120, %v9096
        %v9133 = vmul.f32 %v9120, %v9097
        %v9134 = vmul.f32 %v9120, %v9098
        %v9135 = vmul.f32 %v9120, %v9099
        %v9136 = vmul.f32 %v9120, %v9100
        %v9137 = vmul.f32 %v9120, %v9101
        %v9138 = vmul.f32 %v9120, %v9102
        %v9139 = vmul.f32 %v9120, %v9103
        %v9140 = vmul.f32 %v9120, %v9104
        %v9141 = vmul.f32 %v9120, %v9105
        %v9142 = vmul.f32 %v9120, %v9106
        %v9143 = vmul.f32 %v9120, %v9107
        %v9144 = vmul.f32 %v9120, %v9108
        %v9145 = vmul.f32 %v9120, %v9109
        %v9146 = vmul.f32 %v9120, %v9110
        %v9147 = vmul.f32 %v9120, %v9111
        %v9148 = vmul.f32 %v9120, %v9112
        %v9149 = vmul.f32 %v9120, %v9113
        %v9150 = vmul.f32 %v9120, %v9114
        %v9151 = vmul.f32 %v9120, %v9115
        %v9152 = vmul.f32 %v9120, %v9116
        %v9153 = vlaneseq
        %v9154 = vshrl.u32 %v9153, 7
        %v9155 = vsub.s32 7, %v9154
        %v9156 = vrot.slane %v377, %v9155
        %v9157 = vadd.f32 %v9121, %v9156
        %v9158 = vadd.f32 %v9122, %v9156
        %v9159 = vadd.f32 %v9123, %v9156
        %v9160 = vadd.f32 %v9124, %v9156
        %v9161 = vadd.f32 %v9125, %v9156
        %v9162 = vadd.f32 %v9126, %v9156
        %v9163 = vadd.f32 %v9127, %v9156
        %v9164 = vadd.f32 %v9128, %v9156
        %v9165 = vadd.f32 %v9129, %v9156
        %v9166 = vadd.f32 %v9130, %v9156
        %v9167 = vadd.f32 %v9131, %v9156
        %v9168 = vadd.f32 %v9132, %v9156
        %v9169 = vadd.f32 %v9133, %v9156
        %v9170 = vadd.f32 %v9134, %v9156
        %v9171 = vadd.f32 %v9135, %v9156
        %v9172 = vadd.f32 %v9136, %v9156
        %v9173 = vadd.f32 %v9137, %v9156
        %v9174 = vadd.f32 %v9138, %v9156
        %v9175 = vadd.f32 %v9139, %v9156
        %v9176 = vadd.f32 %v9140, %v9156
        %v9177 = vadd.f32 %v9141, %v9156
        %v9178 = vadd.f32 %v9142, %v9156
        %v9179 = vadd.f32 %v9143, %v9156
        %v9180 = vadd.f32 %v9144, %v9156
        %v9181 = vadd.f32 %v9145, %v9156
        %v9182 = vadd.f32 %v9146, %v9156
        %v9183 = vadd.f32 %v9147, %v9156
        %v9184 = vadd.f32 %v9148, %v9156
        %v9185 = vadd.f32 %v9149, %v9156
        %v9186 = vadd.f32 %v9150, %v9156
        %v9187 = vadd.f32 %v9151, %v9156
        %v9188 = vadd.f32 %v9152, %v9156
        %9189 = vst [vmem:[%s341] sm:$0xff] %v9157
        %9190 = vst [vmem:[%s341 + $0x8] sm:$0xff] %v9158
        %9191 = vst [vmem:[%s341 + $0x10] sm:$0xff] %v9159
        %9192 = vst [vmem:[%s341 + $0x18] sm:$0xff] %v9160
        %9193 = vst [vmem:[%s341 + $0x20] sm:$0xff] %v9161
        %9194 = vst [vmem:[%s341 + $0x28] sm:$0xff] %v9162
        %9195 = vst [vmem:[%s341 + $0x30] sm:$0xff] %v9163
        %9196 = vst [vmem:[%s341 + $0x38] sm:$0xff] %v9164
        %9197 = vst [vmem:[%s341 + $0x40] sm:$0xff] %v9165
        %9198 = vst [vmem:[%s341 + $0x48] sm:$0xff] %v9166
        %9199 = vst [vmem:[%s341 + $0x50] sm:$0xff] %v9167
        %9200 = vst [vmem:[%s341 + $0x58] sm:$0xff] %v9168
        %9201 = vst [vmem:[%s341 + $0x60] sm:$0xff] %v9169
        %9202 = vst [vmem:[%s341 + $0x68] sm:$0xff] %v9170
        %9203 = vst [vmem:[%s341 + $0x70] sm:$0xff] %v9171
        %9204 = vst [vmem:[%s341 + $0x78] sm:$0xff] %v9172
        %9205 = vst [vmem:[%s341 + $0x80] sm:$0xff] %v9173
        %9206 = vst [vmem:[%s341 + $0x88] sm:$0xff] %v9174
        %9207 = vst [vmem:[%s341 + $0x90] sm:$0xff] %v9175
        %9208 = vst [vmem:[%s341 + $0x98] sm:$0xff] %v9176
        %9209 = vst [vmem:[%s341 + $0xa0] sm:$0xff] %v9177
        %9210 = vst [vmem:[%s341 + $0xa8] sm:$0xff] %v9178
        %9211 = vst [vmem:[%s341 + $0xb0] sm:$0xff] %v9179
        %9212 = vst [vmem:[%s341 + $0xb8] sm:$0xff] %v9180
        %9213 = vst [vmem:[%s341 + $0xc0] sm:$0xff] %v9181
        %9214 = vst [vmem:[%s341 + $0xc8] sm:$0xff] %v9182
        %9215 = vst [vmem:[%s341 + $0xd0] sm:$0xff] %v9183
        %9216 = vst [vmem:[%s341 + $0xd8] sm:$0xff] %v9184
        %9217 = vst [vmem:[%s341 + $0xe0] sm:$0xff] %v9185
        %9218 = vst [vmem:[%s341 + $0xe8] sm:$0xff] %v9186
        %9219 = vst [vmem:[%s341 + $0xf0] sm:$0xff] %v9187
        %9220 = vst [vmem:[%s341 + $0xf8] sm:$0xff] %v9188
        %s9221 = sand.u32 %s165, 1
        %s9222 = scalar_lea.sflag [#allocation5], %s9221
        %s9223 = sand.u32 %s165, 1
        %s9224 = smul.addr %s9223, 256
        %s9225 = scalar_lea.vmem [#allocation14], %s9224
        // Predicated region
        $region69: #{tpu_custom_call.1} parent=43 // pred_check
          %p9226 = pneg %p175
        $region70: #{tpu_custom_call.1} parent=43 // pred_check_branch
          %9228 = sbr.rel (%p9226) target = $region72
        $region71: #{tpu_custom_call.1} parent=43 // pred_region
          %s9229 = smul.u32 2, %s26
          %s9231 = ssub.s32 4096, 4096
          %9232 = vsyncadd %s9222, %s9231
          %s9233 = smul.addr %s9229, 16
          %s9234 = smul.addr %s9233, 128
          %s9235 = scalar_lea.hbm %s6, %s9234
          %s9236 = sshll.u32 %s9225, 4
          %s9237 = int_to_ptr.vmem [resolvable:$true] %s9236
          %9242 = dma.vmem_to_hbm [thread:$0]  %s9237, 4096, %s9235, %s9222, 128, 128, 8
        $region72: #{tpu_custom_call.1} parent=43 // pred_fallthru
          _
      $region44: #{tpu_custom_call.1} parent=5 // pred_fallthru
        _
      %p9243 = scmp.le.s32.totalorder 2, %s21
      // Predicated region
      $region73: #{tpu_custom_call.1} parent=5 // pred_check
        %p9244 = pneg %p9243
      $region74: #{tpu_custom_call.1} parent=5 // pred_check_branch
        %9246 = sbr.rel (%p9244) target = $region76
      $region75: #{tpu_custom_call.1} parent=5 // pred_region
        %s9247 = ssub.s32 %s21, 2
        // Predicated region
        $region77: #{tpu_custom_call.1} parent=75 // pred_check
          %p9248 = pneg %p181
        $region78: #{tpu_custom_call.1} parent=75 // pred_check_branch
          %9250 = sbr.rel (%p9248) target = $region80
        $region79: #{tpu_custom_call.1} parent=75 // pred_region
          %s9251 = sand.u32 %s166, 1
          %s9252 = scalar_lea.sflag [#allocation5], %s9251
          %s9253 = sand.u32 %s166, 1
          %s9254 = smul.addr %s9253, 256
          %s9255 = scalar_lea.vmem [#allocation14], %s9254
          %9256 = dma.done %s9252, 4096
        $region80: #{tpu_custom_call.1} parent=75 // pred_fallthru
          _
      $region76: #{tpu_custom_call.1} parent=5 // pred_fallthru
        _
    $region6: #{tpu_custom_call.1} parent=1 // loop_footer
      %s25 = sadd.s32 1, %s21
    $region7: #{tpu_custom_call.1} parent=1 // loop_footer_branch
      %20 = sbr.rel target = $region3
    $region8: #{tpu_custom_call.1} parent=1 // loop_exit
      _
    %9257 = vsyncpa [#allocation4], 1
    %s9258 = scalar_lea.sflag [#allocation4], 1
    %9259 = vsyncpa %s9258, 1
    %9260 = vsyncpa [#allocation7], 1
    %9261 = vsyncpa [#allocation10], 1
    %9262 = vsyncpa [#allocation13], 1
    %9263 = vsyncpa [#allocation5], 1
    %s9264 = scalar_lea.sflag [#allocation5], 1
    %9265 = vsyncpa %s9264, 1

</llo_original>
